<compile_context>
chip_gen: v5e
topology: v5e:2x2
jax: 0.10.0
libtpu: 0.0.40
codegen_flags: <defaults>
</compile_context>

<pallas_src>
import numpy as np
import jax
import jax.numpy as jnp
from jax import lax
from jax.experimental import pallas as pl
from jax.experimental.pallas import tpu as pltpu


def _make_block_kernel(H, W, C, m_blk, pad_rows):
    """Builds the kernel for one batch block of m_blk = batch_block*H*W rows."""
    log2_w = W.bit_length() - 1

    def kernel(xp_ref, w1_ref, w2_ref, scale_ref, bias_ref, out_ref, ybuf_ref):
        # xp_ref:   (m_blk + 2*pad_rows, C) f32   row-flattened input + halo rows
        # w1_ref/w2_ref: (9, C, C) bf16           3x3 weights, tap-major
        # scale_ref/bias_ref: (1, C) f32          folded BN2 affine (applied twice)
        # out_ref:  (m_blk, C) f32
        # ybuf_ref: (m_blk + 2*pad_rows, C) f32   staging buffer for conv2 input
        P = pad_rows

        # Hoisted BN broadcast (used twice; JAX does not CSE broadcast_in_dim).
        scale_b = jnp.broadcast_to(scale_ref[...], (m_blk, C))
        bias_b = jnp.broadcast_to(bias_ref[...], (m_blk, C))

        # Boundary masks for the 3x3 taps, computed once from a row-index iota.
        # (H, W are powers of two; see the assert in block_forward.)
        row = lax.broadcasted_iota(jnp.int32, (m_blk, C), 0)
        w_pos = jnp.bitwise_and(row, W - 1)
        h_pos = jnp.bitwise_and(lax.shift_right_logical(row, log2_w), H - 1)
        h_ok = [(h_pos + d >= 0) & (h_pos + d < H) for d in (-1, 0, 1)]
        w_ok = [(w_pos + d >= 0) & (w_pos + d < W) for d in (-1, 0, 1)]

        def conv3x3(src_ref, w_ref):
            # Rows [P, P+m_blk) of src_ref hold the image data.  Each tap is a
            # statically shifted row-slice; boundary taps are select-masked so
            # the halo rows never need to be zeroed (select, not multiply, so
            # uninitialized halo contents are harmless).
            acc = jnp.zeros((m_blk, C), jnp.float32)
            for kh in range(3):
                for kw in range(3):
                    shift = (kh - 1) * W + (kw - 1)
                    patch = src_ref[P + shift:P + shift + m_blk, :]
                    ok = h_ok[kh] & w_ok[kw]
                    patch = jnp.where(ok, patch, 0.0).astype(jnp.bfloat16)
                    acc = acc + lax.dot(patch, w_ref[kh * 3 + kw],
                                        preferred_element_type=jnp.float32)
            return acc

        # conv1 -> bn2 -> relu
        acc1 = conv3x3(xp_ref, w1_ref)
        y1 = jnp.maximum(acc1 * scale_b + bias_b, 0.0)

        # Stage y1 for conv2's shifted reads.  Aligned store: P and m_blk are
        # multiples of 8, full lane extent of the ref; no halo zero-fill.
        ybuf_ref[P:P + m_blk, :] = y1

        # conv2 -> bn2 (again, exactly as the reference module does)
        acc2 = conv3x3(ybuf_ref, w2_ref)
        y2 = acc2 * scale_b + bias_b

        # Residual add (aligned full-tile read of the original rows) + relu.
        identity = xp_ref[P:P + m_blk, :]
        out_ref[...] = jnp.maximum(y2 + identity, 0.0)

    return kernel


def block_forward(x_nhwc, w1_hwio, w2_hwio, scale, bias, *, batch_block=None):
    """x_nhwc: (N, H, W, C) float32. Returns (N, H, W, C) float32."""
    N, H, W, C = x_nhwc.shape
    # Shift-based boundary masks assume power-of-two spatial dims.
    # TODO(synk): general H/W needs an iota div/mod or precomputed masks.
    assert (H & (H - 1)) == 0 and (W & (W - 1)) == 0, "H, W must be powers of 2"

    # batch_block = N collapses the batch into a single grid step (best for
    # single-TensorCore v5e/v6e: no per-step pipeline overhead, M = N*H*W).
    # On v7x pass batch_block = N // 2 so the "parallel" grid axis spreads the
    # batch across both TensorCores.
    if batch_block is None:
        batch_block = N
    assert N % batch_block == 0
    n_blocks = N // batch_block
    m_blk = batch_block * H * W

    # Halo rows so every 3x3 tap is a static, in-bounds row shift; rounded up
    # to a sublane multiple so the interior starts on an aligned row.
    pad_rows = ((W + 1 + 7) // 8) * 8

    x3 = x_nhwc.astype(jnp.float32).reshape(n_blocks, m_blk, C)
    xp = jnp.pad(x3, ((0, 0), (pad_rows, pad_rows), (0, 0)))
    xp = xp.reshape(n_blocks * (m_blk + 2 * pad_rows), C)

    # Weights: tap-major (9, C, C), bf16 for native MXU rate + half the DMA.
    w1 = w1_hwio.reshape(9, C, C).astype(jnp.bfloat16)
    w2 = w2_hwio.reshape(9, C, C).astype(jnp.bfloat16)
    scale2d = scale.reshape(1, C).astype(jnp.float32)
    bias2d = bias.reshape(1, C).astype(jnp.float32)

    kernel = _make_block_kernel(H, W, C, m_blk, pad_rows)

    grid_spec = pltpu.PrefetchScalarGridSpec(
        num_scalar_prefetch=0,
        grid=(n_blocks,),
        in_specs=[
            pl.BlockSpec((m_blk + 2 * pad_rows, C), lambda i: (i, 0)),
            pl.BlockSpec((9, C, C), lambda i: (0, 0, 0)),
            pl.BlockSpec((9, C, C), lambda i: (0, 0, 0)),
            pl.BlockSpec((1, C), lambda i: (0, 0)),
            pl.BlockSpec((1, C), lambda i: (0, 0)),
        ],
        out_specs=pl.BlockSpec((m_blk, C), lambda i: (i, 0)),
        scratch_shapes=[
            pltpu.VMEM((m_blk + 2 * pad_rows, C), jnp.float32),
        ],
    )

    # VMEM note (v7x, 64 MiB physical / 32 MiB scoped default): per-step
    # footprint here is ~1 MiB after (8,128) lane padding.  For real ResNet
    # channel counts, re-derive batch_block / spatial strips and set
    # vmem_limit_bytes explicitly.
    out2d = pl.pallas_call(
        kernel,
        out_shape=jax.ShapeDtypeStruct((N * H * W, C), jnp.float32),
        grid_spec=grid_spec,
        compiler_params=pltpu.CompilerParams(
            dimension_semantics=("parallel",)),
    )(xp, w1, w2, scale2d, bias2d)

    return out2d.reshape(N, H, W, C)


def reference_forward(x_nhwc, w1_hwio, w2_hwio, scale, bias):
    """Pure-XLA reference mirroring the kernel numerics (bf16 matmul inputs,
    f32 accumulation), NHWC layout."""
    dn = ('NHWC', 'HWIO', 'NHWC')
    w1b = w1_hwio.astype(jnp.bfloat16)
    w2b = w2_hwio.astype(jnp.bfloat16)
    y = lax.conv_general_dilated(x_nhwc.astype(jnp.bfloat16), w1b, (1, 1),
                                 'SAME', dimension_numbers=dn,
                                 preferred_element_type=jnp.float32)
    y = jnp.maximum(y * scale + bias, 0.0)
    y = lax.conv_general_dilated(y.astype(jnp.bfloat16), w2b, (1, 1),
                                 'SAME', dimension_numbers=dn,
                                 preferred_element_type=jnp.float32)
    y = y * scale + bias
    return jnp.maximum(y + x_nhwc, 0.0)


if __name__ == "__main__":
    # Small shapes: batch=2, channels=4 (C_in == C_out so the residual add is
    # valid), spatial 16x16, stride=1, i_downsample=None.
    N, C, H, W = 2, 4, 16, 16

    key = jax.random.PRNGKey(0)
    kx, kw1, kw2 = jax.random.split(key, 3)

    x_nchw = jax.random.normal(kx, (N, C, H, W), jnp.float32)   # PyTorch layout
    x_nhwc = jnp.transpose(x_nchw, (0, 2, 3, 1))                # kernel layout

    # Conv weights (HWIO), deterministic.
    w1 = 0.1 * jax.random.normal(kw1, (3, 3, C, C), jnp.float32)
    w2 = 0.1 * jax.random.normal(kw2, (3, 3, C, C), jnp.float32)

    # BatchNorm2 parameters (used for BOTH BN applications, per the reference
    # module), folded into scale/bias using running statistics.
    eps = 1e-5
    gamma = 1.0 + 0.1 * jnp.arange(C, dtype=jnp.float32)
    beta = 0.01 * jnp.arange(C, dtype=jnp.float32)
    running_mean = 0.05 * jnp.arange(C, dtype=jnp.float32)
    running_var = 1.0 + 0.02 * jnp.arange(C, dtype=jnp.float32)
    scale = gamma / jnp.sqrt(running_var + eps)
    bias = beta - running_mean * scale

    out = block_forward(x_nhwc, w1, w2, scale, bias)
    out = jax.block_until_ready(out)

    ref = reference_forward(x_nhwc, w1, w2, scale, bias)
    np.testing.assert_allclose(np.asarray(out), np.asarray(ref),
                               rtol=2e-3, atol=2e-3)

    print("KERNEL_OK")
</pallas_src>

<mosaic_0001>
module attributes {stable_mosaic.version = 11 : i64} {
  func.func @kernel(%arg0: i32, %arg1: memref<560x4xf32, #tpu.memory_space<vmem>>, %arg2: memref<9x4x4xbf16, #tpu.memory_space<vmem>>, %arg3: memref<9x4x4xbf16, #tpu.memory_space<vmem>>, %arg4: memref<1x4xf32, #tpu.memory_space<vmem>>, %arg5: memref<1x4xf32, #tpu.memory_space<vmem>>, %arg6: memref<512x4xf32, #tpu.memory_space<vmem>>, %arg7: memref<560x4xf32, #tpu.memory_space<vmem>>) attributes {dimension_semantics = [#tpu.dimension_semantics<parallel>], iteration_bounds = array<i64: 1>, scalar_prefetch = 0 : i64, scratch_operands = 1 : i64, tpu.core_type = #tpu.core_type<tc>, window_params = [{transform_indices = @transform_0, window_bounds = array<i64: 560, 4>}, {pipeline_mode = #tpu.pipeline_mode<synchronous>, transform_indices = @transform_1, window_bounds = array<i64: 9, 4, 4>}, {pipeline_mode = #tpu.pipeline_mode<synchronous>, transform_indices = @transform_2, window_bounds = array<i64: 9, 4, 4>}, {pipeline_mode = #tpu.pipeline_mode<synchronous>, transform_indices = @transform_3, window_bounds = array<i64: 1, 4>}, {pipeline_mode = #tpu.pipeline_mode<synchronous>, transform_indices = @transform_4, window_bounds = array<i64: 1, 4>}, {transform_indices = @transform_5, window_bounds = array<i64: 512, 4>}]} {
    %c0 = arith.constant 0 : index
    %c0_0 = arith.constant 0 : index
    %0 = vector.load %arg4[%c0, %c0_0] : memref<1x4xf32, #tpu.memory_space<vmem>>, vector<1x4xf32>
    %1 = vector.shape_cast %0 : vector<1x4xf32> to vector<1x4xf32>
    %2 = vector.broadcast %1 : vector<1x4xf32> to vector<512x4xf32>
    %c0_1 = arith.constant 0 : index
    %c0_2 = arith.constant 0 : index
    %3 = vector.load %arg5[%c0_1, %c0_2] : memref<1x4xf32, #tpu.memory_space<vmem>>, vector<1x4xf32>
    %4 = vector.shape_cast %3 : vector<1x4xf32> to vector<1x4xf32>
    %5 = vector.broadcast %4 : vector<1x4xf32> to vector<512x4xf32>
    %6 = tpu.iota {dimensions = array<i32: 0>} : vector<512x4xi32>
    %c15_i32 = arith.constant 15 : i32
    %7 = vector.broadcast %c15_i32 : i32 to vector<512x4xi32>
    %8 = arith.andi %6, %7 : vector<512x4xi32>
    %c4_i32 = arith.constant 4 : i32
    %9 = vector.broadcast %c4_i32 : i32 to vector<512x4xi32>
    %10 = arith.shrui %6, %9 : vector<512x4xi32>
    %c15_i32_3 = arith.constant 15 : i32
    %11 = vector.broadcast %c15_i32_3 : i32 to vector<512x4xi32>
    %12 = arith.andi %10, %11 : vector<512x4xi32>
    %c-1_i32 = arith.constant -1 : i32
    %13 = vector.broadcast %c-1_i32 : i32 to vector<512x4xi32>
    %14 = arith.addi %12, %13 : vector<512x4xi32>
    %c0_i32 = arith.constant 0 : i32
    %15 = vector.broadcast %c0_i32 : i32 to vector<512x4xi32>
    %16 = arith.cmpi sge, %14, %15 : vector<512x4xi32>
    %c-1_i32_4 = arith.constant -1 : i32
    %17 = vector.broadcast %c-1_i32_4 : i32 to vector<512x4xi32>
    %18 = arith.addi %12, %17 : vector<512x4xi32>
    %c16_i32 = arith.constant 16 : i32
    %19 = vector.broadcast %c16_i32 : i32 to vector<512x4xi32>
    %20 = arith.cmpi slt, %18, %19 : vector<512x4xi32>
    %21 = arith.andi %16, %20 : vector<512x4xi1>
    %c0_i32_5 = arith.constant 0 : i32
    %22 = vector.broadcast %c0_i32_5 : i32 to vector<512x4xi32>
    %23 = arith.addi %12, %22 : vector<512x4xi32>
    %c0_i32_6 = arith.constant 0 : i32
    %24 = vector.broadcast %c0_i32_6 : i32 to vector<512x4xi32>
    %25 = arith.cmpi sge, %23, %24 : vector<512x4xi32>
    %c0_i32_7 = arith.constant 0 : i32
    %26 = vector.broadcast %c0_i32_7 : i32 to vector<512x4xi32>
    %27 = arith.addi %12, %26 : vector<512x4xi32>
    %c16_i32_8 = arith.constant 16 : i32
    %28 = vector.broadcast %c16_i32_8 : i32 to vector<512x4xi32>
    %29 = arith.cmpi slt, %27, %28 : vector<512x4xi32>
    %30 = arith.andi %25, %29 : vector<512x4xi1>
    %c1_i32 = arith.constant 1 : i32
    %31 = vector.broadcast %c1_i32 : i32 to vector<512x4xi32>
    %32 = arith.addi %12, %31 : vector<512x4xi32>
    %c0_i32_9 = arith.constant 0 : i32
    %33 = vector.broadcast %c0_i32_9 : i32 to vector<512x4xi32>
    %34 = arith.cmpi sge, %32, %33 : vector<512x4xi32>
    %c1_i32_10 = arith.constant 1 : i32
    %35 = vector.broadcast %c1_i32_10 : i32 to vector<512x4xi32>
    %36 = arith.addi %12, %35 : vector<512x4xi32>
    %c16_i32_11 = arith.constant 16 : i32
    %37 = vector.broadcast %c16_i32_11 : i32 to vector<512x4xi32>
    %38 = arith.cmpi slt, %36, %37 : vector<512x4xi32>
    %39 = arith.andi %34, %38 : vector<512x4xi1>
    %c-1_i32_12 = arith.constant -1 : i32
    %40 = vector.broadcast %c-1_i32_12 : i32 to vector<512x4xi32>
    %41 = arith.addi %8, %40 : vector<512x4xi32>
    %c0_i32_13 = arith.constant 0 : i32
    %42 = vector.broadcast %c0_i32_13 : i32 to vector<512x4xi32>
    %43 = arith.cmpi sge, %41, %42 : vector<512x4xi32>
    %c-1_i32_14 = arith.constant -1 : i32
    %44 = vector.broadcast %c-1_i32_14 : i32 to vector<512x4xi32>
    %45 = arith.addi %8, %44 : vector<512x4xi32>
    %c16_i32_15 = arith.constant 16 : i32
    %46 = vector.broadcast %c16_i32_15 : i32 to vector<512x4xi32>
    %47 = arith.cmpi slt, %45, %46 : vector<512x4xi32>
    %48 = arith.andi %43, %47 : vector<512x4xi1>
    %c0_i32_16 = arith.constant 0 : i32
    %49 = vector.broadcast %c0_i32_16 : i32 to vector<512x4xi32>
    %50 = arith.addi %8, %49 : vector<512x4xi32>
    %c0_i32_17 = arith.constant 0 : i32
    %51 = vector.broadcast %c0_i32_17 : i32 to vector<512x4xi32>
    %52 = arith.cmpi sge, %50, %51 : vector<512x4xi32>
    %c0_i32_18 = arith.constant 0 : i32
    %53 = vector.broadcast %c0_i32_18 : i32 to vector<512x4xi32>
    %54 = arith.addi %8, %53 : vector<512x4xi32>
    %c16_i32_19 = arith.constant 16 : i32
    %55 = vector.broadcast %c16_i32_19 : i32 to vector<512x4xi32>
    %56 = arith.cmpi slt, %54, %55 : vector<512x4xi32>
    %57 = arith.andi %52, %56 : vector<512x4xi1>
    %c1_i32_20 = arith.constant 1 : i32
    %58 = vector.broadcast %c1_i32_20 : i32 to vector<512x4xi32>
    %59 = arith.addi %8, %58 : vector<512x4xi32>
    %c0_i32_21 = arith.constant 0 : i32
    %60 = vector.broadcast %c0_i32_21 : i32 to vector<512x4xi32>
    %61 = arith.cmpi sge, %59, %60 : vector<512x4xi32>
    %c1_i32_22 = arith.constant 1 : i32
    %62 = vector.broadcast %c1_i32_22 : i32 to vector<512x4xi32>
    %63 = arith.addi %8, %62 : vector<512x4xi32>
    %c16_i32_23 = arith.constant 16 : i32
    %64 = vector.broadcast %c16_i32_23 : i32 to vector<512x4xi32>
    %65 = arith.cmpi slt, %63, %64 : vector<512x4xi32>
    %66 = arith.andi %61, %65 : vector<512x4xi1>
    %cst = arith.constant 0.000000e+00 : f32
    %67 = vector.broadcast %cst : f32 to vector<512x4xf32>
    %c7 = arith.constant 7 : index
    %c0_24 = arith.constant 0 : index
    %68 = vector.load %arg1[%c7, %c0_24] : memref<560x4xf32, #tpu.memory_space<vmem>>, vector<512x4xf32>
    %69 = arith.andi %21, %48 : vector<512x4xi1>
    %cst_25 = arith.constant 0.000000e+00 : f32
    %70 = vector.broadcast %cst_25 : f32 to vector<512x4xf32>
    %71 = arith.select %69, %68, %70 : vector<512x4xi1>, vector<512x4xf32>
    %72 = arith.truncf %71 : vector<512x4xf32> to vector<512x4xbf16>
    %c0_26 = arith.constant 0 : index
    %c0_27 = arith.constant 0 : index
    %c0_28 = arith.constant 0 : index
    %73 = vector.load %arg2[%c0_26, %c0_27, %c0_28] : memref<9x4x4xbf16, #tpu.memory_space<vmem>>, vector<1x4x4xbf16>
    %74 = vector.shape_cast %73 : vector<1x4x4xbf16> to vector<4x4xbf16>
    %cst_29 = arith.constant dense<0.000000e+00> : vector<512x4xf32>
    %75 = tpu.matmul %72, %74, %cst_29 {dimension_numbers = #tpu.dot_dimension_numbers<[1], [0], [0], [1], [0, 0, 1, 1], [], []>} : vector<512x4xbf16>, vector<4x4xbf16>, vector<512x4xf32> -> vector<512x4xf32>
    %76 = arith.addf %67, %75 : vector<512x4xf32>
    %c8 = arith.constant 8 : index
    %c0_30 = arith.constant 0 : index
    %77 = vector.load %arg1[%c8, %c0_30] : memref<560x4xf32, #tpu.memory_space<vmem>>, vector<512x4xf32>
    %78 = arith.andi %21, %57 : vector<512x4xi1>
    %cst_31 = arith.constant 0.000000e+00 : f32
    %79 = vector.broadcast %cst_31 : f32 to vector<512x4xf32>
    %80 = arith.select %78, %77, %79 : vector<512x4xi1>, vector<512x4xf32>
    %81 = arith.truncf %80 : vector<512x4xf32> to vector<512x4xbf16>
    %c1 = arith.constant 1 : index
    %c0_32 = arith.constant 0 : index
    %c0_33 = arith.constant 0 : index
    %82 = vector.load %arg2[%c1, %c0_32, %c0_33] : memref<9x4x4xbf16, #tpu.memory_space<vmem>>, vector<1x4x4xbf16>
    %83 = vector.shape_cast %82 : vector<1x4x4xbf16> to vector<4x4xbf16>
    %cst_34 = arith.constant dense<0.000000e+00> : vector<512x4xf32>
    %84 = tpu.matmul %81, %83, %cst_34 {dimension_numbers = #tpu.dot_dimension_numbers<[1], [0], [0], [1], [0, 0, 1, 1], [], []>} : vector<512x4xbf16>, vector<4x4xbf16>, vector<512x4xf32> -> vector<512x4xf32>
    %85 = arith.addf %76, %84 : vector<512x4xf32>
    %c9 = arith.constant 9 : index
    %c0_35 = arith.constant 0 : index
    %86 = vector.load %arg1[%c9, %c0_35] : memref<560x4xf32, #tpu.memory_space<vmem>>, vector<512x4xf32>
    %87 = arith.andi %21, %66 : vector<512x4xi1>
    %cst_36 = arith.constant 0.000000e+00 : f32
    %88 = vector.broadcast %cst_36 : f32 to vector<512x4xf32>
    %89 = arith.select %87, %86, %88 : vector<512x4xi1>, vector<512x4xf32>
    %90 = arith.truncf %89 : vector<512x4xf32> to vector<512x4xbf16>
    %c2 = arith.constant 2 : index
    %c0_37 = arith.constant 0 : index
    %c0_38 = arith.constant 0 : index
    %91 = vector.load %arg2[%c2, %c0_37, %c0_38] : memref<9x4x4xbf16, #tpu.memory_space<vmem>>, vector<1x4x4xbf16>
    %92 = vector.shape_cast %91 : vector<1x4x4xbf16> to vector<4x4xbf16>
    %cst_39 = arith.constant dense<0.000000e+00> : vector<512x4xf32>
    %93 = tpu.matmul %90, %92, %cst_39 {dimension_numbers = #tpu.dot_dimension_numbers<[1], [0], [0], [1], [0, 0, 1, 1], [], []>} : vector<512x4xbf16>, vector<4x4xbf16>, vector<512x4xf32> -> vector<512x4xf32>
    %94 = arith.addf %85, %93 : vector<512x4xf32>
    %c23 = arith.constant 23 : index
    %c0_40 = arith.constant 0 : index
    %95 = vector.load %arg1[%c23, %c0_40] : memref<560x4xf32, #tpu.memory_space<vmem>>, vector<512x4xf32>
    %96 = arith.andi %30, %48 : vector<512x4xi1>
    %cst_41 = arith.constant 0.000000e+00 : f32
    %97 = vector.broadcast %cst_41 : f32 to vector<512x4xf32>
    %98 = arith.select %96, %95, %97 : vector<512x4xi1>, vector<512x4xf32>
    %99 = arith.truncf %98 : vector<512x4xf32> to vector<512x4xbf16>
    %c3 = arith.constant 3 : index
    %c0_42 = arith.constant 0 : index
    %c0_43 = arith.constant 0 : index
    %100 = vector.load %arg2[%c3, %c0_42, %c0_43] : memref<9x4x4xbf16, #tpu.memory_space<vmem>>, vector<1x4x4xbf16>
    %101 = vector.shape_cast %100 : vector<1x4x4xbf16> to vector<4x4xbf16>
    %cst_44 = arith.constant dense<0.000000e+00> : vector<512x4xf32>
    %102 = tpu.matmul %99, %101, %cst_44 {dimension_numbers = #tpu.dot_dimension_numbers<[1], [0], [0], [1], [0, 0, 1, 1], [], []>} : vector<512x4xbf16>, vector<4x4xbf16>, vector<512x4xf32> -> vector<512x4xf32>
    %103 = arith.addf %94, %102 : vector<512x4xf32>
    %c24 = arith.constant 24 : index
    %c0_45 = arith.constant 0 : index
    %104 = vector.load %arg1[%c24, %c0_45] : memref<560x4xf32, #tpu.memory_space<vmem>>, vector<512x4xf32>
    %105 = arith.andi %30, %57 : vector<512x4xi1>
    %cst_46 = arith.constant 0.000000e+00 : f32
    %106 = vector.broadcast %cst_46 : f32 to vector<512x4xf32>
    %107 = arith.select %105, %104, %106 : vector<512x4xi1>, vector<512x4xf32>
    %108 = arith.truncf %107 : vector<512x4xf32> to vector<512x4xbf16>
    %c4 = arith.constant 4 : index
    %c0_47 = arith.constant 0 : index
    %c0_48 = arith.constant 0 : index
    %109 = vector.load %arg2[%c4, %c0_47, %c0_48] : memref<9x4x4xbf16, #tpu.memory_space<vmem>>, vector<1x4x4xbf16>
    %110 = vector.shape_cast %109 : vector<1x4x4xbf16> to vector<4x4xbf16>
    %cst_49 = arith.constant dense<0.000000e+00> : vector<512x4xf32>
    %111 = tpu.matmul %108, %110, %cst_49 {dimension_numbers = #tpu.dot_dimension_numbers<[1], [0], [0], [1], [0, 0, 1, 1], [], []>} : vector<512x4xbf16>, vector<4x4xbf16>, vector<512x4xf32> -> vector<512x4xf32>
    %112 = arith.addf %103, %111 : vector<512x4xf32>
    %c25 = arith.constant 25 : index
    %c0_50 = arith.constant 0 : index
    %113 = vector.load %arg1[%c25, %c0_50] : memref<560x4xf32, #tpu.memory_space<vmem>>, vector<512x4xf32>
    %114 = arith.andi %30, %66 : vector<512x4xi1>
    %cst_51 = arith.constant 0.000000e+00 : f32
    %115 = vector.broadcast %cst_51 : f32 to vector<512x4xf32>
    %116 = arith.select %114, %113, %115 : vector<512x4xi1>, vector<512x4xf32>
    %117 = arith.truncf %116 : vector<512x4xf32> to vector<512x4xbf16>
    %c5 = arith.constant 5 : index
    %c0_52 = arith.constant 0 : index
    %c0_53 = arith.constant 0 : index
    %118 = vector.load %arg2[%c5, %c0_52, %c0_53] : memref<9x4x4xbf16, #tpu.memory_space<vmem>>, vector<1x4x4xbf16>
    %119 = vector.shape_cast %118 : vector<1x4x4xbf16> to vector<4x4xbf16>
    %cst_54 = arith.constant dense<0.000000e+00> : vector<512x4xf32>
    %120 = tpu.matmul %117, %119, %cst_54 {dimension_numbers = #tpu.dot_dimension_numbers<[1], [0], [0], [1], [0, 0, 1, 1], [], []>} : vector<512x4xbf16>, vector<4x4xbf16>, vector<512x4xf32> -> vector<512x4xf32>
    %121 = arith.addf %112, %120 : vector<512x4xf32>
    %c39 = arith.constant 39 : index
    %c0_55 = arith.constant 0 : index
    %122 = vector.load %arg1[%c39, %c0_55] : memref<560x4xf32, #tpu.memory_space<vmem>>, vector<512x4xf32>
    %123 = arith.andi %39, %48 : vector<512x4xi1>
    %cst_56 = arith.constant 0.000000e+00 : f32
    %124 = vector.broadcast %cst_56 : f32 to vector<512x4xf32>
    %125 = arith.select %123, %122, %124 : vector<512x4xi1>, vector<512x4xf32>
    %126 = arith.truncf %125 : vector<512x4xf32> to vector<512x4xbf16>
    %c6 = arith.constant 6 : index
    %c0_57 = arith.constant 0 : index
    %c0_58 = arith.constant 0 : index
    %127 = vector.load %arg2[%c6, %c0_57, %c0_58] : memref<9x4x4xbf16, #tpu.memory_space<vmem>>, vector<1x4x4xbf16>
    %128 = vector.shape_cast %127 : vector<1x4x4xbf16> to vector<4x4xbf16>
    %cst_59 = arith.constant dense<0.000000e+00> : vector<512x4xf32>
    %129 = tpu.matmul %126, %128, %cst_59 {dimension_numbers = #tpu.dot_dimension_numbers<[1], [0], [0], [1], [0, 0, 1, 1], [], []>} : vector<512x4xbf16>, vector<4x4xbf16>, vector<512x4xf32> -> vector<512x4xf32>
    %130 = arith.addf %121, %129 : vector<512x4xf32>
    %c40 = arith.constant 40 : index
    %c0_60 = arith.constant 0 : index
    %131 = vector.load %arg1[%c40, %c0_60] : memref<560x4xf32, #tpu.memory_space<vmem>>, vector<512x4xf32>
    %132 = arith.andi %39, %57 : vector<512x4xi1>
    %cst_61 = arith.constant 0.000000e+00 : f32
    %133 = vector.broadcast %cst_61 : f32 to vector<512x4xf32>
    %134 = arith.select %132, %131, %133 : vector<512x4xi1>, vector<512x4xf32>
    %135 = arith.truncf %134 : vector<512x4xf32> to vector<512x4xbf16>
    %c7_62 = arith.constant 7 : index
    %c0_63 = arith.constant 0 : index
    %c0_64 = arith.constant 0 : index
    %136 = vector.load %arg2[%c7_62, %c0_63, %c0_64] : memref<9x4x4xbf16, #tpu.memory_space<vmem>>, vector<1x4x4xbf16>
    %137 = vector.shape_cast %136 : vector<1x4x4xbf16> to vector<4x4xbf16>
    %cst_65 = arith.constant dense<0.000000e+00> : vector<512x4xf32>
    %138 = tpu.matmul %135, %137, %cst_65 {dimension_numbers = #tpu.dot_dimension_numbers<[1], [0], [0], [1], [0, 0, 1, 1], [], []>} : vector<512x4xbf16>, vector<4x4xbf16>, vector<512x4xf32> -> vector<512x4xf32>
    %139 = arith.addf %130, %138 : vector<512x4xf32>
    %c41 = arith.constant 41 : index
    %c0_66 = arith.constant 0 : index
    %140 = vector.load %arg1[%c41, %c0_66] : memref<560x4xf32, #tpu.memory_space<vmem>>, vector<512x4xf32>
    %141 = arith.andi %39, %66 : vector<512x4xi1>
    %cst_67 = arith.constant 0.000000e+00 : f32
    %142 = vector.broadcast %cst_67 : f32 to vector<512x4xf32>
    %143 = arith.select %141, %140, %142 : vector<512x4xi1>, vector<512x4xf32>
    %144 = arith.truncf %143 : vector<512x4xf32> to vector<512x4xbf16>
    %c8_68 = arith.constant 8 : index
    %c0_69 = arith.constant 0 : index
    %c0_70 = arith.constant 0 : index
    %145 = vector.load %arg2[%c8_68, %c0_69, %c0_70] : memref<9x4x4xbf16, #tpu.memory_space<vmem>>, vector<1x4x4xbf16>
    %146 = vector.shape_cast %145 : vector<1x4x4xbf16> to vector<4x4xbf16>
    %cst_71 = arith.constant dense<0.000000e+00> : vector<512x4xf32>
    %147 = tpu.matmul %144, %146, %cst_71 {dimension_numbers = #tpu.dot_dimension_numbers<[1], [0], [0], [1], [0, 0, 1, 1], [], []>} : vector<512x4xbf16>, vector<4x4xbf16>, vector<512x4xf32> -> vector<512x4xf32>
    %148 = arith.addf %139, %147 : vector<512x4xf32>
    %149 = arith.mulf %148, %2 : vector<512x4xf32>
    %150 = arith.addf %149, %5 : vector<512x4xf32>
    %cst_72 = arith.constant 0.000000e+00 : f32
    %151 = vector.broadcast %cst_72 : f32 to vector<512x4xf32>
    %152 = arith.maximumf %150, %151 : vector<512x4xf32>
    %c24_73 = arith.constant 24 : index
    %c0_74 = arith.constant 0 : index
    %153 = vector.load %arg7[%c24_73, %c0_74] : memref<560x4xf32, #tpu.memory_space<vmem>>, vector<512x4xf32>
    tpu.vector_store %arg7[%c24_73, %c0_74], %152 {strides = array<i32>} : memref<560x4xf32, #tpu.memory_space<vmem>>, vector<512x4xf32>,
    %cst_75 = arith.constant 0.000000e+00 : f32
    %154 = vector.broadcast %cst_75 : f32 to vector<512x4xf32>
    %c7_76 = arith.constant 7 : index
    %c0_77 = arith.constant 0 : index
    %155 = vector.load %arg7[%c7_76, %c0_77] : memref<560x4xf32, #tpu.memory_space<vmem>>, vector<512x4xf32>
    %156 = arith.andi %21, %48 : vector<512x4xi1>
    %cst_78 = arith.constant 0.000000e+00 : f32
    %157 = vector.broadcast %cst_78 : f32 to vector<512x4xf32>
    %158 = arith.select %156, %155, %157 : vector<512x4xi1>, vector<512x4xf32>
    %159 = arith.truncf %158 : vector<512x4xf32> to vector<512x4xbf16>
    %c0_79 = arith.constant 0 : index
    %c0_80 = arith.constant 0 : index
    %c0_81 = arith.constant 0 : index
    %160 = vector.load %arg3[%c0_79, %c0_80, %c0_81] : memref<9x4x4xbf16, #tpu.memory_space<vmem>>, vector<1x4x4xbf16>
    %161 = vector.shape_cast %160 : vector<1x4x4xbf16> to vector<4x4xbf16>
    %cst_82 = arith.constant dense<0.000000e+00> : vector<512x4xf32>
    %162 = tpu.matmul %159, %161, %cst_82 {dimension_numbers = #tpu.dot_dimension_numbers<[1], [0], [0], [1], [0, 0, 1, 1], [], []>} : vector<512x4xbf16>, vector<4x4xbf16>, vector<512x4xf32> -> vector<512x4xf32>
    %163 = arith.addf %154, %162 : vector<512x4xf32>
    %c8_83 = arith.constant 8 : index
    %c0_84 = arith.constant 0 : index
    %164 = vector.load %arg7[%c8_83, %c0_84] : memref<560x4xf32, #tpu.memory_space<vmem>>, vector<512x4xf32>
    %165 = arith.andi %21, %57 : vector<512x4xi1>
    %cst_85 = arith.constant 0.000000e+00 : f32
    %166 = vector.broadcast %cst_85 : f32 to vector<512x4xf32>
    %167 = arith.select %165, %164, %166 : vector<512x4xi1>, vector<512x4xf32>
    %168 = arith.truncf %167 : vector<512x4xf32> to vector<512x4xbf16>
    %c1_86 = arith.constant 1 : index
    %c0_87 = arith.constant 0 : index
    %c0_88 = arith.constant 0 : index
    %169 = vector.load %arg3[%c1_86, %c0_87, %c0_88] : memref<9x4x4xbf16, #tpu.memory_space<vmem>>, vector<1x4x4xbf16>
    %170 = vector.shape_cast %169 : vector<1x4x4xbf16> to vector<4x4xbf16>
    %cst_89 = arith.constant dense<0.000000e+00> : vector<512x4xf32>
    %171 = tpu.matmul %168, %170, %cst_89 {dimension_numbers = #tpu.dot_dimension_numbers<[1], [0], [0], [1], [0, 0, 1, 1], [], []>} : vector<512x4xbf16>, vector<4x4xbf16>, vector<512x4xf32> -> vector<512x4xf32>
    %172 = arith.addf %163, %171 : vector<512x4xf32>
    %c9_90 = arith.constant 9 : index
    %c0_91 = arith.constant 0 : index
    %173 = vector.load %arg7[%c9_90, %c0_91] : memref<560x4xf32, #tpu.memory_space<vmem>>, vector<512x4xf32>
    %174 = arith.andi %21, %66 : vector<512x4xi1>
    %cst_92 = arith.constant 0.000000e+00 : f32
    %175 = vector.broadcast %cst_92 : f32 to vector<512x4xf32>
    %176 = arith.select %174, %173, %175 : vector<512x4xi1>, vector<512x4xf32>
    %177 = arith.truncf %176 : vector<512x4xf32> to vector<512x4xbf16>
    %c2_93 = arith.constant 2 : index
    %c0_94 = arith.constant 0 : index
    %c0_95 = arith.constant 0 : index
    %178 = vector.load %arg3[%c2_93, %c0_94, %c0_95] : memref<9x4x4xbf16, #tpu.memory_space<vmem>>, vector<1x4x4xbf16>
    %179 = vector.shape_cast %178 : vector<1x4x4xbf16> to vector<4x4xbf16>
    %cst_96 = arith.constant dense<0.000000e+00> : vector<512x4xf32>
    %180 = tpu.matmul %177, %179, %cst_96 {dimension_numbers = #tpu.dot_dimension_numbers<[1], [0], [0], [1], [0, 0, 1, 1], [], []>} : vector<512x4xbf16>, vector<4x4xbf16>, vector<512x4xf32> -> vector<512x4xf32>
    %181 = arith.addf %172, %180 : vector<512x4xf32>
    %c23_97 = arith.constant 23 : index
    %c0_98 = arith.constant 0 : index
    %182 = vector.load %arg7[%c23_97, %c0_98] : memref<560x4xf32, #tpu.memory_space<vmem>>, vector<512x4xf32>
    %183 = arith.andi %30, %48 : vector<512x4xi1>
    %cst_99 = arith.constant 0.000000e+00 : f32
    %184 = vector.broadcast %cst_99 : f32 to vector<512x4xf32>
    %185 = arith.select %183, %182, %184 : vector<512x4xi1>, vector<512x4xf32>
    %186 = arith.truncf %185 : vector<512x4xf32> to vector<512x4xbf16>
    %c3_100 = arith.constant 3 : index
    %c0_101 = arith.constant 0 : index
    %c0_102 = arith.constant 0 : index
    %187 = vector.load %arg3[%c3_100, %c0_101, %c0_102] : memref<9x4x4xbf16, #tpu.memory_space<vmem>>, vector<1x4x4xbf16>
    %188 = vector.shape_cast %187 : vector<1x4x4xbf16> to vector<4x4xbf16>
    %cst_103 = arith.constant dense<0.000000e+00> : vector<512x4xf32>
    %189 = tpu.matmul %186, %188, %cst_103 {dimension_numbers = #tpu.dot_dimension_numbers<[1], [0], [0], [1], [0, 0, 1, 1], [], []>} : vector<512x4xbf16>, vector<4x4xbf16>, vector<512x4xf32> -> vector<512x4xf32>
    %190 = arith.addf %181, %189 : vector<512x4xf32>
    %c24_104 = arith.constant 24 : index
    %c0_105 = arith.constant 0 : index
    %191 = vector.load %arg7[%c24_104, %c0_105] : memref<560x4xf32, #tpu.memory_space<vmem>>, vector<512x4xf32>
    %192 = arith.andi %30, %57 : vector<512x4xi1>
    %cst_106 = arith.constant 0.000000e+00 : f32
    %193 = vector.broadcast %cst_106 : f32 to vector<512x4xf32>
    %194 = arith.select %192, %191, %193 : vector<512x4xi1>, vector<512x4xf32>
    %195 = arith.truncf %194 : vector<512x4xf32> to vector<512x4xbf16>
    %c4_107 = arith.constant 4 : index
    %c0_108 = arith.constant 0 : index
    %c0_109 = arith.constant 0 : index
    %196 = vector.load %arg3[%c4_107, %c0_108, %c0_109] : memref<9x4x4xbf16, #tpu.memory_space<vmem>>, vector<1x4x4xbf16>
    %197 = vector.shape_cast %196 : vector<1x4x4xbf16> to vector<4x4xbf16>
    %cst_110 = arith.constant dense<0.000000e+00> : vector<512x4xf32>
    %198 = tpu.matmul %195, %197, %cst_110 {dimension_numbers = #tpu.dot_dimension_numbers<[1], [0], [0], [1], [0, 0, 1, 1], [], []>} : vector<512x4xbf16>, vector<4x4xbf16>, vector<512x4xf32> -> vector<512x4xf32>
    %199 = arith.addf %190, %198 : vector<512x4xf32>
    %c25_111 = arith.constant 25 : index
    %c0_112 = arith.constant 0 : index
    %200 = vector.load %arg7[%c25_111, %c0_112] : memref<560x4xf32, #tpu.memory_space<vmem>>, vector<512x4xf32>
    %201 = arith.andi %30, %66 : vector<512x4xi1>
    %cst_113 = arith.constant 0.000000e+00 : f32
    %202 = vector.broadcast %cst_113 : f32 to vector<512x4xf32>
    %203 = arith.select %201, %200, %202 : vector<512x4xi1>, vector<512x4xf32>
    %204 = arith.truncf %203 : vector<512x4xf32> to vector<512x4xbf16>
    %c5_114 = arith.constant 5 : index
    %c0_115 = arith.constant 0 : index
    %c0_116 = arith.constant 0 : index
    %205 = vector.load %arg3[%c5_114, %c0_115, %c0_116] : memref<9x4x4xbf16, #tpu.memory_space<vmem>>, vector<1x4x4xbf16>
    %206 = vector.shape_cast %205 : vector<1x4x4xbf16> to vector<4x4xbf16>
    %cst_117 = arith.constant dense<0.000000e+00> : vector<512x4xf32>
    %207 = tpu.matmul %204, %206, %cst_117 {dimension_numbers = #tpu.dot_dimension_numbers<[1], [0], [0], [1], [0, 0, 1, 1], [], []>} : vector<512x4xbf16>, vector<4x4xbf16>, vector<512x4xf32> -> vector<512x4xf32>
    %208 = arith.addf %199, %207 : vector<512x4xf32>
    %c39_118 = arith.constant 39 : index
    %c0_119 = arith.constant 0 : index
    %209 = vector.load %arg7[%c39_118, %c0_119] : memref<560x4xf32, #tpu.memory_space<vmem>>, vector<512x4xf32>
    %210 = arith.andi %39, %48 : vector<512x4xi1>
    %cst_120 = arith.constant 0.000000e+00 : f32
    %211 = vector.broadcast %cst_120 : f32 to vector<512x4xf32>
    %212 = arith.select %210, %209, %211 : vector<512x4xi1>, vector<512x4xf32>
    %213 = arith.truncf %212 : vector<512x4xf32> to vector<512x4xbf16>
    %c6_121 = arith.constant 6 : index
    %c0_122 = arith.constant 0 : index
    %c0_123 = arith.constant 0 : index
    %214 = vector.load %arg3[%c6_121, %c0_122, %c0_123] : memref<9x4x4xbf16, #tpu.memory_space<vmem>>, vector<1x4x4xbf16>
    %215 = vector.shape_cast %214 : vector<1x4x4xbf16> to vector<4x4xbf16>
    %cst_124 = arith.constant dense<0.000000e+00> : vector<512x4xf32>
    %216 = tpu.matmul %213, %215, %cst_124 {dimension_numbers = #tpu.dot_dimension_numbers<[1], [0], [0], [1], [0, 0, 1, 1], [], []>} : vector<512x4xbf16>, vector<4x4xbf16>, vector<512x4xf32> -> vector<512x4xf32>
    %217 = arith.addf %208, %216 : vector<512x4xf32>
    %c40_125 = arith.constant 40 : index
    %c0_126 = arith.constant 0 : index
    %218 = vector.load %arg7[%c40_125, %c0_126] : memref<560x4xf32, #tpu.memory_space<vmem>>, vector<512x4xf32>
    %219 = arith.andi %39, %57 : vector<512x4xi1>
    %cst_127 = arith.constant 0.000000e+00 : f32
    %220 = vector.broadcast %cst_127 : f32 to vector<512x4xf32>
    %221 = arith.select %219, %218, %220 : vector<512x4xi1>, vector<512x4xf32>
    %222 = arith.truncf %221 : vector<512x4xf32> to vector<512x4xbf16>
    %c7_128 = arith.constant 7 : index
    %c0_129 = arith.constant 0 : index
    %c0_130 = arith.constant 0 : index
    %223 = vector.load %arg3[%c7_128, %c0_129, %c0_130] : memref<9x4x4xbf16, #tpu.memory_space<vmem>>, vector<1x4x4xbf16>
    %224 = vector.shape_cast %223 : vector<1x4x4xbf16> to vector<4x4xbf16>
    %cst_131 = arith.constant dense<0.000000e+00> : vector<512x4xf32>
    %225 = tpu.matmul %222, %224, %cst_131 {dimension_numbers = #tpu.dot_dimension_numbers<[1], [0], [0], [1], [0, 0, 1, 1], [], []>} : vector<512x4xbf16>, vector<4x4xbf16>, vector<512x4xf32> -> vector<512x4xf32>
    %226 = arith.addf %217, %225 : vector<512x4xf32>
    %c41_132 = arith.constant 41 : index
    %c0_133 = arith.constant 0 : index
    %227 = vector.load %arg7[%c41_132, %c0_133] : memref<560x4xf32, #tpu.memory_space<vmem>>, vector<512x4xf32>
    %228 = arith.andi %39, %66 : vector<512x4xi1>
    %cst_134 = arith.constant 0.000000e+00 : f32
    %229 = vector.broadcast %cst_134 : f32 to vector<512x4xf32>
    %230 = arith.select %228, %227, %229 : vector<512x4xi1>, vector<512x4xf32>
    %231 = arith.truncf %230 : vector<512x4xf32> to vector<512x4xbf16>
    %c8_135 = arith.constant 8 : index
    %c0_136 = arith.constant 0 : index
    %c0_137 = arith.constant 0 : index
    %232 = vector.load %arg3[%c8_135, %c0_136, %c0_137] : memref<9x4x4xbf16, #tpu.memory_space<vmem>>, vector<1x4x4xbf16>
    %233 = vector.shape_cast %232 : vector<1x4x4xbf16> to vector<4x4xbf16>
    %cst_138 = arith.constant dense<0.000000e+00> : vector<512x4xf32>
    %234 = tpu.matmul %231, %233, %cst_138 {dimension_numbers = #tpu.dot_dimension_numbers<[1], [0], [0], [1], [0, 0, 1, 1], [], []>} : vector<512x4xbf16>, vector<4x4xbf16>, vector<512x4xf32> -> vector<512x4xf32>
    %235 = arith.addf %226, %234 : vector<512x4xf32>
    %236 = arith.mulf %235, %2 : vector<512x4xf32>
    %237 = arith.addf %236, %5 : vector<512x4xf32>
    %c24_139 = arith.constant 24 : index
    %c0_140 = arith.constant 0 : index
    %238 = vector.load %arg1[%c24_139, %c0_140] : memref<560x4xf32, #tpu.memory_space<vmem>>, vector<512x4xf32>
    %239 = arith.addf %237, %238 : vector<512x4xf32>
    %cst_141 = arith.constant 0.000000e+00 : f32
    %240 = vector.broadcast %cst_141 : f32 to vector<512x4xf32>
    %241 = arith.maximumf %239, %240 : vector<512x4xf32>
    %c0_142 = arith.constant 0 : index
    %c0_143 = arith.constant 0 : index
    %242 = vector.load %arg6[%c0_142, %c0_143] : memref<512x4xf32, #tpu.memory_space<vmem>>, vector<512x4xf32>
    tpu.vector_store %arg6[%c0_142, %c0_143], %241 {strides = array<i32>} : memref<512x4xf32, #tpu.memory_space<vmem>>, vector<512x4xf32>,
    return
  }
  func.func @transform_0(%arg0: i32) -> (i32, i32) {
    %c0_i32 = arith.constant 0 : i32
    %c0_i32_0 = arith.constant 0 : i32
    return %arg0, %c0_i32 : i32, i32
  }
  func.func @transform_1(%arg0: i32) -> (i32, i32, i32) {
    %c0_i32 = arith.constant 0 : i32
    %c0_i32_0 = arith.constant 0 : i32
    %c0_i32_1 = arith.constant 0 : i32
    %c0_i32_2 = arith.constant 0 : i32
    return %c0_i32, %c0_i32_0, %c0_i32_1 : i32, i32, i32
  }
  func.func @transform_2(%arg0: i32) -> (i32, i32, i32) {
    %c0_i32 = arith.constant 0 : i32
    %c0_i32_0 = arith.constant 0 : i32
    %c0_i32_1 = arith.constant 0 : i32
    %c0_i32_2 = arith.constant 0 : i32
    return %c0_i32, %c0_i32_0, %c0_i32_1 : i32, i32, i32
  }
  func.func @transform_3(%arg0: i32) -> (i32, i32) {
    %c0_i32 = arith.constant 0 : i32
    %c0_i32_0 = arith.constant 0 : i32
    %c0_i32_1 = arith.constant 0 : i32
    return %c0_i32, %c0_i32_0 : i32, i32
  }
  func.func @transform_4(%arg0: i32) -> (i32, i32) {
    %c0_i32 = arith.constant 0 : i32
    %c0_i32_0 = arith.constant 0 : i32
    %c0_i32_1 = arith.constant 0 : i32
    return %c0_i32, %c0_i32_0 : i32, i32
  }
  func.func @transform_5(%arg0: i32) -> (i32, i32) {
    %c0_i32 = arith.constant 0 : i32
    %c0_i32_0 = arith.constant 0 : i32
    return %arg0, %c0_i32 : i32, i32
  }
}

</mosaic_0001>

<llo_original>
// kernel: tpu_custom_call.1
$region0: #{tpu_custom_call.1}
  #allocation0 [shape = 'u32[]', space=smem, size = 0x4, offset = 0x4, fixed_abs, tag = 'smem constant byte address 0x4 - core index']
  #allocation1 [shape = 'u32[72,128]{1,0:T(1,128)}', space=vmem, size = 0x9000, scoped, tag = 'internal scratch']
  #allocation2 [shape = 'f32[560,4]{1,0:T(8,128)}', space=vmem, size = 0x46000, scoped, tag = 'scratch operand']
  %s0 = inlined_call_operand.vmem [shape: f32[560,4], index: 0, kind: input, shape index: {}]
  %s1 = inlined_call_operand.vmem [shape: bf16[9,4,4], index: 1, kind: input, shape index: {}]
  %s2 = inlined_call_operand.vmem [shape: bf16[9,4,4], index: 2, kind: input, shape index: {}]
  %s3 = inlined_call_operand.vmem [shape: f32[1,4], index: 3, kind: input, shape index: {}]
  %s4 = inlined_call_operand.vmem [shape: f32[1,4], index: 4, kind: input, shape index: {}]
  %s5 = inlined_call_operand.vmem [shape: f32[512,4], index: 5, kind: output, shape index: {}]
  %s6 = sld [smem:[#allocation0]]
  $region30: #{tpu_custom_call.1} parent=0
    _
  %s8 = ssub.s32 1, %s6
  %s9 = scalar_select 0, %s8, %s6
  // Predicated region
  $region2: #{tpu_custom_call.1} parent=0 // pred_check
    _
  $region3: #{tpu_custom_call.1} parent=0 // pred_check_branch
    %11 = sbr.rel (0) target = $region5
  $region4: #{tpu_custom_call.1} parent=0 // pred_region
    _
  $region5: #{tpu_custom_call.1} parent=0 // pred_fallthru
    _
  // Predicated region
  $region6: #{tpu_custom_call.1} parent=0 // pred_check
    _
  $region7: #{tpu_custom_call.1} parent=0 // pred_check_branch
    %13 = sbr.rel (0) target = $region9
  $region8: #{tpu_custom_call.1} parent=0 // pred_region
    _
  $region9: #{tpu_custom_call.1} parent=0 // pred_fallthru
    _
  // Predicated region
  $region10: #{tpu_custom_call.1} parent=0 // pred_check
    _
  $region11: #{tpu_custom_call.1} parent=0 // pred_check_branch
    %15 = sbr.rel (0) target = $region13
  $region12: #{tpu_custom_call.1} parent=0 // pred_region
    _
  $region13: #{tpu_custom_call.1} parent=0 // pred_fallthru
    _
  // Predicated region
  $region14: #{tpu_custom_call.1} parent=0 // pred_check
    _
  $region15: #{tpu_custom_call.1} parent=0 // pred_check_branch
    %17 = sbr.rel (0) target = $region17
  $region16: #{tpu_custom_call.1} parent=0 // pred_region
    _
  $region17: #{tpu_custom_call.1} parent=0 // pred_fallthru
    _
  // Predicated region
  $region18: #{tpu_custom_call.1} parent=0 // pred_check
    _
  $region19: #{tpu_custom_call.1} parent=0 // pred_check_branch
    %19 = sbr.rel (0) target = $region21
  $region20: #{tpu_custom_call.1} parent=0 // pred_region
    _
  $region21: #{tpu_custom_call.1} parent=0 // pred_fallthru
    _
  %v21 = vld [vmem:[%s3] sm:$0x1]
  %v23 = vperm.slane %v21, 0
  %v25 = vld [vmem:[%s4] sm:$0x1]
  %v27 = vperm.slane %v25, 0
  %v29 = vlaneseq
  %v30 = vshrl.u32 %v29, 7
  %v31 = vadd.s32 %v30, 8
  %v32 = vadd.s32 %v30, 16
  %v33 = vadd.s32 %v30, 24
  %v34 = vadd.s32 %v30, 32
  %v35 = vadd.s32 %v30, 40
  %v36 = vadd.s32 %v30, 48
  %v37 = vadd.s32 %v30, 56
  %v38 = vadd.s32 %v30, 64
  %v39 = vadd.s32 %v30, 72
  %v40 = vadd.s32 %v30, 80
  %v41 = vadd.s32 %v30, 88
  %v42 = vadd.s32 %v30, 96
  %v43 = vadd.s32 %v30, 104
  %v44 = vadd.s32 %v30, 112
  %v45 = vadd.s32 %v30, 120
  %v46 = vadd.s32 %v30, 128
  %v47 = vadd.s32 %v30, 136
  %v48 = vadd.s32 %v30, 144
  %v49 = vadd.s32 %v30, 152
  %v50 = vadd.s32 %v30, 160
  %v51 = vadd.s32 %v30, 168
  %v52 = vadd.s32 %v30, 176
  %v53 = vadd.s32 %v30, 184
  %v54 = vadd.s32 %v30, 192
  %v55 = vadd.s32 %v30, 200
  %v56 = vadd.s32 %v30, 208
  %v57 = vadd.s32 %v30, 216
  %v58 = vadd.s32 %v30, 224
  %v59 = vadd.s32 %v30, 232
  %v60 = vadd.s32 %v30, 240
  %v61 = vadd.s32 %v30, 248
  %v62 = vadd.s32 %v30, 256
  %v63 = vadd.s32 %v30, 264
  %v64 = vadd.s32 %v30, 272
  %v65 = vadd.s32 %v30, 280
  %v66 = vadd.s32 %v30, 288
  %v67 = vadd.s32 %v30, 296
  %v68 = vadd.s32 %v30, 304
  %v69 = vadd.s32 %v30, 312
  %v70 = vadd.s32 %v30, 320
  %v71 = vadd.s32 %v30, 328
  %v72 = vadd.s32 %v30, 336
  %v73 = vadd.s32 %v30, 344
  %v74 = vadd.s32 %v30, 352
  %v75 = vadd.s32 %v30, 360
  %v76 = vadd.s32 %v30, 368
  %v77 = vadd.s32 %v30, 376
  %v78 = vadd.s32 %v30, 384
  %v79 = vadd.s32 %v30, 392
  %v80 = vadd.s32 %v30, 400
  %v81 = vadd.s32 %v30, 408
  %v82 = vadd.s32 %v30, 416
  %v83 = vadd.s32 %v30, 424
  %v84 = vadd.s32 %v30, 432
  %v85 = vadd.s32 %v30, 440
  %v86 = vadd.s32 %v30, 448
  %v87 = vadd.s32 %v30, 456
  %v88 = vadd.s32 %v30, 464
  %v89 = vadd.s32 %v30, 472
  %v90 = vadd.s32 %v30, 480
  %v91 = vadd.s32 %v30, 488
  %v92 = vadd.s32 %v30, 496
  %v93 = vadd.s32 %v30, 504
  %v94 = vand.u32 %v30, 15
  %v95 = vand.u32 %v31, 15
  %v96 = vand.u32 %v32, 15
  %v97 = vand.u32 %v33, 15
  %v98 = vand.u32 %v34, 15
  %v99 = vand.u32 %v35, 15
  %v100 = vand.u32 %v36, 15
  %v101 = vand.u32 %v37, 15
  %v102 = vand.u32 %v38, 15
  %v103 = vand.u32 %v39, 15
  %v104 = vand.u32 %v40, 15
  %v105 = vand.u32 %v41, 15
  %v106 = vand.u32 %v42, 15
  %v107 = vand.u32 %v43, 15
  %v108 = vand.u32 %v44, 15
  %v109 = vand.u32 %v45, 15
  %v110 = vand.u32 %v46, 15
  %v111 = vand.u32 %v47, 15
  %v112 = vand.u32 %v48, 15
  %v113 = vand.u32 %v49, 15
  %v114 = vand.u32 %v50, 15
  %v115 = vand.u32 %v51, 15
  %v116 = vand.u32 %v52, 15
  %v117 = vand.u32 %v53, 15
  %v118 = vand.u32 %v54, 15
  %v119 = vand.u32 %v55, 15
  %v120 = vand.u32 %v56, 15
  %v121 = vand.u32 %v57, 15
  %v122 = vand.u32 %v58, 15
  %v123 = vand.u32 %v59, 15
  %v124 = vand.u32 %v60, 15
  %v125 = vand.u32 %v61, 15
  %v126 = vand.u32 %v62, 15
  %v127 = vand.u32 %v63, 15
  %v128 = vand.u32 %v64, 15
  %v129 = vand.u32 %v65, 15
  %v130 = vand.u32 %v66, 15
  %v131 = vand.u32 %v67, 15
  %v132 = vand.u32 %v68, 15
  %v133 = vand.u32 %v69, 15
  %v134 = vand.u32 %v70, 15
  %v135 = vand.u32 %v71, 15
  %v136 = vand.u32 %v72, 15
  %v137 = vand.u32 %v73, 15
  %v138 = vand.u32 %v74, 15
  %v139 = vand.u32 %v75, 15
  %v140 = vand.u32 %v76, 15
  %v141 = vand.u32 %v77, 15
  %v142 = vand.u32 %v78, 15
  %v143 = vand.u32 %v79, 15
  %v144 = vand.u32 %v80, 15
  %v145 = vand.u32 %v81, 15
  %v146 = vand.u32 %v82, 15
  %v147 = vand.u32 %v83, 15
  %v148 = vand.u32 %v84, 15
  %v149 = vand.u32 %v85, 15
  %v150 = vand.u32 %v86, 15
  %v151 = vand.u32 %v87, 15
  %v152 = vand.u32 %v88, 15
  %v153 = vand.u32 %v89, 15
  %v154 = vand.u32 %v90, 15
  %v155 = vand.u32 %v91, 15
  %v156 = vand.u32 %v92, 15
  %v157 = vand.u32 %v93, 15
  %v158 = vshrl.u32 %v30, 4
  %v159 = vshrl.u32 %v31, 4
  %v160 = vshrl.u32 %v32, 4
  %v161 = vshrl.u32 %v33, 4
  %v162 = vshrl.u32 %v34, 4
  %v163 = vshrl.u32 %v35, 4
  %v164 = vshrl.u32 %v36, 4
  %v165 = vshrl.u32 %v37, 4
  %v166 = vshrl.u32 %v38, 4
  %v167 = vshrl.u32 %v39, 4
  %v168 = vshrl.u32 %v40, 4
  %v169 = vshrl.u32 %v41, 4
  %v170 = vshrl.u32 %v42, 4
  %v171 = vshrl.u32 %v43, 4
  %v172 = vshrl.u32 %v44, 4
  %v173 = vshrl.u32 %v45, 4
  %v174 = vshrl.u32 %v46, 4
  %v175 = vshrl.u32 %v47, 4
  %v176 = vshrl.u32 %v48, 4
  %v177 = vshrl.u32 %v49, 4
  %v178 = vshrl.u32 %v50, 4
  %v179 = vshrl.u32 %v51, 4
  %v180 = vshrl.u32 %v52, 4
  %v181 = vshrl.u32 %v53, 4
  %v182 = vshrl.u32 %v54, 4
  %v183 = vshrl.u32 %v55, 4
  %v184 = vshrl.u32 %v56, 4
  %v185 = vshrl.u32 %v57, 4
  %v186 = vshrl.u32 %v58, 4
  %v187 = vshrl.u32 %v59, 4
  %v188 = vshrl.u32 %v60, 4
  %v189 = vshrl.u32 %v61, 4
  %v190 = vshrl.u32 %v62, 4
  %v191 = vshrl.u32 %v63, 4
  %v192 = vshrl.u32 %v64, 4
  %v193 = vshrl.u32 %v65, 4
  %v194 = vshrl.u32 %v66, 4
  %v195 = vshrl.u32 %v67, 4
  %v196 = vshrl.u32 %v68, 4
  %v197 = vshrl.u32 %v69, 4
  %v198 = vshrl.u32 %v70, 4
  %v199 = vshrl.u32 %v71, 4
  %v200 = vshrl.u32 %v72, 4
  %v201 = vshrl.u32 %v73, 4
  %v202 = vshrl.u32 %v74, 4
  %v203 = vshrl.u32 %v75, 4
  %v204 = vshrl.u32 %v76, 4
  %v205 = vshrl.u32 %v77, 4
  %v206 = vshrl.u32 %v78, 4
  %v207 = vshrl.u32 %v79, 4
  %v208 = vshrl.u32 %v80, 4
  %v209 = vshrl.u32 %v81, 4
  %v210 = vshrl.u32 %v82, 4
  %v211 = vshrl.u32 %v83, 4
  %v212 = vshrl.u32 %v84, 4
  %v213 = vshrl.u32 %v85, 4
  %v214 = vshrl.u32 %v86, 4
  %v215 = vshrl.u32 %v87, 4
  %v216 = vshrl.u32 %v88, 4
  %v217 = vshrl.u32 %v89, 4
  %v218 = vshrl.u32 %v90, 4
  %v219 = vshrl.u32 %v91, 4
  %v220 = vshrl.u32 %v92, 4
  %v221 = vshrl.u32 %v93, 4
  %v222 = vand.u32 %v158, 15
  %v223 = vand.u32 %v159, 15
  %v224 = vand.u32 %v160, 15
  %v225 = vand.u32 %v161, 15
  %v226 = vand.u32 %v162, 15
  %v227 = vand.u32 %v163, 15
  %v228 = vand.u32 %v164, 15
  %v229 = vand.u32 %v165, 15
  %v230 = vand.u32 %v166, 15
  %v231 = vand.u32 %v167, 15
  %v232 = vand.u32 %v168, 15
  %v233 = vand.u32 %v169, 15
  %v234 = vand.u32 %v170, 15
  %v235 = vand.u32 %v171, 15
  %v236 = vand.u32 %v172, 15
  %v237 = vand.u32 %v173, 15
  %v238 = vand.u32 %v174, 15
  %v239 = vand.u32 %v175, 15
  %v240 = vand.u32 %v176, 15
  %v241 = vand.u32 %v177, 15
  %v242 = vand.u32 %v178, 15
  %v243 = vand.u32 %v179, 15
  %v244 = vand.u32 %v180, 15
  %v245 = vand.u32 %v181, 15
  %v246 = vand.u32 %v182, 15
  %v247 = vand.u32 %v183, 15
  %v248 = vand.u32 %v184, 15
  %v249 = vand.u32 %v185, 15
  %v250 = vand.u32 %v186, 15
  %v251 = vand.u32 %v187, 15
  %v252 = vand.u32 %v188, 15
  %v253 = vand.u32 %v189, 15
  %v254 = vand.u32 %v190, 15
  %v255 = vand.u32 %v191, 15
  %v256 = vand.u32 %v192, 15
  %v257 = vand.u32 %v193, 15
  %v258 = vand.u32 %v194, 15
  %v259 = vand.u32 %v195, 15
  %v260 = vand.u32 %v196, 15
  %v261 = vand.u32 %v197, 15
  %v262 = vand.u32 %v198, 15
  %v263 = vand.u32 %v199, 15
  %v264 = vand.u32 %v200, 15
  %v265 = vand.u32 %v201, 15
  %v266 = vand.u32 %v202, 15
  %v267 = vand.u32 %v203, 15
  %v268 = vand.u32 %v204, 15
  %v269 = vand.u32 %v205, 15
  %v270 = vand.u32 %v206, 15
  %v271 = vand.u32 %v207, 15
  %v272 = vand.u32 %v208, 15
  %v273 = vand.u32 %v209, 15
  %v274 = vand.u32 %v210, 15
  %v275 = vand.u32 %v211, 15
  %v276 = vand.u32 %v212, 15
  %v277 = vand.u32 %v213, 15
  %v278 = vand.u32 %v214, 15
  %v279 = vand.u32 %v215, 15
  %v280 = vand.u32 %v216, 15
  %v281 = vand.u32 %v217, 15
  %v282 = vand.u32 %v218, 15
  %v283 = vand.u32 %v219, 15
  %v284 = vand.u32 %v220, 15
  %v285 = vand.u32 %v221, 15
  %v286 = vadd.s32 %v222, 4294967295
  %v287 = vadd.s32 %v223, 4294967295
  %v288 = vadd.s32 %v224, 4294967295
  %v289 = vadd.s32 %v225, 4294967295
  %v290 = vadd.s32 %v226, 4294967295
  %v291 = vadd.s32 %v227, 4294967295
  %v292 = vadd.s32 %v228, 4294967295
  %v293 = vadd.s32 %v229, 4294967295
  %v294 = vadd.s32 %v230, 4294967295
  %v295 = vadd.s32 %v231, 4294967295
  %v296 = vadd.s32 %v232, 4294967295
  %v297 = vadd.s32 %v233, 4294967295
  %v298 = vadd.s32 %v234, 4294967295
  %v299 = vadd.s32 %v235, 4294967295
  %v300 = vadd.s32 %v236, 4294967295
  %v301 = vadd.s32 %v237, 4294967295
  %v302 = vadd.s32 %v238, 4294967295
  %v303 = vadd.s32 %v239, 4294967295
  %v304 = vadd.s32 %v240, 4294967295
  %v305 = vadd.s32 %v241, 4294967295
  %v306 = vadd.s32 %v242, 4294967295
  %v307 = vadd.s32 %v243, 4294967295
  %v308 = vadd.s32 %v244, 4294967295
  %v309 = vadd.s32 %v245, 4294967295
  %v310 = vadd.s32 %v246, 4294967295
  %v311 = vadd.s32 %v247, 4294967295
  %v312 = vadd.s32 %v248, 4294967295
  %v313 = vadd.s32 %v249, 4294967295
  %v314 = vadd.s32 %v250, 4294967295
  %v315 = vadd.s32 %v251, 4294967295
  %v316 = vadd.s32 %v252, 4294967295
  %v317 = vadd.s32 %v253, 4294967295
  %v318 = vadd.s32 %v254, 4294967295
  %v319 = vadd.s32 %v255, 4294967295
  %v320 = vadd.s32 %v256, 4294967295
  %v321 = vadd.s32 %v257, 4294967295
  %v322 = vadd.s32 %v258, 4294967295
  %v323 = vadd.s32 %v259, 4294967295
  %v324 = vadd.s32 %v260, 4294967295
  %v325 = vadd.s32 %v261, 4294967295
  %v326 = vadd.s32 %v262, 4294967295
  %v327 = vadd.s32 %v263, 4294967295
  %v328 = vadd.s32 %v264, 4294967295
  %v329 = vadd.s32 %v265, 4294967295
  %v330 = vadd.s32 %v266, 4294967295
  %v331 = vadd.s32 %v267, 4294967295
  %v332 = vadd.s32 %v268, 4294967295
  %v333 = vadd.s32 %v269, 4294967295
  %v334 = vadd.s32 %v270, 4294967295
  %v335 = vadd.s32 %v271, 4294967295
  %v336 = vadd.s32 %v272, 4294967295
  %v337 = vadd.s32 %v273, 4294967295
  %v338 = vadd.s32 %v274, 4294967295
  %v339 = vadd.s32 %v275, 4294967295
  %v340 = vadd.s32 %v276, 4294967295
  %v341 = vadd.s32 %v277, 4294967295
  %v342 = vadd.s32 %v278, 4294967295
  %v343 = vadd.s32 %v279, 4294967295
  %v344 = vadd.s32 %v280, 4294967295
  %v345 = vadd.s32 %v281, 4294967295
  %v346 = vadd.s32 %v282, 4294967295
  %v347 = vadd.s32 %v283, 4294967295
  %v348 = vadd.s32 %v284, 4294967295
  %v349 = vadd.s32 %v285, 4294967295
  %vm350 = vcmp.ge.s32.totalorder %v286, 0
  %vm351 = vcmp.ge.s32.totalorder %v287, 0
  %vm352 = vcmp.ge.s32.totalorder %v288, 0
  %vm353 = vcmp.ge.s32.totalorder %v289, 0
  %vm354 = vcmp.ge.s32.totalorder %v290, 0
  %vm355 = vcmp.ge.s32.totalorder %v291, 0
  %vm356 = vcmp.ge.s32.totalorder %v292, 0
  %vm357 = vcmp.ge.s32.totalorder %v293, 0
  %vm358 = vcmp.ge.s32.totalorder %v294, 0
  %vm359 = vcmp.ge.s32.totalorder %v295, 0
  %vm360 = vcmp.ge.s32.totalorder %v296, 0
  %vm361 = vcmp.ge.s32.totalorder %v297, 0
  %vm362 = vcmp.ge.s32.totalorder %v298, 0
  %vm363 = vcmp.ge.s32.totalorder %v299, 0
  %vm364 = vcmp.ge.s32.totalorder %v300, 0
  %vm365 = vcmp.ge.s32.totalorder %v301, 0
  %vm366 = vcmp.ge.s32.totalorder %v302, 0
  %vm367 = vcmp.ge.s32.totalorder %v303, 0
  %vm368 = vcmp.ge.s32.totalorder %v304, 0
  %vm369 = vcmp.ge.s32.totalorder %v305, 0
  %vm370 = vcmp.ge.s32.totalorder %v306, 0
  %vm371 = vcmp.ge.s32.totalorder %v307, 0
  %vm372 = vcmp.ge.s32.totalorder %v308, 0
  %vm373 = vcmp.ge.s32.totalorder %v309, 0
  %vm374 = vcmp.ge.s32.totalorder %v310, 0
  %vm375 = vcmp.ge.s32.totalorder %v311, 0
  %vm376 = vcmp.ge.s32.totalorder %v312, 0
  %vm377 = vcmp.ge.s32.totalorder %v313, 0
  %vm378 = vcmp.ge.s32.totalorder %v314, 0
  %vm379 = vcmp.ge.s32.totalorder %v315, 0
  %vm380 = vcmp.ge.s32.totalorder %v316, 0
  %vm381 = vcmp.ge.s32.totalorder %v317, 0
  %vm382 = vcmp.ge.s32.totalorder %v318, 0
  %vm383 = vcmp.ge.s32.totalorder %v319, 0
  %vm384 = vcmp.ge.s32.totalorder %v320, 0
  %vm385 = vcmp.ge.s32.totalorder %v321, 0
  %vm386 = vcmp.ge.s32.totalorder %v322, 0
  %vm387 = vcmp.ge.s32.totalorder %v323, 0
  %vm388 = vcmp.ge.s32.totalorder %v324, 0
  %vm389 = vcmp.ge.s32.totalorder %v325, 0
  %vm390 = vcmp.ge.s32.totalorder %v326, 0
  %vm391 = vcmp.ge.s32.totalorder %v327, 0
  %vm392 = vcmp.ge.s32.totalorder %v328, 0
  %vm393 = vcmp.ge.s32.totalorder %v329, 0
  %vm394 = vcmp.ge.s32.totalorder %v330, 0
  %vm395 = vcmp.ge.s32.totalorder %v331, 0
  %vm396 = vcmp.ge.s32.totalorder %v332, 0
  %vm397 = vcmp.ge.s32.totalorder %v333, 0
  %vm398 = vcmp.ge.s32.totalorder %v334, 0
  %vm399 = vcmp.ge.s32.totalorder %v335, 0
  %vm400 = vcmp.ge.s32.totalorder %v336, 0
  %vm401 = vcmp.ge.s32.totalorder %v337, 0
  %vm402 = vcmp.ge.s32.totalorder %v338, 0
  %vm403 = vcmp.ge.s32.totalorder %v339, 0
  %vm404 = vcmp.ge.s32.totalorder %v340, 0
  %vm405 = vcmp.ge.s32.totalorder %v341, 0
  %vm406 = vcmp.ge.s32.totalorder %v342, 0
  %vm407 = vcmp.ge.s32.totalorder %v343, 0
  %vm408 = vcmp.ge.s32.totalorder %v344, 0
  %vm409 = vcmp.ge.s32.totalorder %v345, 0
  %vm410 = vcmp.ge.s32.totalorder %v346, 0
  %vm411 = vcmp.ge.s32.totalorder %v347, 0
  %vm412 = vcmp.ge.s32.totalorder %v348, 0
  %vm413 = vcmp.ge.s32.totalorder %v349, 0
  %vm414 = vcmp.lt.s32.totalorder %v286, 16
  %vm415 = vcmp.lt.s32.totalorder %v287, 16
  %vm416 = vcmp.lt.s32.totalorder %v288, 16
  %vm417 = vcmp.lt.s32.totalorder %v289, 16
  %vm418 = vcmp.lt.s32.totalorder %v290, 16
  %vm419 = vcmp.lt.s32.totalorder %v291, 16
  %vm420 = vcmp.lt.s32.totalorder %v292, 16
  %vm421 = vcmp.lt.s32.totalorder %v293, 16
  %vm422 = vcmp.lt.s32.totalorder %v294, 16
  %vm423 = vcmp.lt.s32.totalorder %v295, 16
  %vm424 = vcmp.lt.s32.totalorder %v296, 16
  %vm425 = vcmp.lt.s32.totalorder %v297, 16
  %vm426 = vcmp.lt.s32.totalorder %v298, 16
  %vm427 = vcmp.lt.s32.totalorder %v299, 16
  %vm428 = vcmp.lt.s32.totalorder %v300, 16
  %vm429 = vcmp.lt.s32.totalorder %v301, 16
  %vm430 = vcmp.lt.s32.totalorder %v302, 16
  %vm431 = vcmp.lt.s32.totalorder %v303, 16
  %vm432 = vcmp.lt.s32.totalorder %v304, 16
  %vm433 = vcmp.lt.s32.totalorder %v305, 16
  %vm434 = vcmp.lt.s32.totalorder %v306, 16
  %vm435 = vcmp.lt.s32.totalorder %v307, 16
  %vm436 = vcmp.lt.s32.totalorder %v308, 16
  %vm437 = vcmp.lt.s32.totalorder %v309, 16
  %vm438 = vcmp.lt.s32.totalorder %v310, 16
  %vm439 = vcmp.lt.s32.totalorder %v311, 16
  %vm440 = vcmp.lt.s32.totalorder %v312, 16
  %vm441 = vcmp.lt.s32.totalorder %v313, 16
  %vm442 = vcmp.lt.s32.totalorder %v314, 16
  %vm443 = vcmp.lt.s32.totalorder %v315, 16
  %vm444 = vcmp.lt.s32.totalorder %v316, 16
  %vm445 = vcmp.lt.s32.totalorder %v317, 16
  %vm446 = vcmp.lt.s32.totalorder %v318, 16
  %vm447 = vcmp.lt.s32.totalorder %v319, 16
  %vm448 = vcmp.lt.s32.totalorder %v320, 16
  %vm449 = vcmp.lt.s32.totalorder %v321, 16
  %vm450 = vcmp.lt.s32.totalorder %v322, 16
  %vm451 = vcmp.lt.s32.totalorder %v323, 16
  %vm452 = vcmp.lt.s32.totalorder %v324, 16
  %vm453 = vcmp.lt.s32.totalorder %v325, 16
  %vm454 = vcmp.lt.s32.totalorder %v326, 16
  %vm455 = vcmp.lt.s32.totalorder %v327, 16
  %vm456 = vcmp.lt.s32.totalorder %v328, 16
  %vm457 = vcmp.lt.s32.totalorder %v329, 16
  %vm458 = vcmp.lt.s32.totalorder %v330, 16
  %vm459 = vcmp.lt.s32.totalorder %v331, 16
  %vm460 = vcmp.lt.s32.totalorder %v332, 16
  %vm461 = vcmp.lt.s32.totalorder %v333, 16
  %vm462 = vcmp.lt.s32.totalorder %v334, 16
  %vm463 = vcmp.lt.s32.totalorder %v335, 16
  %vm464 = vcmp.lt.s32.totalorder %v336, 16
  %vm465 = vcmp.lt.s32.totalorder %v337, 16
  %vm466 = vcmp.lt.s32.totalorder %v338, 16
  %vm467 = vcmp.lt.s32.totalorder %v339, 16
  %vm468 = vcmp.lt.s32.totalorder %v340, 16
  %vm469 = vcmp.lt.s32.totalorder %v341, 16
  %vm470 = vcmp.lt.s32.totalorder %v342, 16
  %vm471 = vcmp.lt.s32.totalorder %v343, 16
  %vm472 = vcmp.lt.s32.totalorder %v344, 16
  %vm473 = vcmp.lt.s32.totalorder %v345, 16
  %vm474 = vcmp.lt.s32.totalorder %v346, 16
  %vm475 = vcmp.lt.s32.totalorder %v347, 16
  %vm476 = vcmp.lt.s32.totalorder %v348, 16
  %vm477 = vcmp.lt.s32.totalorder %v349, 16
  %vm478 = vmand %vm350, %vm414
  %vm479 = vmand %vm351, %vm415
  %vm480 = vmand %vm352, %vm416
  %vm481 = vmand %vm353, %vm417
  %vm482 = vmand %vm354, %vm418
  %vm483 = vmand %vm355, %vm419
  %vm484 = vmand %vm356, %vm420
  %vm485 = vmand %vm357, %vm421
  %vm486 = vmand %vm358, %vm422
  %vm487 = vmand %vm359, %vm423
  %vm488 = vmand %vm360, %vm424
  %vm489 = vmand %vm361, %vm425
  %vm490 = vmand %vm362, %vm426
  %vm491 = vmand %vm363, %vm427
  %vm492 = vmand %vm364, %vm428
  %vm493 = vmand %vm365, %vm429
  %vm494 = vmand %vm366, %vm430
  %vm495 = vmand %vm367, %vm431
  %vm496 = vmand %vm368, %vm432
  %vm497 = vmand %vm369, %vm433
  %vm498 = vmand %vm370, %vm434
  %vm499 = vmand %vm371, %vm435
  %vm500 = vmand %vm372, %vm436
  %vm501 = vmand %vm373, %vm437
  %vm502 = vmand %vm374, %vm438
  %vm503 = vmand %vm375, %vm439
  %vm504 = vmand %vm376, %vm440
  %vm505 = vmand %vm377, %vm441
  %vm506 = vmand %vm378, %vm442
  %vm507 = vmand %vm379, %vm443
  %vm508 = vmand %vm380, %vm444
  %vm509 = vmand %vm381, %vm445
  %vm510 = vmand %vm382, %vm446
  %vm511 = vmand %vm383, %vm447
  %vm512 = vmand %vm384, %vm448
  %vm513 = vmand %vm385, %vm449
  %vm514 = vmand %vm386, %vm450
  %vm515 = vmand %vm387, %vm451
  %vm516 = vmand %vm388, %vm452
  %vm517 = vmand %vm389, %vm453
  %vm518 = vmand %vm390, %vm454
  %vm519 = vmand %vm391, %vm455
  %vm520 = vmand %vm392, %vm456
  %vm521 = vmand %vm393, %vm457
  %vm522 = vmand %vm394, %vm458
  %vm523 = vmand %vm395, %vm459
  %vm524 = vmand %vm396, %vm460
  %vm525 = vmand %vm397, %vm461
  %vm526 = vmand %vm398, %vm462
  %vm527 = vmand %vm399, %vm463
  %vm528 = vmand %vm400, %vm464
  %vm529 = vmand %vm401, %vm465
  %vm530 = vmand %vm402, %vm466
  %vm531 = vmand %vm403, %vm467
  %vm532 = vmand %vm404, %vm468
  %vm533 = vmand %vm405, %vm469
  %vm534 = vmand %vm406, %vm470
  %vm535 = vmand %vm407, %vm471
  %vm536 = vmand %vm408, %vm472
  %vm537 = vmand %vm409, %vm473
  %vm538 = vmand %vm410, %vm474
  %vm539 = vmand %vm411, %vm475
  %vm540 = vmand %vm412, %vm476
  %vm541 = vmand %vm413, %vm477
  %vm542 = vcmp.ge.s32.totalorder %v222, 0
  %vm543 = vcmp.ge.s32.totalorder %v223, 0
  %vm544 = vcmp.ge.s32.totalorder %v224, 0
  %vm545 = vcmp.ge.s32.totalorder %v225, 0
  %vm546 = vcmp.ge.s32.totalorder %v226, 0
  %vm547 = vcmp.ge.s32.totalorder %v227, 0
  %vm548 = vcmp.ge.s32.totalorder %v228, 0
  %vm549 = vcmp.ge.s32.totalorder %v229, 0
  %vm550 = vcmp.ge.s32.totalorder %v230, 0
  %vm551 = vcmp.ge.s32.totalorder %v231, 0
  %vm552 = vcmp.ge.s32.totalorder %v232, 0
  %vm553 = vcmp.ge.s32.totalorder %v233, 0
  %vm554 = vcmp.ge.s32.totalorder %v234, 0
  %vm555 = vcmp.ge.s32.totalorder %v235, 0
  %vm556 = vcmp.ge.s32.totalorder %v236, 0
  %vm557 = vcmp.ge.s32.totalorder %v237, 0
  %vm558 = vcmp.ge.s32.totalorder %v238, 0
  %vm559 = vcmp.ge.s32.totalorder %v239, 0
  %vm560 = vcmp.ge.s32.totalorder %v240, 0
  %vm561 = vcmp.ge.s32.totalorder %v241, 0
  %vm562 = vcmp.ge.s32.totalorder %v242, 0
  %vm563 = vcmp.ge.s32.totalorder %v243, 0
  %vm564 = vcmp.ge.s32.totalorder %v244, 0
  %vm565 = vcmp.ge.s32.totalorder %v245, 0
  %vm566 = vcmp.ge.s32.totalorder %v246, 0
  %vm567 = vcmp.ge.s32.totalorder %v247, 0
  %vm568 = vcmp.ge.s32.totalorder %v248, 0
  %vm569 = vcmp.ge.s32.totalorder %v249, 0
  %vm570 = vcmp.ge.s32.totalorder %v250, 0
  %vm571 = vcmp.ge.s32.totalorder %v251, 0
  %vm572 = vcmp.ge.s32.totalorder %v252, 0
  %vm573 = vcmp.ge.s32.totalorder %v253, 0
  %vm574 = vcmp.ge.s32.totalorder %v254, 0
  %vm575 = vcmp.ge.s32.totalorder %v255, 0
  %vm576 = vcmp.ge.s32.totalorder %v256, 0
  %vm577 = vcmp.ge.s32.totalorder %v257, 0
  %vm578 = vcmp.ge.s32.totalorder %v258, 0
  %vm579 = vcmp.ge.s32.totalorder %v259, 0
  %vm580 = vcmp.ge.s32.totalorder %v260, 0
  %vm581 = vcmp.ge.s32.totalorder %v261, 0
  %vm582 = vcmp.ge.s32.totalorder %v262, 0
  %vm583 = vcmp.ge.s32.totalorder %v263, 0
  %vm584 = vcmp.ge.s32.totalorder %v264, 0
  %vm585 = vcmp.ge.s32.totalorder %v265, 0
  %vm586 = vcmp.ge.s32.totalorder %v266, 0
  %vm587 = vcmp.ge.s32.totalorder %v267, 0
  %vm588 = vcmp.ge.s32.totalorder %v268, 0
  %vm589 = vcmp.ge.s32.totalorder %v269, 0
  %vm590 = vcmp.ge.s32.totalorder %v270, 0
  %vm591 = vcmp.ge.s32.totalorder %v271, 0
  %vm592 = vcmp.ge.s32.totalorder %v272, 0
  %vm593 = vcmp.ge.s32.totalorder %v273, 0
  %vm594 = vcmp.ge.s32.totalorder %v274, 0
  %vm595 = vcmp.ge.s32.totalorder %v275, 0
  %vm596 = vcmp.ge.s32.totalorder %v276, 0
  %vm597 = vcmp.ge.s32.totalorder %v277, 0
  %vm598 = vcmp.ge.s32.totalorder %v278, 0
  %vm599 = vcmp.ge.s32.totalorder %v279, 0
  %vm600 = vcmp.ge.s32.totalorder %v280, 0
  %vm601 = vcmp.ge.s32.totalorder %v281, 0
  %vm602 = vcmp.ge.s32.totalorder %v282, 0
  %vm603 = vcmp.ge.s32.totalorder %v283, 0
  %vm604 = vcmp.ge.s32.totalorder %v284, 0
  %vm605 = vcmp.ge.s32.totalorder %v285, 0
  %vm606 = vcmp.lt.s32.totalorder %v222, 16
  %vm607 = vcmp.lt.s32.totalorder %v223, 16
  %vm608 = vcmp.lt.s32.totalorder %v224, 16
  %vm609 = vcmp.lt.s32.totalorder %v225, 16
  %vm610 = vcmp.lt.s32.totalorder %v226, 16
  %vm611 = vcmp.lt.s32.totalorder %v227, 16
  %vm612 = vcmp.lt.s32.totalorder %v228, 16
  %vm613 = vcmp.lt.s32.totalorder %v229, 16
  %vm614 = vcmp.lt.s32.totalorder %v230, 16
  %vm615 = vcmp.lt.s32.totalorder %v231, 16
  %vm616 = vcmp.lt.s32.totalorder %v232, 16
  %vm617 = vcmp.lt.s32.totalorder %v233, 16
  %vm618 = vcmp.lt.s32.totalorder %v234, 16
  %vm619 = vcmp.lt.s32.totalorder %v235, 16
  %vm620 = vcmp.lt.s32.totalorder %v236, 16
  %vm621 = vcmp.lt.s32.totalorder %v237, 16
  %vm622 = vcmp.lt.s32.totalorder %v238, 16
  %vm623 = vcmp.lt.s32.totalorder %v239, 16
  %vm624 = vcmp.lt.s32.totalorder %v240, 16
  %vm625 = vcmp.lt.s32.totalorder %v241, 16
  %vm626 = vcmp.lt.s32.totalorder %v242, 16
  %vm627 = vcmp.lt.s32.totalorder %v243, 16
  %vm628 = vcmp.lt.s32.totalorder %v244, 16
  %vm629 = vcmp.lt.s32.totalorder %v245, 16
  %vm630 = vcmp.lt.s32.totalorder %v246, 16
  %vm631 = vcmp.lt.s32.totalorder %v247, 16
  %vm632 = vcmp.lt.s32.totalorder %v248, 16
  %vm633 = vcmp.lt.s32.totalorder %v249, 16
  %vm634 = vcmp.lt.s32.totalorder %v250, 16
  %vm635 = vcmp.lt.s32.totalorder %v251, 16
  %vm636 = vcmp.lt.s32.totalorder %v252, 16
  %vm637 = vcmp.lt.s32.totalorder %v253, 16
  %vm638 = vcmp.lt.s32.totalorder %v254, 16
  %vm639 = vcmp.lt.s32.totalorder %v255, 16
  %vm640 = vcmp.lt.s32.totalorder %v256, 16
  %vm641 = vcmp.lt.s32.totalorder %v257, 16
  %vm642 = vcmp.lt.s32.totalorder %v258, 16
  %vm643 = vcmp.lt.s32.totalorder %v259, 16
  %vm644 = vcmp.lt.s32.totalorder %v260, 16
  %vm645 = vcmp.lt.s32.totalorder %v261, 16
  %vm646 = vcmp.lt.s32.totalorder %v262, 16
  %vm647 = vcmp.lt.s32.totalorder %v263, 16
  %vm648 = vcmp.lt.s32.totalorder %v264, 16
  %vm649 = vcmp.lt.s32.totalorder %v265, 16
  %vm650 = vcmp.lt.s32.totalorder %v266, 16
  %vm651 = vcmp.lt.s32.totalorder %v267, 16
  %vm652 = vcmp.lt.s32.totalorder %v268, 16
  %vm653 = vcmp.lt.s32.totalorder %v269, 16
  %vm654 = vcmp.lt.s32.totalorder %v270, 16
  %vm655 = vcmp.lt.s32.totalorder %v271, 16
  %vm656 = vcmp.lt.s32.totalorder %v272, 16
  %vm657 = vcmp.lt.s32.totalorder %v273, 16
  %vm658 = vcmp.lt.s32.totalorder %v274, 16
  %vm659 = vcmp.lt.s32.totalorder %v275, 16
  %vm660 = vcmp.lt.s32.totalorder %v276, 16
  %vm661 = vcmp.lt.s32.totalorder %v277, 16
  %vm662 = vcmp.lt.s32.totalorder %v278, 16
  %vm663 = vcmp.lt.s32.totalorder %v279, 16
  %vm664 = vcmp.lt.s32.totalorder %v280, 16
  %vm665 = vcmp.lt.s32.totalorder %v281, 16
  %vm666 = vcmp.lt.s32.totalorder %v282, 16
  %vm667 = vcmp.lt.s32.totalorder %v283, 16
  %vm668 = vcmp.lt.s32.totalorder %v284, 16
  %vm669 = vcmp.lt.s32.totalorder %v285, 16
  %vm670 = vmand %vm542, %vm606
  %vm671 = vmand %vm543, %vm607
  %vm672 = vmand %vm544, %vm608
  %vm673 = vmand %vm545, %vm609
  %vm674 = vmand %vm546, %vm610
  %vm675 = vmand %vm547, %vm611
  %vm676 = vmand %vm548, %vm612
  %vm677 = vmand %vm549, %vm613
  %vm678 = vmand %vm550, %vm614
  %vm679 = vmand %vm551, %vm615
  %vm680 = vmand %vm552, %vm616
  %vm681 = vmand %vm553, %vm617
  %vm682 = vmand %vm554, %vm618
  %vm683 = vmand %vm555, %vm619
  %vm684 = vmand %vm556, %vm620
  %vm685 = vmand %vm557, %vm621
  %vm686 = vmand %vm558, %vm622
  %vm687 = vmand %vm559, %vm623
  %vm688 = vmand %vm560, %vm624
  %vm689 = vmand %vm561, %vm625
  %vm690 = vmand %vm562, %vm626
  %vm691 = vmand %vm563, %vm627
  %vm692 = vmand %vm564, %vm628
  %vm693 = vmand %vm565, %vm629
  %vm694 = vmand %vm566, %vm630
  %vm695 = vmand %vm567, %vm631
  %vm696 = vmand %vm568, %vm632
  %vm697 = vmand %vm569, %vm633
  %vm698 = vmand %vm570, %vm634
  %vm699 = vmand %vm571, %vm635
  %vm700 = vmand %vm572, %vm636
  %vm701 = vmand %vm573, %vm637
  %vm702 = vmand %vm574, %vm638
  %vm703 = vmand %vm575, %vm639
  %vm704 = vmand %vm576, %vm640
  %vm705 = vmand %vm577, %vm641
  %vm706 = vmand %vm578, %vm642
  %vm707 = vmand %vm579, %vm643
  %vm708 = vmand %vm580, %vm644
  %vm709 = vmand %vm581, %vm645
  %vm710 = vmand %vm582, %vm646
  %vm711 = vmand %vm583, %vm647
  %vm712 = vmand %vm584, %vm648
  %vm713 = vmand %vm585, %vm649
  %vm714 = vmand %vm586, %vm650
  %vm715 = vmand %vm587, %vm651
  %vm716 = vmand %vm588, %vm652
  %vm717 = vmand %vm589, %vm653
  %vm718 = vmand %vm590, %vm654
  %vm719 = vmand %vm591, %vm655
  %vm720 = vmand %vm592, %vm656
  %vm721 = vmand %vm593, %vm657
  %vm722 = vmand %vm594, %vm658
  %vm723 = vmand %vm595, %vm659
  %vm724 = vmand %vm596, %vm660
  %vm725 = vmand %vm597, %vm661
  %vm726 = vmand %vm598, %vm662
  %vm727 = vmand %vm599, %vm663
  %vm728 = vmand %vm600, %vm664
  %vm729 = vmand %vm601, %vm665
  %vm730 = vmand %vm602, %vm666
  %vm731 = vmand %vm603, %vm667
  %vm732 = vmand %vm604, %vm668
  %vm733 = vmand %vm605, %vm669
  %v734 = vadd.s32 %v222, 1
  %v735 = vadd.s32 %v223, 1
  %v736 = vadd.s32 %v224, 1
  %v737 = vadd.s32 %v225, 1
  %v738 = vadd.s32 %v226, 1
  %v739 = vadd.s32 %v227, 1
  %v740 = vadd.s32 %v228, 1
  %v741 = vadd.s32 %v229, 1
  %v742 = vadd.s32 %v230, 1
  %v743 = vadd.s32 %v231, 1
  %v744 = vadd.s32 %v232, 1
  %v745 = vadd.s32 %v233, 1
  %v746 = vadd.s32 %v234, 1
  %v747 = vadd.s32 %v235, 1
  %v748 = vadd.s32 %v236, 1
  %v749 = vadd.s32 %v237, 1
  %v750 = vadd.s32 %v238, 1
  %v751 = vadd.s32 %v239, 1
  %v752 = vadd.s32 %v240, 1
  %v753 = vadd.s32 %v241, 1
  %v754 = vadd.s32 %v242, 1
  %v755 = vadd.s32 %v243, 1
  %v756 = vadd.s32 %v244, 1
  %v757 = vadd.s32 %v245, 1
  %v758 = vadd.s32 %v246, 1
  %v759 = vadd.s32 %v247, 1
  %v760 = vadd.s32 %v248, 1
  %v761 = vadd.s32 %v249, 1
  %v762 = vadd.s32 %v250, 1
  %v763 = vadd.s32 %v251, 1
  %v764 = vadd.s32 %v252, 1
  %v765 = vadd.s32 %v253, 1
  %v766 = vadd.s32 %v254, 1
  %v767 = vadd.s32 %v255, 1
  %v768 = vadd.s32 %v256, 1
  %v769 = vadd.s32 %v257, 1
  %v770 = vadd.s32 %v258, 1
  %v771 = vadd.s32 %v259, 1
  %v772 = vadd.s32 %v260, 1
  %v773 = vadd.s32 %v261, 1
  %v774 = vadd.s32 %v262, 1
  %v775 = vadd.s32 %v263, 1
  %v776 = vadd.s32 %v264, 1
  %v777 = vadd.s32 %v265, 1
  %v778 = vadd.s32 %v266, 1
  %v779 = vadd.s32 %v267, 1
  %v780 = vadd.s32 %v268, 1
  %v781 = vadd.s32 %v269, 1
  %v782 = vadd.s32 %v270, 1
  %v783 = vadd.s32 %v271, 1
  %v784 = vadd.s32 %v272, 1
  %v785 = vadd.s32 %v273, 1
  %v786 = vadd.s32 %v274, 1
  %v787 = vadd.s32 %v275, 1
  %v788 = vadd.s32 %v276, 1
  %v789 = vadd.s32 %v277, 1
  %v790 = vadd.s32 %v278, 1
  %v791 = vadd.s32 %v279, 1
  %v792 = vadd.s32 %v280, 1
  %v793 = vadd.s32 %v281, 1
  %v794 = vadd.s32 %v282, 1
  %v795 = vadd.s32 %v283, 1
  %v796 = vadd.s32 %v284, 1
  %v797 = vadd.s32 %v285, 1
  %vm798 = vcmp.ge.s32.totalorder %v734, 0
  %vm799 = vcmp.ge.s32.totalorder %v735, 0
  %vm800 = vcmp.ge.s32.totalorder %v736, 0
  %vm801 = vcmp.ge.s32.totalorder %v737, 0
  %vm802 = vcmp.ge.s32.totalorder %v738, 0
  %vm803 = vcmp.ge.s32.totalorder %v739, 0
  %vm804 = vcmp.ge.s32.totalorder %v740, 0
  %vm805 = vcmp.ge.s32.totalorder %v741, 0
  %vm806 = vcmp.ge.s32.totalorder %v742, 0
  %vm807 = vcmp.ge.s32.totalorder %v743, 0
  %vm808 = vcmp.ge.s32.totalorder %v744, 0
  %vm809 = vcmp.ge.s32.totalorder %v745, 0
  %vm810 = vcmp.ge.s32.totalorder %v746, 0
  %vm811 = vcmp.ge.s32.totalorder %v747, 0
  %vm812 = vcmp.ge.s32.totalorder %v748, 0
  %vm813 = vcmp.ge.s32.totalorder %v749, 0
  %vm814 = vcmp.ge.s32.totalorder %v750, 0
  %vm815 = vcmp.ge.s32.totalorder %v751, 0
  %vm816 = vcmp.ge.s32.totalorder %v752, 0
  %vm817 = vcmp.ge.s32.totalorder %v753, 0
  %vm818 = vcmp.ge.s32.totalorder %v754, 0
  %vm819 = vcmp.ge.s32.totalorder %v755, 0
  %vm820 = vcmp.ge.s32.totalorder %v756, 0
  %vm821 = vcmp.ge.s32.totalorder %v757, 0
  %vm822 = vcmp.ge.s32.totalorder %v758, 0
  %vm823 = vcmp.ge.s32.totalorder %v759, 0
  %vm824 = vcmp.ge.s32.totalorder %v760, 0
  %vm825 = vcmp.ge.s32.totalorder %v761, 0
  %vm826 = vcmp.ge.s32.totalorder %v762, 0
  %vm827 = vcmp.ge.s32.totalorder %v763, 0
  %vm828 = vcmp.ge.s32.totalorder %v764, 0
  %vm829 = vcmp.ge.s32.totalorder %v765, 0
  %vm830 = vcmp.ge.s32.totalorder %v766, 0
  %vm831 = vcmp.ge.s32.totalorder %v767, 0
  %vm832 = vcmp.ge.s32.totalorder %v768, 0
  %vm833 = vcmp.ge.s32.totalorder %v769, 0
  %vm834 = vcmp.ge.s32.totalorder %v770, 0
  %vm835 = vcmp.ge.s32.totalorder %v771, 0
  %vm836 = vcmp.ge.s32.totalorder %v772, 0
  %vm837 = vcmp.ge.s32.totalorder %v773, 0
  %vm838 = vcmp.ge.s32.totalorder %v774, 0
  %vm839 = vcmp.ge.s32.totalorder %v775, 0
  %vm840 = vcmp.ge.s32.totalorder %v776, 0
  %vm841 = vcmp.ge.s32.totalorder %v777, 0
  %vm842 = vcmp.ge.s32.totalorder %v778, 0
  %vm843 = vcmp.ge.s32.totalorder %v779, 0
  %vm844 = vcmp.ge.s32.totalorder %v780, 0
  %vm845 = vcmp.ge.s32.totalorder %v781, 0
  %vm846 = vcmp.ge.s32.totalorder %v782, 0
  %vm847 = vcmp.ge.s32.totalorder %v783, 0
  %vm848 = vcmp.ge.s32.totalorder %v784, 0
  %vm849 = vcmp.ge.s32.totalorder %v785, 0
  %vm850 = vcmp.ge.s32.totalorder %v786, 0
  %vm851 = vcmp.ge.s32.totalorder %v787, 0
  %vm852 = vcmp.ge.s32.totalorder %v788, 0
  %vm853 = vcmp.ge.s32.totalorder %v789, 0
  %vm854 = vcmp.ge.s32.totalorder %v790, 0
  %vm855 = vcmp.ge.s32.totalorder %v791, 0
  %vm856 = vcmp.ge.s32.totalorder %v792, 0
  %vm857 = vcmp.ge.s32.totalorder %v793, 0
  %vm858 = vcmp.ge.s32.totalorder %v794, 0
  %vm859 = vcmp.ge.s32.totalorder %v795, 0
  %vm860 = vcmp.ge.s32.totalorder %v796, 0
  %vm861 = vcmp.ge.s32.totalorder %v797, 0
  %vm862 = vcmp.lt.s32.totalorder %v734, 16
  %vm863 = vcmp.lt.s32.totalorder %v735, 16
  %vm864 = vcmp.lt.s32.totalorder %v736, 16
  %vm865 = vcmp.lt.s32.totalorder %v737, 16
  %vm866 = vcmp.lt.s32.totalorder %v738, 16
  %vm867 = vcmp.lt.s32.totalorder %v739, 16
  %vm868 = vcmp.lt.s32.totalorder %v740, 16
  %vm869 = vcmp.lt.s32.totalorder %v741, 16
  %vm870 = vcmp.lt.s32.totalorder %v742, 16
  %vm871 = vcmp.lt.s32.totalorder %v743, 16
  %vm872 = vcmp.lt.s32.totalorder %v744, 16
  %vm873 = vcmp.lt.s32.totalorder %v745, 16
  %vm874 = vcmp.lt.s32.totalorder %v746, 16
  %vm875 = vcmp.lt.s32.totalorder %v747, 16
  %vm876 = vcmp.lt.s32.totalorder %v748, 16
  %vm877 = vcmp.lt.s32.totalorder %v749, 16
  %vm878 = vcmp.lt.s32.totalorder %v750, 16
  %vm879 = vcmp.lt.s32.totalorder %v751, 16
  %vm880 = vcmp.lt.s32.totalorder %v752, 16
  %vm881 = vcmp.lt.s32.totalorder %v753, 16
  %vm882 = vcmp.lt.s32.totalorder %v754, 16
  %vm883 = vcmp.lt.s32.totalorder %v755, 16
  %vm884 = vcmp.lt.s32.totalorder %v756, 16
  %vm885 = vcmp.lt.s32.totalorder %v757, 16
  %vm886 = vcmp.lt.s32.totalorder %v758, 16
  %vm887 = vcmp.lt.s32.totalorder %v759, 16
  %vm888 = vcmp.lt.s32.totalorder %v760, 16
  %vm889 = vcmp.lt.s32.totalorder %v761, 16
  %vm890 = vcmp.lt.s32.totalorder %v762, 16
  %vm891 = vcmp.lt.s32.totalorder %v763, 16
  %vm892 = vcmp.lt.s32.totalorder %v764, 16
  %vm893 = vcmp.lt.s32.totalorder %v765, 16
  %vm894 = vcmp.lt.s32.totalorder %v766, 16
  %vm895 = vcmp.lt.s32.totalorder %v767, 16
  %vm896 = vcmp.lt.s32.totalorder %v768, 16
  %vm897 = vcmp.lt.s32.totalorder %v769, 16
  %vm898 = vcmp.lt.s32.totalorder %v770, 16
  %vm899 = vcmp.lt.s32.totalorder %v771, 16
  %vm900 = vcmp.lt.s32.totalorder %v772, 16
  %vm901 = vcmp.lt.s32.totalorder %v773, 16
  %vm902 = vcmp.lt.s32.totalorder %v774, 16
  %vm903 = vcmp.lt.s32.totalorder %v775, 16
  %vm904 = vcmp.lt.s32.totalorder %v776, 16
  %vm905 = vcmp.lt.s32.totalorder %v777, 16
  %vm906 = vcmp.lt.s32.totalorder %v778, 16
  %vm907 = vcmp.lt.s32.totalorder %v779, 16
  %vm908 = vcmp.lt.s32.totalorder %v780, 16
  %vm909 = vcmp.lt.s32.totalorder %v781, 16
  %vm910 = vcmp.lt.s32.totalorder %v782, 16
  %vm911 = vcmp.lt.s32.totalorder %v783, 16
  %vm912 = vcmp.lt.s32.totalorder %v784, 16
  %vm913 = vcmp.lt.s32.totalorder %v785, 16
  %vm914 = vcmp.lt.s32.totalorder %v786, 16
  %vm915 = vcmp.lt.s32.totalorder %v787, 16
  %vm916 = vcmp.lt.s32.totalorder %v788, 16
  %vm917 = vcmp.lt.s32.totalorder %v789, 16
  %vm918 = vcmp.lt.s32.totalorder %v790, 16
  %vm919 = vcmp.lt.s32.totalorder %v791, 16
  %vm920 = vcmp.lt.s32.totalorder %v792, 16
  %vm921 = vcmp.lt.s32.totalorder %v793, 16
  %vm922 = vcmp.lt.s32.totalorder %v794, 16
  %vm923 = vcmp.lt.s32.totalorder %v795, 16
  %vm924 = vcmp.lt.s32.totalorder %v796, 16
  %vm925 = vcmp.lt.s32.totalorder %v797, 16
  %vm926 = vmand %vm798, %vm862
  %vm927 = vmand %vm799, %vm863
  %vm928 = vmand %vm800, %vm864
  %vm929 = vmand %vm801, %vm865
  %vm930 = vmand %vm802, %vm866
  %vm931 = vmand %vm803, %vm867
  %vm932 = vmand %vm804, %vm868
  %vm933 = vmand %vm805, %vm869
  %vm934 = vmand %vm806, %vm870
  %vm935 = vmand %vm807, %vm871
  %vm936 = vmand %vm808, %vm872
  %vm937 = vmand %vm809, %vm873
  %vm938 = vmand %vm810, %vm874
  %vm939 = vmand %vm811, %vm875
  %vm940 = vmand %vm812, %vm876
  %vm941 = vmand %vm813, %vm877
  %vm942 = vmand %vm814, %vm878
  %vm943 = vmand %vm815, %vm879
  %vm944 = vmand %vm816, %vm880
  %vm945 = vmand %vm817, %vm881
  %vm946 = vmand %vm818, %vm882
  %vm947 = vmand %vm819, %vm883
  %vm948 = vmand %vm820, %vm884
  %vm949 = vmand %vm821, %vm885
  %vm950 = vmand %vm822, %vm886
  %vm951 = vmand %vm823, %vm887
  %vm952 = vmand %vm824, %vm888
  %vm953 = vmand %vm825, %vm889
  %vm954 = vmand %vm826, %vm890
  %vm955 = vmand %vm827, %vm891
  %vm956 = vmand %vm828, %vm892
  %vm957 = vmand %vm829, %vm893
  %vm958 = vmand %vm830, %vm894
  %vm959 = vmand %vm831, %vm895
  %vm960 = vmand %vm832, %vm896
  %vm961 = vmand %vm833, %vm897
  %vm962 = vmand %vm834, %vm898
  %vm963 = vmand %vm835, %vm899
  %vm964 = vmand %vm836, %vm900
  %vm965 = vmand %vm837, %vm901
  %vm966 = vmand %vm838, %vm902
  %vm967 = vmand %vm839, %vm903
  %vm968 = vmand %vm840, %vm904
  %vm969 = vmand %vm841, %vm905
  %vm970 = vmand %vm842, %vm906
  %vm971 = vmand %vm843, %vm907
  %vm972 = vmand %vm844, %vm908
  %vm973 = vmand %vm845, %vm909
  %vm974 = vmand %vm846, %vm910
  %vm975 = vmand %vm847, %vm911
  %vm976 = vmand %vm848, %vm912
  %vm977 = vmand %vm849, %vm913
  %vm978 = vmand %vm850, %vm914
  %vm979 = vmand %vm851, %vm915
  %vm980 = vmand %vm852, %vm916
  %vm981 = vmand %vm853, %vm917
  %vm982 = vmand %vm854, %vm918
  %vm983 = vmand %vm855, %vm919
  %vm984 = vmand %vm856, %vm920
  %vm985 = vmand %vm857, %vm921
  %vm986 = vmand %vm858, %vm922
  %vm987 = vmand %vm859, %vm923
  %vm988 = vmand %vm860, %vm924
  %vm989 = vmand %vm861, %vm925
  %v990 = vadd.s32 %v94, 4294967295
  %v991 = vadd.s32 %v95, 4294967295
  %v992 = vadd.s32 %v96, 4294967295
  %v993 = vadd.s32 %v97, 4294967295
  %v994 = vadd.s32 %v98, 4294967295
  %v995 = vadd.s32 %v99, 4294967295
  %v996 = vadd.s32 %v100, 4294967295
  %v997 = vadd.s32 %v101, 4294967295
  %v998 = vadd.s32 %v102, 4294967295
  %v999 = vadd.s32 %v103, 4294967295
  %v1000 = vadd.s32 %v104, 4294967295
  %v1001 = vadd.s32 %v105, 4294967295
  %v1002 = vadd.s32 %v106, 4294967295
  %v1003 = vadd.s32 %v107, 4294967295
  %v1004 = vadd.s32 %v108, 4294967295
  %v1005 = vadd.s32 %v109, 4294967295
  %v1006 = vadd.s32 %v110, 4294967295
  %v1007 = vadd.s32 %v111, 4294967295
  %v1008 = vadd.s32 %v112, 4294967295
  %v1009 = vadd.s32 %v113, 4294967295
  %v1010 = vadd.s32 %v114, 4294967295
  %v1011 = vadd.s32 %v115, 4294967295
  %v1012 = vadd.s32 %v116, 4294967295
  %v1013 = vadd.s32 %v117, 4294967295
  %v1014 = vadd.s32 %v118, 4294967295
  %v1015 = vadd.s32 %v119, 4294967295
  %v1016 = vadd.s32 %v120, 4294967295
  %v1017 = vadd.s32 %v121, 4294967295
  %v1018 = vadd.s32 %v122, 4294967295
  %v1019 = vadd.s32 %v123, 4294967295
  %v1020 = vadd.s32 %v124, 4294967295
  %v1021 = vadd.s32 %v125, 4294967295
  %v1022 = vadd.s32 %v126, 4294967295
  %v1023 = vadd.s32 %v127, 4294967295
  %v1024 = vadd.s32 %v128, 4294967295
  %v1025 = vadd.s32 %v129, 4294967295
  %v1026 = vadd.s32 %v130, 4294967295
  %v1027 = vadd.s32 %v131, 4294967295
  %v1028 = vadd.s32 %v132, 4294967295
  %v1029 = vadd.s32 %v133, 4294967295
  %v1030 = vadd.s32 %v134, 4294967295
  %v1031 = vadd.s32 %v135, 4294967295
  %v1032 = vadd.s32 %v136, 4294967295
  %v1033 = vadd.s32 %v137, 4294967295
  %v1034 = vadd.s32 %v138, 4294967295
  %v1035 = vadd.s32 %v139, 4294967295
  %v1036 = vadd.s32 %v140, 4294967295
  %v1037 = vadd.s32 %v141, 4294967295
  %v1038 = vadd.s32 %v142, 4294967295
  %v1039 = vadd.s32 %v143, 4294967295
  %v1040 = vadd.s32 %v144, 4294967295
  %v1041 = vadd.s32 %v145, 4294967295
  %v1042 = vadd.s32 %v146, 4294967295
  %v1043 = vadd.s32 %v147, 4294967295
  %v1044 = vadd.s32 %v148, 4294967295
  %v1045 = vadd.s32 %v149, 4294967295
  %v1046 = vadd.s32 %v150, 4294967295
  %v1047 = vadd.s32 %v151, 4294967295
  %v1048 = vadd.s32 %v152, 4294967295
  %v1049 = vadd.s32 %v153, 4294967295
  %v1050 = vadd.s32 %v154, 4294967295
  %v1051 = vadd.s32 %v155, 4294967295
  %v1052 = vadd.s32 %v156, 4294967295
  %v1053 = vadd.s32 %v157, 4294967295
  %vm1054 = vcmp.ge.s32.totalorder %v990, 0
  %vm1055 = vcmp.ge.s32.totalorder %v991, 0
  %vm1056 = vcmp.ge.s32.totalorder %v992, 0
  %vm1057 = vcmp.ge.s32.totalorder %v993, 0
  %vm1058 = vcmp.ge.s32.totalorder %v994, 0
  %vm1059 = vcmp.ge.s32.totalorder %v995, 0
  %vm1060 = vcmp.ge.s32.totalorder %v996, 0
  %vm1061 = vcmp.ge.s32.totalorder %v997, 0
  %vm1062 = vcmp.ge.s32.totalorder %v998, 0
  %vm1063 = vcmp.ge.s32.totalorder %v999, 0
  %vm1064 = vcmp.ge.s32.totalorder %v1000, 0
  %vm1065 = vcmp.ge.s32.totalorder %v1001, 0
  %vm1066 = vcmp.ge.s32.totalorder %v1002, 0
  %vm1067 = vcmp.ge.s32.totalorder %v1003, 0
  %vm1068 = vcmp.ge.s32.totalorder %v1004, 0
  %vm1069 = vcmp.ge.s32.totalorder %v1005, 0
  %vm1070 = vcmp.ge.s32.totalorder %v1006, 0
  %vm1071 = vcmp.ge.s32.totalorder %v1007, 0
  %vm1072 = vcmp.ge.s32.totalorder %v1008, 0
  %vm1073 = vcmp.ge.s32.totalorder %v1009, 0
  %vm1074 = vcmp.ge.s32.totalorder %v1010, 0
  %vm1075 = vcmp.ge.s32.totalorder %v1011, 0
  %vm1076 = vcmp.ge.s32.totalorder %v1012, 0
  %vm1077 = vcmp.ge.s32.totalorder %v1013, 0
  %vm1078 = vcmp.ge.s32.totalorder %v1014, 0
  %vm1079 = vcmp.ge.s32.totalorder %v1015, 0
  %vm1080 = vcmp.ge.s32.totalorder %v1016, 0
  %vm1081 = vcmp.ge.s32.totalorder %v1017, 0
  %vm1082 = vcmp.ge.s32.totalorder %v1018, 0
  %vm1083 = vcmp.ge.s32.totalorder %v1019, 0
  %vm1084 = vcmp.ge.s32.totalorder %v1020, 0
  %vm1085 = vcmp.ge.s32.totalorder %v1021, 0
  %vm1086 = vcmp.ge.s32.totalorder %v1022, 0
  %vm1087 = vcmp.ge.s32.totalorder %v1023, 0
  %vm1088 = vcmp.ge.s32.totalorder %v1024, 0
  %vm1089 = vcmp.ge.s32.totalorder %v1025, 0
  %vm1090 = vcmp.ge.s32.totalorder %v1026, 0
  %vm1091 = vcmp.ge.s32.totalorder %v1027, 0
  %vm1092 = vcmp.ge.s32.totalorder %v1028, 0
  %vm1093 = vcmp.ge.s32.totalorder %v1029, 0
  %vm1094 = vcmp.ge.s32.totalorder %v1030, 0
  %vm1095 = vcmp.ge.s32.totalorder %v1031, 0
  %vm1096 = vcmp.ge.s32.totalorder %v1032, 0
  %vm1097 = vcmp.ge.s32.totalorder %v1033, 0
  %vm1098 = vcmp.ge.s32.totalorder %v1034, 0
  %vm1099 = vcmp.ge.s32.totalorder %v1035, 0
  %vm1100 = vcmp.ge.s32.totalorder %v1036, 0
  %vm1101 = vcmp.ge.s32.totalorder %v1037, 0
  %vm1102 = vcmp.ge.s32.totalorder %v1038, 0
  %vm1103 = vcmp.ge.s32.totalorder %v1039, 0
  %vm1104 = vcmp.ge.s32.totalorder %v1040, 0
  %vm1105 = vcmp.ge.s32.totalorder %v1041, 0
  %vm1106 = vcmp.ge.s32.totalorder %v1042, 0
  %vm1107 = vcmp.ge.s32.totalorder %v1043, 0
  %vm1108 = vcmp.ge.s32.totalorder %v1044, 0
  %vm1109 = vcmp.ge.s32.totalorder %v1045, 0
  %vm1110 = vcmp.ge.s32.totalorder %v1046, 0
  %vm1111 = vcmp.ge.s32.totalorder %v1047, 0
  %vm1112 = vcmp.ge.s32.totalorder %v1048, 0
  %vm1113 = vcmp.ge.s32.totalorder %v1049, 0
  %vm1114 = vcmp.ge.s32.totalorder %v1050, 0
  %vm1115 = vcmp.ge.s32.totalorder %v1051, 0
  %vm1116 = vcmp.ge.s32.totalorder %v1052, 0
  %vm1117 = vcmp.ge.s32.totalorder %v1053, 0
  %vm1118 = vcmp.lt.s32.totalorder %v990, 16
  %vm1119 = vcmp.lt.s32.totalorder %v991, 16
  %vm1120 = vcmp.lt.s32.totalorder %v992, 16
  %vm1121 = vcmp.lt.s32.totalorder %v993, 16
  %vm1122 = vcmp.lt.s32.totalorder %v994, 16
  %vm1123 = vcmp.lt.s32.totalorder %v995, 16
  %vm1124 = vcmp.lt.s32.totalorder %v996, 16
  %vm1125 = vcmp.lt.s32.totalorder %v997, 16
  %vm1126 = vcmp.lt.s32.totalorder %v998, 16
  %vm1127 = vcmp.lt.s32.totalorder %v999, 16
  %vm1128 = vcmp.lt.s32.totalorder %v1000, 16
  %vm1129 = vcmp.lt.s32.totalorder %v1001, 16
  %vm1130 = vcmp.lt.s32.totalorder %v1002, 16
  %vm1131 = vcmp.lt.s32.totalorder %v1003, 16
  %vm1132 = vcmp.lt.s32.totalorder %v1004, 16
  %vm1133 = vcmp.lt.s32.totalorder %v1005, 16
  %vm1134 = vcmp.lt.s32.totalorder %v1006, 16
  %vm1135 = vcmp.lt.s32.totalorder %v1007, 16
  %vm1136 = vcmp.lt.s32.totalorder %v1008, 16
  %vm1137 = vcmp.lt.s32.totalorder %v1009, 16
  %vm1138 = vcmp.lt.s32.totalorder %v1010, 16
  %vm1139 = vcmp.lt.s32.totalorder %v1011, 16
  %vm1140 = vcmp.lt.s32.totalorder %v1012, 16
  %vm1141 = vcmp.lt.s32.totalorder %v1013, 16
  %vm1142 = vcmp.lt.s32.totalorder %v1014, 16
  %vm1143 = vcmp.lt.s32.totalorder %v1015, 16
  %vm1144 = vcmp.lt.s32.totalorder %v1016, 16
  %vm1145 = vcmp.lt.s32.totalorder %v1017, 16
  %vm1146 = vcmp.lt.s32.totalorder %v1018, 16
  %vm1147 = vcmp.lt.s32.totalorder %v1019, 16
  %vm1148 = vcmp.lt.s32.totalorder %v1020, 16
  %vm1149 = vcmp.lt.s32.totalorder %v1021, 16
  %vm1150 = vcmp.lt.s32.totalorder %v1022, 16
  %vm1151 = vcmp.lt.s32.totalorder %v1023, 16
  %vm1152 = vcmp.lt.s32.totalorder %v1024, 16
  %vm1153 = vcmp.lt.s32.totalorder %v1025, 16
  %vm1154 = vcmp.lt.s32.totalorder %v1026, 16
  %vm1155 = vcmp.lt.s32.totalorder %v1027, 16
  %vm1156 = vcmp.lt.s32.totalorder %v1028, 16
  %vm1157 = vcmp.lt.s32.totalorder %v1029, 16
  %vm1158 = vcmp.lt.s32.totalorder %v1030, 16
  %vm1159 = vcmp.lt.s32.totalorder %v1031, 16
  %vm1160 = vcmp.lt.s32.totalorder %v1032, 16
  %vm1161 = vcmp.lt.s32.totalorder %v1033, 16
  %vm1162 = vcmp.lt.s32.totalorder %v1034, 16
  %vm1163 = vcmp.lt.s32.totalorder %v1035, 16
  %vm1164 = vcmp.lt.s32.totalorder %v1036, 16
  %vm1165 = vcmp.lt.s32.totalorder %v1037, 16
  %vm1166 = vcmp.lt.s32.totalorder %v1038, 16
  %vm1167 = vcmp.lt.s32.totalorder %v1039, 16
  %vm1168 = vcmp.lt.s32.totalorder %v1040, 16
  %vm1169 = vcmp.lt.s32.totalorder %v1041, 16
  %vm1170 = vcmp.lt.s32.totalorder %v1042, 16
  %vm1171 = vcmp.lt.s32.totalorder %v1043, 16
  %vm1172 = vcmp.lt.s32.totalorder %v1044, 16
  %vm1173 = vcmp.lt.s32.totalorder %v1045, 16
  %vm1174 = vcmp.lt.s32.totalorder %v1046, 16
  %vm1175 = vcmp.lt.s32.totalorder %v1047, 16
  %vm1176 = vcmp.lt.s32.totalorder %v1048, 16
  %vm1177 = vcmp.lt.s32.totalorder %v1049, 16
  %vm1178 = vcmp.lt.s32.totalorder %v1050, 16
  %vm1179 = vcmp.lt.s32.totalorder %v1051, 16
  %vm1180 = vcmp.lt.s32.totalorder %v1052, 16
  %vm1181 = vcmp.lt.s32.totalorder %v1053, 16
  %vm1182 = vmand %vm1054, %vm1118
  %vm1183 = vmand %vm1055, %vm1119
  %vm1184 = vmand %vm1056, %vm1120
  %vm1185 = vmand %vm1057, %vm1121
  %vm1186 = vmand %vm1058, %vm1122
  %vm1187 = vmand %vm1059, %vm1123
  %vm1188 = vmand %vm1060, %vm1124
  %vm1189 = vmand %vm1061, %vm1125
  %vm1190 = vmand %vm1062, %vm1126
  %vm1191 = vmand %vm1063, %vm1127
  %vm1192 = vmand %vm1064, %vm1128
  %vm1193 = vmand %vm1065, %vm1129
  %vm1194 = vmand %vm1066, %vm1130
  %vm1195 = vmand %vm1067, %vm1131
  %vm1196 = vmand %vm1068, %vm1132
  %vm1197 = vmand %vm1069, %vm1133
  %vm1198 = vmand %vm1070, %vm1134
  %vm1199 = vmand %vm1071, %vm1135
  %vm1200 = vmand %vm1072, %vm1136
  %vm1201 = vmand %vm1073, %vm1137
  %vm1202 = vmand %vm1074, %vm1138
  %vm1203 = vmand %vm1075, %vm1139
  %vm1204 = vmand %vm1076, %vm1140
  %vm1205 = vmand %vm1077, %vm1141
  %vm1206 = vmand %vm1078, %vm1142
  %vm1207 = vmand %vm1079, %vm1143
  %vm1208 = vmand %vm1080, %vm1144
  %vm1209 = vmand %vm1081, %vm1145
  %vm1210 = vmand %vm1082, %vm1146
  %vm1211 = vmand %vm1083, %vm1147
  %vm1212 = vmand %vm1084, %vm1148
  %vm1213 = vmand %vm1085, %vm1149
  %vm1214 = vmand %vm1086, %vm1150
  %vm1215 = vmand %vm1087, %vm1151
  %vm1216 = vmand %vm1088, %vm1152
  %vm1217 = vmand %vm1089, %vm1153
  %vm1218 = vmand %vm1090, %vm1154
  %vm1219 = vmand %vm1091, %vm1155
  %vm1220 = vmand %vm1092, %vm1156
  %vm1221 = vmand %vm1093, %vm1157
  %vm1222 = vmand %vm1094, %vm1158
  %vm1223 = vmand %vm1095, %vm1159
  %vm1224 = vmand %vm1096, %vm1160
  %vm1225 = vmand %vm1097, %vm1161
  %vm1226 = vmand %vm1098, %vm1162
  %vm1227 = vmand %vm1099, %vm1163
  %vm1228 = vmand %vm1100, %vm1164
  %vm1229 = vmand %vm1101, %vm1165
  %vm1230 = vmand %vm1102, %vm1166
  %vm1231 = vmand %vm1103, %vm1167
  %vm1232 = vmand %vm1104, %vm1168
  %vm1233 = vmand %vm1105, %vm1169
  %vm1234 = vmand %vm1106, %vm1170
  %vm1235 = vmand %vm1107, %vm1171
  %vm1236 = vmand %vm1108, %vm1172
  %vm1237 = vmand %vm1109, %vm1173
  %vm1238 = vmand %vm1110, %vm1174
  %vm1239 = vmand %vm1111, %vm1175
  %vm1240 = vmand %vm1112, %vm1176
  %vm1241 = vmand %vm1113, %vm1177
  %vm1242 = vmand %vm1114, %vm1178
  %vm1243 = vmand %vm1115, %vm1179
  %vm1244 = vmand %vm1116, %vm1180
  %vm1245 = vmand %vm1117, %vm1181
  %vm1246 = vcmp.ge.s32.totalorder %v94, 0
  %vm1247 = vcmp.ge.s32.totalorder %v95, 0
  %vm1248 = vcmp.ge.s32.totalorder %v96, 0
  %vm1249 = vcmp.ge.s32.totalorder %v97, 0
  %vm1250 = vcmp.ge.s32.totalorder %v98, 0
  %vm1251 = vcmp.ge.s32.totalorder %v99, 0
  %vm1252 = vcmp.ge.s32.totalorder %v100, 0
  %vm1253 = vcmp.ge.s32.totalorder %v101, 0
  %vm1254 = vcmp.ge.s32.totalorder %v102, 0
  %vm1255 = vcmp.ge.s32.totalorder %v103, 0
  %vm1256 = vcmp.ge.s32.totalorder %v104, 0
  %vm1257 = vcmp.ge.s32.totalorder %v105, 0
  %vm1258 = vcmp.ge.s32.totalorder %v106, 0
  %vm1259 = vcmp.ge.s32.totalorder %v107, 0
  %vm1260 = vcmp.ge.s32.totalorder %v108, 0
  %vm1261 = vcmp.ge.s32.totalorder %v109, 0
  %vm1262 = vcmp.ge.s32.totalorder %v110, 0
  %vm1263 = vcmp.ge.s32.totalorder %v111, 0
  %vm1264 = vcmp.ge.s32.totalorder %v112, 0
  %vm1265 = vcmp.ge.s32.totalorder %v113, 0
  %vm1266 = vcmp.ge.s32.totalorder %v114, 0
  %vm1267 = vcmp.ge.s32.totalorder %v115, 0
  %vm1268 = vcmp.ge.s32.totalorder %v116, 0
  %vm1269 = vcmp.ge.s32.totalorder %v117, 0
  %vm1270 = vcmp.ge.s32.totalorder %v118, 0
  %vm1271 = vcmp.ge.s32.totalorder %v119, 0
  %vm1272 = vcmp.ge.s32.totalorder %v120, 0
  %vm1273 = vcmp.ge.s32.totalorder %v121, 0
  %vm1274 = vcmp.ge.s32.totalorder %v122, 0
  %vm1275 = vcmp.ge.s32.totalorder %v123, 0
  %vm1276 = vcmp.ge.s32.totalorder %v124, 0
  %vm1277 = vcmp.ge.s32.totalorder %v125, 0
  %vm1278 = vcmp.ge.s32.totalorder %v126, 0
  %vm1279 = vcmp.ge.s32.totalorder %v127, 0
  %vm1280 = vcmp.ge.s32.totalorder %v128, 0
  %vm1281 = vcmp.ge.s32.totalorder %v129, 0
  %vm1282 = vcmp.ge.s32.totalorder %v130, 0
  %vm1283 = vcmp.ge.s32.totalorder %v131, 0
  %vm1284 = vcmp.ge.s32.totalorder %v132, 0
  %vm1285 = vcmp.ge.s32.totalorder %v133, 0
  %vm1286 = vcmp.ge.s32.totalorder %v134, 0
  %vm1287 = vcmp.ge.s32.totalorder %v135, 0
  %vm1288 = vcmp.ge.s32.totalorder %v136, 0
  %vm1289 = vcmp.ge.s32.totalorder %v137, 0
  %vm1290 = vcmp.ge.s32.totalorder %v138, 0
  %vm1291 = vcmp.ge.s32.totalorder %v139, 0
  %vm1292 = vcmp.ge.s32.totalorder %v140, 0
  %vm1293 = vcmp.ge.s32.totalorder %v141, 0
  %vm1294 = vcmp.ge.s32.totalorder %v142, 0
  %vm1295 = vcmp.ge.s32.totalorder %v143, 0
  %vm1296 = vcmp.ge.s32.totalorder %v144, 0
  %vm1297 = vcmp.ge.s32.totalorder %v145, 0
  %vm1298 = vcmp.ge.s32.totalorder %v146, 0
  %vm1299 = vcmp.ge.s32.totalorder %v147, 0
  %vm1300 = vcmp.ge.s32.totalorder %v148, 0
  %vm1301 = vcmp.ge.s32.totalorder %v149, 0
  %vm1302 = vcmp.ge.s32.totalorder %v150, 0
  %vm1303 = vcmp.ge.s32.totalorder %v151, 0
  %vm1304 = vcmp.ge.s32.totalorder %v152, 0
  %vm1305 = vcmp.ge.s32.totalorder %v153, 0
  %vm1306 = vcmp.ge.s32.totalorder %v154, 0
  %vm1307 = vcmp.ge.s32.totalorder %v155, 0
  %vm1308 = vcmp.ge.s32.totalorder %v156, 0
  %vm1309 = vcmp.ge.s32.totalorder %v157, 0
  %vm1310 = vcmp.lt.s32.totalorder %v94, 16
  %vm1311 = vcmp.lt.s32.totalorder %v95, 16
  %vm1312 = vcmp.lt.s32.totalorder %v96, 16
  %vm1313 = vcmp.lt.s32.totalorder %v97, 16
  %vm1314 = vcmp.lt.s32.totalorder %v98, 16
  %vm1315 = vcmp.lt.s32.totalorder %v99, 16
  %vm1316 = vcmp.lt.s32.totalorder %v100, 16
  %vm1317 = vcmp.lt.s32.totalorder %v101, 16
  %vm1318 = vcmp.lt.s32.totalorder %v102, 16
  %vm1319 = vcmp.lt.s32.totalorder %v103, 16
  %vm1320 = vcmp.lt.s32.totalorder %v104, 16
  %vm1321 = vcmp.lt.s32.totalorder %v105, 16
  %vm1322 = vcmp.lt.s32.totalorder %v106, 16
  %vm1323 = vcmp.lt.s32.totalorder %v107, 16
  %vm1324 = vcmp.lt.s32.totalorder %v108, 16
  %vm1325 = vcmp.lt.s32.totalorder %v109, 16
  %vm1326 = vcmp.lt.s32.totalorder %v110, 16
  %vm1327 = vcmp.lt.s32.totalorder %v111, 16
  %vm1328 = vcmp.lt.s32.totalorder %v112, 16
  %vm1329 = vcmp.lt.s32.totalorder %v113, 16
  %vm1330 = vcmp.lt.s32.totalorder %v114, 16
  %vm1331 = vcmp.lt.s32.totalorder %v115, 16
  %vm1332 = vcmp.lt.s32.totalorder %v116, 16
  %vm1333 = vcmp.lt.s32.totalorder %v117, 16
  %vm1334 = vcmp.lt.s32.totalorder %v118, 16
  %vm1335 = vcmp.lt.s32.totalorder %v119, 16
  %vm1336 = vcmp.lt.s32.totalorder %v120, 16
  %vm1337 = vcmp.lt.s32.totalorder %v121, 16
  %vm1338 = vcmp.lt.s32.totalorder %v122, 16
  %vm1339 = vcmp.lt.s32.totalorder %v123, 16
  %vm1340 = vcmp.lt.s32.totalorder %v124, 16
  %vm1341 = vcmp.lt.s32.totalorder %v125, 16
  %vm1342 = vcmp.lt.s32.totalorder %v126, 16
  %vm1343 = vcmp.lt.s32.totalorder %v127, 16
  %vm1344 = vcmp.lt.s32.totalorder %v128, 16
  %vm1345 = vcmp.lt.s32.totalorder %v129, 16
  %vm1346 = vcmp.lt.s32.totalorder %v130, 16
  %vm1347 = vcmp.lt.s32.totalorder %v131, 16
  %vm1348 = vcmp.lt.s32.totalorder %v132, 16
  %vm1349 = vcmp.lt.s32.totalorder %v133, 16
  %vm1350 = vcmp.lt.s32.totalorder %v134, 16
  %vm1351 = vcmp.lt.s32.totalorder %v135, 16
  %vm1352 = vcmp.lt.s32.totalorder %v136, 16
  %vm1353 = vcmp.lt.s32.totalorder %v137, 16
  %vm1354 = vcmp.lt.s32.totalorder %v138, 16
  %vm1355 = vcmp.lt.s32.totalorder %v139, 16
  %vm1356 = vcmp.lt.s32.totalorder %v140, 16
  %vm1357 = vcmp.lt.s32.totalorder %v141, 16
  %vm1358 = vcmp.lt.s32.totalorder %v142, 16
  %vm1359 = vcmp.lt.s32.totalorder %v143, 16
  %vm1360 = vcmp.lt.s32.totalorder %v144, 16
  %vm1361 = vcmp.lt.s32.totalorder %v145, 16
  %vm1362 = vcmp.lt.s32.totalorder %v146, 16
  %vm1363 = vcmp.lt.s32.totalorder %v147, 16
  %vm1364 = vcmp.lt.s32.totalorder %v148, 16
  %vm1365 = vcmp.lt.s32.totalorder %v149, 16
  %vm1366 = vcmp.lt.s32.totalorder %v150, 16
  %vm1367 = vcmp.lt.s32.totalorder %v151, 16
  %vm1368 = vcmp.lt.s32.totalorder %v152, 16
  %vm1369 = vcmp.lt.s32.totalorder %v153, 16
  %vm1370 = vcmp.lt.s32.totalorder %v154, 16
  %vm1371 = vcmp.lt.s32.totalorder %v155, 16
  %vm1372 = vcmp.lt.s32.totalorder %v156, 16
  %vm1373 = vcmp.lt.s32.totalorder %v157, 16
  %vm1374 = vmand %vm1246, %vm1310
  %vm1375 = vmand %vm1247, %vm1311
  %vm1376 = vmand %vm1248, %vm1312
  %vm1377 = vmand %vm1249, %vm1313
  %vm1378 = vmand %vm1250, %vm1314
  %vm1379 = vmand %vm1251, %vm1315
  %vm1380 = vmand %vm1252, %vm1316
  %vm1381 = vmand %vm1253, %vm1317
  %vm1382 = vmand %vm1254, %vm1318
  %vm1383 = vmand %vm1255, %vm1319
  %vm1384 = vmand %vm1256, %vm1320
  %vm1385 = vmand %vm1257, %vm1321
  %vm1386 = vmand %vm1258, %vm1322
  %vm1387 = vmand %vm1259, %vm1323
  %vm1388 = vmand %vm1260, %vm1324
  %vm1389 = vmand %vm1261, %vm1325
  %vm1390 = vmand %vm1262, %vm1326
  %vm1391 = vmand %vm1263, %vm1327
  %vm1392 = vmand %vm1264, %vm1328
  %vm1393 = vmand %vm1265, %vm1329
  %vm1394 = vmand %vm1266, %vm1330
  %vm1395 = vmand %vm1267, %vm1331
  %vm1396 = vmand %vm1268, %vm1332
  %vm1397 = vmand %vm1269, %vm1333
  %vm1398 = vmand %vm1270, %vm1334
  %vm1399 = vmand %vm1271, %vm1335
  %vm1400 = vmand %vm1272, %vm1336
  %vm1401 = vmand %vm1273, %vm1337
  %vm1402 = vmand %vm1274, %vm1338
  %vm1403 = vmand %vm1275, %vm1339
  %vm1404 = vmand %vm1276, %vm1340
  %vm1405 = vmand %vm1277, %vm1341
  %vm1406 = vmand %vm1278, %vm1342
  %vm1407 = vmand %vm1279, %vm1343
  %vm1408 = vmand %vm1280, %vm1344
  %vm1409 = vmand %vm1281, %vm1345
  %vm1410 = vmand %vm1282, %vm1346
  %vm1411 = vmand %vm1283, %vm1347
  %vm1412 = vmand %vm1284, %vm1348
  %vm1413 = vmand %vm1285, %vm1349
  %vm1414 = vmand %vm1286, %vm1350
  %vm1415 = vmand %vm1287, %vm1351
  %vm1416 = vmand %vm1288, %vm1352
  %vm1417 = vmand %vm1289, %vm1353
  %vm1418 = vmand %vm1290, %vm1354
  %vm1419 = vmand %vm1291, %vm1355
  %vm1420 = vmand %vm1292, %vm1356
  %vm1421 = vmand %vm1293, %vm1357
  %vm1422 = vmand %vm1294, %vm1358
  %vm1423 = vmand %vm1295, %vm1359
  %vm1424 = vmand %vm1296, %vm1360
  %vm1425 = vmand %vm1297, %vm1361
  %vm1426 = vmand %vm1298, %vm1362
  %vm1427 = vmand %vm1299, %vm1363
  %vm1428 = vmand %vm1300, %vm1364
  %vm1429 = vmand %vm1301, %vm1365
  %vm1430 = vmand %vm1302, %vm1366
  %vm1431 = vmand %vm1303, %vm1367
  %vm1432 = vmand %vm1304, %vm1368
  %vm1433 = vmand %vm1305, %vm1369
  %vm1434 = vmand %vm1306, %vm1370
  %vm1435 = vmand %vm1307, %vm1371
  %vm1436 = vmand %vm1308, %vm1372
  %vm1437 = vmand %vm1309, %vm1373
  %v1438 = vadd.s32 %v94, 1
  %v1439 = vadd.s32 %v95, 1
  %v1440 = vadd.s32 %v96, 1
  %v1441 = vadd.s32 %v97, 1
  %v1442 = vadd.s32 %v98, 1
  %v1443 = vadd.s32 %v99, 1
  %v1444 = vadd.s32 %v100, 1
  %v1445 = vadd.s32 %v101, 1
  %v1446 = vadd.s32 %v102, 1
  %v1447 = vadd.s32 %v103, 1
  %v1448 = vadd.s32 %v104, 1
  %v1449 = vadd.s32 %v105, 1
  %v1450 = vadd.s32 %v106, 1
  %v1451 = vadd.s32 %v107, 1
  %v1452 = vadd.s32 %v108, 1
  %v1453 = vadd.s32 %v109, 1
  %v1454 = vadd.s32 %v110, 1
  %v1455 = vadd.s32 %v111, 1
  %v1456 = vadd.s32 %v112, 1
  %v1457 = vadd.s32 %v113, 1
  %v1458 = vadd.s32 %v114, 1
  %v1459 = vadd.s32 %v115, 1
  %v1460 = vadd.s32 %v116, 1
  %v1461 = vadd.s32 %v117, 1
  %v1462 = vadd.s32 %v118, 1
  %v1463 = vadd.s32 %v119, 1
  %v1464 = vadd.s32 %v120, 1
  %v1465 = vadd.s32 %v121, 1
  %v1466 = vadd.s32 %v122, 1
  %v1467 = vadd.s32 %v123, 1
  %v1468 = vadd.s32 %v124, 1
  %v1469 = vadd.s32 %v125, 1
  %v1470 = vadd.s32 %v126, 1
  %v1471 = vadd.s32 %v127, 1
  %v1472 = vadd.s32 %v128, 1
  %v1473 = vadd.s32 %v129, 1
  %v1474 = vadd.s32 %v130, 1
  %v1475 = vadd.s32 %v131, 1
  %v1476 = vadd.s32 %v132, 1
  %v1477 = vadd.s32 %v133, 1
  %v1478 = vadd.s32 %v134, 1
  %v1479 = vadd.s32 %v135, 1
  %v1480 = vadd.s32 %v136, 1
  %v1481 = vadd.s32 %v137, 1
  %v1482 = vadd.s32 %v138, 1
  %v1483 = vadd.s32 %v139, 1
  %v1484 = vadd.s32 %v140, 1
  %v1485 = vadd.s32 %v141, 1
  %v1486 = vadd.s32 %v142, 1
  %v1487 = vadd.s32 %v143, 1
  %v1488 = vadd.s32 %v144, 1
  %v1489 = vadd.s32 %v145, 1
  %v1490 = vadd.s32 %v146, 1
  %v1491 = vadd.s32 %v147, 1
  %v1492 = vadd.s32 %v148, 1
  %v1493 = vadd.s32 %v149, 1
  %v1494 = vadd.s32 %v150, 1
  %v1495 = vadd.s32 %v151, 1
  %v1496 = vadd.s32 %v152, 1
  %v1497 = vadd.s32 %v153, 1
  %v1498 = vadd.s32 %v154, 1
  %v1499 = vadd.s32 %v155, 1
  %v1500 = vadd.s32 %v156, 1
  %v1501 = vadd.s32 %v157, 1
  %vm1502 = vcmp.ge.s32.totalorder %v1438, 0
  %vm1503 = vcmp.ge.s32.totalorder %v1439, 0
  %vm1504 = vcmp.ge.s32.totalorder %v1440, 0
  %vm1505 = vcmp.ge.s32.totalorder %v1441, 0
  %vm1506 = vcmp.ge.s32.totalorder %v1442, 0
  %vm1507 = vcmp.ge.s32.totalorder %v1443, 0
  %vm1508 = vcmp.ge.s32.totalorder %v1444, 0
  %vm1509 = vcmp.ge.s32.totalorder %v1445, 0
  %vm1510 = vcmp.ge.s32.totalorder %v1446, 0
  %vm1511 = vcmp.ge.s32.totalorder %v1447, 0
  %vm1512 = vcmp.ge.s32.totalorder %v1448, 0
  %vm1513 = vcmp.ge.s32.totalorder %v1449, 0
  %vm1514 = vcmp.ge.s32.totalorder %v1450, 0
  %vm1515 = vcmp.ge.s32.totalorder %v1451, 0
  %vm1516 = vcmp.ge.s32.totalorder %v1452, 0
  %vm1517 = vcmp.ge.s32.totalorder %v1453, 0
  %vm1518 = vcmp.ge.s32.totalorder %v1454, 0
  %vm1519 = vcmp.ge.s32.totalorder %v1455, 0
  %vm1520 = vcmp.ge.s32.totalorder %v1456, 0
  %vm1521 = vcmp.ge.s32.totalorder %v1457, 0
  %vm1522 = vcmp.ge.s32.totalorder %v1458, 0
  %vm1523 = vcmp.ge.s32.totalorder %v1459, 0
  %vm1524 = vcmp.ge.s32.totalorder %v1460, 0
  %vm1525 = vcmp.ge.s32.totalorder %v1461, 0
  %vm1526 = vcmp.ge.s32.totalorder %v1462, 0
  %vm1527 = vcmp.ge.s32.totalorder %v1463, 0
  %vm1528 = vcmp.ge.s32.totalorder %v1464, 0
  %vm1529 = vcmp.ge.s32.totalorder %v1465, 0
  %vm1530 = vcmp.ge.s32.totalorder %v1466, 0
  %vm1531 = vcmp.ge.s32.totalorder %v1467, 0
  %vm1532 = vcmp.ge.s32.totalorder %v1468, 0
  %vm1533 = vcmp.ge.s32.totalorder %v1469, 0
  %vm1534 = vcmp.ge.s32.totalorder %v1470, 0
  %vm1535 = vcmp.ge.s32.totalorder %v1471, 0
  %vm1536 = vcmp.ge.s32.totalorder %v1472, 0
  %vm1537 = vcmp.ge.s32.totalorder %v1473, 0
  %vm1538 = vcmp.ge.s32.totalorder %v1474, 0
  %vm1539 = vcmp.ge.s32.totalorder %v1475, 0
  %vm1540 = vcmp.ge.s32.totalorder %v1476, 0
  %vm1541 = vcmp.ge.s32.totalorder %v1477, 0
  %vm1542 = vcmp.ge.s32.totalorder %v1478, 0
  %vm1543 = vcmp.ge.s32.totalorder %v1479, 0
  %vm1544 = vcmp.ge.s32.totalorder %v1480, 0
  %vm1545 = vcmp.ge.s32.totalorder %v1481, 0
  %vm1546 = vcmp.ge.s32.totalorder %v1482, 0
  %vm1547 = vcmp.ge.s32.totalorder %v1483, 0
  %vm1548 = vcmp.ge.s32.totalorder %v1484, 0
  %vm1549 = vcmp.ge.s32.totalorder %v1485, 0
  %vm1550 = vcmp.ge.s32.totalorder %v1486, 0
  %vm1551 = vcmp.ge.s32.totalorder %v1487, 0
  %vm1552 = vcmp.ge.s32.totalorder %v1488, 0
  %vm1553 = vcmp.ge.s32.totalorder %v1489, 0
  %vm1554 = vcmp.ge.s32.totalorder %v1490, 0
  %vm1555 = vcmp.ge.s32.totalorder %v1491, 0
  %vm1556 = vcmp.ge.s32.totalorder %v1492, 0
  %vm1557 = vcmp.ge.s32.totalorder %v1493, 0
  %vm1558 = vcmp.ge.s32.totalorder %v1494, 0
  %vm1559 = vcmp.ge.s32.totalorder %v1495, 0
  %vm1560 = vcmp.ge.s32.totalorder %v1496, 0
  %vm1561 = vcmp.ge.s32.totalorder %v1497, 0
  %vm1562 = vcmp.ge.s32.totalorder %v1498, 0
  %vm1563 = vcmp.ge.s32.totalorder %v1499, 0
  %vm1564 = vcmp.ge.s32.totalorder %v1500, 0
  %vm1565 = vcmp.ge.s32.totalorder %v1501, 0
  %vm1566 = vcmp.lt.s32.totalorder %v1438, 16
  %vm1567 = vcmp.lt.s32.totalorder %v1439, 16
  %vm1568 = vcmp.lt.s32.totalorder %v1440, 16
  %vm1569 = vcmp.lt.s32.totalorder %v1441, 16
  %vm1570 = vcmp.lt.s32.totalorder %v1442, 16
  %vm1571 = vcmp.lt.s32.totalorder %v1443, 16
  %vm1572 = vcmp.lt.s32.totalorder %v1444, 16
  %vm1573 = vcmp.lt.s32.totalorder %v1445, 16
  %vm1574 = vcmp.lt.s32.totalorder %v1446, 16
  %vm1575 = vcmp.lt.s32.totalorder %v1447, 16
  %vm1576 = vcmp.lt.s32.totalorder %v1448, 16
  %vm1577 = vcmp.lt.s32.totalorder %v1449, 16
  %vm1578 = vcmp.lt.s32.totalorder %v1450, 16
  %vm1579 = vcmp.lt.s32.totalorder %v1451, 16
  %vm1580 = vcmp.lt.s32.totalorder %v1452, 16
  %vm1581 = vcmp.lt.s32.totalorder %v1453, 16
  %vm1582 = vcmp.lt.s32.totalorder %v1454, 16
  %vm1583 = vcmp.lt.s32.totalorder %v1455, 16
  %vm1584 = vcmp.lt.s32.totalorder %v1456, 16
  %vm1585 = vcmp.lt.s32.totalorder %v1457, 16
  %vm1586 = vcmp.lt.s32.totalorder %v1458, 16
  %vm1587 = vcmp.lt.s32.totalorder %v1459, 16
  %vm1588 = vcmp.lt.s32.totalorder %v1460, 16
  %vm1589 = vcmp.lt.s32.totalorder %v1461, 16
  %vm1590 = vcmp.lt.s32.totalorder %v1462, 16
  %vm1591 = vcmp.lt.s32.totalorder %v1463, 16
  %vm1592 = vcmp.lt.s32.totalorder %v1464, 16
  %vm1593 = vcmp.lt.s32.totalorder %v1465, 16
  %vm1594 = vcmp.lt.s32.totalorder %v1466, 16
  %vm1595 = vcmp.lt.s32.totalorder %v1467, 16
  %vm1596 = vcmp.lt.s32.totalorder %v1468, 16
  %vm1597 = vcmp.lt.s32.totalorder %v1469, 16
  %vm1598 = vcmp.lt.s32.totalorder %v1470, 16
  %vm1599 = vcmp.lt.s32.totalorder %v1471, 16
  %vm1600 = vcmp.lt.s32.totalorder %v1472, 16
  %vm1601 = vcmp.lt.s32.totalorder %v1473, 16
  %vm1602 = vcmp.lt.s32.totalorder %v1474, 16
  %vm1603 = vcmp.lt.s32.totalorder %v1475, 16
  %vm1604 = vcmp.lt.s32.totalorder %v1476, 16
  %vm1605 = vcmp.lt.s32.totalorder %v1477, 16
  %vm1606 = vcmp.lt.s32.totalorder %v1478, 16
  %vm1607 = vcmp.lt.s32.totalorder %v1479, 16
  %vm1608 = vcmp.lt.s32.totalorder %v1480, 16
  %vm1609 = vcmp.lt.s32.totalorder %v1481, 16
  %vm1610 = vcmp.lt.s32.totalorder %v1482, 16
  %vm1611 = vcmp.lt.s32.totalorder %v1483, 16
  %vm1612 = vcmp.lt.s32.totalorder %v1484, 16
  %vm1613 = vcmp.lt.s32.totalorder %v1485, 16
  %vm1614 = vcmp.lt.s32.totalorder %v1486, 16
  %vm1615 = vcmp.lt.s32.totalorder %v1487, 16
  %vm1616 = vcmp.lt.s32.totalorder %v1488, 16
  %vm1617 = vcmp.lt.s32.totalorder %v1489, 16
  %vm1618 = vcmp.lt.s32.totalorder %v1490, 16
  %vm1619 = vcmp.lt.s32.totalorder %v1491, 16
  %vm1620 = vcmp.lt.s32.totalorder %v1492, 16
  %vm1621 = vcmp.lt.s32.totalorder %v1493, 16
  %vm1622 = vcmp.lt.s32.totalorder %v1494, 16
  %vm1623 = vcmp.lt.s32.totalorder %v1495, 16
  %vm1624 = vcmp.lt.s32.totalorder %v1496, 16
  %vm1625 = vcmp.lt.s32.totalorder %v1497, 16
  %vm1626 = vcmp.lt.s32.totalorder %v1498, 16
  %vm1627 = vcmp.lt.s32.totalorder %v1499, 16
  %vm1628 = vcmp.lt.s32.totalorder %v1500, 16
  %vm1629 = vcmp.lt.s32.totalorder %v1501, 16
  %vm1630 = vmand %vm1502, %vm1566
  %vm1631 = vmand %vm1503, %vm1567
  %vm1632 = vmand %vm1504, %vm1568
  %vm1633 = vmand %vm1505, %vm1569
  %vm1634 = vmand %vm1506, %vm1570
  %vm1635 = vmand %vm1507, %vm1571
  %vm1636 = vmand %vm1508, %vm1572
  %vm1637 = vmand %vm1509, %vm1573
  %vm1638 = vmand %vm1510, %vm1574
  %vm1639 = vmand %vm1511, %vm1575
  %vm1640 = vmand %vm1512, %vm1576
  %vm1641 = vmand %vm1513, %vm1577
  %vm1642 = vmand %vm1514, %vm1578
  %vm1643 = vmand %vm1515, %vm1579
  %vm1644 = vmand %vm1516, %vm1580
  %vm1645 = vmand %vm1517, %vm1581
  %vm1646 = vmand %vm1518, %vm1582
  %vm1647 = vmand %vm1519, %vm1583
  %vm1648 = vmand %vm1520, %vm1584
  %vm1649 = vmand %vm1521, %vm1585
  %vm1650 = vmand %vm1522, %vm1586
  %vm1651 = vmand %vm1523, %vm1587
  %vm1652 = vmand %vm1524, %vm1588
  %vm1653 = vmand %vm1525, %vm1589
  %vm1654 = vmand %vm1526, %vm1590
  %vm1655 = vmand %vm1527, %vm1591
  %vm1656 = vmand %vm1528, %vm1592
  %vm1657 = vmand %vm1529, %vm1593
  %vm1658 = vmand %vm1530, %vm1594
  %vm1659 = vmand %vm1531, %vm1595
  %vm1660 = vmand %vm1532, %vm1596
  %vm1661 = vmand %vm1533, %vm1597
  %vm1662 = vmand %vm1534, %vm1598
  %vm1663 = vmand %vm1535, %vm1599
  %vm1664 = vmand %vm1536, %vm1600
  %vm1665 = vmand %vm1537, %vm1601
  %vm1666 = vmand %vm1538, %vm1602
  %vm1667 = vmand %vm1539, %vm1603
  %vm1668 = vmand %vm1540, %vm1604
  %vm1669 = vmand %vm1541, %vm1605
  %vm1670 = vmand %vm1542, %vm1606
  %vm1671 = vmand %vm1543, %vm1607
  %vm1672 = vmand %vm1544, %vm1608
  %vm1673 = vmand %vm1545, %vm1609
  %vm1674 = vmand %vm1546, %vm1610
  %vm1675 = vmand %vm1547, %vm1611
  %vm1676 = vmand %vm1548, %vm1612
  %vm1677 = vmand %vm1549, %vm1613
  %vm1678 = vmand %vm1550, %vm1614
  %vm1679 = vmand %vm1551, %vm1615
  %vm1680 = vmand %vm1552, %vm1616
  %vm1681 = vmand %vm1553, %vm1617
  %vm1682 = vmand %vm1554, %vm1618
  %vm1683 = vmand %vm1555, %vm1619
  %vm1684 = vmand %vm1556, %vm1620
  %vm1685 = vmand %vm1557, %vm1621
  %vm1686 = vmand %vm1558, %vm1622
  %vm1687 = vmand %vm1559, %vm1623
  %vm1688 = vmand %vm1560, %vm1624
  %vm1689 = vmand %vm1561, %vm1625
  %vm1690 = vmand %vm1562, %vm1626
  %vm1691 = vmand %vm1563, %vm1627
  %vm1692 = vmand %vm1564, %vm1628
  %vm1693 = vmand %vm1565, %vm1629
  %v1694 = vld [vmem:[%s0 + $0x7] sm:$0xff]
  %v1695 = vld [vmem:[%s0 + $0xf] sm:$0xff]
  %v1696 = vld [vmem:[%s0 + $0x17] sm:$0xff]
  %v1697 = vld [vmem:[%s0 + $0x1f] sm:$0xff]
  %v1698 = vld [vmem:[%s0 + $0x27] sm:$0xff]
  %v1699 = vld [vmem:[%s0 + $0x2f] sm:$0xff]
  %v1700 = vld [vmem:[%s0 + $0x37] sm:$0xff]
  %v1701 = vld [vmem:[%s0 + $0x3f] sm:$0xff]
  %v1702 = vld [vmem:[%s0 + $0x47] sm:$0xff]
  %v1703 = vld [vmem:[%s0 + $0x4f] sm:$0xff]
  %v1704 = vld [vmem:[%s0 + $0x57] sm:$0xff]
  %v1705 = vld [vmem:[%s0 + $0x5f] sm:$0xff]
  %v1706 = vld [vmem:[%s0 + $0x67] sm:$0xff]
  %v1707 = vld [vmem:[%s0 + $0x6f] sm:$0xff]
  %v1708 = vld [vmem:[%s0 + $0x77] sm:$0xff]
  %v1709 = vld [vmem:[%s0 + $0x7f] sm:$0xff]
  %v1710 = vld [vmem:[%s0 + $0x87] sm:$0xff]
  %v1711 = vld [vmem:[%s0 + $0x8f] sm:$0xff]
  %v1712 = vld [vmem:[%s0 + $0x97] sm:$0xff]
  %v1713 = vld [vmem:[%s0 + $0x9f] sm:$0xff]
  %v1714 = vld [vmem:[%s0 + $0xa7] sm:$0xff]
  %v1715 = vld [vmem:[%s0 + $0xaf] sm:$0xff]
  %v1716 = vld [vmem:[%s0 + $0xb7] sm:$0xff]
  %v1717 = vld [vmem:[%s0 + $0xbf] sm:$0xff]
  %v1718 = vld [vmem:[%s0 + $0xc7] sm:$0xff]
  %v1719 = vld [vmem:[%s0 + $0xcf] sm:$0xff]
  %v1720 = vld [vmem:[%s0 + $0xd7] sm:$0xff]
  %v1721 = vld [vmem:[%s0 + $0xdf] sm:$0xff]
  %v1722 = vld [vmem:[%s0 + $0xe7] sm:$0xff]
  %v1723 = vld [vmem:[%s0 + $0xef] sm:$0xff]
  %v1724 = vld [vmem:[%s0 + $0xf7] sm:$0xff]
  %v1725 = vld [vmem:[%s0 + $0xff] sm:$0xff]
  %v1726 = vld [vmem:[%s0 + $0x107] sm:$0xff]
  %v1727 = vld [vmem:[%s0 + $0x10f] sm:$0xff]
  %v1728 = vld [vmem:[%s0 + $0x117] sm:$0xff]
  %v1729 = vld [vmem:[%s0 + $0x11f] sm:$0xff]
  %v1730 = vld [vmem:[%s0 + $0x127] sm:$0xff]
  %v1731 = vld [vmem:[%s0 + $0x12f] sm:$0xff]
  %v1732 = vld [vmem:[%s0 + $0x137] sm:$0xff]
  %v1733 = vld [vmem:[%s0 + $0x13f] sm:$0xff]
  %v1734 = vld [vmem:[%s0 + $0x147] sm:$0xff]
  %v1735 = vld [vmem:[%s0 + $0x14f] sm:$0xff]
  %v1736 = vld [vmem:[%s0 + $0x157] sm:$0xff]
  %v1737 = vld [vmem:[%s0 + $0x15f] sm:$0xff]
  %v1738 = vld [vmem:[%s0 + $0x167] sm:$0xff]
  %v1739 = vld [vmem:[%s0 + $0x16f] sm:$0xff]
  %v1740 = vld [vmem:[%s0 + $0x177] sm:$0xff]
  %v1741 = vld [vmem:[%s0 + $0x17f] sm:$0xff]
  %v1742 = vld [vmem:[%s0 + $0x187] sm:$0xff]
  %v1743 = vld [vmem:[%s0 + $0x18f] sm:$0xff]
  %v1744 = vld [vmem:[%s0 + $0x197] sm:$0xff]
  %v1745 = vld [vmem:[%s0 + $0x19f] sm:$0xff]
  %v1746 = vld [vmem:[%s0 + $0x1a7] sm:$0xff]
  %v1747 = vld [vmem:[%s0 + $0x1af] sm:$0xff]
  %v1748 = vld [vmem:[%s0 + $0x1b7] sm:$0xff]
  %v1749 = vld [vmem:[%s0 + $0x1bf] sm:$0xff]
  %v1750 = vld [vmem:[%s0 + $0x1c7] sm:$0xff]
  %v1751 = vld [vmem:[%s0 + $0x1cf] sm:$0xff]
  %v1752 = vld [vmem:[%s0 + $0x1d7] sm:$0xff]
  %v1753 = vld [vmem:[%s0 + $0x1df] sm:$0xff]
  %v1754 = vld [vmem:[%s0 + $0x1e7] sm:$0xff]
  %v1755 = vld [vmem:[%s0 + $0x1ef] sm:$0xff]
  %v1756 = vld [vmem:[%s0 + $0x1f7] sm:$0xff]
  %v1757 = vld [vmem:[%s0 + $0x1ff] sm:$0xff]
  %vm1758 = vmand %vm478, %vm1182
  %vm1759 = vmand %vm479, %vm1183
  %vm1760 = vmand %vm480, %vm1184
  %vm1761 = vmand %vm481, %vm1185
  %vm1762 = vmand %vm482, %vm1186
  %vm1763 = vmand %vm483, %vm1187
  %vm1764 = vmand %vm484, %vm1188
  %vm1765 = vmand %vm485, %vm1189
  %vm1766 = vmand %vm486, %vm1190
  %vm1767 = vmand %vm487, %vm1191
  %vm1768 = vmand %vm488, %vm1192
  %vm1769 = vmand %vm489, %vm1193
  %vm1770 = vmand %vm490, %vm1194
  %vm1771 = vmand %vm491, %vm1195
  %vm1772 = vmand %vm492, %vm1196
  %vm1773 = vmand %vm493, %vm1197
  %vm1774 = vmand %vm494, %vm1198
  %vm1775 = vmand %vm495, %vm1199
  %vm1776 = vmand %vm496, %vm1200
  %vm1777 = vmand %vm497, %vm1201
  %vm1778 = vmand %vm498, %vm1202
  %vm1779 = vmand %vm499, %vm1203
  %vm1780 = vmand %vm500, %vm1204
  %vm1781 = vmand %vm501, %vm1205
  %vm1782 = vmand %vm502, %vm1206
  %vm1783 = vmand %vm503, %vm1207
  %vm1784 = vmand %vm504, %vm1208
  %vm1785 = vmand %vm505, %vm1209
  %vm1786 = vmand %vm506, %vm1210
  %vm1787 = vmand %vm507, %vm1211
  %vm1788 = vmand %vm508, %vm1212
  %vm1789 = vmand %vm509, %vm1213
  %vm1790 = vmand %vm510, %vm1214
  %vm1791 = vmand %vm511, %vm1215
  %vm1792 = vmand %vm512, %vm1216
  %vm1793 = vmand %vm513, %vm1217
  %vm1794 = vmand %vm514, %vm1218
  %vm1795 = vmand %vm515, %vm1219
  %vm1796 = vmand %vm516, %vm1220
  %vm1797 = vmand %vm517, %vm1221
  %vm1798 = vmand %vm518, %vm1222
  %vm1799 = vmand %vm519, %vm1223
  %vm1800 = vmand %vm520, %vm1224
  %vm1801 = vmand %vm521, %vm1225
  %vm1802 = vmand %vm522, %vm1226
  %vm1803 = vmand %vm523, %vm1227
  %vm1804 = vmand %vm524, %vm1228
  %vm1805 = vmand %vm525, %vm1229
  %vm1806 = vmand %vm526, %vm1230
  %vm1807 = vmand %vm527, %vm1231
  %vm1808 = vmand %vm528, %vm1232
  %vm1809 = vmand %vm529, %vm1233
  %vm1810 = vmand %vm530, %vm1234
  %vm1811 = vmand %vm531, %vm1235
  %vm1812 = vmand %vm532, %vm1236
  %vm1813 = vmand %vm533, %vm1237
  %vm1814 = vmand %vm534, %vm1238
  %vm1815 = vmand %vm535, %vm1239
  %vm1816 = vmand %vm536, %vm1240
  %vm1817 = vmand %vm537, %vm1241
  %vm1818 = vmand %vm538, %vm1242
  %vm1819 = vmand %vm539, %vm1243
  %vm1820 = vmand %vm540, %vm1244
  %vm1821 = vmand %vm541, %vm1245
  %v1822 = vsel %vm1758, %v1694, 0.0
  %v1823 = vsel %vm1759, %v1695, 0.0
  %v1824 = vsel %vm1760, %v1696, 0.0
  %v1825 = vsel %vm1761, %v1697, 0.0
  %v1826 = vsel %vm1762, %v1698, 0.0
  %v1827 = vsel %vm1763, %v1699, 0.0
  %v1828 = vsel %vm1764, %v1700, 0.0
  %v1829 = vsel %vm1765, %v1701, 0.0
  %v1830 = vsel %vm1766, %v1702, 0.0
  %v1831 = vsel %vm1767, %v1703, 0.0
  %v1832 = vsel %vm1768, %v1704, 0.0
  %v1833 = vsel %vm1769, %v1705, 0.0
  %v1834 = vsel %vm1770, %v1706, 0.0
  %v1835 = vsel %vm1771, %v1707, 0.0
  %v1836 = vsel %vm1772, %v1708, 0.0
  %v1837 = vsel %vm1773, %v1709, 0.0
  %v1838 = vsel %vm1774, %v1710, 0.0
  %v1839 = vsel %vm1775, %v1711, 0.0
  %v1840 = vsel %vm1776, %v1712, 0.0
  %v1841 = vsel %vm1777, %v1713, 0.0
  %v1842 = vsel %vm1778, %v1714, 0.0
  %v1843 = vsel %vm1779, %v1715, 0.0
  %v1844 = vsel %vm1780, %v1716, 0.0
  %v1845 = vsel %vm1781, %v1717, 0.0
  %v1846 = vsel %vm1782, %v1718, 0.0
  %v1847 = vsel %vm1783, %v1719, 0.0
  %v1848 = vsel %vm1784, %v1720, 0.0
  %v1849 = vsel %vm1785, %v1721, 0.0
  %v1850 = vsel %vm1786, %v1722, 0.0
  %v1851 = vsel %vm1787, %v1723, 0.0
  %v1852 = vsel %vm1788, %v1724, 0.0
  %v1853 = vsel %vm1789, %v1725, 0.0
  %v1854 = vsel %vm1790, %v1726, 0.0
  %v1855 = vsel %vm1791, %v1727, 0.0
  %v1856 = vsel %vm1792, %v1728, 0.0
  %v1857 = vsel %vm1793, %v1729, 0.0
  %v1858 = vsel %vm1794, %v1730, 0.0
  %v1859 = vsel %vm1795, %v1731, 0.0
  %v1860 = vsel %vm1796, %v1732, 0.0
  %v1861 = vsel %vm1797, %v1733, 0.0
  %v1862 = vsel %vm1798, %v1734, 0.0
  %v1863 = vsel %vm1799, %v1735, 0.0
  %v1864 = vsel %vm1800, %v1736, 0.0
  %v1865 = vsel %vm1801, %v1737, 0.0
  %v1866 = vsel %vm1802, %v1738, 0.0
  %v1867 = vsel %vm1803, %v1739, 0.0
  %v1868 = vsel %vm1804, %v1740, 0.0
  %v1869 = vsel %vm1805, %v1741, 0.0
  %v1870 = vsel %vm1806, %v1742, 0.0
  %v1871 = vsel %vm1807, %v1743, 0.0
  %v1872 = vsel %vm1808, %v1744, 0.0
  %v1873 = vsel %vm1809, %v1745, 0.0
  %v1874 = vsel %vm1810, %v1746, 0.0
  %v1875 = vsel %vm1811, %v1747, 0.0
  %v1876 = vsel %vm1812, %v1748, 0.0
  %v1877 = vsel %vm1813, %v1749, 0.0
  %v1878 = vsel %vm1814, %v1750, 0.0
  %v1879 = vsel %vm1815, %v1751, 0.0
  %v1880 = vsel %vm1816, %v1752, 0.0
  %v1881 = vsel %vm1817, %v1753, 0.0
  %v1882 = vsel %vm1818, %v1754, 0.0
  %v1883 = vsel %vm1819, %v1755, 0.0
  %v1884 = vsel %vm1820, %v1756, 0.0
  %v1885 = vsel %vm1821, %v1757, 0.0
  %v1886 = vpack.c.bf16 %v1823, %v1822
  %v1887 = vpack.c.bf16 %v1825, %v1824
  %v1888 = vpack.c.bf16 %v1827, %v1826
  %v1889 = vpack.c.bf16 %v1829, %v1828
  %v1890 = vpack.c.bf16 %v1831, %v1830
  %v1891 = vpack.c.bf16 %v1833, %v1832
  %v1892 = vpack.c.bf16 %v1835, %v1834
  %v1893 = vpack.c.bf16 %v1837, %v1836
  %v1894 = vpack.c.bf16 %v1839, %v1838
  %v1895 = vpack.c.bf16 %v1841, %v1840
  %v1896 = vpack.c.bf16 %v1843, %v1842
  %v1897 = vpack.c.bf16 %v1845, %v1844
  %v1898 = vpack.c.bf16 %v1847, %v1846
  %v1899 = vpack.c.bf16 %v1849, %v1848
  %v1900 = vpack.c.bf16 %v1851, %v1850
  %v1901 = vpack.c.bf16 %v1853, %v1852
  %v1902 = vpack.c.bf16 %v1855, %v1854
  %v1903 = vpack.c.bf16 %v1857, %v1856
  %v1904 = vpack.c.bf16 %v1859, %v1858
  %v1905 = vpack.c.bf16 %v1861, %v1860
  %v1906 = vpack.c.bf16 %v1863, %v1862
  %v1907 = vpack.c.bf16 %v1865, %v1864
  %v1908 = vpack.c.bf16 %v1867, %v1866
  %v1909 = vpack.c.bf16 %v1869, %v1868
  %v1910 = vpack.c.bf16 %v1871, %v1870
  %v1911 = vpack.c.bf16 %v1873, %v1872
  %v1912 = vpack.c.bf16 %v1875, %v1874
  %v1913 = vpack.c.bf16 %v1877, %v1876
  %v1914 = vpack.c.bf16 %v1879, %v1878
  %v1915 = vpack.c.bf16 %v1881, %v1880
  %v1916 = vpack.c.bf16 %v1883, %v1882
  %v1917 = vpack.c.bf16 %v1885, %v1884
  %v1918 = vld [vmem:[%s1] sm:$0x3]
  %v1919 = vld [vmem:[%s0 + $0x8] sm:$0xff]
  %v1920 = vld [vmem:[%s0 + $0x10] sm:$0xff]
  %v1921 = vld [vmem:[%s0 + $0x18] sm:$0xff]
  %v1922 = vld [vmem:[%s0 + $0x20] sm:$0xff]
  %v1923 = vld [vmem:[%s0 + $0x28] sm:$0xff]
  %v1924 = vld [vmem:[%s0 + $0x30] sm:$0xff]
  %v1925 = vld [vmem:[%s0 + $0x38] sm:$0xff]
  %v1926 = vld [vmem:[%s0 + $0x40] sm:$0xff]
  %v1927 = vld [vmem:[%s0 + $0x48] sm:$0xff]
  %v1928 = vld [vmem:[%s0 + $0x50] sm:$0xff]
  %v1929 = vld [vmem:[%s0 + $0x58] sm:$0xff]
  %v1930 = vld [vmem:[%s0 + $0x60] sm:$0xff]
  %v1931 = vld [vmem:[%s0 + $0x68] sm:$0xff]
  %v1932 = vld [vmem:[%s0 + $0x70] sm:$0xff]
  %v1933 = vld [vmem:[%s0 + $0x78] sm:$0xff]
  %v1934 = vld [vmem:[%s0 + $0x80] sm:$0xff]
  %v1935 = vld [vmem:[%s0 + $0x88] sm:$0xff]
  %v1936 = vld [vmem:[%s0 + $0x90] sm:$0xff]
  %v1937 = vld [vmem:[%s0 + $0x98] sm:$0xff]
  %v1938 = vld [vmem:[%s0 + $0xa0] sm:$0xff]
  %v1939 = vld [vmem:[%s0 + $0xa8] sm:$0xff]
  %v1940 = vld [vmem:[%s0 + $0xb0] sm:$0xff]
  %v1941 = vld [vmem:[%s0 + $0xb8] sm:$0xff]
  %v1942 = vld [vmem:[%s0 + $0xc0] sm:$0xff]
  %v1943 = vld [vmem:[%s0 + $0xc8] sm:$0xff]
  %v1944 = vld [vmem:[%s0 + $0xd0] sm:$0xff]
  %v1945 = vld [vmem:[%s0 + $0xd8] sm:$0xff]
  %v1946 = vld [vmem:[%s0 + $0xe0] sm:$0xff]
  %v1947 = vld [vmem:[%s0 + $0xe8] sm:$0xff]
  %v1948 = vld [vmem:[%s0 + $0xf0] sm:$0xff]
  %v1949 = vld [vmem:[%s0 + $0xf8] sm:$0xff]
  %v1950 = vld [vmem:[%s0 + $0x100] sm:$0xff]
  %v1951 = vld [vmem:[%s0 + $0x108] sm:$0xff]
  %v1952 = vld [vmem:[%s0 + $0x110] sm:$0xff]
  %v1953 = vld [vmem:[%s0 + $0x118] sm:$0xff]
  %v1954 = vld [vmem:[%s0 + $0x120] sm:$0xff]
  %v1955 = vld [vmem:[%s0 + $0x128] sm:$0xff]
  %v1956 = vld [vmem:[%s0 + $0x130] sm:$0xff]
  %v1957 = vld [vmem:[%s0 + $0x138] sm:$0xff]
  %v1958 = vld [vmem:[%s0 + $0x140] sm:$0xff]
  %v1959 = vld [vmem:[%s0 + $0x148] sm:$0xff]
  %v1960 = vld [vmem:[%s0 + $0x150] sm:$0xff]
  %v1961 = vld [vmem:[%s0 + $0x158] sm:$0xff]
  %v1962 = vld [vmem:[%s0 + $0x160] sm:$0xff]
  %v1963 = vld [vmem:[%s0 + $0x168] sm:$0xff]
  %v1964 = vld [vmem:[%s0 + $0x170] sm:$0xff]
  %v1965 = vld [vmem:[%s0 + $0x178] sm:$0xff]
  %v1966 = vld [vmem:[%s0 + $0x180] sm:$0xff]
  %v1967 = vld [vmem:[%s0 + $0x188] sm:$0xff]
  %v1968 = vld [vmem:[%s0 + $0x190] sm:$0xff]
  %v1969 = vld [vmem:[%s0 + $0x198] sm:$0xff]
  %v1970 = vld [vmem:[%s0 + $0x1a0] sm:$0xff]
  %v1971 = vld [vmem:[%s0 + $0x1a8] sm:$0xff]
  %v1972 = vld [vmem:[%s0 + $0x1b0] sm:$0xff]
  %v1973 = vld [vmem:[%s0 + $0x1b8] sm:$0xff]
  %v1974 = vld [vmem:[%s0 + $0x1c0] sm:$0xff]
  %v1975 = vld [vmem:[%s0 + $0x1c8] sm:$0xff]
  %v1976 = vld [vmem:[%s0 + $0x1d0] sm:$0xff]
  %v1977 = vld [vmem:[%s0 + $0x1d8] sm:$0xff]
  %v1978 = vld [vmem:[%s0 + $0x1e0] sm:$0xff]
  %v1979 = vld [vmem:[%s0 + $0x1e8] sm:$0xff]
  %v1980 = vld [vmem:[%s0 + $0x1f0] sm:$0xff]
  %v1981 = vld [vmem:[%s0 + $0x1f8] sm:$0xff]
  %v1982 = vld [vmem:[%s0 + $0x200] sm:$0xff]
  %vm1983 = vmand %vm478, %vm1374
  %vm1984 = vmand %vm479, %vm1375
  %vm1985 = vmand %vm480, %vm1376
  %vm1986 = vmand %vm481, %vm1377
  %vm1987 = vmand %vm482, %vm1378
  %vm1988 = vmand %vm483, %vm1379
  %vm1989 = vmand %vm484, %vm1380
  %vm1990 = vmand %vm485, %vm1381
  %vm1991 = vmand %vm486, %vm1382
  %vm1992 = vmand %vm487, %vm1383
  %vm1993 = vmand %vm488, %vm1384
  %vm1994 = vmand %vm489, %vm1385
  %vm1995 = vmand %vm490, %vm1386
  %vm1996 = vmand %vm491, %vm1387
  %vm1997 = vmand %vm492, %vm1388
  %vm1998 = vmand %vm493, %vm1389
  %vm1999 = vmand %vm494, %vm1390
  %vm2000 = vmand %vm495, %vm1391
  %vm2001 = vmand %vm496, %vm1392
  %vm2002 = vmand %vm497, %vm1393
  %vm2003 = vmand %vm498, %vm1394
  %vm2004 = vmand %vm499, %vm1395
  %vm2005 = vmand %vm500, %vm1396
  %vm2006 = vmand %vm501, %vm1397
  %vm2007 = vmand %vm502, %vm1398
  %vm2008 = vmand %vm503, %vm1399
  %vm2009 = vmand %vm504, %vm1400
  %vm2010 = vmand %vm505, %vm1401
  %vm2011 = vmand %vm506, %vm1402
  %vm2012 = vmand %vm507, %vm1403
  %vm2013 = vmand %vm508, %vm1404
  %vm2014 = vmand %vm509, %vm1405
  %vm2015 = vmand %vm510, %vm1406
  %vm2016 = vmand %vm511, %vm1407
  %vm2017 = vmand %vm512, %vm1408
  %vm2018 = vmand %vm513, %vm1409
  %vm2019 = vmand %vm514, %vm1410
  %vm2020 = vmand %vm515, %vm1411
  %vm2021 = vmand %vm516, %vm1412
  %vm2022 = vmand %vm517, %vm1413
  %vm2023 = vmand %vm518, %vm1414
  %vm2024 = vmand %vm519, %vm1415
  %vm2025 = vmand %vm520, %vm1416
  %vm2026 = vmand %vm521, %vm1417
  %vm2027 = vmand %vm522, %vm1418
  %vm2028 = vmand %vm523, %vm1419
  %vm2029 = vmand %vm524, %vm1420
  %vm2030 = vmand %vm525, %vm1421
  %vm2031 = vmand %vm526, %vm1422
  %vm2032 = vmand %vm527, %vm1423
  %vm2033 = vmand %vm528, %vm1424
  %vm2034 = vmand %vm529, %vm1425
  %vm2035 = vmand %vm530, %vm1426
  %vm2036 = vmand %vm531, %vm1427
  %vm2037 = vmand %vm532, %vm1428
  %vm2038 = vmand %vm533, %vm1429
  %vm2039 = vmand %vm534, %vm1430
  %vm2040 = vmand %vm535, %vm1431
  %vm2041 = vmand %vm536, %vm1432
  %vm2042 = vmand %vm537, %vm1433
  %vm2043 = vmand %vm538, %vm1434
  %vm2044 = vmand %vm539, %vm1435
  %vm2045 = vmand %vm540, %vm1436
  %vm2046 = vmand %vm541, %vm1437
  %v2047 = vsel %vm1983, %v1919, 0.0
  %v2048 = vsel %vm1984, %v1920, 0.0
  %v2049 = vsel %vm1985, %v1921, 0.0
  %v2050 = vsel %vm1986, %v1922, 0.0
  %v2051 = vsel %vm1987, %v1923, 0.0
  %v2052 = vsel %vm1988, %v1924, 0.0
  %v2053 = vsel %vm1989, %v1925, 0.0
  %v2054 = vsel %vm1990, %v1926, 0.0
  %v2055 = vsel %vm1991, %v1927, 0.0
  %v2056 = vsel %vm1992, %v1928, 0.0
  %v2057 = vsel %vm1993, %v1929, 0.0
  %v2058 = vsel %vm1994, %v1930, 0.0
  %v2059 = vsel %vm1995, %v1931, 0.0
  %v2060 = vsel %vm1996, %v1932, 0.0
  %v2061 = vsel %vm1997, %v1933, 0.0
  %v2062 = vsel %vm1998, %v1934, 0.0
  %v2063 = vsel %vm1999, %v1935, 0.0
  %v2064 = vsel %vm2000, %v1936, 0.0
  %v2065 = vsel %vm2001, %v1937, 0.0
  %v2066 = vsel %vm2002, %v1938, 0.0
  %v2067 = vsel %vm2003, %v1939, 0.0
  %v2068 = vsel %vm2004, %v1940, 0.0
  %v2069 = vsel %vm2005, %v1941, 0.0
  %v2070 = vsel %vm2006, %v1942, 0.0
  %v2071 = vsel %vm2007, %v1943, 0.0
  %v2072 = vsel %vm2008, %v1944, 0.0
  %v2073 = vsel %vm2009, %v1945, 0.0
  %v2074 = vsel %vm2010, %v1946, 0.0
  %v2075 = vsel %vm2011, %v1947, 0.0
  %v2076 = vsel %vm2012, %v1948, 0.0
  %v2077 = vsel %vm2013, %v1949, 0.0
  %v2078 = vsel %vm2014, %v1950, 0.0
  %v2079 = vsel %vm2015, %v1951, 0.0
  %v2080 = vsel %vm2016, %v1952, 0.0
  %v2081 = vsel %vm2017, %v1953, 0.0
  %v2082 = vsel %vm2018, %v1954, 0.0
  %v2083 = vsel %vm2019, %v1955, 0.0
  %v2084 = vsel %vm2020, %v1956, 0.0
  %v2085 = vsel %vm2021, %v1957, 0.0
  %v2086 = vsel %vm2022, %v1958, 0.0
  %v2087 = vsel %vm2023, %v1959, 0.0
  %v2088 = vsel %vm2024, %v1960, 0.0
  %v2089 = vsel %vm2025, %v1961, 0.0
  %v2090 = vsel %vm2026, %v1962, 0.0
  %v2091 = vsel %vm2027, %v1963, 0.0
  %v2092 = vsel %vm2028, %v1964, 0.0
  %v2093 = vsel %vm2029, %v1965, 0.0
  %v2094 = vsel %vm2030, %v1966, 0.0
  %v2095 = vsel %vm2031, %v1967, 0.0
  %v2096 = vsel %vm2032, %v1968, 0.0
  %v2097 = vsel %vm2033, %v1969, 0.0
  %v2098 = vsel %vm2034, %v1970, 0.0
  %v2099 = vsel %vm2035, %v1971, 0.0
  %v2100 = vsel %vm2036, %v1972, 0.0
  %v2101 = vsel %vm2037, %v1973, 0.0
  %v2102 = vsel %vm2038, %v1974, 0.0
  %v2103 = vsel %vm2039, %v1975, 0.0
  %v2104 = vsel %vm2040, %v1976, 0.0
  %v2105 = vsel %vm2041, %v1977, 0.0
  %v2106 = vsel %vm2042, %v1978, 0.0
  %v2107 = vsel %vm2043, %v1979, 0.0
  %v2108 = vsel %vm2044, %v1980, 0.0
  %v2109 = vsel %vm2045, %v1981, 0.0
  %v2110 = vsel %vm2046, %v1982, 0.0
  %v2111 = vpack.c.bf16 %v2048, %v2047
  %v2112 = vpack.c.bf16 %v2050, %v2049
  %v2113 = vpack.c.bf16 %v2052, %v2051
  %v2114 = vpack.c.bf16 %v2054, %v2053
  %v2115 = vpack.c.bf16 %v2056, %v2055
  %v2116 = vpack.c.bf16 %v2058, %v2057
  %v2117 = vpack.c.bf16 %v2060, %v2059
  %v2118 = vpack.c.bf16 %v2062, %v2061
  %v2119 = vpack.c.bf16 %v2064, %v2063
  %v2120 = vpack.c.bf16 %v2066, %v2065
  %v2121 = vpack.c.bf16 %v2068, %v2067
  %v2122 = vpack.c.bf16 %v2070, %v2069
  %v2123 = vpack.c.bf16 %v2072, %v2071
  %v2124 = vpack.c.bf16 %v2074, %v2073
  %v2125 = vpack.c.bf16 %v2076, %v2075
  %v2126 = vpack.c.bf16 %v2078, %v2077
  %v2127 = vpack.c.bf16 %v2080, %v2079
  %v2128 = vpack.c.bf16 %v2082, %v2081
  %v2129 = vpack.c.bf16 %v2084, %v2083
  %v2130 = vpack.c.bf16 %v2086, %v2085
  %v2131 = vpack.c.bf16 %v2088, %v2087
  %v2132 = vpack.c.bf16 %v2090, %v2089
  %v2133 = vpack.c.bf16 %v2092, %v2091
  %v2134 = vpack.c.bf16 %v2094, %v2093
  %v2135 = vpack.c.bf16 %v2096, %v2095
  %v2136 = vpack.c.bf16 %v2098, %v2097
  %v2137 = vpack.c.bf16 %v2100, %v2099
  %v2138 = vpack.c.bf16 %v2102, %v2101
  %v2139 = vpack.c.bf16 %v2104, %v2103
  %v2140 = vpack.c.bf16 %v2106, %v2105
  %v2141 = vpack.c.bf16 %v2108, %v2107
  %v2142 = vpack.c.bf16 %v2110, %v2109
  %s2143 = scalar_lea.vmem %s1, 2
  %v2144 = vld [vmem:[%s2143] sm:$0x3]
  %vm2145 = vcmask 31744
  %v2147 = vsel %vm2145, %v2111, 0
  %v2150 = vsel %vm2145, %v2112, 0
  %v2153 = vsel %vm2145, %v2113, 0
  %v2156 = vsel %vm2145, %v2114, 0
  %v2159 = vsel %vm2145, %v2115, 0
  %v2162 = vsel %vm2145, %v2116, 0
  %v2165 = vsel %vm2145, %v2117, 0
  %v2168 = vsel %vm2145, %v2118, 0
  %v2171 = vsel %vm2145, %v2119, 0
  %v2174 = vsel %vm2145, %v2120, 0
  %v2177 = vsel %vm2145, %v2121, 0
  %v2180 = vsel %vm2145, %v2122, 0
  %v2183 = vsel %vm2145, %v2123, 0
  %v2186 = vsel %vm2145, %v2124, 0
  %v2189 = vsel %vm2145, %v2125, 0
  %v2192 = vsel %vm2145, %v2126, 0
  %v2195 = vsel %vm2145, %v2127, 0
  %v2198 = vsel %vm2145, %v2128, 0
  %v2201 = vsel %vm2145, %v2129, 0
  %v2204 = vsel %vm2145, %v2130, 0
  %v2207 = vsel %vm2145, %v2131, 0
  %v2210 = vsel %vm2145, %v2132, 0
  %v2213 = vsel %vm2145, %v2133, 0
  %v2216 = vsel %vm2145, %v2134, 0
  %v2219 = vsel %vm2145, %v2135, 0
  %v2222 = vsel %vm2145, %v2136, 0
  %v2225 = vsel %vm2145, %v2137, 0
  %v2228 = vsel %vm2145, %v2138, 0
  %v2231 = vsel %vm2145, %v2139, 0
  %v2234 = vsel %vm2145, %v2140, 0
  %v2237 = vsel %vm2145, %v2141, 0
  %v2240 = vsel %vm2145, %v2142, 0
  %vm2242 = vcmask 1041408
  %v2244 = vsel %vm2242, %v2144, 0
  %2246 = vmatpush.bf16.msra.mxu0 0
  %2247 = vmatpush.bf16.msra.mxu0 0
  %2248 = vmatpush.bf16.msra.mxu0 0
  %2249 = vmatpush.bf16.msra.mxu0 0
  %2250 = vmatpush.bf16.msra.mxu0 0
  %2251 = vmatpush.bf16.msra.mxu0 0
  %2252 = vmatpush.bf16.msra.mxu0 0
  %2253 = vmatpush.bf16.msra.mxu0 %v2244
  %2254 = vmatmul.bf16.gmra.mxu0 %v2147
  %v2255 = vpop.f32.mrf.mxu0
  %v2256 = vadd.f32 0.0, %v2255
  %v2257 = vpop.f32.mrf.mxu0
  %v2258 = vadd.f32 0.0, %v2257
  %2259 = vmatmul.bf16.gmra.mxu0 %v2150
  %v2260 = vpop.f32.mrf.mxu0
  %v2261 = vadd.f32 0.0, %v2260
  %v2262 = vpop.f32.mrf.mxu0
  %v2263 = vadd.f32 0.0, %v2262
  %2264 = vmatmul.bf16.gmra.mxu0 %v2153
  %v2265 = vpop.f32.mrf.mxu0
  %v2266 = vadd.f32 0.0, %v2265
  %v2267 = vpop.f32.mrf.mxu0
  %v2268 = vadd.f32 0.0, %v2267
  %2269 = vmatmul.bf16.gmra.mxu0 %v2156
  %v2270 = vpop.f32.mrf.mxu0
  %v2271 = vadd.f32 0.0, %v2270
  %v2272 = vpop.f32.mrf.mxu0
  %v2273 = vadd.f32 0.0, %v2272
  %2274 = vmatmul.bf16.gmra.mxu0 %v2159
  %v2275 = vpop.f32.mrf.mxu0
  %v2276 = vadd.f32 0.0, %v2275
  %v2277 = vpop.f32.mrf.mxu0
  %v2278 = vadd.f32 0.0, %v2277
  %2279 = vmatmul.bf16.gmra.mxu0 %v2162
  %v2280 = vpop.f32.mrf.mxu0
  %v2281 = vadd.f32 0.0, %v2280
  %v2282 = vpop.f32.mrf.mxu0
  %v2283 = vadd.f32 0.0, %v2282
  %2284 = vmatmul.bf16.gmra.mxu0 %v2165
  %v2285 = vpop.f32.mrf.mxu0
  %v2286 = vadd.f32 0.0, %v2285
  %v2287 = vpop.f32.mrf.mxu0
  %v2288 = vadd.f32 0.0, %v2287
  %2289 = vmatmul.bf16.gmra.mxu0 %v2168
  %v2290 = vpop.f32.mrf.mxu0
  %v2291 = vadd.f32 0.0, %v2290
  %v2292 = vpop.f32.mrf.mxu0
  %v2293 = vadd.f32 0.0, %v2292
  %2294 = vmatmul.bf16.gmra.mxu0 %v2171
  %v2295 = vpop.f32.mrf.mxu0
  %v2296 = vadd.f32 0.0, %v2295
  %v2297 = vpop.f32.mrf.mxu0
  %v2298 = vadd.f32 0.0, %v2297
  %2299 = vmatmul.bf16.gmra.mxu0 %v2174
  %v2300 = vpop.f32.mrf.mxu0
  %v2301 = vadd.f32 0.0, %v2300
  %v2302 = vpop.f32.mrf.mxu0
  %v2303 = vadd.f32 0.0, %v2302
  %2304 = vmatmul.bf16.gmra.mxu0 %v2177
  %v2305 = vpop.f32.mrf.mxu0
  %v2306 = vadd.f32 0.0, %v2305
  %v2307 = vpop.f32.mrf.mxu0
  %v2308 = vadd.f32 0.0, %v2307
  %2309 = vmatmul.bf16.gmra.mxu0 %v2180
  %v2310 = vpop.f32.mrf.mxu0
  %v2311 = vadd.f32 0.0, %v2310
  %v2312 = vpop.f32.mrf.mxu0
  %v2313 = vadd.f32 0.0, %v2312
  %2314 = vmatmul.bf16.gmra.mxu0 %v2183
  %v2315 = vpop.f32.mrf.mxu0
  %v2316 = vadd.f32 0.0, %v2315
  %v2317 = vpop.f32.mrf.mxu0
  %v2318 = vadd.f32 0.0, %v2317
  %2319 = vmatmul.bf16.gmra.mxu0 %v2186
  %v2320 = vpop.f32.mrf.mxu0
  %v2321 = vadd.f32 0.0, %v2320
  %v2322 = vpop.f32.mrf.mxu0
  %v2323 = vadd.f32 0.0, %v2322
  %2324 = vmatmul.bf16.gmra.mxu0 %v2189
  %v2325 = vpop.f32.mrf.mxu0
  %v2326 = vadd.f32 0.0, %v2325
  %v2327 = vpop.f32.mrf.mxu0
  %v2328 = vadd.f32 0.0, %v2327
  %2329 = vmatmul.bf16.gmra.mxu0 %v2192
  %v2330 = vpop.f32.mrf.mxu0
  %v2331 = vadd.f32 0.0, %v2330
  %v2332 = vpop.f32.mrf.mxu0
  %v2333 = vadd.f32 0.0, %v2332
  %2334 = vmatmul.bf16.gmra.mxu0 %v2195
  %v2335 = vpop.f32.mrf.mxu0
  %v2336 = vadd.f32 0.0, %v2335
  %v2337 = vpop.f32.mrf.mxu0
  %v2338 = vadd.f32 0.0, %v2337
  %2339 = vmatmul.bf16.gmra.mxu0 %v2198
  %v2340 = vpop.f32.mrf.mxu0
  %v2341 = vadd.f32 0.0, %v2340
  %v2342 = vpop.f32.mrf.mxu0
  %v2343 = vadd.f32 0.0, %v2342
  %2344 = vmatmul.bf16.gmra.mxu0 %v2201
  %v2345 = vpop.f32.mrf.mxu0
  %v2346 = vadd.f32 0.0, %v2345
  %v2347 = vpop.f32.mrf.mxu0
  %v2348 = vadd.f32 0.0, %v2347
  %2349 = vmatmul.bf16.gmra.mxu0 %v2204
  %v2350 = vpop.f32.mrf.mxu0
  %v2351 = vadd.f32 0.0, %v2350
  %v2352 = vpop.f32.mrf.mxu0
  %v2353 = vadd.f32 0.0, %v2352
  %2354 = vmatmul.bf16.gmra.mxu0 %v2207
  %v2355 = vpop.f32.mrf.mxu0
  %v2356 = vadd.f32 0.0, %v2355
  %v2357 = vpop.f32.mrf.mxu0
  %v2358 = vadd.f32 0.0, %v2357
  %2359 = vmatmul.bf16.gmra.mxu0 %v2210
  %v2360 = vpop.f32.mrf.mxu0
  %v2361 = vadd.f32 0.0, %v2360
  %v2362 = vpop.f32.mrf.mxu0
  %v2363 = vadd.f32 0.0, %v2362
  %2364 = vmatmul.bf16.gmra.mxu0 %v2213
  %v2365 = vpop.f32.mrf.mxu0
  %v2366 = vadd.f32 0.0, %v2365
  %v2367 = vpop.f32.mrf.mxu0
  %v2368 = vadd.f32 0.0, %v2367
  %2369 = vmatmul.bf16.gmra.mxu0 %v2216
  %v2370 = vpop.f32.mrf.mxu0
  %v2371 = vadd.f32 0.0, %v2370
  %v2372 = vpop.f32.mrf.mxu0
  %v2373 = vadd.f32 0.0, %v2372
  %2374 = vmatmul.bf16.gmra.mxu0 %v2219
  %v2375 = vpop.f32.mrf.mxu0
  %v2376 = vadd.f32 0.0, %v2375
  %v2377 = vpop.f32.mrf.mxu0
  %v2378 = vadd.f32 0.0, %v2377
  %2379 = vmatmul.bf16.gmra.mxu0 %v2222
  %v2380 = vpop.f32.mrf.mxu0
  %v2381 = vadd.f32 0.0, %v2380
  %v2382 = vpop.f32.mrf.mxu0
  %v2383 = vadd.f32 0.0, %v2382
  %2384 = vmatmul.bf16.gmra.mxu0 %v2225
  %v2385 = vpop.f32.mrf.mxu0
  %v2386 = vadd.f32 0.0, %v2385
  %v2387 = vpop.f32.mrf.mxu0
  %v2388 = vadd.f32 0.0, %v2387
  %2389 = vmatmul.bf16.gmra.mxu0 %v2228
  %v2390 = vpop.f32.mrf.mxu0
  %v2391 = vadd.f32 0.0, %v2390
  %v2392 = vpop.f32.mrf.mxu0
  %v2393 = vadd.f32 0.0, %v2392
  %2394 = vmatmul.bf16.gmra.mxu0 %v2231
  %v2395 = vpop.f32.mrf.mxu0
  %v2396 = vadd.f32 0.0, %v2395
  %v2397 = vpop.f32.mrf.mxu0
  %v2398 = vadd.f32 0.0, %v2397
  %2399 = vmatmul.bf16.gmra.mxu0 %v2234
  %v2400 = vpop.f32.mrf.mxu0
  %v2401 = vadd.f32 0.0, %v2400
  %v2402 = vpop.f32.mrf.mxu0
  %v2403 = vadd.f32 0.0, %v2402
  %2404 = vmatmul.bf16.gmra.mxu0 %v2237
  %v2405 = vpop.f32.mrf.mxu0
  %v2406 = vadd.f32 0.0, %v2405
  %v2407 = vpop.f32.mrf.mxu0
  %v2408 = vadd.f32 0.0, %v2407
  %2409 = vmatmul.bf16.gmra.mxu0 %v2240
  %v2410 = vpop.f32.mrf.mxu0
  %v2411 = vadd.f32 0.0, %v2410
  %v2412 = vpop.f32.mrf.mxu0
  %v2413 = vadd.f32 0.0, %v2412
  %2414 = vdwg.mxu0
  %v2416 = vsel %vm2145, %v1886, 0
  %v2419 = vsel %vm2145, %v1887, 0
  %v2422 = vsel %vm2145, %v1888, 0
  %v2425 = vsel %vm2145, %v1889, 0
  %v2428 = vsel %vm2145, %v1890, 0
  %v2431 = vsel %vm2145, %v1891, 0
  %v2434 = vsel %vm2145, %v1892, 0
  %v2437 = vsel %vm2145, %v1893, 0
  %v2440 = vsel %vm2145, %v1894, 0
  %v2443 = vsel %vm2145, %v1895, 0
  %v2446 = vsel %vm2145, %v1896, 0
  %v2449 = vsel %vm2145, %v1897, 0
  %v2452 = vsel %vm2145, %v1898, 0
  %v2455 = vsel %vm2145, %v1899, 0
  %v2458 = vsel %vm2145, %v1900, 0
  %v2461 = vsel %vm2145, %v1901, 0
  %v2464 = vsel %vm2145, %v1902, 0
  %v2467 = vsel %vm2145, %v1903, 0
  %v2470 = vsel %vm2145, %v1904, 0
  %v2473 = vsel %vm2145, %v1905, 0
  %v2476 = vsel %vm2145, %v1906, 0
  %v2479 = vsel %vm2145, %v1907, 0
  %v2482 = vsel %vm2145, %v1908, 0
  %v2485 = vsel %vm2145, %v1909, 0
  %v2488 = vsel %vm2145, %v1910, 0
  %v2491 = vsel %vm2145, %v1911, 0
  %v2494 = vsel %vm2145, %v1912, 0
  %v2497 = vsel %vm2145, %v1913, 0
  %v2500 = vsel %vm2145, %v1914, 0
  %v2503 = vsel %vm2145, %v1915, 0
  %v2506 = vsel %vm2145, %v1916, 0
  %v2509 = vsel %vm2145, %v1917, 0
  %v2512 = vsel %vm2242, %v1918, 0
  %2514 = vmatpush.bf16.msra.mxu0 0
  %2515 = vmatpush.bf16.msra.mxu0 0
  %2516 = vmatpush.bf16.msra.mxu0 0
  %2517 = vmatpush.bf16.msra.mxu0 0
  %2518 = vmatpush.bf16.msra.mxu0 0
  %2519 = vmatpush.bf16.msra.mxu0 0
  %2520 = vmatpush.bf16.msra.mxu0 0
  %2521 = vmatpush.bf16.msra.mxu0 %v2512
  %2522 = vmatmul.bf16.gmra.mxu0 %v2416
  %v2523 = vpop.f32.mrf.mxu0
  %v2524 = vadd.f32 %v2256, %v2523
  %v2525 = vpop.f32.mrf.mxu0
  %v2526 = vadd.f32 %v2258, %v2525
  %2527 = vmatmul.bf16.gmra.mxu0 %v2419
  %v2528 = vpop.f32.mrf.mxu0
  %v2529 = vadd.f32 %v2261, %v2528
  %v2530 = vpop.f32.mrf.mxu0
  %v2531 = vadd.f32 %v2263, %v2530
  %2532 = vmatmul.bf16.gmra.mxu0 %v2422
  %v2533 = vpop.f32.mrf.mxu0
  %v2534 = vadd.f32 %v2266, %v2533
  %v2535 = vpop.f32.mrf.mxu0
  %v2536 = vadd.f32 %v2268, %v2535
  %2537 = vmatmul.bf16.gmra.mxu0 %v2425
  %v2538 = vpop.f32.mrf.mxu0
  %v2539 = vadd.f32 %v2271, %v2538
  %v2540 = vpop.f32.mrf.mxu0
  %v2541 = vadd.f32 %v2273, %v2540
  %2542 = vmatmul.bf16.gmra.mxu0 %v2428
  %v2543 = vpop.f32.mrf.mxu0
  %v2544 = vadd.f32 %v2276, %v2543
  %v2545 = vpop.f32.mrf.mxu0
  %v2546 = vadd.f32 %v2278, %v2545
  %2547 = vmatmul.bf16.gmra.mxu0 %v2431
  %v2548 = vpop.f32.mrf.mxu0
  %v2549 = vadd.f32 %v2281, %v2548
  %v2550 = vpop.f32.mrf.mxu0
  %v2551 = vadd.f32 %v2283, %v2550
  %2552 = vmatmul.bf16.gmra.mxu0 %v2434
  %v2553 = vpop.f32.mrf.mxu0
  %v2554 = vadd.f32 %v2286, %v2553
  %v2555 = vpop.f32.mrf.mxu0
  %v2556 = vadd.f32 %v2288, %v2555
  %2557 = vmatmul.bf16.gmra.mxu0 %v2437
  %v2558 = vpop.f32.mrf.mxu0
  %v2559 = vadd.f32 %v2291, %v2558
  %v2560 = vpop.f32.mrf.mxu0
  %v2561 = vadd.f32 %v2293, %v2560
  %2562 = vmatmul.bf16.gmra.mxu0 %v2440
  %v2563 = vpop.f32.mrf.mxu0
  %v2564 = vadd.f32 %v2296, %v2563
  %v2565 = vpop.f32.mrf.mxu0
  %v2566 = vadd.f32 %v2298, %v2565
  %2567 = vmatmul.bf16.gmra.mxu0 %v2443
  %v2568 = vpop.f32.mrf.mxu0
  %v2569 = vadd.f32 %v2301, %v2568
  %v2570 = vpop.f32.mrf.mxu0
  %v2571 = vadd.f32 %v2303, %v2570
  %2572 = vmatmul.bf16.gmra.mxu0 %v2446
  %v2573 = vpop.f32.mrf.mxu0
  %v2574 = vadd.f32 %v2306, %v2573
  %v2575 = vpop.f32.mrf.mxu0
  %v2576 = vadd.f32 %v2308, %v2575
  %2577 = vmatmul.bf16.gmra.mxu0 %v2449
  %v2578 = vpop.f32.mrf.mxu0
  %v2579 = vadd.f32 %v2311, %v2578
  %v2580 = vpop.f32.mrf.mxu0
  %v2581 = vadd.f32 %v2313, %v2580
  %2582 = vmatmul.bf16.gmra.mxu0 %v2452
  %v2583 = vpop.f32.mrf.mxu0
  %v2584 = vadd.f32 %v2316, %v2583
  %v2585 = vpop.f32.mrf.mxu0
  %v2586 = vadd.f32 %v2318, %v2585
  %2587 = vmatmul.bf16.gmra.mxu0 %v2455
  %v2588 = vpop.f32.mrf.mxu0
  %v2589 = vadd.f32 %v2321, %v2588
  %v2590 = vpop.f32.mrf.mxu0
  %v2591 = vadd.f32 %v2323, %v2590
  %2592 = vmatmul.bf16.gmra.mxu0 %v2458
  %v2593 = vpop.f32.mrf.mxu0
  %v2594 = vadd.f32 %v2326, %v2593
  %v2595 = vpop.f32.mrf.mxu0
  %v2596 = vadd.f32 %v2328, %v2595
  %2597 = vmatmul.bf16.gmra.mxu0 %v2461
  %v2598 = vpop.f32.mrf.mxu0
  %v2599 = vadd.f32 %v2331, %v2598
  %v2600 = vpop.f32.mrf.mxu0
  %v2601 = vadd.f32 %v2333, %v2600
  %2602 = vmatmul.bf16.gmra.mxu0 %v2464
  %v2603 = vpop.f32.mrf.mxu0
  %v2604 = vadd.f32 %v2336, %v2603
  %v2605 = vpop.f32.mrf.mxu0
  %v2606 = vadd.f32 %v2338, %v2605
  %2607 = vmatmul.bf16.gmra.mxu0 %v2467
  %v2608 = vpop.f32.mrf.mxu0
  %v2609 = vadd.f32 %v2341, %v2608
  %v2610 = vpop.f32.mrf.mxu0
  %v2611 = vadd.f32 %v2343, %v2610
  %2612 = vmatmul.bf16.gmra.mxu0 %v2470
  %v2613 = vpop.f32.mrf.mxu0
  %v2614 = vadd.f32 %v2346, %v2613
  %v2615 = vpop.f32.mrf.mxu0
  %v2616 = vadd.f32 %v2348, %v2615
  %2617 = vmatmul.bf16.gmra.mxu0 %v2473
  %v2618 = vpop.f32.mrf.mxu0
  %v2619 = vadd.f32 %v2351, %v2618
  %v2620 = vpop.f32.mrf.mxu0
  %v2621 = vadd.f32 %v2353, %v2620
  %2622 = vmatmul.bf16.gmra.mxu0 %v2476
  %v2623 = vpop.f32.mrf.mxu0
  %v2624 = vadd.f32 %v2356, %v2623
  %v2625 = vpop.f32.mrf.mxu0
  %v2626 = vadd.f32 %v2358, %v2625
  %2627 = vmatmul.bf16.gmra.mxu0 %v2479
  %v2628 = vpop.f32.mrf.mxu0
  %v2629 = vadd.f32 %v2361, %v2628
  %v2630 = vpop.f32.mrf.mxu0
  %v2631 = vadd.f32 %v2363, %v2630
  %2632 = vmatmul.bf16.gmra.mxu0 %v2482
  %v2633 = vpop.f32.mrf.mxu0
  %v2634 = vadd.f32 %v2366, %v2633
  %v2635 = vpop.f32.mrf.mxu0
  %v2636 = vadd.f32 %v2368, %v2635
  %2637 = vmatmul.bf16.gmra.mxu0 %v2485
  %v2638 = vpop.f32.mrf.mxu0
  %v2639 = vadd.f32 %v2371, %v2638
  %v2640 = vpop.f32.mrf.mxu0
  %v2641 = vadd.f32 %v2373, %v2640
  %2642 = vmatmul.bf16.gmra.mxu0 %v2488
  %v2643 = vpop.f32.mrf.mxu0
  %v2644 = vadd.f32 %v2376, %v2643
  %v2645 = vpop.f32.mrf.mxu0
  %v2646 = vadd.f32 %v2378, %v2645
  %2647 = vmatmul.bf16.gmra.mxu0 %v2491
  %v2648 = vpop.f32.mrf.mxu0
  %v2649 = vadd.f32 %v2381, %v2648
  %v2650 = vpop.f32.mrf.mxu0
  %v2651 = vadd.f32 %v2383, %v2650
  %2652 = vmatmul.bf16.gmra.mxu0 %v2494
  %v2653 = vpop.f32.mrf.mxu0
  %v2654 = vadd.f32 %v2386, %v2653
  %v2655 = vpop.f32.mrf.mxu0
  %v2656 = vadd.f32 %v2388, %v2655
  %2657 = vmatmul.bf16.gmra.mxu0 %v2497
  %v2658 = vpop.f32.mrf.mxu0
  %v2659 = vadd.f32 %v2391, %v2658
  %v2660 = vpop.f32.mrf.mxu0
  %v2661 = vadd.f32 %v2393, %v2660
  %2662 = vmatmul.bf16.gmra.mxu0 %v2500
  %v2663 = vpop.f32.mrf.mxu0
  %v2664 = vadd.f32 %v2396, %v2663
  %v2665 = vpop.f32.mrf.mxu0
  %v2666 = vadd.f32 %v2398, %v2665
  %2667 = vmatmul.bf16.gmra.mxu0 %v2503
  %v2668 = vpop.f32.mrf.mxu0
  %v2669 = vadd.f32 %v2401, %v2668
  %v2670 = vpop.f32.mrf.mxu0
  %v2671 = vadd.f32 %v2403, %v2670
  %2672 = vmatmul.bf16.gmra.mxu0 %v2506
  %v2673 = vpop.f32.mrf.mxu0
  %v2674 = vadd.f32 %v2406, %v2673
  %v2675 = vpop.f32.mrf.mxu0
  %v2676 = vadd.f32 %v2408, %v2675
  %2677 = vmatmul.bf16.gmra.mxu0 %v2509
  %v2678 = vpop.f32.mrf.mxu0
  %v2679 = vadd.f32 %v2411, %v2678
  %v2680 = vpop.f32.mrf.mxu0
  %v2681 = vadd.f32 %v2413, %v2680
  %2682 = vdwg.mxu0
  %v2683 = vld [vmem:[%s0 + $0x9] sm:$0xff]
  %v2684 = vld [vmem:[%s0 + $0x11] sm:$0xff]
  %v2685 = vld [vmem:[%s0 + $0x19] sm:$0xff]
  %v2686 = vld [vmem:[%s0 + $0x21] sm:$0xff]
  %v2687 = vld [vmem:[%s0 + $0x29] sm:$0xff]
  %v2688 = vld [vmem:[%s0 + $0x31] sm:$0xff]
  %v2689 = vld [vmem:[%s0 + $0x39] sm:$0xff]
  %v2690 = vld [vmem:[%s0 + $0x41] sm:$0xff]
  %v2691 = vld [vmem:[%s0 + $0x49] sm:$0xff]
  %v2692 = vld [vmem:[%s0 + $0x51] sm:$0xff]
  %v2693 = vld [vmem:[%s0 + $0x59] sm:$0xff]
  %v2694 = vld [vmem:[%s0 + $0x61] sm:$0xff]
  %v2695 = vld [vmem:[%s0 + $0x69] sm:$0xff]
  %v2696 = vld [vmem:[%s0 + $0x71] sm:$0xff]
  %v2697 = vld [vmem:[%s0 + $0x79] sm:$0xff]
  %v2698 = vld [vmem:[%s0 + $0x81] sm:$0xff]
  %v2699 = vld [vmem:[%s0 + $0x89] sm:$0xff]
  %v2700 = vld [vmem:[%s0 + $0x91] sm:$0xff]
  %v2701 = vld [vmem:[%s0 + $0x99] sm:$0xff]
  %v2702 = vld [vmem:[%s0 + $0xa1] sm:$0xff]
  %v2703 = vld [vmem:[%s0 + $0xa9] sm:$0xff]
  %v2704 = vld [vmem:[%s0 + $0xb1] sm:$0xff]
  %v2705 = vld [vmem:[%s0 + $0xb9] sm:$0xff]
  %v2706 = vld [vmem:[%s0 + $0xc1] sm:$0xff]
  %v2707 = vld [vmem:[%s0 + $0xc9] sm:$0xff]
  %v2708 = vld [vmem:[%s0 + $0xd1] sm:$0xff]
  %v2709 = vld [vmem:[%s0 + $0xd9] sm:$0xff]
  %v2710 = vld [vmem:[%s0 + $0xe1] sm:$0xff]
  %v2711 = vld [vmem:[%s0 + $0xe9] sm:$0xff]
  %v2712 = vld [vmem:[%s0 + $0xf1] sm:$0xff]
  %v2713 = vld [vmem:[%s0 + $0xf9] sm:$0xff]
  %v2714 = vld [vmem:[%s0 + $0x101] sm:$0xff]
  %v2715 = vld [vmem:[%s0 + $0x109] sm:$0xff]
  %v2716 = vld [vmem:[%s0 + $0x111] sm:$0xff]
  %v2717 = vld [vmem:[%s0 + $0x119] sm:$0xff]
  %v2718 = vld [vmem:[%s0 + $0x121] sm:$0xff]
  %v2719 = vld [vmem:[%s0 + $0x129] sm:$0xff]
  %v2720 = vld [vmem:[%s0 + $0x131] sm:$0xff]
  %v2721 = vld [vmem:[%s0 + $0x139] sm:$0xff]
  %v2722 = vld [vmem:[%s0 + $0x141] sm:$0xff]
  %v2723 = vld [vmem:[%s0 + $0x149] sm:$0xff]
  %v2724 = vld [vmem:[%s0 + $0x151] sm:$0xff]
  %v2725 = vld [vmem:[%s0 + $0x159] sm:$0xff]
  %v2726 = vld [vmem:[%s0 + $0x161] sm:$0xff]
  %v2727 = vld [vmem:[%s0 + $0x169] sm:$0xff]
  %v2728 = vld [vmem:[%s0 + $0x171] sm:$0xff]
  %v2729 = vld [vmem:[%s0 + $0x179] sm:$0xff]
  %v2730 = vld [vmem:[%s0 + $0x181] sm:$0xff]
  %v2731 = vld [vmem:[%s0 + $0x189] sm:$0xff]
  %v2732 = vld [vmem:[%s0 + $0x191] sm:$0xff]
  %v2733 = vld [vmem:[%s0 + $0x199] sm:$0xff]
  %v2734 = vld [vmem:[%s0 + $0x1a1] sm:$0xff]
  %v2735 = vld [vmem:[%s0 + $0x1a9] sm:$0xff]
  %v2736 = vld [vmem:[%s0 + $0x1b1] sm:$0xff]
  %v2737 = vld [vmem:[%s0 + $0x1b9] sm:$0xff]
  %v2738 = vld [vmem:[%s0 + $0x1c1] sm:$0xff]
  %v2739 = vld [vmem:[%s0 + $0x1c9] sm:$0xff]
  %v2740 = vld [vmem:[%s0 + $0x1d1] sm:$0xff]
  %v2741 = vld [vmem:[%s0 + $0x1d9] sm:$0xff]
  %v2742 = vld [vmem:[%s0 + $0x1e1] sm:$0xff]
  %v2743 = vld [vmem:[%s0 + $0x1e9] sm:$0xff]
  %v2744 = vld [vmem:[%s0 + $0x1f1] sm:$0xff]
  %v2745 = vld [vmem:[%s0 + $0x1f9] sm:$0xff]
  %v2746 = vld [vmem:[%s0 + $0x201] sm:$0xff]
  %vm2747 = vmand %vm478, %vm1630
  %vm2748 = vmand %vm479, %vm1631
  %vm2749 = vmand %vm480, %vm1632
  %vm2750 = vmand %vm481, %vm1633
  %vm2751 = vmand %vm482, %vm1634
  %vm2752 = vmand %vm483, %vm1635
  %vm2753 = vmand %vm484, %vm1636
  %vm2754 = vmand %vm485, %vm1637
  %vm2755 = vmand %vm486, %vm1638
  %vm2756 = vmand %vm487, %vm1639
  %vm2757 = vmand %vm488, %vm1640
  %vm2758 = vmand %vm489, %vm1641
  %vm2759 = vmand %vm490, %vm1642
  %vm2760 = vmand %vm491, %vm1643
  %vm2761 = vmand %vm492, %vm1644
  %vm2762 = vmand %vm493, %vm1645
  %vm2763 = vmand %vm494, %vm1646
  %vm2764 = vmand %vm495, %vm1647
  %vm2765 = vmand %vm496, %vm1648
  %vm2766 = vmand %vm497, %vm1649
  %vm2767 = vmand %vm498, %vm1650
  %vm2768 = vmand %vm499, %vm1651
  %vm2769 = vmand %vm500, %vm1652
  %vm2770 = vmand %vm501, %vm1653
  %vm2771 = vmand %vm502, %vm1654
  %vm2772 = vmand %vm503, %vm1655
  %vm2773 = vmand %vm504, %vm1656
  %vm2774 = vmand %vm505, %vm1657
  %vm2775 = vmand %vm506, %vm1658
  %vm2776 = vmand %vm507, %vm1659
  %vm2777 = vmand %vm508, %vm1660
  %vm2778 = vmand %vm509, %vm1661
  %vm2779 = vmand %vm510, %vm1662
  %vm2780 = vmand %vm511, %vm1663
  %vm2781 = vmand %vm512, %vm1664
  %vm2782 = vmand %vm513, %vm1665
  %vm2783 = vmand %vm514, %vm1666
  %vm2784 = vmand %vm515, %vm1667
  %vm2785 = vmand %vm516, %vm1668
  %vm2786 = vmand %vm517, %vm1669
  %vm2787 = vmand %vm518, %vm1670
  %vm2788 = vmand %vm519, %vm1671
  %vm2789 = vmand %vm520, %vm1672
  %vm2790 = vmand %vm521, %vm1673
  %vm2791 = vmand %vm522, %vm1674
  %vm2792 = vmand %vm523, %vm1675
  %vm2793 = vmand %vm524, %vm1676
  %vm2794 = vmand %vm525, %vm1677
  %vm2795 = vmand %vm526, %vm1678
  %vm2796 = vmand %vm527, %vm1679
  %vm2797 = vmand %vm528, %vm1680
  %vm2798 = vmand %vm529, %vm1681
  %vm2799 = vmand %vm530, %vm1682
  %vm2800 = vmand %vm531, %vm1683
  %vm2801 = vmand %vm532, %vm1684
  %vm2802 = vmand %vm533, %vm1685
  %vm2803 = vmand %vm534, %vm1686
  %vm2804 = vmand %vm535, %vm1687
  %vm2805 = vmand %vm536, %vm1688
  %vm2806 = vmand %vm537, %vm1689
  %vm2807 = vmand %vm538, %vm1690
  %vm2808 = vmand %vm539, %vm1691
  %vm2809 = vmand %vm540, %vm1692
  %vm2810 = vmand %vm541, %vm1693
  %v2811 = vsel %vm2747, %v2683, 0.0
  %v2812 = vsel %vm2748, %v2684, 0.0
  %v2813 = vsel %vm2749, %v2685, 0.0
  %v2814 = vsel %vm2750, %v2686, 0.0
  %v2815 = vsel %vm2751, %v2687, 0.0
  %v2816 = vsel %vm2752, %v2688, 0.0
  %v2817 = vsel %vm2753, %v2689, 0.0
  %v2818 = vsel %vm2754, %v2690, 0.0
  %v2819 = vsel %vm2755, %v2691, 0.0
  %v2820 = vsel %vm2756, %v2692, 0.0
  %v2821 = vsel %vm2757, %v2693, 0.0
  %v2822 = vsel %vm2758, %v2694, 0.0
  %v2823 = vsel %vm2759, %v2695, 0.0
  %v2824 = vsel %vm2760, %v2696, 0.0
  %v2825 = vsel %vm2761, %v2697, 0.0
  %v2826 = vsel %vm2762, %v2698, 0.0
  %v2827 = vsel %vm2763, %v2699, 0.0
  %v2828 = vsel %vm2764, %v2700, 0.0
  %v2829 = vsel %vm2765, %v2701, 0.0
  %v2830 = vsel %vm2766, %v2702, 0.0
  %v2831 = vsel %vm2767, %v2703, 0.0
  %v2832 = vsel %vm2768, %v2704, 0.0
  %v2833 = vsel %vm2769, %v2705, 0.0
  %v2834 = vsel %vm2770, %v2706, 0.0
  %v2835 = vsel %vm2771, %v2707, 0.0
  %v2836 = vsel %vm2772, %v2708, 0.0
  %v2837 = vsel %vm2773, %v2709, 0.0
  %v2838 = vsel %vm2774, %v2710, 0.0
  %v2839 = vsel %vm2775, %v2711, 0.0
  %v2840 = vsel %vm2776, %v2712, 0.0
  %v2841 = vsel %vm2777, %v2713, 0.0
  %v2842 = vsel %vm2778, %v2714, 0.0
  %v2843 = vsel %vm2779, %v2715, 0.0
  %v2844 = vsel %vm2780, %v2716, 0.0
  %v2845 = vsel %vm2781, %v2717, 0.0
  %v2846 = vsel %vm2782, %v2718, 0.0
  %v2847 = vsel %vm2783, %v2719, 0.0
  %v2848 = vsel %vm2784, %v2720, 0.0
  %v2849 = vsel %vm2785, %v2721, 0.0
  %v2850 = vsel %vm2786, %v2722, 0.0
  %v2851 = vsel %vm2787, %v2723, 0.0
  %v2852 = vsel %vm2788, %v2724, 0.0
  %v2853 = vsel %vm2789, %v2725, 0.0
  %v2854 = vsel %vm2790, %v2726, 0.0
  %v2855 = vsel %vm2791, %v2727, 0.0
  %v2856 = vsel %vm2792, %v2728, 0.0
  %v2857 = vsel %vm2793, %v2729, 0.0
  %v2858 = vsel %vm2794, %v2730, 0.0
  %v2859 = vsel %vm2795, %v2731, 0.0
  %v2860 = vsel %vm2796, %v2732, 0.0
  %v2861 = vsel %vm2797, %v2733, 0.0
  %v2862 = vsel %vm2798, %v2734, 0.0
  %v2863 = vsel %vm2799, %v2735, 0.0
  %v2864 = vsel %vm2800, %v2736, 0.0
  %v2865 = vsel %vm2801, %v2737, 0.0
  %v2866 = vsel %vm2802, %v2738, 0.0
  %v2867 = vsel %vm2803, %v2739, 0.0
  %v2868 = vsel %vm2804, %v2740, 0.0
  %v2869 = vsel %vm2805, %v2741, 0.0
  %v2870 = vsel %vm2806, %v2742, 0.0
  %v2871 = vsel %vm2807, %v2743, 0.0
  %v2872 = vsel %vm2808, %v2744, 0.0
  %v2873 = vsel %vm2809, %v2745, 0.0
  %v2874 = vsel %vm2810, %v2746, 0.0
  %v2875 = vpack.c.bf16 %v2812, %v2811
  %v2876 = vpack.c.bf16 %v2814, %v2813
  %v2877 = vpack.c.bf16 %v2816, %v2815
  %v2878 = vpack.c.bf16 %v2818, %v2817
  %v2879 = vpack.c.bf16 %v2820, %v2819
  %v2880 = vpack.c.bf16 %v2822, %v2821
  %v2881 = vpack.c.bf16 %v2824, %v2823
  %v2882 = vpack.c.bf16 %v2826, %v2825
  %v2883 = vpack.c.bf16 %v2828, %v2827
  %v2884 = vpack.c.bf16 %v2830, %v2829
  %v2885 = vpack.c.bf16 %v2832, %v2831
  %v2886 = vpack.c.bf16 %v2834, %v2833
  %v2887 = vpack.c.bf16 %v2836, %v2835
  %v2888 = vpack.c.bf16 %v2838, %v2837
  %v2889 = vpack.c.bf16 %v2840, %v2839
  %v2890 = vpack.c.bf16 %v2842, %v2841
  %v2891 = vpack.c.bf16 %v2844, %v2843
  %v2892 = vpack.c.bf16 %v2846, %v2845
  %v2893 = vpack.c.bf16 %v2848, %v2847
  %v2894 = vpack.c.bf16 %v2850, %v2849
  %v2895 = vpack.c.bf16 %v2852, %v2851
  %v2896 = vpack.c.bf16 %v2854, %v2853
  %v2897 = vpack.c.bf16 %v2856, %v2855
  %v2898 = vpack.c.bf16 %v2858, %v2857
  %v2899 = vpack.c.bf16 %v2860, %v2859
  %v2900 = vpack.c.bf16 %v2862, %v2861
  %v2901 = vpack.c.bf16 %v2864, %v2863
  %v2902 = vpack.c.bf16 %v2866, %v2865
  %v2903 = vpack.c.bf16 %v2868, %v2867
  %v2904 = vpack.c.bf16 %v2870, %v2869
  %v2905 = vpack.c.bf16 %v2872, %v2871
  %v2906 = vpack.c.bf16 %v2874, %v2873
  %s2907 = scalar_lea.vmem %s1, 4
  %v2908 = vld [vmem:[%s2907] sm:$0x3]
  %v2910 = vsel %vm2145, %v2875, 0
  %v2913 = vsel %vm2145, %v2876, 0
  %v2916 = vsel %vm2145, %v2877, 0
  %v2919 = vsel %vm2145, %v2878, 0
  %v2922 = vsel %vm2145, %v2879, 0
  %v2925 = vsel %vm2145, %v2880, 0
  %v2928 = vsel %vm2145, %v2881, 0
  %v2931 = vsel %vm2145, %v2882, 0
  %v2934 = vsel %vm2145, %v2883, 0
  %v2937 = vsel %vm2145, %v2884, 0
  %v2940 = vsel %vm2145, %v2885, 0
  %v2943 = vsel %vm2145, %v2886, 0
  %v2946 = vsel %vm2145, %v2887, 0
  %v2949 = vsel %vm2145, %v2888, 0
  %v2952 = vsel %vm2145, %v2889, 0
  %v2955 = vsel %vm2145, %v2890, 0
  %v2958 = vsel %vm2145, %v2891, 0
  %v2961 = vsel %vm2145, %v2892, 0
  %v2964 = vsel %vm2145, %v2893, 0
  %v2967 = vsel %vm2145, %v2894, 0
  %v2970 = vsel %vm2145, %v2895, 0
  %v2973 = vsel %vm2145, %v2896, 0
  %v2976 = vsel %vm2145, %v2897, 0
  %v2979 = vsel %vm2145, %v2898, 0
  %v2982 = vsel %vm2145, %v2899, 0
  %v2985 = vsel %vm2145, %v2900, 0
  %v2988 = vsel %vm2145, %v2901, 0
  %v2991 = vsel %vm2145, %v2902, 0
  %v2994 = vsel %vm2145, %v2903, 0
  %v2997 = vsel %vm2145, %v2904, 0
  %v3000 = vsel %vm2145, %v2905, 0
  %v3003 = vsel %vm2145, %v2906, 0
  %v3006 = vsel %vm2242, %v2908, 0
  %3008 = vmatpush.bf16.msra.mxu0 0
  %3009 = vmatpush.bf16.msra.mxu0 0
  %3010 = vmatpush.bf16.msra.mxu0 0
  %3011 = vmatpush.bf16.msra.mxu0 0
  %3012 = vmatpush.bf16.msra.mxu0 0
  %3013 = vmatpush.bf16.msra.mxu0 0
  %3014 = vmatpush.bf16.msra.mxu0 0
  %3015 = vmatpush.bf16.msra.mxu0 %v3006
  %3016 = vmatmul.bf16.gmra.mxu0 %v2910
  %v3017 = vpop.f32.mrf.mxu0
  %v3018 = vadd.f32 0.0, %v3017
  %v3019 = vpop.f32.mrf.mxu0
  %v3020 = vadd.f32 0.0, %v3019
  %3021 = vmatmul.bf16.gmra.mxu0 %v2913
  %v3022 = vpop.f32.mrf.mxu0
  %v3023 = vadd.f32 0.0, %v3022
  %v3024 = vpop.f32.mrf.mxu0
  %v3025 = vadd.f32 0.0, %v3024
  %3026 = vmatmul.bf16.gmra.mxu0 %v2916
  %v3027 = vpop.f32.mrf.mxu0
  %v3028 = vadd.f32 0.0, %v3027
  %v3029 = vpop.f32.mrf.mxu0
  %v3030 = vadd.f32 0.0, %v3029
  %3031 = vmatmul.bf16.gmra.mxu0 %v2919
  %v3032 = vpop.f32.mrf.mxu0
  %v3033 = vadd.f32 0.0, %v3032
  %v3034 = vpop.f32.mrf.mxu0
  %v3035 = vadd.f32 0.0, %v3034
  %3036 = vmatmul.bf16.gmra.mxu0 %v2922
  %v3037 = vpop.f32.mrf.mxu0
  %v3038 = vadd.f32 0.0, %v3037
  %v3039 = vpop.f32.mrf.mxu0
  %v3040 = vadd.f32 0.0, %v3039
  %3041 = vmatmul.bf16.gmra.mxu0 %v2925
  %v3042 = vpop.f32.mrf.mxu0
  %v3043 = vadd.f32 0.0, %v3042
  %v3044 = vpop.f32.mrf.mxu0
  %v3045 = vadd.f32 0.0, %v3044
  %3046 = vmatmul.bf16.gmra.mxu0 %v2928
  %v3047 = vpop.f32.mrf.mxu0
  %v3048 = vadd.f32 0.0, %v3047
  %v3049 = vpop.f32.mrf.mxu0
  %v3050 = vadd.f32 0.0, %v3049
  %3051 = vmatmul.bf16.gmra.mxu0 %v2931
  %v3052 = vpop.f32.mrf.mxu0
  %v3053 = vadd.f32 0.0, %v3052
  %v3054 = vpop.f32.mrf.mxu0
  %v3055 = vadd.f32 0.0, %v3054
  %3056 = vmatmul.bf16.gmra.mxu0 %v2934
  %v3057 = vpop.f32.mrf.mxu0
  %v3058 = vadd.f32 0.0, %v3057
  %v3059 = vpop.f32.mrf.mxu0
  %v3060 = vadd.f32 0.0, %v3059
  %3061 = vmatmul.bf16.gmra.mxu0 %v2937
  %v3062 = vpop.f32.mrf.mxu0
  %v3063 = vadd.f32 0.0, %v3062
  %v3064 = vpop.f32.mrf.mxu0
  %v3065 = vadd.f32 0.0, %v3064
  %3066 = vmatmul.bf16.gmra.mxu0 %v2940
  %v3067 = vpop.f32.mrf.mxu0
  %v3068 = vadd.f32 0.0, %v3067
  %v3069 = vpop.f32.mrf.mxu0
  %v3070 = vadd.f32 0.0, %v3069
  %3071 = vmatmul.bf16.gmra.mxu0 %v2943
  %v3072 = vpop.f32.mrf.mxu0
  %v3073 = vadd.f32 0.0, %v3072
  %v3074 = vpop.f32.mrf.mxu0
  %v3075 = vadd.f32 0.0, %v3074
  %3076 = vmatmul.bf16.gmra.mxu0 %v2946
  %v3077 = vpop.f32.mrf.mxu0
  %v3078 = vadd.f32 0.0, %v3077
  %v3079 = vpop.f32.mrf.mxu0
  %v3080 = vadd.f32 0.0, %v3079
  %3081 = vmatmul.bf16.gmra.mxu0 %v2949
  %v3082 = vpop.f32.mrf.mxu0
  %v3083 = vadd.f32 0.0, %v3082
  %v3084 = vpop.f32.mrf.mxu0
  %v3085 = vadd.f32 0.0, %v3084
  %3086 = vmatmul.bf16.gmra.mxu0 %v2952
  %v3087 = vpop.f32.mrf.mxu0
  %v3088 = vadd.f32 0.0, %v3087
  %v3089 = vpop.f32.mrf.mxu0
  %v3090 = vadd.f32 0.0, %v3089
  %3091 = vmatmul.bf16.gmra.mxu0 %v2955
  %v3092 = vpop.f32.mrf.mxu0
  %v3093 = vadd.f32 0.0, %v3092
  %v3094 = vpop.f32.mrf.mxu0
  %v3095 = vadd.f32 0.0, %v3094
  %3096 = vmatmul.bf16.gmra.mxu0 %v2958
  %v3097 = vpop.f32.mrf.mxu0
  %v3098 = vadd.f32 0.0, %v3097
  %v3099 = vpop.f32.mrf.mxu0
  %v3100 = vadd.f32 0.0, %v3099
  %3101 = vmatmul.bf16.gmra.mxu0 %v2961
  %v3102 = vpop.f32.mrf.mxu0
  %v3103 = vadd.f32 0.0, %v3102
  %v3104 = vpop.f32.mrf.mxu0
  %v3105 = vadd.f32 0.0, %v3104
  %3106 = vmatmul.bf16.gmra.mxu0 %v2964
  %v3107 = vpop.f32.mrf.mxu0
  %v3108 = vadd.f32 0.0, %v3107
  %v3109 = vpop.f32.mrf.mxu0
  %v3110 = vadd.f32 0.0, %v3109
  %3111 = vmatmul.bf16.gmra.mxu0 %v2967
  %v3112 = vpop.f32.mrf.mxu0
  %v3113 = vadd.f32 0.0, %v3112
  %v3114 = vpop.f32.mrf.mxu0
  %v3115 = vadd.f32 0.0, %v3114
  %3116 = vmatmul.bf16.gmra.mxu0 %v2970
  %v3117 = vpop.f32.mrf.mxu0
  %v3118 = vadd.f32 0.0, %v3117
  %v3119 = vpop.f32.mrf.mxu0
  %v3120 = vadd.f32 0.0, %v3119
  %3121 = vmatmul.bf16.gmra.mxu0 %v2973
  %v3122 = vpop.f32.mrf.mxu0
  %v3123 = vadd.f32 0.0, %v3122
  %v3124 = vpop.f32.mrf.mxu0
  %v3125 = vadd.f32 0.0, %v3124
  %3126 = vmatmul.bf16.gmra.mxu0 %v2976
  %v3127 = vpop.f32.mrf.mxu0
  %v3128 = vadd.f32 0.0, %v3127
  %v3129 = vpop.f32.mrf.mxu0
  %v3130 = vadd.f32 0.0, %v3129
  %3131 = vmatmul.bf16.gmra.mxu0 %v2979
  %v3132 = vpop.f32.mrf.mxu0
  %v3133 = vadd.f32 0.0, %v3132
  %v3134 = vpop.f32.mrf.mxu0
  %v3135 = vadd.f32 0.0, %v3134
  %3136 = vmatmul.bf16.gmra.mxu0 %v2982
  %v3137 = vpop.f32.mrf.mxu0
  %v3138 = vadd.f32 0.0, %v3137
  %v3139 = vpop.f32.mrf.mxu0
  %v3140 = vadd.f32 0.0, %v3139
  %3141 = vmatmul.bf16.gmra.mxu0 %v2985
  %v3142 = vpop.f32.mrf.mxu0
  %v3143 = vadd.f32 0.0, %v3142
  %v3144 = vpop.f32.mrf.mxu0
  %v3145 = vadd.f32 0.0, %v3144
  %3146 = vmatmul.bf16.gmra.mxu0 %v2988
  %v3147 = vpop.f32.mrf.mxu0
  %v3148 = vadd.f32 0.0, %v3147
  %v3149 = vpop.f32.mrf.mxu0
  %v3150 = vadd.f32 0.0, %v3149
  %3151 = vmatmul.bf16.gmra.mxu0 %v2991
  %v3152 = vpop.f32.mrf.mxu0
  %v3153 = vadd.f32 0.0, %v3152
  %v3154 = vpop.f32.mrf.mxu0
  %v3155 = vadd.f32 0.0, %v3154
  %3156 = vmatmul.bf16.gmra.mxu0 %v2994
  %v3157 = vpop.f32.mrf.mxu0
  %v3158 = vadd.f32 0.0, %v3157
  %v3159 = vpop.f32.mrf.mxu0
  %v3160 = vadd.f32 0.0, %v3159
  %3161 = vmatmul.bf16.gmra.mxu0 %v2997
  %v3162 = vpop.f32.mrf.mxu0
  %v3163 = vadd.f32 0.0, %v3162
  %v3164 = vpop.f32.mrf.mxu0
  %v3165 = vadd.f32 0.0, %v3164
  %3166 = vmatmul.bf16.gmra.mxu0 %v3000
  %v3167 = vpop.f32.mrf.mxu0
  %v3168 = vadd.f32 0.0, %v3167
  %v3169 = vpop.f32.mrf.mxu0
  %v3170 = vadd.f32 0.0, %v3169
  %3171 = vmatmul.bf16.gmra.mxu0 %v3003
  %v3172 = vpop.f32.mrf.mxu0
  %v3173 = vadd.f32 0.0, %v3172
  %v3174 = vpop.f32.mrf.mxu0
  %v3175 = vadd.f32 0.0, %v3174
  %3176 = vdwg.mxu0
  %v3177 = vadd.f32 %v2524, %v3018
  %v3178 = vadd.f32 %v2526, %v3020
  %v3179 = vadd.f32 %v2529, %v3023
  %v3180 = vadd.f32 %v2531, %v3025
  %v3181 = vadd.f32 %v2534, %v3028
  %v3182 = vadd.f32 %v2536, %v3030
  %v3183 = vadd.f32 %v2539, %v3033
  %v3184 = vadd.f32 %v2541, %v3035
  %v3185 = vadd.f32 %v2544, %v3038
  %v3186 = vadd.f32 %v2546, %v3040
  %v3187 = vadd.f32 %v2549, %v3043
  %v3188 = vadd.f32 %v2551, %v3045
  %v3189 = vadd.f32 %v2554, %v3048
  %v3190 = vadd.f32 %v2556, %v3050
  %v3191 = vadd.f32 %v2559, %v3053
  %v3192 = vadd.f32 %v2561, %v3055
  %v3193 = vadd.f32 %v2564, %v3058
  %v3194 = vadd.f32 %v2566, %v3060
  %v3195 = vadd.f32 %v2569, %v3063
  %v3196 = vadd.f32 %v2571, %v3065
  %v3197 = vadd.f32 %v2574, %v3068
  %v3198 = vadd.f32 %v2576, %v3070
  %v3199 = vadd.f32 %v2579, %v3073
  %v3200 = vadd.f32 %v2581, %v3075
  %v3201 = vadd.f32 %v2584, %v3078
  %v3202 = vadd.f32 %v2586, %v3080
  %v3203 = vadd.f32 %v2589, %v3083
  %v3204 = vadd.f32 %v2591, %v3085
  %v3205 = vadd.f32 %v2594, %v3088
  %v3206 = vadd.f32 %v2596, %v3090
  %v3207 = vadd.f32 %v2599, %v3093
  %v3208 = vadd.f32 %v2601, %v3095
  %v3209 = vadd.f32 %v2604, %v3098
  %v3210 = vadd.f32 %v2606, %v3100
  %v3211 = vadd.f32 %v2609, %v3103
  %v3212 = vadd.f32 %v2611, %v3105
  %v3213 = vadd.f32 %v2614, %v3108
  %v3214 = vadd.f32 %v2616, %v3110
  %v3215 = vadd.f32 %v2619, %v3113
  %v3216 = vadd.f32 %v2621, %v3115
  %v3217 = vadd.f32 %v2624, %v3118
  %v3218 = vadd.f32 %v2626, %v3120
  %v3219 = vadd.f32 %v2629, %v3123
  %v3220 = vadd.f32 %v2631, %v3125
  %v3221 = vadd.f32 %v2634, %v3128
  %v3222 = vadd.f32 %v2636, %v3130
  %v3223 = vadd.f32 %v2639, %v3133
  %v3224 = vadd.f32 %v2641, %v3135
  %v3225 = vadd.f32 %v2644, %v3138
  %v3226 = vadd.f32 %v2646, %v3140
  %v3227 = vadd.f32 %v2649, %v3143
  %v3228 = vadd.f32 %v2651, %v3145
  %v3229 = vadd.f32 %v2654, %v3148
  %v3230 = vadd.f32 %v2656, %v3150
  %v3231 = vadd.f32 %v2659, %v3153
  %v3232 = vadd.f32 %v2661, %v3155
  %v3233 = vadd.f32 %v2664, %v3158
  %v3234 = vadd.f32 %v2666, %v3160
  %v3235 = vadd.f32 %v2669, %v3163
  %v3236 = vadd.f32 %v2671, %v3165
  %v3237 = vadd.f32 %v2674, %v3168
  %v3238 = vadd.f32 %v2676, %v3170
  %v3239 = vadd.f32 %v2679, %v3173
  %v3240 = vadd.f32 %v2681, %v3175
  %v3241 = vld [vmem:[%s0 + $0x17] sm:$0xff]
  %v3242 = vld [vmem:[%s0 + $0x1f] sm:$0xff]
  %v3243 = vld [vmem:[%s0 + $0x27] sm:$0xff]
  %v3244 = vld [vmem:[%s0 + $0x2f] sm:$0xff]
  %v3245 = vld [vmem:[%s0 + $0x37] sm:$0xff]
  %v3246 = vld [vmem:[%s0 + $0x3f] sm:$0xff]
  %v3247 = vld [vmem:[%s0 + $0x47] sm:$0xff]
  %v3248 = vld [vmem:[%s0 + $0x4f] sm:$0xff]
  %v3249 = vld [vmem:[%s0 + $0x57] sm:$0xff]
  %v3250 = vld [vmem:[%s0 + $0x5f] sm:$0xff]
  %v3251 = vld [vmem:[%s0 + $0x67] sm:$0xff]
  %v3252 = vld [vmem:[%s0 + $0x6f] sm:$0xff]
  %v3253 = vld [vmem:[%s0 + $0x77] sm:$0xff]
  %v3254 = vld [vmem:[%s0 + $0x7f] sm:$0xff]
  %v3255 = vld [vmem:[%s0 + $0x87] sm:$0xff]
  %v3256 = vld [vmem:[%s0 + $0x8f] sm:$0xff]
  %v3257 = vld [vmem:[%s0 + $0x97] sm:$0xff]
  %v3258 = vld [vmem:[%s0 + $0x9f] sm:$0xff]
  %v3259 = vld [vmem:[%s0 + $0xa7] sm:$0xff]
  %v3260 = vld [vmem:[%s0 + $0xaf] sm:$0xff]
  %v3261 = vld [vmem:[%s0 + $0xb7] sm:$0xff]
  %v3262 = vld [vmem:[%s0 + $0xbf] sm:$0xff]
  %v3263 = vld [vmem:[%s0 + $0xc7] sm:$0xff]
  %v3264 = vld [vmem:[%s0 + $0xcf] sm:$0xff]
  %v3265 = vld [vmem:[%s0 + $0xd7] sm:$0xff]
  %v3266 = vld [vmem:[%s0 + $0xdf] sm:$0xff]
  %v3267 = vld [vmem:[%s0 + $0xe7] sm:$0xff]
  %v3268 = vld [vmem:[%s0 + $0xef] sm:$0xff]
  %v3269 = vld [vmem:[%s0 + $0xf7] sm:$0xff]
  %v3270 = vld [vmem:[%s0 + $0xff] sm:$0xff]
  %v3271 = vld [vmem:[%s0 + $0x107] sm:$0xff]
  %v3272 = vld [vmem:[%s0 + $0x10f] sm:$0xff]
  %v3273 = vld [vmem:[%s0 + $0x117] sm:$0xff]
  %v3274 = vld [vmem:[%s0 + $0x11f] sm:$0xff]
  %v3275 = vld [vmem:[%s0 + $0x127] sm:$0xff]
  %v3276 = vld [vmem:[%s0 + $0x12f] sm:$0xff]
  %v3277 = vld [vmem:[%s0 + $0x137] sm:$0xff]
  %v3278 = vld [vmem:[%s0 + $0x13f] sm:$0xff]
  %v3279 = vld [vmem:[%s0 + $0x147] sm:$0xff]
  %v3280 = vld [vmem:[%s0 + $0x14f] sm:$0xff]
  %v3281 = vld [vmem:[%s0 + $0x157] sm:$0xff]
  %v3282 = vld [vmem:[%s0 + $0x15f] sm:$0xff]
  %v3283 = vld [vmem:[%s0 + $0x167] sm:$0xff]
  %v3284 = vld [vmem:[%s0 + $0x16f] sm:$0xff]
  %v3285 = vld [vmem:[%s0 + $0x177] sm:$0xff]
  %v3286 = vld [vmem:[%s0 + $0x17f] sm:$0xff]
  %v3287 = vld [vmem:[%s0 + $0x187] sm:$0xff]
  %v3288 = vld [vmem:[%s0 + $0x18f] sm:$0xff]
  %v3289 = vld [vmem:[%s0 + $0x197] sm:$0xff]
  %v3290 = vld [vmem:[%s0 + $0x19f] sm:$0xff]
  %v3291 = vld [vmem:[%s0 + $0x1a7] sm:$0xff]
  %v3292 = vld [vmem:[%s0 + $0x1af] sm:$0xff]
  %v3293 = vld [vmem:[%s0 + $0x1b7] sm:$0xff]
  %v3294 = vld [vmem:[%s0 + $0x1bf] sm:$0xff]
  %v3295 = vld [vmem:[%s0 + $0x1c7] sm:$0xff]
  %v3296 = vld [vmem:[%s0 + $0x1cf] sm:$0xff]
  %v3297 = vld [vmem:[%s0 + $0x1d7] sm:$0xff]
  %v3298 = vld [vmem:[%s0 + $0x1df] sm:$0xff]
  %v3299 = vld [vmem:[%s0 + $0x1e7] sm:$0xff]
  %v3300 = vld [vmem:[%s0 + $0x1ef] sm:$0xff]
  %v3301 = vld [vmem:[%s0 + $0x1f7] sm:$0xff]
  %v3302 = vld [vmem:[%s0 + $0x1ff] sm:$0xff]
  %v3303 = vld [vmem:[%s0 + $0x207] sm:$0xff]
  %v3304 = vld [vmem:[%s0 + $0x20f] sm:$0xff]
  %vm3305 = vmand %vm670, %vm1182
  %vm3306 = vmand %vm671, %vm1183
  %vm3307 = vmand %vm672, %vm1184
  %vm3308 = vmand %vm673, %vm1185
  %vm3309 = vmand %vm674, %vm1186
  %vm3310 = vmand %vm675, %vm1187
  %vm3311 = vmand %vm676, %vm1188
  %vm3312 = vmand %vm677, %vm1189
  %vm3313 = vmand %vm678, %vm1190
  %vm3314 = vmand %vm679, %vm1191
  %vm3315 = vmand %vm680, %vm1192
  %vm3316 = vmand %vm681, %vm1193
  %vm3317 = vmand %vm682, %vm1194
  %vm3318 = vmand %vm683, %vm1195
  %vm3319 = vmand %vm684, %vm1196
  %vm3320 = vmand %vm685, %vm1197
  %vm3321 = vmand %vm686, %vm1198
  %vm3322 = vmand %vm687, %vm1199
  %vm3323 = vmand %vm688, %vm1200
  %vm3324 = vmand %vm689, %vm1201
  %vm3325 = vmand %vm690, %vm1202
  %vm3326 = vmand %vm691, %vm1203
  %vm3327 = vmand %vm692, %vm1204
  %vm3328 = vmand %vm693, %vm1205
  %vm3329 = vmand %vm694, %vm1206
  %vm3330 = vmand %vm695, %vm1207
  %vm3331 = vmand %vm696, %vm1208
  %vm3332 = vmand %vm697, %vm1209
  %vm3333 = vmand %vm698, %vm1210
  %vm3334 = vmand %vm699, %vm1211
  %vm3335 = vmand %vm700, %vm1212
  %vm3336 = vmand %vm701, %vm1213
  %vm3337 = vmand %vm702, %vm1214
  %vm3338 = vmand %vm703, %vm1215
  %vm3339 = vmand %vm704, %vm1216
  %vm3340 = vmand %vm705, %vm1217
  %vm3341 = vmand %vm706, %vm1218
  %vm3342 = vmand %vm707, %vm1219
  %vm3343 = vmand %vm708, %vm1220
  %vm3344 = vmand %vm709, %vm1221
  %vm3345 = vmand %vm710, %vm1222
  %vm3346 = vmand %vm711, %vm1223
  %vm3347 = vmand %vm712, %vm1224
  %vm3348 = vmand %vm713, %vm1225
  %vm3349 = vmand %vm714, %vm1226
  %vm3350 = vmand %vm715, %vm1227
  %vm3351 = vmand %vm716, %vm1228
  %vm3352 = vmand %vm717, %vm1229
  %vm3353 = vmand %vm718, %vm1230
  %vm3354 = vmand %vm719, %vm1231
  %vm3355 = vmand %vm720, %vm1232
  %vm3356 = vmand %vm721, %vm1233
  %vm3357 = vmand %vm722, %vm1234
  %vm3358 = vmand %vm723, %vm1235
  %vm3359 = vmand %vm724, %vm1236
  %vm3360 = vmand %vm725, %vm1237
  %vm3361 = vmand %vm726, %vm1238
  %vm3362 = vmand %vm727, %vm1239
  %vm3363 = vmand %vm728, %vm1240
  %vm3364 = vmand %vm729, %vm1241
  %vm3365 = vmand %vm730, %vm1242
  %vm3366 = vmand %vm731, %vm1243
  %vm3367 = vmand %vm732, %vm1244
  %vm3368 = vmand %vm733, %vm1245
  %v3369 = vsel %vm3305, %v3241, 0.0
  %v3370 = vsel %vm3306, %v3242, 0.0
  %v3371 = vsel %vm3307, %v3243, 0.0
  %v3372 = vsel %vm3308, %v3244, 0.0
  %v3373 = vsel %vm3309, %v3245, 0.0
  %v3374 = vsel %vm3310, %v3246, 0.0
  %v3375 = vsel %vm3311, %v3247, 0.0
  %v3376 = vsel %vm3312, %v3248, 0.0
  %v3377 = vsel %vm3313, %v3249, 0.0
  %v3378 = vsel %vm3314, %v3250, 0.0
  %v3379 = vsel %vm3315, %v3251, 0.0
  %v3380 = vsel %vm3316, %v3252, 0.0
  %v3381 = vsel %vm3317, %v3253, 0.0
  %v3382 = vsel %vm3318, %v3254, 0.0
  %v3383 = vsel %vm3319, %v3255, 0.0
  %v3384 = vsel %vm3320, %v3256, 0.0
  %v3385 = vsel %vm3321, %v3257, 0.0
  %v3386 = vsel %vm3322, %v3258, 0.0
  %v3387 = vsel %vm3323, %v3259, 0.0
  %v3388 = vsel %vm3324, %v3260, 0.0
  %v3389 = vsel %vm3325, %v3261, 0.0
  %v3390 = vsel %vm3326, %v3262, 0.0
  %v3391 = vsel %vm3327, %v3263, 0.0
  %v3392 = vsel %vm3328, %v3264, 0.0
  %v3393 = vsel %vm3329, %v3265, 0.0
  %v3394 = vsel %vm3330, %v3266, 0.0
  %v3395 = vsel %vm3331, %v3267, 0.0
  %v3396 = vsel %vm3332, %v3268, 0.0
  %v3397 = vsel %vm3333, %v3269, 0.0
  %v3398 = vsel %vm3334, %v3270, 0.0
  %v3399 = vsel %vm3335, %v3271, 0.0
  %v3400 = vsel %vm3336, %v3272, 0.0
  %v3401 = vsel %vm3337, %v3273, 0.0
  %v3402 = vsel %vm3338, %v3274, 0.0
  %v3403 = vsel %vm3339, %v3275, 0.0
  %v3404 = vsel %vm3340, %v3276, 0.0
  %v3405 = vsel %vm3341, %v3277, 0.0
  %v3406 = vsel %vm3342, %v3278, 0.0
  %v3407 = vsel %vm3343, %v3279, 0.0
  %v3408 = vsel %vm3344, %v3280, 0.0
  %v3409 = vsel %vm3345, %v3281, 0.0
  %v3410 = vsel %vm3346, %v3282, 0.0
  %v3411 = vsel %vm3347, %v3283, 0.0
  %v3412 = vsel %vm3348, %v3284, 0.0
  %v3413 = vsel %vm3349, %v3285, 0.0
  %v3414 = vsel %vm3350, %v3286, 0.0
  %v3415 = vsel %vm3351, %v3287, 0.0
  %v3416 = vsel %vm3352, %v3288, 0.0
  %v3417 = vsel %vm3353, %v3289, 0.0
  %v3418 = vsel %vm3354, %v3290, 0.0
  %v3419 = vsel %vm3355, %v3291, 0.0
  %v3420 = vsel %vm3356, %v3292, 0.0
  %v3421 = vsel %vm3357, %v3293, 0.0
  %v3422 = vsel %vm3358, %v3294, 0.0
  %v3423 = vsel %vm3359, %v3295, 0.0
  %v3424 = vsel %vm3360, %v3296, 0.0
  %v3425 = vsel %vm3361, %v3297, 0.0
  %v3426 = vsel %vm3362, %v3298, 0.0
  %v3427 = vsel %vm3363, %v3299, 0.0
  %v3428 = vsel %vm3364, %v3300, 0.0
  %v3429 = vsel %vm3365, %v3301, 0.0
  %v3430 = vsel %vm3366, %v3302, 0.0
  %v3431 = vsel %vm3367, %v3303, 0.0
  %v3432 = vsel %vm3368, %v3304, 0.0
  %v3433 = vpack.c.bf16 %v3370, %v3369
  %v3434 = vpack.c.bf16 %v3372, %v3371
  %v3435 = vpack.c.bf16 %v3374, %v3373
  %v3436 = vpack.c.bf16 %v3376, %v3375
  %v3437 = vpack.c.bf16 %v3378, %v3377
  %v3438 = vpack.c.bf16 %v3380, %v3379
  %v3439 = vpack.c.bf16 %v3382, %v3381
  %v3440 = vpack.c.bf16 %v3384, %v3383
  %v3441 = vpack.c.bf16 %v3386, %v3385
  %v3442 = vpack.c.bf16 %v3388, %v3387
  %v3443 = vpack.c.bf16 %v3390, %v3389
  %v3444 = vpack.c.bf16 %v3392, %v3391
  %v3445 = vpack.c.bf16 %v3394, %v3393
  %v3446 = vpack.c.bf16 %v3396, %v3395
  %v3447 = vpack.c.bf16 %v3398, %v3397
  %v3448 = vpack.c.bf16 %v3400, %v3399
  %v3449 = vpack.c.bf16 %v3402, %v3401
  %v3450 = vpack.c.bf16 %v3404, %v3403
  %v3451 = vpack.c.bf16 %v3406, %v3405
  %v3452 = vpack.c.bf16 %v3408, %v3407
  %v3453 = vpack.c.bf16 %v3410, %v3409
  %v3454 = vpack.c.bf16 %v3412, %v3411
  %v3455 = vpack.c.bf16 %v3414, %v3413
  %v3456 = vpack.c.bf16 %v3416, %v3415
  %v3457 = vpack.c.bf16 %v3418, %v3417
  %v3458 = vpack.c.bf16 %v3420, %v3419
  %v3459 = vpack.c.bf16 %v3422, %v3421
  %v3460 = vpack.c.bf16 %v3424, %v3423
  %v3461 = vpack.c.bf16 %v3426, %v3425
  %v3462 = vpack.c.bf16 %v3428, %v3427
  %v3463 = vpack.c.bf16 %v3430, %v3429
  %v3464 = vpack.c.bf16 %v3432, %v3431
  %s3465 = scalar_lea.vmem %s1, 6
  %v3466 = vld [vmem:[%s3465] sm:$0x3]
  %v3468 = vsel %vm2145, %v3433, 0
  %v3471 = vsel %vm2145, %v3434, 0
  %v3474 = vsel %vm2145, %v3435, 0
  %v3477 = vsel %vm2145, %v3436, 0
  %v3480 = vsel %vm2145, %v3437, 0
  %v3483 = vsel %vm2145, %v3438, 0
  %v3486 = vsel %vm2145, %v3439, 0
  %v3489 = vsel %vm2145, %v3440, 0
  %v3492 = vsel %vm2145, %v3441, 0
  %v3495 = vsel %vm2145, %v3442, 0
  %v3498 = vsel %vm2145, %v3443, 0
  %v3501 = vsel %vm2145, %v3444, 0
  %v3504 = vsel %vm2145, %v3445, 0
  %v3507 = vsel %vm2145, %v3446, 0
  %v3510 = vsel %vm2145, %v3447, 0
  %v3513 = vsel %vm2145, %v3448, 0
  %v3516 = vsel %vm2145, %v3449, 0
  %v3519 = vsel %vm2145, %v3450, 0
  %v3522 = vsel %vm2145, %v3451, 0
  %v3525 = vsel %vm2145, %v3452, 0
  %v3528 = vsel %vm2145, %v3453, 0
  %v3531 = vsel %vm2145, %v3454, 0
  %v3534 = vsel %vm2145, %v3455, 0
  %v3537 = vsel %vm2145, %v3456, 0
  %v3540 = vsel %vm2145, %v3457, 0
  %v3543 = vsel %vm2145, %v3458, 0
  %v3546 = vsel %vm2145, %v3459, 0
  %v3549 = vsel %vm2145, %v3460, 0
  %v3552 = vsel %vm2145, %v3461, 0
  %v3555 = vsel %vm2145, %v3462, 0
  %v3558 = vsel %vm2145, %v3463, 0
  %v3561 = vsel %vm2145, %v3464, 0
  %v3564 = vsel %vm2242, %v3466, 0
  %3566 = vmatpush.bf16.msra.mxu0 0
  %3567 = vmatpush.bf16.msra.mxu0 0
  %3568 = vmatpush.bf16.msra.mxu0 0
  %3569 = vmatpush.bf16.msra.mxu0 0
  %3570 = vmatpush.bf16.msra.mxu0 0
  %3571 = vmatpush.bf16.msra.mxu0 0
  %3572 = vmatpush.bf16.msra.mxu0 0
  %3573 = vmatpush.bf16.msra.mxu0 %v3564
  %3574 = vmatmul.bf16.gmra.mxu0 %v3468
  %v3575 = vpop.f32.mrf.mxu0
  %v3576 = vadd.f32 0.0, %v3575
  %v3577 = vpop.f32.mrf.mxu0
  %v3578 = vadd.f32 0.0, %v3577
  %3579 = vmatmul.bf16.gmra.mxu0 %v3471
  %v3580 = vpop.f32.mrf.mxu0
  %v3581 = vadd.f32 0.0, %v3580
  %v3582 = vpop.f32.mrf.mxu0
  %v3583 = vadd.f32 0.0, %v3582
  %3584 = vmatmul.bf16.gmra.mxu0 %v3474
  %v3585 = vpop.f32.mrf.mxu0
  %v3586 = vadd.f32 0.0, %v3585
  %v3587 = vpop.f32.mrf.mxu0
  %v3588 = vadd.f32 0.0, %v3587
  %3589 = vmatmul.bf16.gmra.mxu0 %v3477
  %v3590 = vpop.f32.mrf.mxu0
  %v3591 = vadd.f32 0.0, %v3590
  %v3592 = vpop.f32.mrf.mxu0
  %v3593 = vadd.f32 0.0, %v3592
  %3594 = vmatmul.bf16.gmra.mxu0 %v3480
  %v3595 = vpop.f32.mrf.mxu0
  %v3596 = vadd.f32 0.0, %v3595
  %v3597 = vpop.f32.mrf.mxu0
  %v3598 = vadd.f32 0.0, %v3597
  %3599 = vmatmul.bf16.gmra.mxu0 %v3483
  %v3600 = vpop.f32.mrf.mxu0
  %v3601 = vadd.f32 0.0, %v3600
  %v3602 = vpop.f32.mrf.mxu0
  %v3603 = vadd.f32 0.0, %v3602
  %3604 = vmatmul.bf16.gmra.mxu0 %v3486
  %v3605 = vpop.f32.mrf.mxu0
  %v3606 = vadd.f32 0.0, %v3605
  %v3607 = vpop.f32.mrf.mxu0
  %v3608 = vadd.f32 0.0, %v3607
  %3609 = vmatmul.bf16.gmra.mxu0 %v3489
  %v3610 = vpop.f32.mrf.mxu0
  %v3611 = vadd.f32 0.0, %v3610
  %v3612 = vpop.f32.mrf.mxu0
  %v3613 = vadd.f32 0.0, %v3612
  %3614 = vmatmul.bf16.gmra.mxu0 %v3492
  %v3615 = vpop.f32.mrf.mxu0
  %v3616 = vadd.f32 0.0, %v3615
  %v3617 = vpop.f32.mrf.mxu0
  %v3618 = vadd.f32 0.0, %v3617
  %3619 = vmatmul.bf16.gmra.mxu0 %v3495
  %v3620 = vpop.f32.mrf.mxu0
  %v3621 = vadd.f32 0.0, %v3620
  %v3622 = vpop.f32.mrf.mxu0
  %v3623 = vadd.f32 0.0, %v3622
  %3624 = vmatmul.bf16.gmra.mxu0 %v3498
  %v3625 = vpop.f32.mrf.mxu0
  %v3626 = vadd.f32 0.0, %v3625
  %v3627 = vpop.f32.mrf.mxu0
  %v3628 = vadd.f32 0.0, %v3627
  %3629 = vmatmul.bf16.gmra.mxu0 %v3501
  %v3630 = vpop.f32.mrf.mxu0
  %v3631 = vadd.f32 0.0, %v3630
  %v3632 = vpop.f32.mrf.mxu0
  %v3633 = vadd.f32 0.0, %v3632
  %3634 = vmatmul.bf16.gmra.mxu0 %v3504
  %v3635 = vpop.f32.mrf.mxu0
  %v3636 = vadd.f32 0.0, %v3635
  %v3637 = vpop.f32.mrf.mxu0
  %v3638 = vadd.f32 0.0, %v3637
  %3639 = vmatmul.bf16.gmra.mxu0 %v3507
  %v3640 = vpop.f32.mrf.mxu0
  %v3641 = vadd.f32 0.0, %v3640
  %v3642 = vpop.f32.mrf.mxu0
  %v3643 = vadd.f32 0.0, %v3642
  %3644 = vmatmul.bf16.gmra.mxu0 %v3510
  %v3645 = vpop.f32.mrf.mxu0
  %v3646 = vadd.f32 0.0, %v3645
  %v3647 = vpop.f32.mrf.mxu0
  %v3648 = vadd.f32 0.0, %v3647
  %3649 = vmatmul.bf16.gmra.mxu0 %v3513
  %v3650 = vpop.f32.mrf.mxu0
  %v3651 = vadd.f32 0.0, %v3650
  %v3652 = vpop.f32.mrf.mxu0
  %v3653 = vadd.f32 0.0, %v3652
  %3654 = vmatmul.bf16.gmra.mxu0 %v3516
  %v3655 = vpop.f32.mrf.mxu0
  %v3656 = vadd.f32 0.0, %v3655
  %v3657 = vpop.f32.mrf.mxu0
  %v3658 = vadd.f32 0.0, %v3657
  %3659 = vmatmul.bf16.gmra.mxu0 %v3519
  %v3660 = vpop.f32.mrf.mxu0
  %v3661 = vadd.f32 0.0, %v3660
  %v3662 = vpop.f32.mrf.mxu0
  %v3663 = vadd.f32 0.0, %v3662
  %3664 = vmatmul.bf16.gmra.mxu0 %v3522
  %v3665 = vpop.f32.mrf.mxu0
  %v3666 = vadd.f32 0.0, %v3665
  %v3667 = vpop.f32.mrf.mxu0
  %v3668 = vadd.f32 0.0, %v3667
  %3669 = vmatmul.bf16.gmra.mxu0 %v3525
  %v3670 = vpop.f32.mrf.mxu0
  %v3671 = vadd.f32 0.0, %v3670
  %v3672 = vpop.f32.mrf.mxu0
  %v3673 = vadd.f32 0.0, %v3672
  %3674 = vmatmul.bf16.gmra.mxu0 %v3528
  %v3675 = vpop.f32.mrf.mxu0
  %v3676 = vadd.f32 0.0, %v3675
  %v3677 = vpop.f32.mrf.mxu0
  %v3678 = vadd.f32 0.0, %v3677
  %3679 = vmatmul.bf16.gmra.mxu0 %v3531
  %v3680 = vpop.f32.mrf.mxu0
  %v3681 = vadd.f32 0.0, %v3680
  %v3682 = vpop.f32.mrf.mxu0
  %v3683 = vadd.f32 0.0, %v3682
  %3684 = vmatmul.bf16.gmra.mxu0 %v3534
  %v3685 = vpop.f32.mrf.mxu0
  %v3686 = vadd.f32 0.0, %v3685
  %v3687 = vpop.f32.mrf.mxu0
  %v3688 = vadd.f32 0.0, %v3687
  %3689 = vmatmul.bf16.gmra.mxu0 %v3537
  %v3690 = vpop.f32.mrf.mxu0
  %v3691 = vadd.f32 0.0, %v3690
  %v3692 = vpop.f32.mrf.mxu0
  %v3693 = vadd.f32 0.0, %v3692
  %3694 = vmatmul.bf16.gmra.mxu0 %v3540
  %v3695 = vpop.f32.mrf.mxu0
  %v3696 = vadd.f32 0.0, %v3695
  %v3697 = vpop.f32.mrf.mxu0
  %v3698 = vadd.f32 0.0, %v3697
  %3699 = vmatmul.bf16.gmra.mxu0 %v3543
  %v3700 = vpop.f32.mrf.mxu0
  %v3701 = vadd.f32 0.0, %v3700
  %v3702 = vpop.f32.mrf.mxu0
  %v3703 = vadd.f32 0.0, %v3702
  %3704 = vmatmul.bf16.gmra.mxu0 %v3546
  %v3705 = vpop.f32.mrf.mxu0
  %v3706 = vadd.f32 0.0, %v3705
  %v3707 = vpop.f32.mrf.mxu0
  %v3708 = vadd.f32 0.0, %v3707
  %3709 = vmatmul.bf16.gmra.mxu0 %v3549
  %v3710 = vpop.f32.mrf.mxu0
  %v3711 = vadd.f32 0.0, %v3710
  %v3712 = vpop.f32.mrf.mxu0
  %v3713 = vadd.f32 0.0, %v3712
  %3714 = vmatmul.bf16.gmra.mxu0 %v3552
  %v3715 = vpop.f32.mrf.mxu0
  %v3716 = vadd.f32 0.0, %v3715
  %v3717 = vpop.f32.mrf.mxu0
  %v3718 = vadd.f32 0.0, %v3717
  %3719 = vmatmul.bf16.gmra.mxu0 %v3555
  %v3720 = vpop.f32.mrf.mxu0
  %v3721 = vadd.f32 0.0, %v3720
  %v3722 = vpop.f32.mrf.mxu0
  %v3723 = vadd.f32 0.0, %v3722
  %3724 = vmatmul.bf16.gmra.mxu0 %v3558
  %v3725 = vpop.f32.mrf.mxu0
  %v3726 = vadd.f32 0.0, %v3725
  %v3727 = vpop.f32.mrf.mxu0
  %v3728 = vadd.f32 0.0, %v3727
  %3729 = vmatmul.bf16.gmra.mxu0 %v3561
  %v3730 = vpop.f32.mrf.mxu0
  %v3731 = vadd.f32 0.0, %v3730
  %v3732 = vpop.f32.mrf.mxu0
  %v3733 = vadd.f32 0.0, %v3732
  %3734 = vdwg.mxu0
  %v3735 = vadd.f32 %v3177, %v3576
  %v3736 = vadd.f32 %v3178, %v3578
  %v3737 = vadd.f32 %v3179, %v3581
  %v3738 = vadd.f32 %v3180, %v3583
  %v3739 = vadd.f32 %v3181, %v3586
  %v3740 = vadd.f32 %v3182, %v3588
  %v3741 = vadd.f32 %v3183, %v3591
  %v3742 = vadd.f32 %v3184, %v3593
  %v3743 = vadd.f32 %v3185, %v3596
  %v3744 = vadd.f32 %v3186, %v3598
  %v3745 = vadd.f32 %v3187, %v3601
  %v3746 = vadd.f32 %v3188, %v3603
  %v3747 = vadd.f32 %v3189, %v3606
  %v3748 = vadd.f32 %v3190, %v3608
  %v3749 = vadd.f32 %v3191, %v3611
  %v3750 = vadd.f32 %v3192, %v3613
  %v3751 = vadd.f32 %v3193, %v3616
  %v3752 = vadd.f32 %v3194, %v3618
  %v3753 = vadd.f32 %v3195, %v3621
  %v3754 = vadd.f32 %v3196, %v3623
  %v3755 = vadd.f32 %v3197, %v3626
  %v3756 = vadd.f32 %v3198, %v3628
  %v3757 = vadd.f32 %v3199, %v3631
  %v3758 = vadd.f32 %v3200, %v3633
  %v3759 = vadd.f32 %v3201, %v3636
  %v3760 = vadd.f32 %v3202, %v3638
  %v3761 = vadd.f32 %v3203, %v3641
  %v3762 = vadd.f32 %v3204, %v3643
  %v3763 = vadd.f32 %v3205, %v3646
  %v3764 = vadd.f32 %v3206, %v3648
  %v3765 = vadd.f32 %v3207, %v3651
  %v3766 = vadd.f32 %v3208, %v3653
  %v3767 = vadd.f32 %v3209, %v3656
  %v3768 = vadd.f32 %v3210, %v3658
  %v3769 = vadd.f32 %v3211, %v3661
  %v3770 = vadd.f32 %v3212, %v3663
  %v3771 = vadd.f32 %v3213, %v3666
  %v3772 = vadd.f32 %v3214, %v3668
  %v3773 = vadd.f32 %v3215, %v3671
  %v3774 = vadd.f32 %v3216, %v3673
  %v3775 = vadd.f32 %v3217, %v3676
  %v3776 = vadd.f32 %v3218, %v3678
  %v3777 = vadd.f32 %v3219, %v3681
  %v3778 = vadd.f32 %v3220, %v3683
  %v3779 = vadd.f32 %v3221, %v3686
  %v3780 = vadd.f32 %v3222, %v3688
  %v3781 = vadd.f32 %v3223, %v3691
  %v3782 = vadd.f32 %v3224, %v3693
  %v3783 = vadd.f32 %v3225, %v3696
  %v3784 = vadd.f32 %v3226, %v3698
  %v3785 = vadd.f32 %v3227, %v3701
  %v3786 = vadd.f32 %v3228, %v3703
  %v3787 = vadd.f32 %v3229, %v3706
  %v3788 = vadd.f32 %v3230, %v3708
  %v3789 = vadd.f32 %v3231, %v3711
  %v3790 = vadd.f32 %v3232, %v3713
  %v3791 = vadd.f32 %v3233, %v3716
  %v3792 = vadd.f32 %v3234, %v3718
  %v3793 = vadd.f32 %v3235, %v3721
  %v3794 = vadd.f32 %v3236, %v3723
  %v3795 = vadd.f32 %v3237, %v3726
  %v3796 = vadd.f32 %v3238, %v3728
  %v3797 = vadd.f32 %v3239, %v3731
  %v3798 = vadd.f32 %v3240, %v3733
  %v3799 = vld [vmem:[%s0 + $0x18] sm:$0xff]
  %v3800 = vld [vmem:[%s0 + $0x20] sm:$0xff]
  %v3801 = vld [vmem:[%s0 + $0x28] sm:$0xff]
  %v3802 = vld [vmem:[%s0 + $0x30] sm:$0xff]
  %v3803 = vld [vmem:[%s0 + $0x38] sm:$0xff]
  %v3804 = vld [vmem:[%s0 + $0x40] sm:$0xff]
  %v3805 = vld [vmem:[%s0 + $0x48] sm:$0xff]
  %v3806 = vld [vmem:[%s0 + $0x50] sm:$0xff]
  %v3807 = vld [vmem:[%s0 + $0x58] sm:$0xff]
  %v3808 = vld [vmem:[%s0 + $0x60] sm:$0xff]
  %v3809 = vld [vmem:[%s0 + $0x68] sm:$0xff]
  %v3810 = vld [vmem:[%s0 + $0x70] sm:$0xff]
  %v3811 = vld [vmem:[%s0 + $0x78] sm:$0xff]
  %v3812 = vld [vmem:[%s0 + $0x80] sm:$0xff]
  %v3813 = vld [vmem:[%s0 + $0x88] sm:$0xff]
  %v3814 = vld [vmem:[%s0 + $0x90] sm:$0xff]
  %v3815 = vld [vmem:[%s0 + $0x98] sm:$0xff]
  %v3816 = vld [vmem:[%s0 + $0xa0] sm:$0xff]
  %v3817 = vld [vmem:[%s0 + $0xa8] sm:$0xff]
  %v3818 = vld [vmem:[%s0 + $0xb0] sm:$0xff]
  %v3819 = vld [vmem:[%s0 + $0xb8] sm:$0xff]
  %v3820 = vld [vmem:[%s0 + $0xc0] sm:$0xff]
  %v3821 = vld [vmem:[%s0 + $0xc8] sm:$0xff]
  %v3822 = vld [vmem:[%s0 + $0xd0] sm:$0xff]
  %v3823 = vld [vmem:[%s0 + $0xd8] sm:$0xff]
  %v3824 = vld [vmem:[%s0 + $0xe0] sm:$0xff]
  %v3825 = vld [vmem:[%s0 + $0xe8] sm:$0xff]
  %v3826 = vld [vmem:[%s0 + $0xf0] sm:$0xff]
  %v3827 = vld [vmem:[%s0 + $0xf8] sm:$0xff]
  %v3828 = vld [vmem:[%s0 + $0x100] sm:$0xff]
  %v3829 = vld [vmem:[%s0 + $0x108] sm:$0xff]
  %v3830 = vld [vmem:[%s0 + $0x110] sm:$0xff]
  %v3831 = vld [vmem:[%s0 + $0x118] sm:$0xff]
  %v3832 = vld [vmem:[%s0 + $0x120] sm:$0xff]
  %v3833 = vld [vmem:[%s0 + $0x128] sm:$0xff]
  %v3834 = vld [vmem:[%s0 + $0x130] sm:$0xff]
  %v3835 = vld [vmem:[%s0 + $0x138] sm:$0xff]
  %v3836 = vld [vmem:[%s0 + $0x140] sm:$0xff]
  %v3837 = vld [vmem:[%s0 + $0x148] sm:$0xff]
  %v3838 = vld [vmem:[%s0 + $0x150] sm:$0xff]
  %v3839 = vld [vmem:[%s0 + $0x158] sm:$0xff]
  %v3840 = vld [vmem:[%s0 + $0x160] sm:$0xff]
  %v3841 = vld [vmem:[%s0 + $0x168] sm:$0xff]
  %v3842 = vld [vmem:[%s0 + $0x170] sm:$0xff]
  %v3843 = vld [vmem:[%s0 + $0x178] sm:$0xff]
  %v3844 = vld [vmem:[%s0 + $0x180] sm:$0xff]
  %v3845 = vld [vmem:[%s0 + $0x188] sm:$0xff]
  %v3846 = vld [vmem:[%s0 + $0x190] sm:$0xff]
  %v3847 = vld [vmem:[%s0 + $0x198] sm:$0xff]
  %v3848 = vld [vmem:[%s0 + $0x1a0] sm:$0xff]
  %v3849 = vld [vmem:[%s0 + $0x1a8] sm:$0xff]
  %v3850 = vld [vmem:[%s0 + $0x1b0] sm:$0xff]
  %v3851 = vld [vmem:[%s0 + $0x1b8] sm:$0xff]
  %v3852 = vld [vmem:[%s0 + $0x1c0] sm:$0xff]
  %v3853 = vld [vmem:[%s0 + $0x1c8] sm:$0xff]
  %v3854 = vld [vmem:[%s0 + $0x1d0] sm:$0xff]
  %v3855 = vld [vmem:[%s0 + $0x1d8] sm:$0xff]
  %v3856 = vld [vmem:[%s0 + $0x1e0] sm:$0xff]
  %v3857 = vld [vmem:[%s0 + $0x1e8] sm:$0xff]
  %v3858 = vld [vmem:[%s0 + $0x1f0] sm:$0xff]
  %v3859 = vld [vmem:[%s0 + $0x1f8] sm:$0xff]
  %v3860 = vld [vmem:[%s0 + $0x200] sm:$0xff]
  %v3861 = vld [vmem:[%s0 + $0x208] sm:$0xff]
  %v3862 = vld [vmem:[%s0 + $0x210] sm:$0xff]
  %vm3863 = vmand %vm670, %vm1374
  %vm3864 = vmand %vm671, %vm1375
  %vm3865 = vmand %vm672, %vm1376
  %vm3866 = vmand %vm673, %vm1377
  %vm3867 = vmand %vm674, %vm1378
  %vm3868 = vmand %vm675, %vm1379
  %vm3869 = vmand %vm676, %vm1380
  %vm3870 = vmand %vm677, %vm1381
  %vm3871 = vmand %vm678, %vm1382
  %vm3872 = vmand %vm679, %vm1383
  %vm3873 = vmand %vm680, %vm1384
  %vm3874 = vmand %vm681, %vm1385
  %vm3875 = vmand %vm682, %vm1386
  %vm3876 = vmand %vm683, %vm1387
  %vm3877 = vmand %vm684, %vm1388
  %vm3878 = vmand %vm685, %vm1389
  %vm3879 = vmand %vm686, %vm1390
  %vm3880 = vmand %vm687, %vm1391
  %vm3881 = vmand %vm688, %vm1392
  %vm3882 = vmand %vm689, %vm1393
  %vm3883 = vmand %vm690, %vm1394
  %vm3884 = vmand %vm691, %vm1395
  %vm3885 = vmand %vm692, %vm1396
  %vm3886 = vmand %vm693, %vm1397
  %vm3887 = vmand %vm694, %vm1398
  %vm3888 = vmand %vm695, %vm1399
  %vm3889 = vmand %vm696, %vm1400
  %vm3890 = vmand %vm697, %vm1401
  %vm3891 = vmand %vm698, %vm1402
  %vm3892 = vmand %vm699, %vm1403
  %vm3893 = vmand %vm700, %vm1404
  %vm3894 = vmand %vm701, %vm1405
  %vm3895 = vmand %vm702, %vm1406
  %vm3896 = vmand %vm703, %vm1407
  %vm3897 = vmand %vm704, %vm1408
  %vm3898 = vmand %vm705, %vm1409
  %vm3899 = vmand %vm706, %vm1410
  %vm3900 = vmand %vm707, %vm1411
  %vm3901 = vmand %vm708, %vm1412
  %vm3902 = vmand %vm709, %vm1413
  %vm3903 = vmand %vm710, %vm1414
  %vm3904 = vmand %vm711, %vm1415
  %vm3905 = vmand %vm712, %vm1416
  %vm3906 = vmand %vm713, %vm1417
  %vm3907 = vmand %vm714, %vm1418
  %vm3908 = vmand %vm715, %vm1419
  %vm3909 = vmand %vm716, %vm1420
  %vm3910 = vmand %vm717, %vm1421
  %vm3911 = vmand %vm718, %vm1422
  %vm3912 = vmand %vm719, %vm1423
  %vm3913 = vmand %vm720, %vm1424
  %vm3914 = vmand %vm721, %vm1425
  %vm3915 = vmand %vm722, %vm1426
  %vm3916 = vmand %vm723, %vm1427
  %vm3917 = vmand %vm724, %vm1428
  %vm3918 = vmand %vm725, %vm1429
  %vm3919 = vmand %vm726, %vm1430
  %vm3920 = vmand %vm727, %vm1431
  %vm3921 = vmand %vm728, %vm1432
  %vm3922 = vmand %vm729, %vm1433
  %vm3923 = vmand %vm730, %vm1434
  %vm3924 = vmand %vm731, %vm1435
  %vm3925 = vmand %vm732, %vm1436
  %vm3926 = vmand %vm733, %vm1437
  %v3927 = vsel %vm3863, %v3799, 0.0
  %v3928 = vsel %vm3864, %v3800, 0.0
  %v3929 = vsel %vm3865, %v3801, 0.0
  %v3930 = vsel %vm3866, %v3802, 0.0
  %v3931 = vsel %vm3867, %v3803, 0.0
  %v3932 = vsel %vm3868, %v3804, 0.0
  %v3933 = vsel %vm3869, %v3805, 0.0
  %v3934 = vsel %vm3870, %v3806, 0.0
  %v3935 = vsel %vm3871, %v3807, 0.0
  %v3936 = vsel %vm3872, %v3808, 0.0
  %v3937 = vsel %vm3873, %v3809, 0.0
  %v3938 = vsel %vm3874, %v3810, 0.0
  %v3939 = vsel %vm3875, %v3811, 0.0
  %v3940 = vsel %vm3876, %v3812, 0.0
  %v3941 = vsel %vm3877, %v3813, 0.0
  %v3942 = vsel %vm3878, %v3814, 0.0
  %v3943 = vsel %vm3879, %v3815, 0.0
  %v3944 = vsel %vm3880, %v3816, 0.0
  %v3945 = vsel %vm3881, %v3817, 0.0
  %v3946 = vsel %vm3882, %v3818, 0.0
  %v3947 = vsel %vm3883, %v3819, 0.0
  %v3948 = vsel %vm3884, %v3820, 0.0
  %v3949 = vsel %vm3885, %v3821, 0.0
  %v3950 = vsel %vm3886, %v3822, 0.0
  %v3951 = vsel %vm3887, %v3823, 0.0
  %v3952 = vsel %vm3888, %v3824, 0.0
  %v3953 = vsel %vm3889, %v3825, 0.0
  %v3954 = vsel %vm3890, %v3826, 0.0
  %v3955 = vsel %vm3891, %v3827, 0.0
  %v3956 = vsel %vm3892, %v3828, 0.0
  %v3957 = vsel %vm3893, %v3829, 0.0
  %v3958 = vsel %vm3894, %v3830, 0.0
  %v3959 = vsel %vm3895, %v3831, 0.0
  %v3960 = vsel %vm3896, %v3832, 0.0
  %v3961 = vsel %vm3897, %v3833, 0.0
  %v3962 = vsel %vm3898, %v3834, 0.0
  %v3963 = vsel %vm3899, %v3835, 0.0
  %v3964 = vsel %vm3900, %v3836, 0.0
  %v3965 = vsel %vm3901, %v3837, 0.0
  %v3966 = vsel %vm3902, %v3838, 0.0
  %v3967 = vsel %vm3903, %v3839, 0.0
  %v3968 = vsel %vm3904, %v3840, 0.0
  %v3969 = vsel %vm3905, %v3841, 0.0
  %v3970 = vsel %vm3906, %v3842, 0.0
  %v3971 = vsel %vm3907, %v3843, 0.0
  %v3972 = vsel %vm3908, %v3844, 0.0
  %v3973 = vsel %vm3909, %v3845, 0.0
  %v3974 = vsel %vm3910, %v3846, 0.0
  %v3975 = vsel %vm3911, %v3847, 0.0
  %v3976 = vsel %vm3912, %v3848, 0.0
  %v3977 = vsel %vm3913, %v3849, 0.0
  %v3978 = vsel %vm3914, %v3850, 0.0
  %v3979 = vsel %vm3915, %v3851, 0.0
  %v3980 = vsel %vm3916, %v3852, 0.0
  %v3981 = vsel %vm3917, %v3853, 0.0
  %v3982 = vsel %vm3918, %v3854, 0.0
  %v3983 = vsel %vm3919, %v3855, 0.0
  %v3984 = vsel %vm3920, %v3856, 0.0
  %v3985 = vsel %vm3921, %v3857, 0.0
  %v3986 = vsel %vm3922, %v3858, 0.0
  %v3987 = vsel %vm3923, %v3859, 0.0
  %v3988 = vsel %vm3924, %v3860, 0.0
  %v3989 = vsel %vm3925, %v3861, 0.0
  %v3990 = vsel %vm3926, %v3862, 0.0
  %v3991 = vpack.c.bf16 %v3928, %v3927
  %v3992 = vpack.c.bf16 %v3930, %v3929
  %v3993 = vpack.c.bf16 %v3932, %v3931
  %v3994 = vpack.c.bf16 %v3934, %v3933
  %v3995 = vpack.c.bf16 %v3936, %v3935
  %v3996 = vpack.c.bf16 %v3938, %v3937
  %v3997 = vpack.c.bf16 %v3940, %v3939
  %v3998 = vpack.c.bf16 %v3942, %v3941
  %v3999 = vpack.c.bf16 %v3944, %v3943
  %v4000 = vpack.c.bf16 %v3946, %v3945
  %v4001 = vpack.c.bf16 %v3948, %v3947
  %v4002 = vpack.c.bf16 %v3950, %v3949
  %v4003 = vpack.c.bf16 %v3952, %v3951
  %v4004 = vpack.c.bf16 %v3954, %v3953
  %v4005 = vpack.c.bf16 %v3956, %v3955
  %v4006 = vpack.c.bf16 %v3958, %v3957
  %v4007 = vpack.c.bf16 %v3960, %v3959
  %v4008 = vpack.c.bf16 %v3962, %v3961
  %v4009 = vpack.c.bf16 %v3964, %v3963
  %v4010 = vpack.c.bf16 %v3966, %v3965
  %v4011 = vpack.c.bf16 %v3968, %v3967
  %v4012 = vpack.c.bf16 %v3970, %v3969
  %v4013 = vpack.c.bf16 %v3972, %v3971
  %v4014 = vpack.c.bf16 %v3974, %v3973
  %v4015 = vpack.c.bf16 %v3976, %v3975
  %v4016 = vpack.c.bf16 %v3978, %v3977
  %v4017 = vpack.c.bf16 %v3980, %v3979
  %v4018 = vpack.c.bf16 %v3982, %v3981
  %v4019 = vpack.c.bf16 %v3984, %v3983
  %v4020 = vpack.c.bf16 %v3986, %v3985
  %v4021 = vpack.c.bf16 %v3988, %v3987
  %v4022 = vpack.c.bf16 %v3990, %v3989
  %s4023 = scalar_lea.vmem %s1, 8
  %v4024 = vld [vmem:[%s4023] sm:$0x3]
  %v4026 = vsel %vm2145, %v3991, 0
  %v4029 = vsel %vm2145, %v3992, 0
  %v4032 = vsel %vm2145, %v3993, 0
  %v4035 = vsel %vm2145, %v3994, 0
  %v4038 = vsel %vm2145, %v3995, 0
  %v4041 = vsel %vm2145, %v3996, 0
  %v4044 = vsel %vm2145, %v3997, 0
  %v4047 = vsel %vm2145, %v3998, 0
  %v4050 = vsel %vm2145, %v3999, 0
  %v4053 = vsel %vm2145, %v4000, 0
  %v4056 = vsel %vm2145, %v4001, 0
  %v4059 = vsel %vm2145, %v4002, 0
  %v4062 = vsel %vm2145, %v4003, 0
  %v4065 = vsel %vm2145, %v4004, 0
  %v4068 = vsel %vm2145, %v4005, 0
  %v4071 = vsel %vm2145, %v4006, 0
  %v4074 = vsel %vm2145, %v4007, 0
  %v4077 = vsel %vm2145, %v4008, 0
  %v4080 = vsel %vm2145, %v4009, 0
  %v4083 = vsel %vm2145, %v4010, 0
  %v4086 = vsel %vm2145, %v4011, 0
  %v4089 = vsel %vm2145, %v4012, 0
  %v4092 = vsel %vm2145, %v4013, 0
  %v4095 = vsel %vm2145, %v4014, 0
  %v4098 = vsel %vm2145, %v4015, 0
  %v4101 = vsel %vm2145, %v4016, 0
  %v4104 = vsel %vm2145, %v4017, 0
  %v4107 = vsel %vm2145, %v4018, 0
  %v4110 = vsel %vm2145, %v4019, 0
  %v4113 = vsel %vm2145, %v4020, 0
  %v4116 = vsel %vm2145, %v4021, 0
  %v4119 = vsel %vm2145, %v4022, 0
  %v4122 = vsel %vm2242, %v4024, 0
  %4124 = vmatpush.bf16.msra.mxu0 0
  %4125 = vmatpush.bf16.msra.mxu0 0
  %4126 = vmatpush.bf16.msra.mxu0 0
  %4127 = vmatpush.bf16.msra.mxu0 0
  %4128 = vmatpush.bf16.msra.mxu0 0
  %4129 = vmatpush.bf16.msra.mxu0 0
  %4130 = vmatpush.bf16.msra.mxu0 0
  %4131 = vmatpush.bf16.msra.mxu0 %v4122
  %4132 = vmatmul.bf16.gmra.mxu0 %v4026
  %v4133 = vpop.f32.mrf.mxu0
  %v4134 = vadd.f32 0.0, %v4133
  %v4135 = vpop.f32.mrf.mxu0
  %v4136 = vadd.f32 0.0, %v4135
  %4137 = vmatmul.bf16.gmra.mxu0 %v4029
  %v4138 = vpop.f32.mrf.mxu0
  %v4139 = vadd.f32 0.0, %v4138
  %v4140 = vpop.f32.mrf.mxu0
  %v4141 = vadd.f32 0.0, %v4140
  %4142 = vmatmul.bf16.gmra.mxu0 %v4032
  %v4143 = vpop.f32.mrf.mxu0
  %v4144 = vadd.f32 0.0, %v4143
  %v4145 = vpop.f32.mrf.mxu0
  %v4146 = vadd.f32 0.0, %v4145
  %4147 = vmatmul.bf16.gmra.mxu0 %v4035
  %v4148 = vpop.f32.mrf.mxu0
  %v4149 = vadd.f32 0.0, %v4148
  %v4150 = vpop.f32.mrf.mxu0
  %v4151 = vadd.f32 0.0, %v4150
  %4152 = vmatmul.bf16.gmra.mxu0 %v4038
  %v4153 = vpop.f32.mrf.mxu0
  %v4154 = vadd.f32 0.0, %v4153
  %v4155 = vpop.f32.mrf.mxu0
  %v4156 = vadd.f32 0.0, %v4155
  %4157 = vmatmul.bf16.gmra.mxu0 %v4041
  %v4158 = vpop.f32.mrf.mxu0
  %v4159 = vadd.f32 0.0, %v4158
  %v4160 = vpop.f32.mrf.mxu0
  %v4161 = vadd.f32 0.0, %v4160
  %4162 = vmatmul.bf16.gmra.mxu0 %v4044
  %v4163 = vpop.f32.mrf.mxu0
  %v4164 = vadd.f32 0.0, %v4163
  %v4165 = vpop.f32.mrf.mxu0
  %v4166 = vadd.f32 0.0, %v4165
  %4167 = vmatmul.bf16.gmra.mxu0 %v4047
  %v4168 = vpop.f32.mrf.mxu0
  %v4169 = vadd.f32 0.0, %v4168
  %v4170 = vpop.f32.mrf.mxu0
  %v4171 = vadd.f32 0.0, %v4170
  %4172 = vmatmul.bf16.gmra.mxu0 %v4050
  %v4173 = vpop.f32.mrf.mxu0
  %v4174 = vadd.f32 0.0, %v4173
  %v4175 = vpop.f32.mrf.mxu0
  %v4176 = vadd.f32 0.0, %v4175
  %4177 = vmatmul.bf16.gmra.mxu0 %v4053
  %v4178 = vpop.f32.mrf.mxu0
  %v4179 = vadd.f32 0.0, %v4178
  %v4180 = vpop.f32.mrf.mxu0
  %v4181 = vadd.f32 0.0, %v4180
  %4182 = vmatmul.bf16.gmra.mxu0 %v4056
  %v4183 = vpop.f32.mrf.mxu0
  %v4184 = vadd.f32 0.0, %v4183
  %v4185 = vpop.f32.mrf.mxu0
  %v4186 = vadd.f32 0.0, %v4185
  %4187 = vmatmul.bf16.gmra.mxu0 %v4059
  %v4188 = vpop.f32.mrf.mxu0
  %v4189 = vadd.f32 0.0, %v4188
  %v4190 = vpop.f32.mrf.mxu0
  %v4191 = vadd.f32 0.0, %v4190
  %4192 = vmatmul.bf16.gmra.mxu0 %v4062
  %v4193 = vpop.f32.mrf.mxu0
  %v4194 = vadd.f32 0.0, %v4193
  %v4195 = vpop.f32.mrf.mxu0
  %v4196 = vadd.f32 0.0, %v4195
  %4197 = vmatmul.bf16.gmra.mxu0 %v4065
  %v4198 = vpop.f32.mrf.mxu0
  %v4199 = vadd.f32 0.0, %v4198
  %v4200 = vpop.f32.mrf.mxu0
  %v4201 = vadd.f32 0.0, %v4200
  %4202 = vmatmul.bf16.gmra.mxu0 %v4068
  %v4203 = vpop.f32.mrf.mxu0
  %v4204 = vadd.f32 0.0, %v4203
  %v4205 = vpop.f32.mrf.mxu0
  %v4206 = vadd.f32 0.0, %v4205
  %4207 = vmatmul.bf16.gmra.mxu0 %v4071
  %v4208 = vpop.f32.mrf.mxu0
  %v4209 = vadd.f32 0.0, %v4208
  %v4210 = vpop.f32.mrf.mxu0
  %v4211 = vadd.f32 0.0, %v4210
  %4212 = vmatmul.bf16.gmra.mxu0 %v4074
  %v4213 = vpop.f32.mrf.mxu0
  %v4214 = vadd.f32 0.0, %v4213
  %v4215 = vpop.f32.mrf.mxu0
  %v4216 = vadd.f32 0.0, %v4215
  %4217 = vmatmul.bf16.gmra.mxu0 %v4077
  %v4218 = vpop.f32.mrf.mxu0
  %v4219 = vadd.f32 0.0, %v4218
  %v4220 = vpop.f32.mrf.mxu0
  %v4221 = vadd.f32 0.0, %v4220
  %4222 = vmatmul.bf16.gmra.mxu0 %v4080
  %v4223 = vpop.f32.mrf.mxu0
  %v4224 = vadd.f32 0.0, %v4223
  %v4225 = vpop.f32.mrf.mxu0
  %v4226 = vadd.f32 0.0, %v4225
  %4227 = vmatmul.bf16.gmra.mxu0 %v4083
  %v4228 = vpop.f32.mrf.mxu0
  %v4229 = vadd.f32 0.0, %v4228
  %v4230 = vpop.f32.mrf.mxu0
  %v4231 = vadd.f32 0.0, %v4230
  %4232 = vmatmul.bf16.gmra.mxu0 %v4086
  %v4233 = vpop.f32.mrf.mxu0
  %v4234 = vadd.f32 0.0, %v4233
  %v4235 = vpop.f32.mrf.mxu0
  %v4236 = vadd.f32 0.0, %v4235
  %4237 = vmatmul.bf16.gmra.mxu0 %v4089
  %v4238 = vpop.f32.mrf.mxu0
  %v4239 = vadd.f32 0.0, %v4238
  %v4240 = vpop.f32.mrf.mxu0
  %v4241 = vadd.f32 0.0, %v4240
  %4242 = vmatmul.bf16.gmra.mxu0 %v4092
  %v4243 = vpop.f32.mrf.mxu0
  %v4244 = vadd.f32 0.0, %v4243
  %v4245 = vpop.f32.mrf.mxu0
  %v4246 = vadd.f32 0.0, %v4245
  %4247 = vmatmul.bf16.gmra.mxu0 %v4095
  %v4248 = vpop.f32.mrf.mxu0
  %v4249 = vadd.f32 0.0, %v4248
  %v4250 = vpop.f32.mrf.mxu0
  %v4251 = vadd.f32 0.0, %v4250
  %4252 = vmatmul.bf16.gmra.mxu0 %v4098
  %v4253 = vpop.f32.mrf.mxu0
  %v4254 = vadd.f32 0.0, %v4253
  %v4255 = vpop.f32.mrf.mxu0
  %v4256 = vadd.f32 0.0, %v4255
  %4257 = vmatmul.bf16.gmra.mxu0 %v4101
  %v4258 = vpop.f32.mrf.mxu0
  %v4259 = vadd.f32 0.0, %v4258
  %v4260 = vpop.f32.mrf.mxu0
  %v4261 = vadd.f32 0.0, %v4260
  %4262 = vmatmul.bf16.gmra.mxu0 %v4104
  %v4263 = vpop.f32.mrf.mxu0
  %v4264 = vadd.f32 0.0, %v4263
  %v4265 = vpop.f32.mrf.mxu0
  %v4266 = vadd.f32 0.0, %v4265
  %4267 = vmatmul.bf16.gmra.mxu0 %v4107
  %v4268 = vpop.f32.mrf.mxu0
  %v4269 = vadd.f32 0.0, %v4268
  %v4270 = vpop.f32.mrf.mxu0
  %v4271 = vadd.f32 0.0, %v4270
  %4272 = vmatmul.bf16.gmra.mxu0 %v4110
  %v4273 = vpop.f32.mrf.mxu0
  %v4274 = vadd.f32 0.0, %v4273
  %v4275 = vpop.f32.mrf.mxu0
  %v4276 = vadd.f32 0.0, %v4275
  %4277 = vmatmul.bf16.gmra.mxu0 %v4113
  %v4278 = vpop.f32.mrf.mxu0
  %v4279 = vadd.f32 0.0, %v4278
  %v4280 = vpop.f32.mrf.mxu0
  %v4281 = vadd.f32 0.0, %v4280
  %4282 = vmatmul.bf16.gmra.mxu0 %v4116
  %v4283 = vpop.f32.mrf.mxu0
  %v4284 = vadd.f32 0.0, %v4283
  %v4285 = vpop.f32.mrf.mxu0
  %v4286 = vadd.f32 0.0, %v4285
  %4287 = vmatmul.bf16.gmra.mxu0 %v4119
  %v4288 = vpop.f32.mrf.mxu0
  %v4289 = vadd.f32 0.0, %v4288
  %v4290 = vpop.f32.mrf.mxu0
  %v4291 = vadd.f32 0.0, %v4290
  %4292 = vdwg.mxu0
  %v4293 = vadd.f32 %v3735, %v4134
  %v4294 = vadd.f32 %v3736, %v4136
  %v4295 = vadd.f32 %v3737, %v4139
  %v4296 = vadd.f32 %v3738, %v4141
  %v4297 = vadd.f32 %v3739, %v4144
  %v4298 = vadd.f32 %v3740, %v4146
  %v4299 = vadd.f32 %v3741, %v4149
  %v4300 = vadd.f32 %v3742, %v4151
  %v4301 = vadd.f32 %v3743, %v4154
  %v4302 = vadd.f32 %v3744, %v4156
  %v4303 = vadd.f32 %v3745, %v4159
  %v4304 = vadd.f32 %v3746, %v4161
  %v4305 = vadd.f32 %v3747, %v4164
  %v4306 = vadd.f32 %v3748, %v4166
  %v4307 = vadd.f32 %v3749, %v4169
  %v4308 = vadd.f32 %v3750, %v4171
  %v4309 = vadd.f32 %v3751, %v4174
  %v4310 = vadd.f32 %v3752, %v4176
  %v4311 = vadd.f32 %v3753, %v4179
  %v4312 = vadd.f32 %v3754, %v4181
  %v4313 = vadd.f32 %v3755, %v4184
  %v4314 = vadd.f32 %v3756, %v4186
  %v4315 = vadd.f32 %v3757, %v4189
  %v4316 = vadd.f32 %v3758, %v4191
  %v4317 = vadd.f32 %v3759, %v4194
  %v4318 = vadd.f32 %v3760, %v4196
  %v4319 = vadd.f32 %v3761, %v4199
  %v4320 = vadd.f32 %v3762, %v4201
  %v4321 = vadd.f32 %v3763, %v4204
  %v4322 = vadd.f32 %v3764, %v4206
  %v4323 = vadd.f32 %v3765, %v4209
  %v4324 = vadd.f32 %v3766, %v4211
  %v4325 = vadd.f32 %v3767, %v4214
  %v4326 = vadd.f32 %v3768, %v4216
  %v4327 = vadd.f32 %v3769, %v4219
  %v4328 = vadd.f32 %v3770, %v4221
  %v4329 = vadd.f32 %v3771, %v4224
  %v4330 = vadd.f32 %v3772, %v4226
  %v4331 = vadd.f32 %v3773, %v4229
  %v4332 = vadd.f32 %v3774, %v4231
  %v4333 = vadd.f32 %v3775, %v4234
  %v4334 = vadd.f32 %v3776, %v4236
  %v4335 = vadd.f32 %v3777, %v4239
  %v4336 = vadd.f32 %v3778, %v4241
  %v4337 = vadd.f32 %v3779, %v4244
  %v4338 = vadd.f32 %v3780, %v4246
  %v4339 = vadd.f32 %v3781, %v4249
  %v4340 = vadd.f32 %v3782, %v4251
  %v4341 = vadd.f32 %v3783, %v4254
  %v4342 = vadd.f32 %v3784, %v4256
  %v4343 = vadd.f32 %v3785, %v4259
  %v4344 = vadd.f32 %v3786, %v4261
  %v4345 = vadd.f32 %v3787, %v4264
  %v4346 = vadd.f32 %v3788, %v4266
  %v4347 = vadd.f32 %v3789, %v4269
  %v4348 = vadd.f32 %v3790, %v4271
  %v4349 = vadd.f32 %v3791, %v4274
  %v4350 = vadd.f32 %v3792, %v4276
  %v4351 = vadd.f32 %v3793, %v4279
  %v4352 = vadd.f32 %v3794, %v4281
  %v4353 = vadd.f32 %v3795, %v4284
  %v4354 = vadd.f32 %v3796, %v4286
  %v4355 = vadd.f32 %v3797, %v4289
  %v4356 = vadd.f32 %v3798, %v4291
  %v4357 = vld [vmem:[%s0 + $0x19] sm:$0xff]
  %v4358 = vld [vmem:[%s0 + $0x21] sm:$0xff]
  %v4359 = vld [vmem:[%s0 + $0x29] sm:$0xff]
  %v4360 = vld [vmem:[%s0 + $0x31] sm:$0xff]
  %v4361 = vld [vmem:[%s0 + $0x39] sm:$0xff]
  %v4362 = vld [vmem:[%s0 + $0x41] sm:$0xff]
  %v4363 = vld [vmem:[%s0 + $0x49] sm:$0xff]
  %v4364 = vld [vmem:[%s0 + $0x51] sm:$0xff]
  %v4365 = vld [vmem:[%s0 + $0x59] sm:$0xff]
  %v4366 = vld [vmem:[%s0 + $0x61] sm:$0xff]
  %v4367 = vld [vmem:[%s0 + $0x69] sm:$0xff]
  %v4368 = vld [vmem:[%s0 + $0x71] sm:$0xff]
  %v4369 = vld [vmem:[%s0 + $0x79] sm:$0xff]
  %v4370 = vld [vmem:[%s0 + $0x81] sm:$0xff]
  %v4371 = vld [vmem:[%s0 + $0x89] sm:$0xff]
  %v4372 = vld [vmem:[%s0 + $0x91] sm:$0xff]
  %v4373 = vld [vmem:[%s0 + $0x99] sm:$0xff]
  %v4374 = vld [vmem:[%s0 + $0xa1] sm:$0xff]
  %v4375 = vld [vmem:[%s0 + $0xa9] sm:$0xff]
  %v4376 = vld [vmem:[%s0 + $0xb1] sm:$0xff]
  %v4377 = vld [vmem:[%s0 + $0xb9] sm:$0xff]
  %v4378 = vld [vmem:[%s0 + $0xc1] sm:$0xff]
  %v4379 = vld [vmem:[%s0 + $0xc9] sm:$0xff]
  %v4380 = vld [vmem:[%s0 + $0xd1] sm:$0xff]
  %v4381 = vld [vmem:[%s0 + $0xd9] sm:$0xff]
  %v4382 = vld [vmem:[%s0 + $0xe1] sm:$0xff]
  %v4383 = vld [vmem:[%s0 + $0xe9] sm:$0xff]
  %v4384 = vld [vmem:[%s0 + $0xf1] sm:$0xff]
  %v4385 = vld [vmem:[%s0 + $0xf9] sm:$0xff]
  %v4386 = vld [vmem:[%s0 + $0x101] sm:$0xff]
  %v4387 = vld [vmem:[%s0 + $0x109] sm:$0xff]
  %v4388 = vld [vmem:[%s0 + $0x111] sm:$0xff]
  %v4389 = vld [vmem:[%s0 + $0x119] sm:$0xff]
  %v4390 = vld [vmem:[%s0 + $0x121] sm:$0xff]
  %v4391 = vld [vmem:[%s0 + $0x129] sm:$0xff]
  %v4392 = vld [vmem:[%s0 + $0x131] sm:$0xff]
  %v4393 = vld [vmem:[%s0 + $0x139] sm:$0xff]
  %v4394 = vld [vmem:[%s0 + $0x141] sm:$0xff]
  %v4395 = vld [vmem:[%s0 + $0x149] sm:$0xff]
  %v4396 = vld [vmem:[%s0 + $0x151] sm:$0xff]
  %v4397 = vld [vmem:[%s0 + $0x159] sm:$0xff]
  %v4398 = vld [vmem:[%s0 + $0x161] sm:$0xff]
  %v4399 = vld [vmem:[%s0 + $0x169] sm:$0xff]
  %v4400 = vld [vmem:[%s0 + $0x171] sm:$0xff]
  %v4401 = vld [vmem:[%s0 + $0x179] sm:$0xff]
  %v4402 = vld [vmem:[%s0 + $0x181] sm:$0xff]
  %v4403 = vld [vmem:[%s0 + $0x189] sm:$0xff]
  %v4404 = vld [vmem:[%s0 + $0x191] sm:$0xff]
  %v4405 = vld [vmem:[%s0 + $0x199] sm:$0xff]
  %v4406 = vld [vmem:[%s0 + $0x1a1] sm:$0xff]
  %v4407 = vld [vmem:[%s0 + $0x1a9] sm:$0xff]
  %v4408 = vld [vmem:[%s0 + $0x1b1] sm:$0xff]
  %v4409 = vld [vmem:[%s0 + $0x1b9] sm:$0xff]
  %v4410 = vld [vmem:[%s0 + $0x1c1] sm:$0xff]
  %v4411 = vld [vmem:[%s0 + $0x1c9] sm:$0xff]
  %v4412 = vld [vmem:[%s0 + $0x1d1] sm:$0xff]
  %v4413 = vld [vmem:[%s0 + $0x1d9] sm:$0xff]
  %v4414 = vld [vmem:[%s0 + $0x1e1] sm:$0xff]
  %v4415 = vld [vmem:[%s0 + $0x1e9] sm:$0xff]
  %v4416 = vld [vmem:[%s0 + $0x1f1] sm:$0xff]
  %v4417 = vld [vmem:[%s0 + $0x1f9] sm:$0xff]
  %v4418 = vld [vmem:[%s0 + $0x201] sm:$0xff]
  %v4419 = vld [vmem:[%s0 + $0x209] sm:$0xff]
  %v4420 = vld [vmem:[%s0 + $0x211] sm:$0xff]
  %vm4421 = vmand %vm670, %vm1630
  %vm4422 = vmand %vm671, %vm1631
  %vm4423 = vmand %vm672, %vm1632
  %vm4424 = vmand %vm673, %vm1633
  %vm4425 = vmand %vm674, %vm1634
  %vm4426 = vmand %vm675, %vm1635
  %vm4427 = vmand %vm676, %vm1636
  %vm4428 = vmand %vm677, %vm1637
  %vm4429 = vmand %vm678, %vm1638
  %vm4430 = vmand %vm679, %vm1639
  %vm4431 = vmand %vm680, %vm1640
  %vm4432 = vmand %vm681, %vm1641
  %vm4433 = vmand %vm682, %vm1642
  %vm4434 = vmand %vm683, %vm1643
  %vm4435 = vmand %vm684, %vm1644
  %vm4436 = vmand %vm685, %vm1645
  %vm4437 = vmand %vm686, %vm1646
  %vm4438 = vmand %vm687, %vm1647
  %vm4439 = vmand %vm688, %vm1648
  %vm4440 = vmand %vm689, %vm1649
  %vm4441 = vmand %vm690, %vm1650
  %vm4442 = vmand %vm691, %vm1651
  %vm4443 = vmand %vm692, %vm1652
  %vm4444 = vmand %vm693, %vm1653
  %vm4445 = vmand %vm694, %vm1654
  %vm4446 = vmand %vm695, %vm1655
  %vm4447 = vmand %vm696, %vm1656
  %vm4448 = vmand %vm697, %vm1657
  %vm4449 = vmand %vm698, %vm1658
  %vm4450 = vmand %vm699, %vm1659
  %vm4451 = vmand %vm700, %vm1660
  %vm4452 = vmand %vm701, %vm1661
  %vm4453 = vmand %vm702, %vm1662
  %vm4454 = vmand %vm703, %vm1663
  %vm4455 = vmand %vm704, %vm1664
  %vm4456 = vmand %vm705, %vm1665
  %vm4457 = vmand %vm706, %vm1666
  %vm4458 = vmand %vm707, %vm1667
  %vm4459 = vmand %vm708, %vm1668
  %vm4460 = vmand %vm709, %vm1669
  %vm4461 = vmand %vm710, %vm1670
  %vm4462 = vmand %vm711, %vm1671
  %vm4463 = vmand %vm712, %vm1672
  %vm4464 = vmand %vm713, %vm1673
  %vm4465 = vmand %vm714, %vm1674
  %vm4466 = vmand %vm715, %vm1675
  %vm4467 = vmand %vm716, %vm1676
  %vm4468 = vmand %vm717, %vm1677
  %vm4469 = vmand %vm718, %vm1678
  %vm4470 = vmand %vm719, %vm1679
  %vm4471 = vmand %vm720, %vm1680
  %vm4472 = vmand %vm721, %vm1681
  %vm4473 = vmand %vm722, %vm1682
  %vm4474 = vmand %vm723, %vm1683
  %vm4475 = vmand %vm724, %vm1684
  %vm4476 = vmand %vm725, %vm1685
  %vm4477 = vmand %vm726, %vm1686
  %vm4478 = vmand %vm727, %vm1687
  %vm4479 = vmand %vm728, %vm1688
  %vm4480 = vmand %vm729, %vm1689
  %vm4481 = vmand %vm730, %vm1690
  %vm4482 = vmand %vm731, %vm1691
  %vm4483 = vmand %vm732, %vm1692
  %vm4484 = vmand %vm733, %vm1693
  %v4485 = vsel %vm4421, %v4357, 0.0
  %v4486 = vsel %vm4422, %v4358, 0.0
  %v4487 = vsel %vm4423, %v4359, 0.0
  %v4488 = vsel %vm4424, %v4360, 0.0
  %v4489 = vsel %vm4425, %v4361, 0.0
  %v4490 = vsel %vm4426, %v4362, 0.0
  %v4491 = vsel %vm4427, %v4363, 0.0
  %v4492 = vsel %vm4428, %v4364, 0.0
  %v4493 = vsel %vm4429, %v4365, 0.0
  %v4494 = vsel %vm4430, %v4366, 0.0
  %v4495 = vsel %vm4431, %v4367, 0.0
  %v4496 = vsel %vm4432, %v4368, 0.0
  %v4497 = vsel %vm4433, %v4369, 0.0
  %v4498 = vsel %vm4434, %v4370, 0.0
  %v4499 = vsel %vm4435, %v4371, 0.0
  %v4500 = vsel %vm4436, %v4372, 0.0
  %v4501 = vsel %vm4437, %v4373, 0.0
  %v4502 = vsel %vm4438, %v4374, 0.0
  %v4503 = vsel %vm4439, %v4375, 0.0
  %v4504 = vsel %vm4440, %v4376, 0.0
  %v4505 = vsel %vm4441, %v4377, 0.0
  %v4506 = vsel %vm4442, %v4378, 0.0
  %v4507 = vsel %vm4443, %v4379, 0.0
  %v4508 = vsel %vm4444, %v4380, 0.0
  %v4509 = vsel %vm4445, %v4381, 0.0
  %v4510 = vsel %vm4446, %v4382, 0.0
  %v4511 = vsel %vm4447, %v4383, 0.0
  %v4512 = vsel %vm4448, %v4384, 0.0
  %v4513 = vsel %vm4449, %v4385, 0.0
  %v4514 = vsel %vm4450, %v4386, 0.0
  %v4515 = vsel %vm4451, %v4387, 0.0
  %v4516 = vsel %vm4452, %v4388, 0.0
  %v4517 = vsel %vm4453, %v4389, 0.0
  %v4518 = vsel %vm4454, %v4390, 0.0
  %v4519 = vsel %vm4455, %v4391, 0.0
  %v4520 = vsel %vm4456, %v4392, 0.0
  %v4521 = vsel %vm4457, %v4393, 0.0
  %v4522 = vsel %vm4458, %v4394, 0.0
  %v4523 = vsel %vm4459, %v4395, 0.0
  %v4524 = vsel %vm4460, %v4396, 0.0
  %v4525 = vsel %vm4461, %v4397, 0.0
  %v4526 = vsel %vm4462, %v4398, 0.0
  %v4527 = vsel %vm4463, %v4399, 0.0
  %v4528 = vsel %vm4464, %v4400, 0.0
  %v4529 = vsel %vm4465, %v4401, 0.0
  %v4530 = vsel %vm4466, %v4402, 0.0
  %v4531 = vsel %vm4467, %v4403, 0.0
  %v4532 = vsel %vm4468, %v4404, 0.0
  %v4533 = vsel %vm4469, %v4405, 0.0
  %v4534 = vsel %vm4470, %v4406, 0.0
  %v4535 = vsel %vm4471, %v4407, 0.0
  %v4536 = vsel %vm4472, %v4408, 0.0
  %v4537 = vsel %vm4473, %v4409, 0.0
  %v4538 = vsel %vm4474, %v4410, 0.0
  %v4539 = vsel %vm4475, %v4411, 0.0
  %v4540 = vsel %vm4476, %v4412, 0.0
  %v4541 = vsel %vm4477, %v4413, 0.0
  %v4542 = vsel %vm4478, %v4414, 0.0
  %v4543 = vsel %vm4479, %v4415, 0.0
  %v4544 = vsel %vm4480, %v4416, 0.0
  %v4545 = vsel %vm4481, %v4417, 0.0
  %v4546 = vsel %vm4482, %v4418, 0.0
  %v4547 = vsel %vm4483, %v4419, 0.0
  %v4548 = vsel %vm4484, %v4420, 0.0
  %v4549 = vpack.c.bf16 %v4486, %v4485
  %v4550 = vpack.c.bf16 %v4488, %v4487
  %v4551 = vpack.c.bf16 %v4490, %v4489
  %v4552 = vpack.c.bf16 %v4492, %v4491
  %v4553 = vpack.c.bf16 %v4494, %v4493
  %v4554 = vpack.c.bf16 %v4496, %v4495
  %v4555 = vpack.c.bf16 %v4498, %v4497
  %v4556 = vpack.c.bf16 %v4500, %v4499
  %v4557 = vpack.c.bf16 %v4502, %v4501
  %v4558 = vpack.c.bf16 %v4504, %v4503
  %v4559 = vpack.c.bf16 %v4506, %v4505
  %v4560 = vpack.c.bf16 %v4508, %v4507
  %v4561 = vpack.c.bf16 %v4510, %v4509
  %v4562 = vpack.c.bf16 %v4512, %v4511
  %v4563 = vpack.c.bf16 %v4514, %v4513
  %v4564 = vpack.c.bf16 %v4516, %v4515
  %v4565 = vpack.c.bf16 %v4518, %v4517
  %v4566 = vpack.c.bf16 %v4520, %v4519
  %v4567 = vpack.c.bf16 %v4522, %v4521
  %v4568 = vpack.c.bf16 %v4524, %v4523
  %v4569 = vpack.c.bf16 %v4526, %v4525
  %v4570 = vpack.c.bf16 %v4528, %v4527
  %v4571 = vpack.c.bf16 %v4530, %v4529
  %v4572 = vpack.c.bf16 %v4532, %v4531
  %v4573 = vpack.c.bf16 %v4534, %v4533
  %v4574 = vpack.c.bf16 %v4536, %v4535
  %v4575 = vpack.c.bf16 %v4538, %v4537
  %v4576 = vpack.c.bf16 %v4540, %v4539
  %v4577 = vpack.c.bf16 %v4542, %v4541
  %v4578 = vpack.c.bf16 %v4544, %v4543
  %v4579 = vpack.c.bf16 %v4546, %v4545
  %v4580 = vpack.c.bf16 %v4548, %v4547
  %s4581 = scalar_lea.vmem %s1, 10
  %v4582 = vld [vmem:[%s4581] sm:$0x3]
  %v4584 = vsel %vm2145, %v4549, 0
  %v4587 = vsel %vm2145, %v4550, 0
  %v4590 = vsel %vm2145, %v4551, 0
  %v4593 = vsel %vm2145, %v4552, 0
  %v4596 = vsel %vm2145, %v4553, 0
  %v4599 = vsel %vm2145, %v4554, 0
  %v4602 = vsel %vm2145, %v4555, 0
  %v4605 = vsel %vm2145, %v4556, 0
  %v4608 = vsel %vm2145, %v4557, 0
  %v4611 = vsel %vm2145, %v4558, 0
  %v4614 = vsel %vm2145, %v4559, 0
  %v4617 = vsel %vm2145, %v4560, 0
  %v4620 = vsel %vm2145, %v4561, 0
  %v4623 = vsel %vm2145, %v4562, 0
  %v4626 = vsel %vm2145, %v4563, 0
  %v4629 = vsel %vm2145, %v4564, 0
  %v4632 = vsel %vm2145, %v4565, 0
  %v4635 = vsel %vm2145, %v4566, 0
  %v4638 = vsel %vm2145, %v4567, 0
  %v4641 = vsel %vm2145, %v4568, 0
  %v4644 = vsel %vm2145, %v4569, 0
  %v4647 = vsel %vm2145, %v4570, 0
  %v4650 = vsel %vm2145, %v4571, 0
  %v4653 = vsel %vm2145, %v4572, 0
  %v4656 = vsel %vm2145, %v4573, 0
  %v4659 = vsel %vm2145, %v4574, 0
  %v4662 = vsel %vm2145, %v4575, 0
  %v4665 = vsel %vm2145, %v4576, 0
  %v4668 = vsel %vm2145, %v4577, 0
  %v4671 = vsel %vm2145, %v4578, 0
  %v4674 = vsel %vm2145, %v4579, 0
  %v4677 = vsel %vm2145, %v4580, 0
  %v4680 = vsel %vm2242, %v4582, 0
  %4682 = vmatpush.bf16.msra.mxu0 0
  %4683 = vmatpush.bf16.msra.mxu0 0
  %4684 = vmatpush.bf16.msra.mxu0 0
  %4685 = vmatpush.bf16.msra.mxu0 0
  %4686 = vmatpush.bf16.msra.mxu0 0
  %4687 = vmatpush.bf16.msra.mxu0 0
  %4688 = vmatpush.bf16.msra.mxu0 0
  %4689 = vmatpush.bf16.msra.mxu0 %v4680
  %4690 = vmatmul.bf16.gmra.mxu0 %v4584
  %v4691 = vpop.f32.mrf.mxu0
  %v4692 = vadd.f32 0.0, %v4691
  %v4693 = vpop.f32.mrf.mxu0
  %v4694 = vadd.f32 0.0, %v4693
  %4695 = vmatmul.bf16.gmra.mxu0 %v4587
  %v4696 = vpop.f32.mrf.mxu0
  %v4697 = vadd.f32 0.0, %v4696
  %v4698 = vpop.f32.mrf.mxu0
  %v4699 = vadd.f32 0.0, %v4698
  %4700 = vmatmul.bf16.gmra.mxu0 %v4590
  %v4701 = vpop.f32.mrf.mxu0
  %v4702 = vadd.f32 0.0, %v4701
  %v4703 = vpop.f32.mrf.mxu0
  %v4704 = vadd.f32 0.0, %v4703
  %4705 = vmatmul.bf16.gmra.mxu0 %v4593
  %v4706 = vpop.f32.mrf.mxu0
  %v4707 = vadd.f32 0.0, %v4706
  %v4708 = vpop.f32.mrf.mxu0
  %v4709 = vadd.f32 0.0, %v4708
  %4710 = vmatmul.bf16.gmra.mxu0 %v4596
  %v4711 = vpop.f32.mrf.mxu0
  %v4712 = vadd.f32 0.0, %v4711
  %v4713 = vpop.f32.mrf.mxu0
  %v4714 = vadd.f32 0.0, %v4713
  %4715 = vmatmul.bf16.gmra.mxu0 %v4599
  %v4716 = vpop.f32.mrf.mxu0
  %v4717 = vadd.f32 0.0, %v4716
  %v4718 = vpop.f32.mrf.mxu0
  %v4719 = vadd.f32 0.0, %v4718
  %4720 = vmatmul.bf16.gmra.mxu0 %v4602
  %v4721 = vpop.f32.mrf.mxu0
  %v4722 = vadd.f32 0.0, %v4721
  %v4723 = vpop.f32.mrf.mxu0
  %v4724 = vadd.f32 0.0, %v4723
  %4725 = vmatmul.bf16.gmra.mxu0 %v4605
  %v4726 = vpop.f32.mrf.mxu0
  %v4727 = vadd.f32 0.0, %v4726
  %v4728 = vpop.f32.mrf.mxu0
  %v4729 = vadd.f32 0.0, %v4728
  %4730 = vmatmul.bf16.gmra.mxu0 %v4608
  %v4731 = vpop.f32.mrf.mxu0
  %v4732 = vadd.f32 0.0, %v4731
  %v4733 = vpop.f32.mrf.mxu0
  %v4734 = vadd.f32 0.0, %v4733
  %4735 = vmatmul.bf16.gmra.mxu0 %v4611
  %v4736 = vpop.f32.mrf.mxu0
  %v4737 = vadd.f32 0.0, %v4736
  %v4738 = vpop.f32.mrf.mxu0
  %v4739 = vadd.f32 0.0, %v4738
  %4740 = vmatmul.bf16.gmra.mxu0 %v4614
  %v4741 = vpop.f32.mrf.mxu0
  %v4742 = vadd.f32 0.0, %v4741
  %v4743 = vpop.f32.mrf.mxu0
  %v4744 = vadd.f32 0.0, %v4743
  %4745 = vmatmul.bf16.gmra.mxu0 %v4617
  %v4746 = vpop.f32.mrf.mxu0
  %v4747 = vadd.f32 0.0, %v4746
  %v4748 = vpop.f32.mrf.mxu0
  %v4749 = vadd.f32 0.0, %v4748
  %4750 = vmatmul.bf16.gmra.mxu0 %v4620
  %v4751 = vpop.f32.mrf.mxu0
  %v4752 = vadd.f32 0.0, %v4751
  %v4753 = vpop.f32.mrf.mxu0
  %v4754 = vadd.f32 0.0, %v4753
  %4755 = vmatmul.bf16.gmra.mxu0 %v4623
  %v4756 = vpop.f32.mrf.mxu0
  %v4757 = vadd.f32 0.0, %v4756
  %v4758 = vpop.f32.mrf.mxu0
  %v4759 = vadd.f32 0.0, %v4758
  %4760 = vmatmul.bf16.gmra.mxu0 %v4626
  %v4761 = vpop.f32.mrf.mxu0
  %v4762 = vadd.f32 0.0, %v4761
  %v4763 = vpop.f32.mrf.mxu0
  %v4764 = vadd.f32 0.0, %v4763
  %4765 = vmatmul.bf16.gmra.mxu0 %v4629
  %v4766 = vpop.f32.mrf.mxu0
  %v4767 = vadd.f32 0.0, %v4766
  %v4768 = vpop.f32.mrf.mxu0
  %v4769 = vadd.f32 0.0, %v4768
  %4770 = vmatmul.bf16.gmra.mxu0 %v4632
  %v4771 = vpop.f32.mrf.mxu0
  %v4772 = vadd.f32 0.0, %v4771
  %v4773 = vpop.f32.mrf.mxu0
  %v4774 = vadd.f32 0.0, %v4773
  %4775 = vmatmul.bf16.gmra.mxu0 %v4635
  %v4776 = vpop.f32.mrf.mxu0
  %v4777 = vadd.f32 0.0, %v4776
  %v4778 = vpop.f32.mrf.mxu0
  %v4779 = vadd.f32 0.0, %v4778
  %4780 = vmatmul.bf16.gmra.mxu0 %v4638
  %v4781 = vpop.f32.mrf.mxu0
  %v4782 = vadd.f32 0.0, %v4781
  %v4783 = vpop.f32.mrf.mxu0
  %v4784 = vadd.f32 0.0, %v4783
  %4785 = vmatmul.bf16.gmra.mxu0 %v4641
  %v4786 = vpop.f32.mrf.mxu0
  %v4787 = vadd.f32 0.0, %v4786
  %v4788 = vpop.f32.mrf.mxu0
  %v4789 = vadd.f32 0.0, %v4788
  %4790 = vmatmul.bf16.gmra.mxu0 %v4644
  %v4791 = vpop.f32.mrf.mxu0
  %v4792 = vadd.f32 0.0, %v4791
  %v4793 = vpop.f32.mrf.mxu0
  %v4794 = vadd.f32 0.0, %v4793
  %4795 = vmatmul.bf16.gmra.mxu0 %v4647
  %v4796 = vpop.f32.mrf.mxu0
  %v4797 = vadd.f32 0.0, %v4796
  %v4798 = vpop.f32.mrf.mxu0
  %v4799 = vadd.f32 0.0, %v4798
  %4800 = vmatmul.bf16.gmra.mxu0 %v4650
  %v4801 = vpop.f32.mrf.mxu0
  %v4802 = vadd.f32 0.0, %v4801
  %v4803 = vpop.f32.mrf.mxu0
  %v4804 = vadd.f32 0.0, %v4803
  %4805 = vmatmul.bf16.gmra.mxu0 %v4653
  %v4806 = vpop.f32.mrf.mxu0
  %v4807 = vadd.f32 0.0, %v4806
  %v4808 = vpop.f32.mrf.mxu0
  %v4809 = vadd.f32 0.0, %v4808
  %4810 = vmatmul.bf16.gmra.mxu0 %v4656
  %v4811 = vpop.f32.mrf.mxu0
  %v4812 = vadd.f32 0.0, %v4811
  %v4813 = vpop.f32.mrf.mxu0
  %v4814 = vadd.f32 0.0, %v4813
  %4815 = vmatmul.bf16.gmra.mxu0 %v4659
  %v4816 = vpop.f32.mrf.mxu0
  %v4817 = vadd.f32 0.0, %v4816
  %v4818 = vpop.f32.mrf.mxu0
  %v4819 = vadd.f32 0.0, %v4818
  %4820 = vmatmul.bf16.gmra.mxu0 %v4662
  %v4821 = vpop.f32.mrf.mxu0
  %v4822 = vadd.f32 0.0, %v4821
  %v4823 = vpop.f32.mrf.mxu0
  %v4824 = vadd.f32 0.0, %v4823
  %4825 = vmatmul.bf16.gmra.mxu0 %v4665
  %v4826 = vpop.f32.mrf.mxu0
  %v4827 = vadd.f32 0.0, %v4826
  %v4828 = vpop.f32.mrf.mxu0
  %v4829 = vadd.f32 0.0, %v4828
  %4830 = vmatmul.bf16.gmra.mxu0 %v4668
  %v4831 = vpop.f32.mrf.mxu0
  %v4832 = vadd.f32 0.0, %v4831
  %v4833 = vpop.f32.mrf.mxu0
  %v4834 = vadd.f32 0.0, %v4833
  %4835 = vmatmul.bf16.gmra.mxu0 %v4671
  %v4836 = vpop.f32.mrf.mxu0
  %v4837 = vadd.f32 0.0, %v4836
  %v4838 = vpop.f32.mrf.mxu0
  %v4839 = vadd.f32 0.0, %v4838
  %4840 = vmatmul.bf16.gmra.mxu0 %v4674
  %v4841 = vpop.f32.mrf.mxu0
  %v4842 = vadd.f32 0.0, %v4841
  %v4843 = vpop.f32.mrf.mxu0
  %v4844 = vadd.f32 0.0, %v4843
  %4845 = vmatmul.bf16.gmra.mxu0 %v4677
  %v4846 = vpop.f32.mrf.mxu0
  %v4847 = vadd.f32 0.0, %v4846
  %v4848 = vpop.f32.mrf.mxu0
  %v4849 = vadd.f32 0.0, %v4848
  %4850 = vdwg.mxu0
  %v4851 = vadd.f32 %v4293, %v4692
  %v4852 = vadd.f32 %v4294, %v4694
  %v4853 = vadd.f32 %v4295, %v4697
  %v4854 = vadd.f32 %v4296, %v4699
  %v4855 = vadd.f32 %v4297, %v4702
  %v4856 = vadd.f32 %v4298, %v4704
  %v4857 = vadd.f32 %v4299, %v4707
  %v4858 = vadd.f32 %v4300, %v4709
  %v4859 = vadd.f32 %v4301, %v4712
  %v4860 = vadd.f32 %v4302, %v4714
  %v4861 = vadd.f32 %v4303, %v4717
  %v4862 = vadd.f32 %v4304, %v4719
  %v4863 = vadd.f32 %v4305, %v4722
  %v4864 = vadd.f32 %v4306, %v4724
  %v4865 = vadd.f32 %v4307, %v4727
  %v4866 = vadd.f32 %v4308, %v4729
  %v4867 = vadd.f32 %v4309, %v4732
  %v4868 = vadd.f32 %v4310, %v4734
  %v4869 = vadd.f32 %v4311, %v4737
  %v4870 = vadd.f32 %v4312, %v4739
  %v4871 = vadd.f32 %v4313, %v4742
  %v4872 = vadd.f32 %v4314, %v4744
  %v4873 = vadd.f32 %v4315, %v4747
  %v4874 = vadd.f32 %v4316, %v4749
  %v4875 = vadd.f32 %v4317, %v4752
  %v4876 = vadd.f32 %v4318, %v4754
  %v4877 = vadd.f32 %v4319, %v4757
  %v4878 = vadd.f32 %v4320, %v4759
  %v4879 = vadd.f32 %v4321, %v4762
  %v4880 = vadd.f32 %v4322, %v4764
  %v4881 = vadd.f32 %v4323, %v4767
  %v4882 = vadd.f32 %v4324, %v4769
  %v4883 = vadd.f32 %v4325, %v4772
  %v4884 = vadd.f32 %v4326, %v4774
  %v4885 = vadd.f32 %v4327, %v4777
  %v4886 = vadd.f32 %v4328, %v4779
  %v4887 = vadd.f32 %v4329, %v4782
  %v4888 = vadd.f32 %v4330, %v4784
  %v4889 = vadd.f32 %v4331, %v4787
  %v4890 = vadd.f32 %v4332, %v4789
  %v4891 = vadd.f32 %v4333, %v4792
  %v4892 = vadd.f32 %v4334, %v4794
  %v4893 = vadd.f32 %v4335, %v4797
  %v4894 = vadd.f32 %v4336, %v4799
  %v4895 = vadd.f32 %v4337, %v4802
  %v4896 = vadd.f32 %v4338, %v4804
  %v4897 = vadd.f32 %v4339, %v4807
  %v4898 = vadd.f32 %v4340, %v4809
  %v4899 = vadd.f32 %v4341, %v4812
  %v4900 = vadd.f32 %v4342, %v4814
  %v4901 = vadd.f32 %v4343, %v4817
  %v4902 = vadd.f32 %v4344, %v4819
  %v4903 = vadd.f32 %v4345, %v4822
  %v4904 = vadd.f32 %v4346, %v4824
  %v4905 = vadd.f32 %v4347, %v4827
  %v4906 = vadd.f32 %v4348, %v4829
  %v4907 = vadd.f32 %v4349, %v4832
  %v4908 = vadd.f32 %v4350, %v4834
  %v4909 = vadd.f32 %v4351, %v4837
  %v4910 = vadd.f32 %v4352, %v4839
  %v4911 = vadd.f32 %v4353, %v4842
  %v4912 = vadd.f32 %v4354, %v4844
  %v4913 = vadd.f32 %v4355, %v4847
  %v4914 = vadd.f32 %v4356, %v4849
  %v4915 = vld [vmem:[%s0 + $0x27] sm:$0xff]
  %v4916 = vld [vmem:[%s0 + $0x2f] sm:$0xff]
  %v4917 = vld [vmem:[%s0 + $0x37] sm:$0xff]
  %v4918 = vld [vmem:[%s0 + $0x3f] sm:$0xff]
  %v4919 = vld [vmem:[%s0 + $0x47] sm:$0xff]
  %v4920 = vld [vmem:[%s0 + $0x4f] sm:$0xff]
  %v4921 = vld [vmem:[%s0 + $0x57] sm:$0xff]
  %v4922 = vld [vmem:[%s0 + $0x5f] sm:$0xff]
  %v4923 = vld [vmem:[%s0 + $0x67] sm:$0xff]
  %v4924 = vld [vmem:[%s0 + $0x6f] sm:$0xff]
  %v4925 = vld [vmem:[%s0 + $0x77] sm:$0xff]
  %v4926 = vld [vmem:[%s0 + $0x7f] sm:$0xff]
  %v4927 = vld [vmem:[%s0 + $0x87] sm:$0xff]
  %v4928 = vld [vmem:[%s0 + $0x8f] sm:$0xff]
  %v4929 = vld [vmem:[%s0 + $0x97] sm:$0xff]
  %v4930 = vld [vmem:[%s0 + $0x9f] sm:$0xff]
  %v4931 = vld [vmem:[%s0 + $0xa7] sm:$0xff]
  %v4932 = vld [vmem:[%s0 + $0xaf] sm:$0xff]
  %v4933 = vld [vmem:[%s0 + $0xb7] sm:$0xff]
  %v4934 = vld [vmem:[%s0 + $0xbf] sm:$0xff]
  %v4935 = vld [vmem:[%s0 + $0xc7] sm:$0xff]
  %v4936 = vld [vmem:[%s0 + $0xcf] sm:$0xff]
  %v4937 = vld [vmem:[%s0 + $0xd7] sm:$0xff]
  %v4938 = vld [vmem:[%s0 + $0xdf] sm:$0xff]
  %v4939 = vld [vmem:[%s0 + $0xe7] sm:$0xff]
  %v4940 = vld [vmem:[%s0 + $0xef] sm:$0xff]
  %v4941 = vld [vmem:[%s0 + $0xf7] sm:$0xff]
  %v4942 = vld [vmem:[%s0 + $0xff] sm:$0xff]
  %v4943 = vld [vmem:[%s0 + $0x107] sm:$0xff]
  %v4944 = vld [vmem:[%s0 + $0x10f] sm:$0xff]
  %v4945 = vld [vmem:[%s0 + $0x117] sm:$0xff]
  %v4946 = vld [vmem:[%s0 + $0x11f] sm:$0xff]
  %v4947 = vld [vmem:[%s0 + $0x127] sm:$0xff]
  %v4948 = vld [vmem:[%s0 + $0x12f] sm:$0xff]
  %v4949 = vld [vmem:[%s0 + $0x137] sm:$0xff]
  %v4950 = vld [vmem:[%s0 + $0x13f] sm:$0xff]
  %v4951 = vld [vmem:[%s0 + $0x147] sm:$0xff]
  %v4952 = vld [vmem:[%s0 + $0x14f] sm:$0xff]
  %v4953 = vld [vmem:[%s0 + $0x157] sm:$0xff]
  %v4954 = vld [vmem:[%s0 + $0x15f] sm:$0xff]
  %v4955 = vld [vmem:[%s0 + $0x167] sm:$0xff]
  %v4956 = vld [vmem:[%s0 + $0x16f] sm:$0xff]
  %v4957 = vld [vmem:[%s0 + $0x177] sm:$0xff]
  %v4958 = vld [vmem:[%s0 + $0x17f] sm:$0xff]
  %v4959 = vld [vmem:[%s0 + $0x187] sm:$0xff]
  %v4960 = vld [vmem:[%s0 + $0x18f] sm:$0xff]
  %v4961 = vld [vmem:[%s0 + $0x197] sm:$0xff]
  %v4962 = vld [vmem:[%s0 + $0x19f] sm:$0xff]
  %v4963 = vld [vmem:[%s0 + $0x1a7] sm:$0xff]
  %v4964 = vld [vmem:[%s0 + $0x1af] sm:$0xff]
  %v4965 = vld [vmem:[%s0 + $0x1b7] sm:$0xff]
  %v4966 = vld [vmem:[%s0 + $0x1bf] sm:$0xff]
  %v4967 = vld [vmem:[%s0 + $0x1c7] sm:$0xff]
  %v4968 = vld [vmem:[%s0 + $0x1cf] sm:$0xff]
  %v4969 = vld [vmem:[%s0 + $0x1d7] sm:$0xff]
  %v4970 = vld [vmem:[%s0 + $0x1df] sm:$0xff]
  %v4971 = vld [vmem:[%s0 + $0x1e7] sm:$0xff]
  %v4972 = vld [vmem:[%s0 + $0x1ef] sm:$0xff]
  %v4973 = vld [vmem:[%s0 + $0x1f7] sm:$0xff]
  %v4974 = vld [vmem:[%s0 + $0x1ff] sm:$0xff]
  %v4975 = vld [vmem:[%s0 + $0x207] sm:$0xff]
  %v4976 = vld [vmem:[%s0 + $0x20f] sm:$0xff]
  %v4977 = vld [vmem:[%s0 + $0x217] sm:$0xff]
  %v4978 = vld [vmem:[%s0 + $0x21f] sm:$0xff]
  %vm4979 = vmand %vm926, %vm1182
  %vm4980 = vmand %vm927, %vm1183
  %vm4981 = vmand %vm928, %vm1184
  %vm4982 = vmand %vm929, %vm1185
  %vm4983 = vmand %vm930, %vm1186
  %vm4984 = vmand %vm931, %vm1187
  %vm4985 = vmand %vm932, %vm1188
  %vm4986 = vmand %vm933, %vm1189
  %vm4987 = vmand %vm934, %vm1190
  %vm4988 = vmand %vm935, %vm1191
  %vm4989 = vmand %vm936, %vm1192
  %vm4990 = vmand %vm937, %vm1193
  %vm4991 = vmand %vm938, %vm1194
  %vm4992 = vmand %vm939, %vm1195
  %vm4993 = vmand %vm940, %vm1196
  %vm4994 = vmand %vm941, %vm1197
  %vm4995 = vmand %vm942, %vm1198
  %vm4996 = vmand %vm943, %vm1199
  %vm4997 = vmand %vm944, %vm1200
  %vm4998 = vmand %vm945, %vm1201
  %vm4999 = vmand %vm946, %vm1202
  %vm5000 = vmand %vm947, %vm1203
  %vm5001 = vmand %vm948, %vm1204
  %vm5002 = vmand %vm949, %vm1205
  %vm5003 = vmand %vm950, %vm1206
  %vm5004 = vmand %vm951, %vm1207
  %vm5005 = vmand %vm952, %vm1208
  %vm5006 = vmand %vm953, %vm1209
  %vm5007 = vmand %vm954, %vm1210
  %vm5008 = vmand %vm955, %vm1211
  %vm5009 = vmand %vm956, %vm1212
  %vm5010 = vmand %vm957, %vm1213
  %vm5011 = vmand %vm958, %vm1214
  %vm5012 = vmand %vm959, %vm1215
  %vm5013 = vmand %vm960, %vm1216
  %vm5014 = vmand %vm961, %vm1217
  %vm5015 = vmand %vm962, %vm1218
  %vm5016 = vmand %vm963, %vm1219
  %vm5017 = vmand %vm964, %vm1220
  %vm5018 = vmand %vm965, %vm1221
  %vm5019 = vmand %vm966, %vm1222
  %vm5020 = vmand %vm967, %vm1223
  %vm5021 = vmand %vm968, %vm1224
  %vm5022 = vmand %vm969, %vm1225
  %vm5023 = vmand %vm970, %vm1226
  %vm5024 = vmand %vm971, %vm1227
  %vm5025 = vmand %vm972, %vm1228
  %vm5026 = vmand %vm973, %vm1229
  %vm5027 = vmand %vm974, %vm1230
  %vm5028 = vmand %vm975, %vm1231
  %vm5029 = vmand %vm976, %vm1232
  %vm5030 = vmand %vm977, %vm1233
  %vm5031 = vmand %vm978, %vm1234
  %vm5032 = vmand %vm979, %vm1235
  %vm5033 = vmand %vm980, %vm1236
  %vm5034 = vmand %vm981, %vm1237
  %vm5035 = vmand %vm982, %vm1238
  %vm5036 = vmand %vm983, %vm1239
  %vm5037 = vmand %vm984, %vm1240
  %vm5038 = vmand %vm985, %vm1241
  %vm5039 = vmand %vm986, %vm1242
  %vm5040 = vmand %vm987, %vm1243
  %vm5041 = vmand %vm988, %vm1244
  %vm5042 = vmand %vm989, %vm1245
  %v5043 = vsel %vm4979, %v4915, 0.0
  %v5044 = vsel %vm4980, %v4916, 0.0
  %v5045 = vsel %vm4981, %v4917, 0.0
  %v5046 = vsel %vm4982, %v4918, 0.0
  %v5047 = vsel %vm4983, %v4919, 0.0
  %v5048 = vsel %vm4984, %v4920, 0.0
  %v5049 = vsel %vm4985, %v4921, 0.0
  %v5050 = vsel %vm4986, %v4922, 0.0
  %v5051 = vsel %vm4987, %v4923, 0.0
  %v5052 = vsel %vm4988, %v4924, 0.0
  %v5053 = vsel %vm4989, %v4925, 0.0
  %v5054 = vsel %vm4990, %v4926, 0.0
  %v5055 = vsel %vm4991, %v4927, 0.0
  %v5056 = vsel %vm4992, %v4928, 0.0
  %v5057 = vsel %vm4993, %v4929, 0.0
  %v5058 = vsel %vm4994, %v4930, 0.0
  %v5059 = vsel %vm4995, %v4931, 0.0
  %v5060 = vsel %vm4996, %v4932, 0.0
  %v5061 = vsel %vm4997, %v4933, 0.0
  %v5062 = vsel %vm4998, %v4934, 0.0
  %v5063 = vsel %vm4999, %v4935, 0.0
  %v5064 = vsel %vm5000, %v4936, 0.0
  %v5065 = vsel %vm5001, %v4937, 0.0
  %v5066 = vsel %vm5002, %v4938, 0.0
  %v5067 = vsel %vm5003, %v4939, 0.0
  %v5068 = vsel %vm5004, %v4940, 0.0
  %v5069 = vsel %vm5005, %v4941, 0.0
  %v5070 = vsel %vm5006, %v4942, 0.0
  %v5071 = vsel %vm5007, %v4943, 0.0
  %v5072 = vsel %vm5008, %v4944, 0.0
  %v5073 = vsel %vm5009, %v4945, 0.0
  %v5074 = vsel %vm5010, %v4946, 0.0
  %v5075 = vsel %vm5011, %v4947, 0.0
  %v5076 = vsel %vm5012, %v4948, 0.0
  %v5077 = vsel %vm5013, %v4949, 0.0
  %v5078 = vsel %vm5014, %v4950, 0.0
  %v5079 = vsel %vm5015, %v4951, 0.0
  %v5080 = vsel %vm5016, %v4952, 0.0
  %v5081 = vsel %vm5017, %v4953, 0.0
  %v5082 = vsel %vm5018, %v4954, 0.0
  %v5083 = vsel %vm5019, %v4955, 0.0
  %v5084 = vsel %vm5020, %v4956, 0.0
  %v5085 = vsel %vm5021, %v4957, 0.0
  %v5086 = vsel %vm5022, %v4958, 0.0
  %v5087 = vsel %vm5023, %v4959, 0.0
  %v5088 = vsel %vm5024, %v4960, 0.0
  %v5089 = vsel %vm5025, %v4961, 0.0
  %v5090 = vsel %vm5026, %v4962, 0.0
  %v5091 = vsel %vm5027, %v4963, 0.0
  %v5092 = vsel %vm5028, %v4964, 0.0
  %v5093 = vsel %vm5029, %v4965, 0.0
  %v5094 = vsel %vm5030, %v4966, 0.0
  %v5095 = vsel %vm5031, %v4967, 0.0
  %v5096 = vsel %vm5032, %v4968, 0.0
  %v5097 = vsel %vm5033, %v4969, 0.0
  %v5098 = vsel %vm5034, %v4970, 0.0
  %v5099 = vsel %vm5035, %v4971, 0.0
  %v5100 = vsel %vm5036, %v4972, 0.0
  %v5101 = vsel %vm5037, %v4973, 0.0
  %v5102 = vsel %vm5038, %v4974, 0.0
  %v5103 = vsel %vm5039, %v4975, 0.0
  %v5104 = vsel %vm5040, %v4976, 0.0
  %v5105 = vsel %vm5041, %v4977, 0.0
  %v5106 = vsel %vm5042, %v4978, 0.0
  %v5107 = vpack.c.bf16 %v5044, %v5043
  %v5108 = vpack.c.bf16 %v5046, %v5045
  %v5109 = vpack.c.bf16 %v5048, %v5047
  %v5110 = vpack.c.bf16 %v5050, %v5049
  %v5111 = vpack.c.bf16 %v5052, %v5051
  %v5112 = vpack.c.bf16 %v5054, %v5053
  %v5113 = vpack.c.bf16 %v5056, %v5055
  %v5114 = vpack.c.bf16 %v5058, %v5057
  %v5115 = vpack.c.bf16 %v5060, %v5059
  %v5116 = vpack.c.bf16 %v5062, %v5061
  %v5117 = vpack.c.bf16 %v5064, %v5063
  %v5118 = vpack.c.bf16 %v5066, %v5065
  %v5119 = vpack.c.bf16 %v5068, %v5067
  %v5120 = vpack.c.bf16 %v5070, %v5069
  %v5121 = vpack.c.bf16 %v5072, %v5071
  %v5122 = vpack.c.bf16 %v5074, %v5073
  %v5123 = vpack.c.bf16 %v5076, %v5075
  %v5124 = vpack.c.bf16 %v5078, %v5077
  %v5125 = vpack.c.bf16 %v5080, %v5079
  %v5126 = vpack.c.bf16 %v5082, %v5081
  %v5127 = vpack.c.bf16 %v5084, %v5083
  %v5128 = vpack.c.bf16 %v5086, %v5085
  %v5129 = vpack.c.bf16 %v5088, %v5087
  %v5130 = vpack.c.bf16 %v5090, %v5089
  %v5131 = vpack.c.bf16 %v5092, %v5091
  %v5132 = vpack.c.bf16 %v5094, %v5093
  %v5133 = vpack.c.bf16 %v5096, %v5095
  %v5134 = vpack.c.bf16 %v5098, %v5097
  %v5135 = vpack.c.bf16 %v5100, %v5099
  %v5136 = vpack.c.bf16 %v5102, %v5101
  %v5137 = vpack.c.bf16 %v5104, %v5103
  %v5138 = vpack.c.bf16 %v5106, %v5105
  %s5139 = scalar_lea.vmem %s1, 12
  %v5140 = vld [vmem:[%s5139] sm:$0x3]
  %v5142 = vsel %vm2145, %v5107, 0
  %v5145 = vsel %vm2145, %v5108, 0
  %v5148 = vsel %vm2145, %v5109, 0
  %v5151 = vsel %vm2145, %v5110, 0
  %v5154 = vsel %vm2145, %v5111, 0
  %v5157 = vsel %vm2145, %v5112, 0
  %v5160 = vsel %vm2145, %v5113, 0
  %v5163 = vsel %vm2145, %v5114, 0
  %v5166 = vsel %vm2145, %v5115, 0
  %v5169 = vsel %vm2145, %v5116, 0
  %v5172 = vsel %vm2145, %v5117, 0
  %v5175 = vsel %vm2145, %v5118, 0
  %v5178 = vsel %vm2145, %v5119, 0
  %v5181 = vsel %vm2145, %v5120, 0
  %v5184 = vsel %vm2145, %v5121, 0
  %v5187 = vsel %vm2145, %v5122, 0
  %v5190 = vsel %vm2145, %v5123, 0
  %v5193 = vsel %vm2145, %v5124, 0
  %v5196 = vsel %vm2145, %v5125, 0
  %v5199 = vsel %vm2145, %v5126, 0
  %v5202 = vsel %vm2145, %v5127, 0
  %v5205 = vsel %vm2145, %v5128, 0
  %v5208 = vsel %vm2145, %v5129, 0
  %v5211 = vsel %vm2145, %v5130, 0
  %v5214 = vsel %vm2145, %v5131, 0
  %v5217 = vsel %vm2145, %v5132, 0
  %v5220 = vsel %vm2145, %v5133, 0
  %v5223 = vsel %vm2145, %v5134, 0
  %v5226 = vsel %vm2145, %v5135, 0
  %v5229 = vsel %vm2145, %v5136, 0
  %v5232 = vsel %vm2145, %v5137, 0
  %v5235 = vsel %vm2145, %v5138, 0
  %v5238 = vsel %vm2242, %v5140, 0
  %5240 = vmatpush.bf16.msra.mxu0 0
  %5241 = vmatpush.bf16.msra.mxu0 0
  %5242 = vmatpush.bf16.msra.mxu0 0
  %5243 = vmatpush.bf16.msra.mxu0 0
  %5244 = vmatpush.bf16.msra.mxu0 0
  %5245 = vmatpush.bf16.msra.mxu0 0
  %5246 = vmatpush.bf16.msra.mxu0 0
  %5247 = vmatpush.bf16.msra.mxu0 %v5238
  %5248 = vmatmul.bf16.gmra.mxu0 %v5142
  %v5249 = vpop.f32.mrf.mxu0
  %v5250 = vadd.f32 0.0, %v5249
  %v5251 = vpop.f32.mrf.mxu0
  %v5252 = vadd.f32 0.0, %v5251
  %5253 = vmatmul.bf16.gmra.mxu0 %v5145
  %v5254 = vpop.f32.mrf.mxu0
  %v5255 = vadd.f32 0.0, %v5254
  %v5256 = vpop.f32.mrf.mxu0
  %v5257 = vadd.f32 0.0, %v5256
  %5258 = vmatmul.bf16.gmra.mxu0 %v5148
  %v5259 = vpop.f32.mrf.mxu0
  %v5260 = vadd.f32 0.0, %v5259
  %v5261 = vpop.f32.mrf.mxu0
  %v5262 = vadd.f32 0.0, %v5261
  %5263 = vmatmul.bf16.gmra.mxu0 %v5151
  %v5264 = vpop.f32.mrf.mxu0
  %v5265 = vadd.f32 0.0, %v5264
  %v5266 = vpop.f32.mrf.mxu0
  %v5267 = vadd.f32 0.0, %v5266
  %5268 = vmatmul.bf16.gmra.mxu0 %v5154
  %v5269 = vpop.f32.mrf.mxu0
  %v5270 = vadd.f32 0.0, %v5269
  %v5271 = vpop.f32.mrf.mxu0
  %v5272 = vadd.f32 0.0, %v5271
  %5273 = vmatmul.bf16.gmra.mxu0 %v5157
  %v5274 = vpop.f32.mrf.mxu0
  %v5275 = vadd.f32 0.0, %v5274
  %v5276 = vpop.f32.mrf.mxu0
  %v5277 = vadd.f32 0.0, %v5276
  %5278 = vmatmul.bf16.gmra.mxu0 %v5160
  %v5279 = vpop.f32.mrf.mxu0
  %v5280 = vadd.f32 0.0, %v5279
  %v5281 = vpop.f32.mrf.mxu0
  %v5282 = vadd.f32 0.0, %v5281
  %5283 = vmatmul.bf16.gmra.mxu0 %v5163
  %v5284 = vpop.f32.mrf.mxu0
  %v5285 = vadd.f32 0.0, %v5284
  %v5286 = vpop.f32.mrf.mxu0
  %v5287 = vadd.f32 0.0, %v5286
  %5288 = vmatmul.bf16.gmra.mxu0 %v5166
  %v5289 = vpop.f32.mrf.mxu0
  %v5290 = vadd.f32 0.0, %v5289
  %v5291 = vpop.f32.mrf.mxu0
  %v5292 = vadd.f32 0.0, %v5291
  %5293 = vmatmul.bf16.gmra.mxu0 %v5169
  %v5294 = vpop.f32.mrf.mxu0
  %v5295 = vadd.f32 0.0, %v5294
  %v5296 = vpop.f32.mrf.mxu0
  %v5297 = vadd.f32 0.0, %v5296
  %5298 = vmatmul.bf16.gmra.mxu0 %v5172
  %v5299 = vpop.f32.mrf.mxu0
  %v5300 = vadd.f32 0.0, %v5299
  %v5301 = vpop.f32.mrf.mxu0
  %v5302 = vadd.f32 0.0, %v5301
  %5303 = vmatmul.bf16.gmra.mxu0 %v5175
  %v5304 = vpop.f32.mrf.mxu0
  %v5305 = vadd.f32 0.0, %v5304
  %v5306 = vpop.f32.mrf.mxu0
  %v5307 = vadd.f32 0.0, %v5306
  %5308 = vmatmul.bf16.gmra.mxu0 %v5178
  %v5309 = vpop.f32.mrf.mxu0
  %v5310 = vadd.f32 0.0, %v5309
  %v5311 = vpop.f32.mrf.mxu0
  %v5312 = vadd.f32 0.0, %v5311
  %5313 = vmatmul.bf16.gmra.mxu0 %v5181
  %v5314 = vpop.f32.mrf.mxu0
  %v5315 = vadd.f32 0.0, %v5314
  %v5316 = vpop.f32.mrf.mxu0
  %v5317 = vadd.f32 0.0, %v5316
  %5318 = vmatmul.bf16.gmra.mxu0 %v5184
  %v5319 = vpop.f32.mrf.mxu0
  %v5320 = vadd.f32 0.0, %v5319
  %v5321 = vpop.f32.mrf.mxu0
  %v5322 = vadd.f32 0.0, %v5321
  %5323 = vmatmul.bf16.gmra.mxu0 %v5187
  %v5324 = vpop.f32.mrf.mxu0
  %v5325 = vadd.f32 0.0, %v5324
  %v5326 = vpop.f32.mrf.mxu0
  %v5327 = vadd.f32 0.0, %v5326
  %5328 = vmatmul.bf16.gmra.mxu0 %v5190
  %v5329 = vpop.f32.mrf.mxu0
  %v5330 = vadd.f32 0.0, %v5329
  %v5331 = vpop.f32.mrf.mxu0
  %v5332 = vadd.f32 0.0, %v5331
  %5333 = vmatmul.bf16.gmra.mxu0 %v5193
  %v5334 = vpop.f32.mrf.mxu0
  %v5335 = vadd.f32 0.0, %v5334
  %v5336 = vpop.f32.mrf.mxu0
  %v5337 = vadd.f32 0.0, %v5336
  %5338 = vmatmul.bf16.gmra.mxu0 %v5196
  %v5339 = vpop.f32.mrf.mxu0
  %v5340 = vadd.f32 0.0, %v5339
  %v5341 = vpop.f32.mrf.mxu0
  %v5342 = vadd.f32 0.0, %v5341
  %5343 = vmatmul.bf16.gmra.mxu0 %v5199
  %v5344 = vpop.f32.mrf.mxu0
  %v5345 = vadd.f32 0.0, %v5344
  %v5346 = vpop.f32.mrf.mxu0
  %v5347 = vadd.f32 0.0, %v5346
  %5348 = vmatmul.bf16.gmra.mxu0 %v5202
  %v5349 = vpop.f32.mrf.mxu0
  %v5350 = vadd.f32 0.0, %v5349
  %v5351 = vpop.f32.mrf.mxu0
  %v5352 = vadd.f32 0.0, %v5351
  %5353 = vmatmul.bf16.gmra.mxu0 %v5205
  %v5354 = vpop.f32.mrf.mxu0
  %v5355 = vadd.f32 0.0, %v5354
  %v5356 = vpop.f32.mrf.mxu0
  %v5357 = vadd.f32 0.0, %v5356
  %5358 = vmatmul.bf16.gmra.mxu0 %v5208
  %v5359 = vpop.f32.mrf.mxu0
  %v5360 = vadd.f32 0.0, %v5359
  %v5361 = vpop.f32.mrf.mxu0
  %v5362 = vadd.f32 0.0, %v5361
  %5363 = vmatmul.bf16.gmra.mxu0 %v5211
  %v5364 = vpop.f32.mrf.mxu0
  %v5365 = vadd.f32 0.0, %v5364
  %v5366 = vpop.f32.mrf.mxu0
  %v5367 = vadd.f32 0.0, %v5366
  %5368 = vmatmul.bf16.gmra.mxu0 %v5214
  %v5369 = vpop.f32.mrf.mxu0
  %v5370 = vadd.f32 0.0, %v5369
  %v5371 = vpop.f32.mrf.mxu0
  %v5372 = vadd.f32 0.0, %v5371
  %5373 = vmatmul.bf16.gmra.mxu0 %v5217
  %v5374 = vpop.f32.mrf.mxu0
  %v5375 = vadd.f32 0.0, %v5374
  %v5376 = vpop.f32.mrf.mxu0
  %v5377 = vadd.f32 0.0, %v5376
  %5378 = vmatmul.bf16.gmra.mxu0 %v5220
  %v5379 = vpop.f32.mrf.mxu0
  %v5380 = vadd.f32 0.0, %v5379
  %v5381 = vpop.f32.mrf.mxu0
  %v5382 = vadd.f32 0.0, %v5381
  %5383 = vmatmul.bf16.gmra.mxu0 %v5223
  %v5384 = vpop.f32.mrf.mxu0
  %v5385 = vadd.f32 0.0, %v5384
  %v5386 = vpop.f32.mrf.mxu0
  %v5387 = vadd.f32 0.0, %v5386
  %5388 = vmatmul.bf16.gmra.mxu0 %v5226
  %v5389 = vpop.f32.mrf.mxu0
  %v5390 = vadd.f32 0.0, %v5389
  %v5391 = vpop.f32.mrf.mxu0
  %v5392 = vadd.f32 0.0, %v5391
  %5393 = vmatmul.bf16.gmra.mxu0 %v5229
  %v5394 = vpop.f32.mrf.mxu0
  %v5395 = vadd.f32 0.0, %v5394
  %v5396 = vpop.f32.mrf.mxu0
  %v5397 = vadd.f32 0.0, %v5396
  %5398 = vmatmul.bf16.gmra.mxu0 %v5232
  %v5399 = vpop.f32.mrf.mxu0
  %v5400 = vadd.f32 0.0, %v5399
  %v5401 = vpop.f32.mrf.mxu0
  %v5402 = vadd.f32 0.0, %v5401
  %5403 = vmatmul.bf16.gmra.mxu0 %v5235
  %v5404 = vpop.f32.mrf.mxu0
  %v5405 = vadd.f32 0.0, %v5404
  %v5406 = vpop.f32.mrf.mxu0
  %v5407 = vadd.f32 0.0, %v5406
  %5408 = vdwg.mxu0
  %v5409 = vadd.f32 %v4851, %v5250
  %v5410 = vadd.f32 %v4852, %v5252
  %v5411 = vadd.f32 %v4853, %v5255
  %v5412 = vadd.f32 %v4854, %v5257
  %v5413 = vadd.f32 %v4855, %v5260
  %v5414 = vadd.f32 %v4856, %v5262
  %v5415 = vadd.f32 %v4857, %v5265
  %v5416 = vadd.f32 %v4858, %v5267
  %v5417 = vadd.f32 %v4859, %v5270
  %v5418 = vadd.f32 %v4860, %v5272
  %v5419 = vadd.f32 %v4861, %v5275
  %v5420 = vadd.f32 %v4862, %v5277
  %v5421 = vadd.f32 %v4863, %v5280
  %v5422 = vadd.f32 %v4864, %v5282
  %v5423 = vadd.f32 %v4865, %v5285
  %v5424 = vadd.f32 %v4866, %v5287
  %v5425 = vadd.f32 %v4867, %v5290
  %v5426 = vadd.f32 %v4868, %v5292
  %v5427 = vadd.f32 %v4869, %v5295
  %v5428 = vadd.f32 %v4870, %v5297
  %v5429 = vadd.f32 %v4871, %v5300
  %v5430 = vadd.f32 %v4872, %v5302
  %v5431 = vadd.f32 %v4873, %v5305
  %v5432 = vadd.f32 %v4874, %v5307
  %v5433 = vadd.f32 %v4875, %v5310
  %v5434 = vadd.f32 %v4876, %v5312
  %v5435 = vadd.f32 %v4877, %v5315
  %v5436 = vadd.f32 %v4878, %v5317
  %v5437 = vadd.f32 %v4879, %v5320
  %v5438 = vadd.f32 %v4880, %v5322
  %v5439 = vadd.f32 %v4881, %v5325
  %v5440 = vadd.f32 %v4882, %v5327
  %v5441 = vadd.f32 %v4883, %v5330
  %v5442 = vadd.f32 %v4884, %v5332
  %v5443 = vadd.f32 %v4885, %v5335
  %v5444 = vadd.f32 %v4886, %v5337
  %v5445 = vadd.f32 %v4887, %v5340
  %v5446 = vadd.f32 %v4888, %v5342
  %v5447 = vadd.f32 %v4889, %v5345
  %v5448 = vadd.f32 %v4890, %v5347
  %v5449 = vadd.f32 %v4891, %v5350
  %v5450 = vadd.f32 %v4892, %v5352
  %v5451 = vadd.f32 %v4893, %v5355
  %v5452 = vadd.f32 %v4894, %v5357
  %v5453 = vadd.f32 %v4895, %v5360
  %v5454 = vadd.f32 %v4896, %v5362
  %v5455 = vadd.f32 %v4897, %v5365
  %v5456 = vadd.f32 %v4898, %v5367
  %v5457 = vadd.f32 %v4899, %v5370
  %v5458 = vadd.f32 %v4900, %v5372
  %v5459 = vadd.f32 %v4901, %v5375
  %v5460 = vadd.f32 %v4902, %v5377
  %v5461 = vadd.f32 %v4903, %v5380
  %v5462 = vadd.f32 %v4904, %v5382
  %v5463 = vadd.f32 %v4905, %v5385
  %v5464 = vadd.f32 %v4906, %v5387
  %v5465 = vadd.f32 %v4907, %v5390
  %v5466 = vadd.f32 %v4908, %v5392
  %v5467 = vadd.f32 %v4909, %v5395
  %v5468 = vadd.f32 %v4910, %v5397
  %v5469 = vadd.f32 %v4911, %v5400
  %v5470 = vadd.f32 %v4912, %v5402
  %v5471 = vadd.f32 %v4913, %v5405
  %v5472 = vadd.f32 %v4914, %v5407
  %v5473 = vld [vmem:[%s0 + $0x28] sm:$0xff]
  %v5474 = vld [vmem:[%s0 + $0x30] sm:$0xff]
  %v5475 = vld [vmem:[%s0 + $0x38] sm:$0xff]
  %v5476 = vld [vmem:[%s0 + $0x40] sm:$0xff]
  %v5477 = vld [vmem:[%s0 + $0x48] sm:$0xff]
  %v5478 = vld [vmem:[%s0 + $0x50] sm:$0xff]
  %v5479 = vld [vmem:[%s0 + $0x58] sm:$0xff]
  %v5480 = vld [vmem:[%s0 + $0x60] sm:$0xff]
  %v5481 = vld [vmem:[%s0 + $0x68] sm:$0xff]
  %v5482 = vld [vmem:[%s0 + $0x70] sm:$0xff]
  %v5483 = vld [vmem:[%s0 + $0x78] sm:$0xff]
  %v5484 = vld [vmem:[%s0 + $0x80] sm:$0xff]
  %v5485 = vld [vmem:[%s0 + $0x88] sm:$0xff]
  %v5486 = vld [vmem:[%s0 + $0x90] sm:$0xff]
  %v5487 = vld [vmem:[%s0 + $0x98] sm:$0xff]
  %v5488 = vld [vmem:[%s0 + $0xa0] sm:$0xff]
  %v5489 = vld [vmem:[%s0 + $0xa8] sm:$0xff]
  %v5490 = vld [vmem:[%s0 + $0xb0] sm:$0xff]
  %v5491 = vld [vmem:[%s0 + $0xb8] sm:$0xff]
  %v5492 = vld [vmem:[%s0 + $0xc0] sm:$0xff]
  %v5493 = vld [vmem:[%s0 + $0xc8] sm:$0xff]
  %v5494 = vld [vmem:[%s0 + $0xd0] sm:$0xff]
  %v5495 = vld [vmem:[%s0 + $0xd8] sm:$0xff]
  %v5496 = vld [vmem:[%s0 + $0xe0] sm:$0xff]
  %v5497 = vld [vmem:[%s0 + $0xe8] sm:$0xff]
  %v5498 = vld [vmem:[%s0 + $0xf0] sm:$0xff]
  %v5499 = vld [vmem:[%s0 + $0xf8] sm:$0xff]
  %v5500 = vld [vmem:[%s0 + $0x100] sm:$0xff]
  %v5501 = vld [vmem:[%s0 + $0x108] sm:$0xff]
  %v5502 = vld [vmem:[%s0 + $0x110] sm:$0xff]
  %v5503 = vld [vmem:[%s0 + $0x118] sm:$0xff]
  %v5504 = vld [vmem:[%s0 + $0x120] sm:$0xff]
  %v5505 = vld [vmem:[%s0 + $0x128] sm:$0xff]
  %v5506 = vld [vmem:[%s0 + $0x130] sm:$0xff]
  %v5507 = vld [vmem:[%s0 + $0x138] sm:$0xff]
  %v5508 = vld [vmem:[%s0 + $0x140] sm:$0xff]
  %v5509 = vld [vmem:[%s0 + $0x148] sm:$0xff]
  %v5510 = vld [vmem:[%s0 + $0x150] sm:$0xff]
  %v5511 = vld [vmem:[%s0 + $0x158] sm:$0xff]
  %v5512 = vld [vmem:[%s0 + $0x160] sm:$0xff]
  %v5513 = vld [vmem:[%s0 + $0x168] sm:$0xff]
  %v5514 = vld [vmem:[%s0 + $0x170] sm:$0xff]
  %v5515 = vld [vmem:[%s0 + $0x178] sm:$0xff]
  %v5516 = vld [vmem:[%s0 + $0x180] sm:$0xff]
  %v5517 = vld [vmem:[%s0 + $0x188] sm:$0xff]
  %v5518 = vld [vmem:[%s0 + $0x190] sm:$0xff]
  %v5519 = vld [vmem:[%s0 + $0x198] sm:$0xff]
  %v5520 = vld [vmem:[%s0 + $0x1a0] sm:$0xff]
  %v5521 = vld [vmem:[%s0 + $0x1a8] sm:$0xff]
  %v5522 = vld [vmem:[%s0 + $0x1b0] sm:$0xff]
  %v5523 = vld [vmem:[%s0 + $0x1b8] sm:$0xff]
  %v5524 = vld [vmem:[%s0 + $0x1c0] sm:$0xff]
  %v5525 = vld [vmem:[%s0 + $0x1c8] sm:$0xff]
  %v5526 = vld [vmem:[%s0 + $0x1d0] sm:$0xff]
  %v5527 = vld [vmem:[%s0 + $0x1d8] sm:$0xff]
  %v5528 = vld [vmem:[%s0 + $0x1e0] sm:$0xff]
  %v5529 = vld [vmem:[%s0 + $0x1e8] sm:$0xff]
  %v5530 = vld [vmem:[%s0 + $0x1f0] sm:$0xff]
  %v5531 = vld [vmem:[%s0 + $0x1f8] sm:$0xff]
  %v5532 = vld [vmem:[%s0 + $0x200] sm:$0xff]
  %v5533 = vld [vmem:[%s0 + $0x208] sm:$0xff]
  %v5534 = vld [vmem:[%s0 + $0x210] sm:$0xff]
  %v5535 = vld [vmem:[%s0 + $0x218] sm:$0xff]
  %v5536 = vld [vmem:[%s0 + $0x220] sm:$0xff]
  %vm5537 = vmand %vm926, %vm1374
  %vm5538 = vmand %vm927, %vm1375
  %vm5539 = vmand %vm928, %vm1376
  %vm5540 = vmand %vm929, %vm1377
  %vm5541 = vmand %vm930, %vm1378
  %vm5542 = vmand %vm931, %vm1379
  %vm5543 = vmand %vm932, %vm1380
  %vm5544 = vmand %vm933, %vm1381
  %vm5545 = vmand %vm934, %vm1382
  %vm5546 = vmand %vm935, %vm1383
  %vm5547 = vmand %vm936, %vm1384
  %vm5548 = vmand %vm937, %vm1385
  %vm5549 = vmand %vm938, %vm1386
  %vm5550 = vmand %vm939, %vm1387
  %vm5551 = vmand %vm940, %vm1388
  %vm5552 = vmand %vm941, %vm1389
  %vm5553 = vmand %vm942, %vm1390
  %vm5554 = vmand %vm943, %vm1391
  %vm5555 = vmand %vm944, %vm1392
  %vm5556 = vmand %vm945, %vm1393
  %vm5557 = vmand %vm946, %vm1394
  %vm5558 = vmand %vm947, %vm1395
  %vm5559 = vmand %vm948, %vm1396
  %vm5560 = vmand %vm949, %vm1397
  %vm5561 = vmand %vm950, %vm1398
  %vm5562 = vmand %vm951, %vm1399
  %vm5563 = vmand %vm952, %vm1400
  %vm5564 = vmand %vm953, %vm1401
  %vm5565 = vmand %vm954, %vm1402
  %vm5566 = vmand %vm955, %vm1403
  %vm5567 = vmand %vm956, %vm1404
  %vm5568 = vmand %vm957, %vm1405
  %vm5569 = vmand %vm958, %vm1406
  %vm5570 = vmand %vm959, %vm1407
  %vm5571 = vmand %vm960, %vm1408
  %vm5572 = vmand %vm961, %vm1409
  %vm5573 = vmand %vm962, %vm1410
  %vm5574 = vmand %vm963, %vm1411
  %vm5575 = vmand %vm964, %vm1412
  %vm5576 = vmand %vm965, %vm1413
  %vm5577 = vmand %vm966, %vm1414
  %vm5578 = vmand %vm967, %vm1415
  %vm5579 = vmand %vm968, %vm1416
  %vm5580 = vmand %vm969, %vm1417
  %vm5581 = vmand %vm970, %vm1418
  %vm5582 = vmand %vm971, %vm1419
  %vm5583 = vmand %vm972, %vm1420
  %vm5584 = vmand %vm973, %vm1421
  %vm5585 = vmand %vm974, %vm1422
  %vm5586 = vmand %vm975, %vm1423
  %vm5587 = vmand %vm976, %vm1424
  %vm5588 = vmand %vm977, %vm1425
  %vm5589 = vmand %vm978, %vm1426
  %vm5590 = vmand %vm979, %vm1427
  %vm5591 = vmand %vm980, %vm1428
  %vm5592 = vmand %vm981, %vm1429
  %vm5593 = vmand %vm982, %vm1430
  %vm5594 = vmand %vm983, %vm1431
  %vm5595 = vmand %vm984, %vm1432
  %vm5596 = vmand %vm985, %vm1433
  %vm5597 = vmand %vm986, %vm1434
  %vm5598 = vmand %vm987, %vm1435
  %vm5599 = vmand %vm988, %vm1436
  %vm5600 = vmand %vm989, %vm1437
  %v5601 = vsel %vm5537, %v5473, 0.0
  %v5602 = vsel %vm5538, %v5474, 0.0
  %v5603 = vsel %vm5539, %v5475, 0.0
  %v5604 = vsel %vm5540, %v5476, 0.0
  %v5605 = vsel %vm5541, %v5477, 0.0
  %v5606 = vsel %vm5542, %v5478, 0.0
  %v5607 = vsel %vm5543, %v5479, 0.0
  %v5608 = vsel %vm5544, %v5480, 0.0
  %v5609 = vsel %vm5545, %v5481, 0.0
  %v5610 = vsel %vm5546, %v5482, 0.0
  %v5611 = vsel %vm5547, %v5483, 0.0
  %v5612 = vsel %vm5548, %v5484, 0.0
  %v5613 = vsel %vm5549, %v5485, 0.0
  %v5614 = vsel %vm5550, %v5486, 0.0
  %v5615 = vsel %vm5551, %v5487, 0.0
  %v5616 = vsel %vm5552, %v5488, 0.0
  %v5617 = vsel %vm5553, %v5489, 0.0
  %v5618 = vsel %vm5554, %v5490, 0.0
  %v5619 = vsel %vm5555, %v5491, 0.0
  %v5620 = vsel %vm5556, %v5492, 0.0
  %v5621 = vsel %vm5557, %v5493, 0.0
  %v5622 = vsel %vm5558, %v5494, 0.0
  %v5623 = vsel %vm5559, %v5495, 0.0
  %v5624 = vsel %vm5560, %v5496, 0.0
  %v5625 = vsel %vm5561, %v5497, 0.0
  %v5626 = vsel %vm5562, %v5498, 0.0
  %v5627 = vsel %vm5563, %v5499, 0.0
  %v5628 = vsel %vm5564, %v5500, 0.0
  %v5629 = vsel %vm5565, %v5501, 0.0
  %v5630 = vsel %vm5566, %v5502, 0.0
  %v5631 = vsel %vm5567, %v5503, 0.0
  %v5632 = vsel %vm5568, %v5504, 0.0
  %v5633 = vsel %vm5569, %v5505, 0.0
  %v5634 = vsel %vm5570, %v5506, 0.0
  %v5635 = vsel %vm5571, %v5507, 0.0
  %v5636 = vsel %vm5572, %v5508, 0.0
  %v5637 = vsel %vm5573, %v5509, 0.0
  %v5638 = vsel %vm5574, %v5510, 0.0
  %v5639 = vsel %vm5575, %v5511, 0.0
  %v5640 = vsel %vm5576, %v5512, 0.0
  %v5641 = vsel %vm5577, %v5513, 0.0
  %v5642 = vsel %vm5578, %v5514, 0.0
  %v5643 = vsel %vm5579, %v5515, 0.0
  %v5644 = vsel %vm5580, %v5516, 0.0
  %v5645 = vsel %vm5581, %v5517, 0.0
  %v5646 = vsel %vm5582, %v5518, 0.0
  %v5647 = vsel %vm5583, %v5519, 0.0
  %v5648 = vsel %vm5584, %v5520, 0.0
  %v5649 = vsel %vm5585, %v5521, 0.0
  %v5650 = vsel %vm5586, %v5522, 0.0
  %v5651 = vsel %vm5587, %v5523, 0.0
  %v5652 = vsel %vm5588, %v5524, 0.0
  %v5653 = vsel %vm5589, %v5525, 0.0
  %v5654 = vsel %vm5590, %v5526, 0.0
  %v5655 = vsel %vm5591, %v5527, 0.0
  %v5656 = vsel %vm5592, %v5528, 0.0
  %v5657 = vsel %vm5593, %v5529, 0.0
  %v5658 = vsel %vm5594, %v5530, 0.0
  %v5659 = vsel %vm5595, %v5531, 0.0
  %v5660 = vsel %vm5596, %v5532, 0.0
  %v5661 = vsel %vm5597, %v5533, 0.0
  %v5662 = vsel %vm5598, %v5534, 0.0
  %v5663 = vsel %vm5599, %v5535, 0.0
  %v5664 = vsel %vm5600, %v5536, 0.0
  %v5665 = vpack.c.bf16 %v5602, %v5601
  %v5666 = vpack.c.bf16 %v5604, %v5603
  %v5667 = vpack.c.bf16 %v5606, %v5605
  %v5668 = vpack.c.bf16 %v5608, %v5607
  %v5669 = vpack.c.bf16 %v5610, %v5609
  %v5670 = vpack.c.bf16 %v5612, %v5611
  %v5671 = vpack.c.bf16 %v5614, %v5613
  %v5672 = vpack.c.bf16 %v5616, %v5615
  %v5673 = vpack.c.bf16 %v5618, %v5617
  %v5674 = vpack.c.bf16 %v5620, %v5619
  %v5675 = vpack.c.bf16 %v5622, %v5621
  %v5676 = vpack.c.bf16 %v5624, %v5623
  %v5677 = vpack.c.bf16 %v5626, %v5625
  %v5678 = vpack.c.bf16 %v5628, %v5627
  %v5679 = vpack.c.bf16 %v5630, %v5629
  %v5680 = vpack.c.bf16 %v5632, %v5631
  %v5681 = vpack.c.bf16 %v5634, %v5633
  %v5682 = vpack.c.bf16 %v5636, %v5635
  %v5683 = vpack.c.bf16 %v5638, %v5637
  %v5684 = vpack.c.bf16 %v5640, %v5639
  %v5685 = vpack.c.bf16 %v5642, %v5641
  %v5686 = vpack.c.bf16 %v5644, %v5643
  %v5687 = vpack.c.bf16 %v5646, %v5645
  %v5688 = vpack.c.bf16 %v5648, %v5647
  %v5689 = vpack.c.bf16 %v5650, %v5649
  %v5690 = vpack.c.bf16 %v5652, %v5651
  %v5691 = vpack.c.bf16 %v5654, %v5653
  %v5692 = vpack.c.bf16 %v5656, %v5655
  %v5693 = vpack.c.bf16 %v5658, %v5657
  %v5694 = vpack.c.bf16 %v5660, %v5659
  %v5695 = vpack.c.bf16 %v5662, %v5661
  %v5696 = vpack.c.bf16 %v5664, %v5663
  %s5697 = scalar_lea.vmem %s1, 14
  %v5698 = vld [vmem:[%s5697] sm:$0x3]
  %v5700 = vsel %vm2145, %v5665, 0
  %v5703 = vsel %vm2145, %v5666, 0
  %v5706 = vsel %vm2145, %v5667, 0
  %v5709 = vsel %vm2145, %v5668, 0
  %v5712 = vsel %vm2145, %v5669, 0
  %v5715 = vsel %vm2145, %v5670, 0
  %v5718 = vsel %vm2145, %v5671, 0
  %v5721 = vsel %vm2145, %v5672, 0
  %v5724 = vsel %vm2145, %v5673, 0
  %v5727 = vsel %vm2145, %v5674, 0
  %v5730 = vsel %vm2145, %v5675, 0
  %v5733 = vsel %vm2145, %v5676, 0
  %v5736 = vsel %vm2145, %v5677, 0
  %v5739 = vsel %vm2145, %v5678, 0
  %v5742 = vsel %vm2145, %v5679, 0
  %v5745 = vsel %vm2145, %v5680, 0
  %v5748 = vsel %vm2145, %v5681, 0
  %v5751 = vsel %vm2145, %v5682, 0
  %v5754 = vsel %vm2145, %v5683, 0
  %v5757 = vsel %vm2145, %v5684, 0
  %v5760 = vsel %vm2145, %v5685, 0
  %v5763 = vsel %vm2145, %v5686, 0
  %v5766 = vsel %vm2145, %v5687, 0
  %v5769 = vsel %vm2145, %v5688, 0
  %v5772 = vsel %vm2145, %v5689, 0
  %v5775 = vsel %vm2145, %v5690, 0
  %v5778 = vsel %vm2145, %v5691, 0
  %v5781 = vsel %vm2145, %v5692, 0
  %v5784 = vsel %vm2145, %v5693, 0
  %v5787 = vsel %vm2145, %v5694, 0
  %v5790 = vsel %vm2145, %v5695, 0
  %v5793 = vsel %vm2145, %v5696, 0
  %v5796 = vsel %vm2242, %v5698, 0
  %5798 = vmatpush.bf16.msra.mxu0 0
  %5799 = vmatpush.bf16.msra.mxu0 0
  %5800 = vmatpush.bf16.msra.mxu0 0
  %5801 = vmatpush.bf16.msra.mxu0 0
  %5802 = vmatpush.bf16.msra.mxu0 0
  %5803 = vmatpush.bf16.msra.mxu0 0
  %5804 = vmatpush.bf16.msra.mxu0 0
  %5805 = vmatpush.bf16.msra.mxu0 %v5796
  %5806 = vmatmul.bf16.gmra.mxu0 %v5700
  %v5807 = vpop.f32.mrf.mxu0
  %v5808 = vadd.f32 0.0, %v5807
  %v5809 = vpop.f32.mrf.mxu0
  %v5810 = vadd.f32 0.0, %v5809
  %5811 = vmatmul.bf16.gmra.mxu0 %v5703
  %v5812 = vpop.f32.mrf.mxu0
  %v5813 = vadd.f32 0.0, %v5812
  %v5814 = vpop.f32.mrf.mxu0
  %v5815 = vadd.f32 0.0, %v5814
  %5816 = vmatmul.bf16.gmra.mxu0 %v5706
  %v5817 = vpop.f32.mrf.mxu0
  %v5818 = vadd.f32 0.0, %v5817
  %v5819 = vpop.f32.mrf.mxu0
  %v5820 = vadd.f32 0.0, %v5819
  %5821 = vmatmul.bf16.gmra.mxu0 %v5709
  %v5822 = vpop.f32.mrf.mxu0
  %v5823 = vadd.f32 0.0, %v5822
  %v5824 = vpop.f32.mrf.mxu0
  %v5825 = vadd.f32 0.0, %v5824
  %5826 = vmatmul.bf16.gmra.mxu0 %v5712
  %v5827 = vpop.f32.mrf.mxu0
  %v5828 = vadd.f32 0.0, %v5827
  %v5829 = vpop.f32.mrf.mxu0
  %v5830 = vadd.f32 0.0, %v5829
  %5831 = vmatmul.bf16.gmra.mxu0 %v5715
  %v5832 = vpop.f32.mrf.mxu0
  %v5833 = vadd.f32 0.0, %v5832
  %v5834 = vpop.f32.mrf.mxu0
  %v5835 = vadd.f32 0.0, %v5834
  %5836 = vmatmul.bf16.gmra.mxu0 %v5718
  %v5837 = vpop.f32.mrf.mxu0
  %v5838 = vadd.f32 0.0, %v5837
  %v5839 = vpop.f32.mrf.mxu0
  %v5840 = vadd.f32 0.0, %v5839
  %5841 = vmatmul.bf16.gmra.mxu0 %v5721
  %v5842 = vpop.f32.mrf.mxu0
  %v5843 = vadd.f32 0.0, %v5842
  %v5844 = vpop.f32.mrf.mxu0
  %v5845 = vadd.f32 0.0, %v5844
  %5846 = vmatmul.bf16.gmra.mxu0 %v5724
  %v5847 = vpop.f32.mrf.mxu0
  %v5848 = vadd.f32 0.0, %v5847
  %v5849 = vpop.f32.mrf.mxu0
  %v5850 = vadd.f32 0.0, %v5849
  %5851 = vmatmul.bf16.gmra.mxu0 %v5727
  %v5852 = vpop.f32.mrf.mxu0
  %v5853 = vadd.f32 0.0, %v5852
  %v5854 = vpop.f32.mrf.mxu0
  %v5855 = vadd.f32 0.0, %v5854
  %5856 = vmatmul.bf16.gmra.mxu0 %v5730
  %v5857 = vpop.f32.mrf.mxu0
  %v5858 = vadd.f32 0.0, %v5857
  %v5859 = vpop.f32.mrf.mxu0
  %v5860 = vadd.f32 0.0, %v5859
  %5861 = vmatmul.bf16.gmra.mxu0 %v5733
  %v5862 = vpop.f32.mrf.mxu0
  %v5863 = vadd.f32 0.0, %v5862
  %v5864 = vpop.f32.mrf.mxu0
  %v5865 = vadd.f32 0.0, %v5864
  %5866 = vmatmul.bf16.gmra.mxu0 %v5736
  %v5867 = vpop.f32.mrf.mxu0
  %v5868 = vadd.f32 0.0, %v5867
  %v5869 = vpop.f32.mrf.mxu0
  %v5870 = vadd.f32 0.0, %v5869
  %5871 = vmatmul.bf16.gmra.mxu0 %v5739
  %v5872 = vpop.f32.mrf.mxu0
  %v5873 = vadd.f32 0.0, %v5872
  %v5874 = vpop.f32.mrf.mxu0
  %v5875 = vadd.f32 0.0, %v5874
  %5876 = vmatmul.bf16.gmra.mxu0 %v5742
  %v5877 = vpop.f32.mrf.mxu0
  %v5878 = vadd.f32 0.0, %v5877
  %v5879 = vpop.f32.mrf.mxu0
  %v5880 = vadd.f32 0.0, %v5879
  %5881 = vmatmul.bf16.gmra.mxu0 %v5745
  %v5882 = vpop.f32.mrf.mxu0
  %v5883 = vadd.f32 0.0, %v5882
  %v5884 = vpop.f32.mrf.mxu0
  %v5885 = vadd.f32 0.0, %v5884
  %5886 = vmatmul.bf16.gmra.mxu0 %v5748
  %v5887 = vpop.f32.mrf.mxu0
  %v5888 = vadd.f32 0.0, %v5887
  %v5889 = vpop.f32.mrf.mxu0
  %v5890 = vadd.f32 0.0, %v5889
  %5891 = vmatmul.bf16.gmra.mxu0 %v5751
  %v5892 = vpop.f32.mrf.mxu0
  %v5893 = vadd.f32 0.0, %v5892
  %v5894 = vpop.f32.mrf.mxu0
  %v5895 = vadd.f32 0.0, %v5894
  %5896 = vmatmul.bf16.gmra.mxu0 %v5754
  %v5897 = vpop.f32.mrf.mxu0
  %v5898 = vadd.f32 0.0, %v5897
  %v5899 = vpop.f32.mrf.mxu0
  %v5900 = vadd.f32 0.0, %v5899
  %5901 = vmatmul.bf16.gmra.mxu0 %v5757
  %v5902 = vpop.f32.mrf.mxu0
  %v5903 = vadd.f32 0.0, %v5902
  %v5904 = vpop.f32.mrf.mxu0
  %v5905 = vadd.f32 0.0, %v5904
  %5906 = vmatmul.bf16.gmra.mxu0 %v5760
  %v5907 = vpop.f32.mrf.mxu0
  %v5908 = vadd.f32 0.0, %v5907
  %v5909 = vpop.f32.mrf.mxu0
  %v5910 = vadd.f32 0.0, %v5909
  %5911 = vmatmul.bf16.gmra.mxu0 %v5763
  %v5912 = vpop.f32.mrf.mxu0
  %v5913 = vadd.f32 0.0, %v5912
  %v5914 = vpop.f32.mrf.mxu0
  %v5915 = vadd.f32 0.0, %v5914
  %5916 = vmatmul.bf16.gmra.mxu0 %v5766
  %v5917 = vpop.f32.mrf.mxu0
  %v5918 = vadd.f32 0.0, %v5917
  %v5919 = vpop.f32.mrf.mxu0
  %v5920 = vadd.f32 0.0, %v5919
  %5921 = vmatmul.bf16.gmra.mxu0 %v5769
  %v5922 = vpop.f32.mrf.mxu0
  %v5923 = vadd.f32 0.0, %v5922
  %v5924 = vpop.f32.mrf.mxu0
  %v5925 = vadd.f32 0.0, %v5924
  %5926 = vmatmul.bf16.gmra.mxu0 %v5772
  %v5927 = vpop.f32.mrf.mxu0
  %v5928 = vadd.f32 0.0, %v5927
  %v5929 = vpop.f32.mrf.mxu0
  %v5930 = vadd.f32 0.0, %v5929
  %5931 = vmatmul.bf16.gmra.mxu0 %v5775
  %v5932 = vpop.f32.mrf.mxu0
  %v5933 = vadd.f32 0.0, %v5932
  %v5934 = vpop.f32.mrf.mxu0
  %v5935 = vadd.f32 0.0, %v5934
  %5936 = vmatmul.bf16.gmra.mxu0 %v5778
  %v5937 = vpop.f32.mrf.mxu0
  %v5938 = vadd.f32 0.0, %v5937
  %v5939 = vpop.f32.mrf.mxu0
  %v5940 = vadd.f32 0.0, %v5939
  %5941 = vmatmul.bf16.gmra.mxu0 %v5781
  %v5942 = vpop.f32.mrf.mxu0
  %v5943 = vadd.f32 0.0, %v5942
  %v5944 = vpop.f32.mrf.mxu0
  %v5945 = vadd.f32 0.0, %v5944
  %5946 = vmatmul.bf16.gmra.mxu0 %v5784
  %v5947 = vpop.f32.mrf.mxu0
  %v5948 = vadd.f32 0.0, %v5947
  %v5949 = vpop.f32.mrf.mxu0
  %v5950 = vadd.f32 0.0, %v5949
  %5951 = vmatmul.bf16.gmra.mxu0 %v5787
  %v5952 = vpop.f32.mrf.mxu0
  %v5953 = vadd.f32 0.0, %v5952
  %v5954 = vpop.f32.mrf.mxu0
  %v5955 = vadd.f32 0.0, %v5954
  %5956 = vmatmul.bf16.gmra.mxu0 %v5790
  %v5957 = vpop.f32.mrf.mxu0
  %v5958 = vadd.f32 0.0, %v5957
  %v5959 = vpop.f32.mrf.mxu0
  %v5960 = vadd.f32 0.0, %v5959
  %5961 = vmatmul.bf16.gmra.mxu0 %v5793
  %v5962 = vpop.f32.mrf.mxu0
  %v5963 = vadd.f32 0.0, %v5962
  %v5964 = vpop.f32.mrf.mxu0
  %v5965 = vadd.f32 0.0, %v5964
  %5966 = vdwg.mxu0
  %v5967 = vadd.f32 %v5409, %v5808
  %v5968 = vadd.f32 %v5410, %v5810
  %v5969 = vadd.f32 %v5411, %v5813
  %v5970 = vadd.f32 %v5412, %v5815
  %v5971 = vadd.f32 %v5413, %v5818
  %v5972 = vadd.f32 %v5414, %v5820
  %v5973 = vadd.f32 %v5415, %v5823
  %v5974 = vadd.f32 %v5416, %v5825
  %v5975 = vadd.f32 %v5417, %v5828
  %v5976 = vadd.f32 %v5418, %v5830
  %v5977 = vadd.f32 %v5419, %v5833
  %v5978 = vadd.f32 %v5420, %v5835
  %v5979 = vadd.f32 %v5421, %v5838
  %v5980 = vadd.f32 %v5422, %v5840
  %v5981 = vadd.f32 %v5423, %v5843
  %v5982 = vadd.f32 %v5424, %v5845
  %v5983 = vadd.f32 %v5425, %v5848
  %v5984 = vadd.f32 %v5426, %v5850
  %v5985 = vadd.f32 %v5427, %v5853
  %v5986 = vadd.f32 %v5428, %v5855
  %v5987 = vadd.f32 %v5429, %v5858
  %v5988 = vadd.f32 %v5430, %v5860
  %v5989 = vadd.f32 %v5431, %v5863
  %v5990 = vadd.f32 %v5432, %v5865
  %v5991 = vadd.f32 %v5433, %v5868
  %v5992 = vadd.f32 %v5434, %v5870
  %v5993 = vadd.f32 %v5435, %v5873
  %v5994 = vadd.f32 %v5436, %v5875
  %v5995 = vadd.f32 %v5437, %v5878
  %v5996 = vadd.f32 %v5438, %v5880
  %v5997 = vadd.f32 %v5439, %v5883
  %v5998 = vadd.f32 %v5440, %v5885
  %v5999 = vadd.f32 %v5441, %v5888
  %v6000 = vadd.f32 %v5442, %v5890
  %v6001 = vadd.f32 %v5443, %v5893
  %v6002 = vadd.f32 %v5444, %v5895
  %v6003 = vadd.f32 %v5445, %v5898
  %v6004 = vadd.f32 %v5446, %v5900
  %v6005 = vadd.f32 %v5447, %v5903
  %v6006 = vadd.f32 %v5448, %v5905
  %v6007 = vadd.f32 %v5449, %v5908
  %v6008 = vadd.f32 %v5450, %v5910
  %v6009 = vadd.f32 %v5451, %v5913
  %v6010 = vadd.f32 %v5452, %v5915
  %v6011 = vadd.f32 %v5453, %v5918
  %v6012 = vadd.f32 %v5454, %v5920
  %v6013 = vadd.f32 %v5455, %v5923
  %v6014 = vadd.f32 %v5456, %v5925
  %v6015 = vadd.f32 %v5457, %v5928
  %v6016 = vadd.f32 %v5458, %v5930
  %v6017 = vadd.f32 %v5459, %v5933
  %v6018 = vadd.f32 %v5460, %v5935
  %v6019 = vadd.f32 %v5461, %v5938
  %v6020 = vadd.f32 %v5462, %v5940
  %v6021 = vadd.f32 %v5463, %v5943
  %v6022 = vadd.f32 %v5464, %v5945
  %v6023 = vadd.f32 %v5465, %v5948
  %v6024 = vadd.f32 %v5466, %v5950
  %v6025 = vadd.f32 %v5467, %v5953
  %v6026 = vadd.f32 %v5468, %v5955
  %v6027 = vadd.f32 %v5469, %v5958
  %v6028 = vadd.f32 %v5470, %v5960
  %v6029 = vadd.f32 %v5471, %v5963
  %v6030 = vadd.f32 %v5472, %v5965
  %v6031 = vld [vmem:[%s0 + $0x29] sm:$0xff]
  %v6032 = vld [vmem:[%s0 + $0x31] sm:$0xff]
  %v6033 = vld [vmem:[%s0 + $0x39] sm:$0xff]
  %v6034 = vld [vmem:[%s0 + $0x41] sm:$0xff]
  %v6035 = vld [vmem:[%s0 + $0x49] sm:$0xff]
  %v6036 = vld [vmem:[%s0 + $0x51] sm:$0xff]
  %v6037 = vld [vmem:[%s0 + $0x59] sm:$0xff]
  %v6038 = vld [vmem:[%s0 + $0x61] sm:$0xff]
  %v6039 = vld [vmem:[%s0 + $0x69] sm:$0xff]
  %v6040 = vld [vmem:[%s0 + $0x71] sm:$0xff]
  %v6041 = vld [vmem:[%s0 + $0x79] sm:$0xff]
  %v6042 = vld [vmem:[%s0 + $0x81] sm:$0xff]
  %v6043 = vld [vmem:[%s0 + $0x89] sm:$0xff]
  %v6044 = vld [vmem:[%s0 + $0x91] sm:$0xff]
  %v6045 = vld [vmem:[%s0 + $0x99] sm:$0xff]
  %v6046 = vld [vmem:[%s0 + $0xa1] sm:$0xff]
  %v6047 = vld [vmem:[%s0 + $0xa9] sm:$0xff]
  %v6048 = vld [vmem:[%s0 + $0xb1] sm:$0xff]
  %v6049 = vld [vmem:[%s0 + $0xb9] sm:$0xff]
  %v6050 = vld [vmem:[%s0 + $0xc1] sm:$0xff]
  %v6051 = vld [vmem:[%s0 + $0xc9] sm:$0xff]
  %v6052 = vld [vmem:[%s0 + $0xd1] sm:$0xff]
  %v6053 = vld [vmem:[%s0 + $0xd9] sm:$0xff]
  %v6054 = vld [vmem:[%s0 + $0xe1] sm:$0xff]
  %v6055 = vld [vmem:[%s0 + $0xe9] sm:$0xff]
  %v6056 = vld [vmem:[%s0 + $0xf1] sm:$0xff]
  %v6057 = vld [vmem:[%s0 + $0xf9] sm:$0xff]
  %v6058 = vld [vmem:[%s0 + $0x101] sm:$0xff]
  %v6059 = vld [vmem:[%s0 + $0x109] sm:$0xff]
  %v6060 = vld [vmem:[%s0 + $0x111] sm:$0xff]
  %v6061 = vld [vmem:[%s0 + $0x119] sm:$0xff]
  %v6062 = vld [vmem:[%s0 + $0x121] sm:$0xff]
  %v6063 = vld [vmem:[%s0 + $0x129] sm:$0xff]
  %v6064 = vld [vmem:[%s0 + $0x131] sm:$0xff]
  %v6065 = vld [vmem:[%s0 + $0x139] sm:$0xff]
  %v6066 = vld [vmem:[%s0 + $0x141] sm:$0xff]
  %v6067 = vld [vmem:[%s0 + $0x149] sm:$0xff]
  %v6068 = vld [vmem:[%s0 + $0x151] sm:$0xff]
  %v6069 = vld [vmem:[%s0 + $0x159] sm:$0xff]
  %v6070 = vld [vmem:[%s0 + $0x161] sm:$0xff]
  %v6071 = vld [vmem:[%s0 + $0x169] sm:$0xff]
  %v6072 = vld [vmem:[%s0 + $0x171] sm:$0xff]
  %v6073 = vld [vmem:[%s0 + $0x179] sm:$0xff]
  %v6074 = vld [vmem:[%s0 + $0x181] sm:$0xff]
  %v6075 = vld [vmem:[%s0 + $0x189] sm:$0xff]
  %v6076 = vld [vmem:[%s0 + $0x191] sm:$0xff]
  %v6077 = vld [vmem:[%s0 + $0x199] sm:$0xff]
  %v6078 = vld [vmem:[%s0 + $0x1a1] sm:$0xff]
  %v6079 = vld [vmem:[%s0 + $0x1a9] sm:$0xff]
  %v6080 = vld [vmem:[%s0 + $0x1b1] sm:$0xff]
  %v6081 = vld [vmem:[%s0 + $0x1b9] sm:$0xff]
  %v6082 = vld [vmem:[%s0 + $0x1c1] sm:$0xff]
  %v6083 = vld [vmem:[%s0 + $0x1c9] sm:$0xff]
  %v6084 = vld [vmem:[%s0 + $0x1d1] sm:$0xff]
  %v6085 = vld [vmem:[%s0 + $0x1d9] sm:$0xff]
  %v6086 = vld [vmem:[%s0 + $0x1e1] sm:$0xff]
  %v6087 = vld [vmem:[%s0 + $0x1e9] sm:$0xff]
  %v6088 = vld [vmem:[%s0 + $0x1f1] sm:$0xff]
  %v6089 = vld [vmem:[%s0 + $0x1f9] sm:$0xff]
  %v6090 = vld [vmem:[%s0 + $0x201] sm:$0xff]
  %v6091 = vld [vmem:[%s0 + $0x209] sm:$0xff]
  %v6092 = vld [vmem:[%s0 + $0x211] sm:$0xff]
  %v6093 = vld [vmem:[%s0 + $0x219] sm:$0xff]
  %v6094 = vld [vmem:[%s0 + $0x221] sm:$0xff]
  %vm6095 = vmand %vm926, %vm1630
  %vm6096 = vmand %vm927, %vm1631
  %vm6097 = vmand %vm928, %vm1632
  %vm6098 = vmand %vm929, %vm1633
  %vm6099 = vmand %vm930, %vm1634
  %vm6100 = vmand %vm931, %vm1635
  %vm6101 = vmand %vm932, %vm1636
  %vm6102 = vmand %vm933, %vm1637
  %vm6103 = vmand %vm934, %vm1638
  %vm6104 = vmand %vm935, %vm1639
  %vm6105 = vmand %vm936, %vm1640
  %vm6106 = vmand %vm937, %vm1641
  %vm6107 = vmand %vm938, %vm1642
  %vm6108 = vmand %vm939, %vm1643
  %vm6109 = vmand %vm940, %vm1644
  %vm6110 = vmand %vm941, %vm1645
  %vm6111 = vmand %vm942, %vm1646
  %vm6112 = vmand %vm943, %vm1647
  %vm6113 = vmand %vm944, %vm1648
  %vm6114 = vmand %vm945, %vm1649
  %vm6115 = vmand %vm946, %vm1650
  %vm6116 = vmand %vm947, %vm1651
  %vm6117 = vmand %vm948, %vm1652
  %vm6118 = vmand %vm949, %vm1653
  %vm6119 = vmand %vm950, %vm1654
  %vm6120 = vmand %vm951, %vm1655
  %vm6121 = vmand %vm952, %vm1656
  %vm6122 = vmand %vm953, %vm1657
  %vm6123 = vmand %vm954, %vm1658
  %vm6124 = vmand %vm955, %vm1659
  %vm6125 = vmand %vm956, %vm1660
  %vm6126 = vmand %vm957, %vm1661
  %vm6127 = vmand %vm958, %vm1662
  %vm6128 = vmand %vm959, %vm1663
  %vm6129 = vmand %vm960, %vm1664
  %vm6130 = vmand %vm961, %vm1665
  %vm6131 = vmand %vm962, %vm1666
  %vm6132 = vmand %vm963, %vm1667
  %vm6133 = vmand %vm964, %vm1668
  %vm6134 = vmand %vm965, %vm1669
  %vm6135 = vmand %vm966, %vm1670
  %vm6136 = vmand %vm967, %vm1671
  %vm6137 = vmand %vm968, %vm1672
  %vm6138 = vmand %vm969, %vm1673
  %vm6139 = vmand %vm970, %vm1674
  %vm6140 = vmand %vm971, %vm1675
  %vm6141 = vmand %vm972, %vm1676
  %vm6142 = vmand %vm973, %vm1677
  %vm6143 = vmand %vm974, %vm1678
  %vm6144 = vmand %vm975, %vm1679
  %vm6145 = vmand %vm976, %vm1680
  %vm6146 = vmand %vm977, %vm1681
  %vm6147 = vmand %vm978, %vm1682
  %vm6148 = vmand %vm979, %vm1683
  %vm6149 = vmand %vm980, %vm1684
  %vm6150 = vmand %vm981, %vm1685
  %vm6151 = vmand %vm982, %vm1686
  %vm6152 = vmand %vm983, %vm1687
  %vm6153 = vmand %vm984, %vm1688
  %vm6154 = vmand %vm985, %vm1689
  %vm6155 = vmand %vm986, %vm1690
  %vm6156 = vmand %vm987, %vm1691
  %vm6157 = vmand %vm988, %vm1692
  %vm6158 = vmand %vm989, %vm1693
  %v6159 = vsel %vm6095, %v6031, 0.0
  %v6160 = vsel %vm6096, %v6032, 0.0
  %v6161 = vsel %vm6097, %v6033, 0.0
  %v6162 = vsel %vm6098, %v6034, 0.0
  %v6163 = vsel %vm6099, %v6035, 0.0
  %v6164 = vsel %vm6100, %v6036, 0.0
  %v6165 = vsel %vm6101, %v6037, 0.0
  %v6166 = vsel %vm6102, %v6038, 0.0
  %v6167 = vsel %vm6103, %v6039, 0.0
  %v6168 = vsel %vm6104, %v6040, 0.0
  %v6169 = vsel %vm6105, %v6041, 0.0
  %v6170 = vsel %vm6106, %v6042, 0.0
  %v6171 = vsel %vm6107, %v6043, 0.0
  %v6172 = vsel %vm6108, %v6044, 0.0
  %v6173 = vsel %vm6109, %v6045, 0.0
  %v6174 = vsel %vm6110, %v6046, 0.0
  %v6175 = vsel %vm6111, %v6047, 0.0
  %v6176 = vsel %vm6112, %v6048, 0.0
  %v6177 = vsel %vm6113, %v6049, 0.0
  %v6178 = vsel %vm6114, %v6050, 0.0
  %v6179 = vsel %vm6115, %v6051, 0.0
  %v6180 = vsel %vm6116, %v6052, 0.0
  %v6181 = vsel %vm6117, %v6053, 0.0
  %v6182 = vsel %vm6118, %v6054, 0.0
  %v6183 = vsel %vm6119, %v6055, 0.0
  %v6184 = vsel %vm6120, %v6056, 0.0
  %v6185 = vsel %vm6121, %v6057, 0.0
  %v6186 = vsel %vm6122, %v6058, 0.0
  %v6187 = vsel %vm6123, %v6059, 0.0
  %v6188 = vsel %vm6124, %v6060, 0.0
  %v6189 = vsel %vm6125, %v6061, 0.0
  %v6190 = vsel %vm6126, %v6062, 0.0
  %v6191 = vsel %vm6127, %v6063, 0.0
  %v6192 = vsel %vm6128, %v6064, 0.0
  %v6193 = vsel %vm6129, %v6065, 0.0
  %v6194 = vsel %vm6130, %v6066, 0.0
  %v6195 = vsel %vm6131, %v6067, 0.0
  %v6196 = vsel %vm6132, %v6068, 0.0
  %v6197 = vsel %vm6133, %v6069, 0.0
  %v6198 = vsel %vm6134, %v6070, 0.0
  %v6199 = vsel %vm6135, %v6071, 0.0
  %v6200 = vsel %vm6136, %v6072, 0.0
  %v6201 = vsel %vm6137, %v6073, 0.0
  %v6202 = vsel %vm6138, %v6074, 0.0
  %v6203 = vsel %vm6139, %v6075, 0.0
  %v6204 = vsel %vm6140, %v6076, 0.0
  %v6205 = vsel %vm6141, %v6077, 0.0
  %v6206 = vsel %vm6142, %v6078, 0.0
  %v6207 = vsel %vm6143, %v6079, 0.0
  %v6208 = vsel %vm6144, %v6080, 0.0
  %v6209 = vsel %vm6145, %v6081, 0.0
  %v6210 = vsel %vm6146, %v6082, 0.0
  %v6211 = vsel %vm6147, %v6083, 0.0
  %v6212 = vsel %vm6148, %v6084, 0.0
  %v6213 = vsel %vm6149, %v6085, 0.0
  %v6214 = vsel %vm6150, %v6086, 0.0
  %v6215 = vsel %vm6151, %v6087, 0.0
  %v6216 = vsel %vm6152, %v6088, 0.0
  %v6217 = vsel %vm6153, %v6089, 0.0
  %v6218 = vsel %vm6154, %v6090, 0.0
  %v6219 = vsel %vm6155, %v6091, 0.0
  %v6220 = vsel %vm6156, %v6092, 0.0
  %v6221 = vsel %vm6157, %v6093, 0.0
  %v6222 = vsel %vm6158, %v6094, 0.0
  %v6223 = vpack.c.bf16 %v6160, %v6159
  %v6224 = vpack.c.bf16 %v6162, %v6161
  %v6225 = vpack.c.bf16 %v6164, %v6163
  %v6226 = vpack.c.bf16 %v6166, %v6165
  %v6227 = vpack.c.bf16 %v6168, %v6167
  %v6228 = vpack.c.bf16 %v6170, %v6169
  %v6229 = vpack.c.bf16 %v6172, %v6171
  %v6230 = vpack.c.bf16 %v6174, %v6173
  %v6231 = vpack.c.bf16 %v6176, %v6175
  %v6232 = vpack.c.bf16 %v6178, %v6177
  %v6233 = vpack.c.bf16 %v6180, %v6179
  %v6234 = vpack.c.bf16 %v6182, %v6181
  %v6235 = vpack.c.bf16 %v6184, %v6183
  %v6236 = vpack.c.bf16 %v6186, %v6185
  %v6237 = vpack.c.bf16 %v6188, %v6187
  %v6238 = vpack.c.bf16 %v6190, %v6189
  %v6239 = vpack.c.bf16 %v6192, %v6191
  %v6240 = vpack.c.bf16 %v6194, %v6193
  %v6241 = vpack.c.bf16 %v6196, %v6195
  %v6242 = vpack.c.bf16 %v6198, %v6197
  %v6243 = vpack.c.bf16 %v6200, %v6199
  %v6244 = vpack.c.bf16 %v6202, %v6201
  %v6245 = vpack.c.bf16 %v6204, %v6203
  %v6246 = vpack.c.bf16 %v6206, %v6205
  %v6247 = vpack.c.bf16 %v6208, %v6207
  %v6248 = vpack.c.bf16 %v6210, %v6209
  %v6249 = vpack.c.bf16 %v6212, %v6211
  %v6250 = vpack.c.bf16 %v6214, %v6213
  %v6251 = vpack.c.bf16 %v6216, %v6215
  %v6252 = vpack.c.bf16 %v6218, %v6217
  %v6253 = vpack.c.bf16 %v6220, %v6219
  %v6254 = vpack.c.bf16 %v6222, %v6221
  %s6255 = scalar_lea.vmem %s1, 16
  %v6256 = vld [vmem:[%s6255] sm:$0x3]
  %v6258 = vsel %vm2145, %v6223, 0
  %v6261 = vsel %vm2145, %v6224, 0
  %v6264 = vsel %vm2145, %v6225, 0
  %v6267 = vsel %vm2145, %v6226, 0
  %v6270 = vsel %vm2145, %v6227, 0
  %v6273 = vsel %vm2145, %v6228, 0
  %v6276 = vsel %vm2145, %v6229, 0
  %v6279 = vsel %vm2145, %v6230, 0
  %v6282 = vsel %vm2145, %v6231, 0
  %v6285 = vsel %vm2145, %v6232, 0
  %v6288 = vsel %vm2145, %v6233, 0
  %v6291 = vsel %vm2145, %v6234, 0
  %v6294 = vsel %vm2145, %v6235, 0
  %v6297 = vsel %vm2145, %v6236, 0
  %v6300 = vsel %vm2145, %v6237, 0
  %v6303 = vsel %vm2145, %v6238, 0
  %v6306 = vsel %vm2145, %v6239, 0
  %v6309 = vsel %vm2145, %v6240, 0
  %v6312 = vsel %vm2145, %v6241, 0
  %v6315 = vsel %vm2145, %v6242, 0
  %v6318 = vsel %vm2145, %v6243, 0
  %v6321 = vsel %vm2145, %v6244, 0
  %v6324 = vsel %vm2145, %v6245, 0
  %v6327 = vsel %vm2145, %v6246, 0
  %v6330 = vsel %vm2145, %v6247, 0
  %v6333 = vsel %vm2145, %v6248, 0
  %v6336 = vsel %vm2145, %v6249, 0
  %v6339 = vsel %vm2145, %v6250, 0
  %v6342 = vsel %vm2145, %v6251, 0
  %v6345 = vsel %vm2145, %v6252, 0
  %v6348 = vsel %vm2145, %v6253, 0
  %v6351 = vsel %vm2145, %v6254, 0
  %v6354 = vsel %vm2242, %v6256, 0
  %6356 = vmatpush.bf16.msra.mxu0 0
  %6357 = vmatpush.bf16.msra.mxu0 0
  %6358 = vmatpush.bf16.msra.mxu0 0
  %6359 = vmatpush.bf16.msra.mxu0 0
  %6360 = vmatpush.bf16.msra.mxu0 0
  %6361 = vmatpush.bf16.msra.mxu0 0
  %6362 = vmatpush.bf16.msra.mxu0 0
  %6363 = vmatpush.bf16.msra.mxu0 %v6354
  %6364 = vmatmul.bf16.gmra.mxu0 %v6258
  %v6365 = vpop.f32.mrf.mxu0
  %v6366 = vadd.f32 0.0, %v6365
  %v6367 = vpop.f32.mrf.mxu0
  %v6368 = vadd.f32 0.0, %v6367
  %6369 = vmatmul.bf16.gmra.mxu0 %v6261
  %v6370 = vpop.f32.mrf.mxu0
  %v6371 = vadd.f32 0.0, %v6370
  %v6372 = vpop.f32.mrf.mxu0
  %v6373 = vadd.f32 0.0, %v6372
  %6374 = vmatmul.bf16.gmra.mxu0 %v6264
  %v6375 = vpop.f32.mrf.mxu0
  %v6376 = vadd.f32 0.0, %v6375
  %v6377 = vpop.f32.mrf.mxu0
  %v6378 = vadd.f32 0.0, %v6377
  %6379 = vmatmul.bf16.gmra.mxu0 %v6267
  %v6380 = vpop.f32.mrf.mxu0
  %v6381 = vadd.f32 0.0, %v6380
  %v6382 = vpop.f32.mrf.mxu0
  %v6383 = vadd.f32 0.0, %v6382
  %6384 = vmatmul.bf16.gmra.mxu0 %v6270
  %v6385 = vpop.f32.mrf.mxu0
  %v6386 = vadd.f32 0.0, %v6385
  %v6387 = vpop.f32.mrf.mxu0
  %v6388 = vadd.f32 0.0, %v6387
  %6389 = vmatmul.bf16.gmra.mxu0 %v6273
  %v6390 = vpop.f32.mrf.mxu0
  %v6391 = vadd.f32 0.0, %v6390
  %v6392 = vpop.f32.mrf.mxu0
  %v6393 = vadd.f32 0.0, %v6392
  %6394 = vmatmul.bf16.gmra.mxu0 %v6276
  %v6395 = vpop.f32.mrf.mxu0
  %v6396 = vadd.f32 0.0, %v6395
  %v6397 = vpop.f32.mrf.mxu0
  %v6398 = vadd.f32 0.0, %v6397
  %6399 = vmatmul.bf16.gmra.mxu0 %v6279
  %v6400 = vpop.f32.mrf.mxu0
  %v6401 = vadd.f32 0.0, %v6400
  %v6402 = vpop.f32.mrf.mxu0
  %v6403 = vadd.f32 0.0, %v6402
  %6404 = vmatmul.bf16.gmra.mxu0 %v6282
  %v6405 = vpop.f32.mrf.mxu0
  %v6406 = vadd.f32 0.0, %v6405
  %v6407 = vpop.f32.mrf.mxu0
  %v6408 = vadd.f32 0.0, %v6407
  %6409 = vmatmul.bf16.gmra.mxu0 %v6285
  %v6410 = vpop.f32.mrf.mxu0
  %v6411 = vadd.f32 0.0, %v6410
  %v6412 = vpop.f32.mrf.mxu0
  %v6413 = vadd.f32 0.0, %v6412
  %6414 = vmatmul.bf16.gmra.mxu0 %v6288
  %v6415 = vpop.f32.mrf.mxu0
  %v6416 = vadd.f32 0.0, %v6415
  %v6417 = vpop.f32.mrf.mxu0
  %v6418 = vadd.f32 0.0, %v6417
  %6419 = vmatmul.bf16.gmra.mxu0 %v6291
  %v6420 = vpop.f32.mrf.mxu0
  %v6421 = vadd.f32 0.0, %v6420
  %v6422 = vpop.f32.mrf.mxu0
  %v6423 = vadd.f32 0.0, %v6422
  %6424 = vmatmul.bf16.gmra.mxu0 %v6294
  %v6425 = vpop.f32.mrf.mxu0
  %v6426 = vadd.f32 0.0, %v6425
  %v6427 = vpop.f32.mrf.mxu0
  %v6428 = vadd.f32 0.0, %v6427
  %6429 = vmatmul.bf16.gmra.mxu0 %v6297
  %v6430 = vpop.f32.mrf.mxu0
  %v6431 = vadd.f32 0.0, %v6430
  %v6432 = vpop.f32.mrf.mxu0
  %v6433 = vadd.f32 0.0, %v6432
  %6434 = vmatmul.bf16.gmra.mxu0 %v6300
  %v6435 = vpop.f32.mrf.mxu0
  %v6436 = vadd.f32 0.0, %v6435
  %v6437 = vpop.f32.mrf.mxu0
  %v6438 = vadd.f32 0.0, %v6437
  %6439 = vmatmul.bf16.gmra.mxu0 %v6303
  %v6440 = vpop.f32.mrf.mxu0
  %v6441 = vadd.f32 0.0, %v6440
  %v6442 = vpop.f32.mrf.mxu0
  %v6443 = vadd.f32 0.0, %v6442
  %6444 = vmatmul.bf16.gmra.mxu0 %v6306
  %v6445 = vpop.f32.mrf.mxu0
  %v6446 = vadd.f32 0.0, %v6445
  %v6447 = vpop.f32.mrf.mxu0
  %v6448 = vadd.f32 0.0, %v6447
  %6449 = vmatmul.bf16.gmra.mxu0 %v6309
  %v6450 = vpop.f32.mrf.mxu0
  %v6451 = vadd.f32 0.0, %v6450
  %v6452 = vpop.f32.mrf.mxu0
  %v6453 = vadd.f32 0.0, %v6452
  %6454 = vmatmul.bf16.gmra.mxu0 %v6312
  %v6455 = vpop.f32.mrf.mxu0
  %v6456 = vadd.f32 0.0, %v6455
  %v6457 = vpop.f32.mrf.mxu0
  %v6458 = vadd.f32 0.0, %v6457
  %6459 = vmatmul.bf16.gmra.mxu0 %v6315
  %v6460 = vpop.f32.mrf.mxu0
  %v6461 = vadd.f32 0.0, %v6460
  %v6462 = vpop.f32.mrf.mxu0
  %v6463 = vadd.f32 0.0, %v6462
  %6464 = vmatmul.bf16.gmra.mxu0 %v6318
  %v6465 = vpop.f32.mrf.mxu0
  %v6466 = vadd.f32 0.0, %v6465
  %v6467 = vpop.f32.mrf.mxu0
  %v6468 = vadd.f32 0.0, %v6467
  %6469 = vmatmul.bf16.gmra.mxu0 %v6321
  %v6470 = vpop.f32.mrf.mxu0
  %v6471 = vadd.f32 0.0, %v6470
  %v6472 = vpop.f32.mrf.mxu0
  %v6473 = vadd.f32 0.0, %v6472
  %6474 = vmatmul.bf16.gmra.mxu0 %v6324
  %v6475 = vpop.f32.mrf.mxu0
  %v6476 = vadd.f32 0.0, %v6475
  %v6477 = vpop.f32.mrf.mxu0
  %v6478 = vadd.f32 0.0, %v6477
  %6479 = vmatmul.bf16.gmra.mxu0 %v6327
  %v6480 = vpop.f32.mrf.mxu0
  %v6481 = vadd.f32 0.0, %v6480
  %v6482 = vpop.f32.mrf.mxu0
  %v6483 = vadd.f32 0.0, %v6482
  %6484 = vmatmul.bf16.gmra.mxu0 %v6330
  %v6485 = vpop.f32.mrf.mxu0
  %v6486 = vadd.f32 0.0, %v6485
  %v6487 = vpop.f32.mrf.mxu0
  %v6488 = vadd.f32 0.0, %v6487
  %6489 = vmatmul.bf16.gmra.mxu0 %v6333
  %v6490 = vpop.f32.mrf.mxu0
  %v6491 = vadd.f32 0.0, %v6490
  %v6492 = vpop.f32.mrf.mxu0
  %v6493 = vadd.f32 0.0, %v6492
  %6494 = vmatmul.bf16.gmra.mxu0 %v6336
  %v6495 = vpop.f32.mrf.mxu0
  %v6496 = vadd.f32 0.0, %v6495
  %v6497 = vpop.f32.mrf.mxu0
  %v6498 = vadd.f32 0.0, %v6497
  %6499 = vmatmul.bf16.gmra.mxu0 %v6339
  %v6500 = vpop.f32.mrf.mxu0
  %v6501 = vadd.f32 0.0, %v6500
  %v6502 = vpop.f32.mrf.mxu0
  %v6503 = vadd.f32 0.0, %v6502
  %6504 = vmatmul.bf16.gmra.mxu0 %v6342
  %v6505 = vpop.f32.mrf.mxu0
  %v6506 = vadd.f32 0.0, %v6505
  %v6507 = vpop.f32.mrf.mxu0
  %v6508 = vadd.f32 0.0, %v6507
  %6509 = vmatmul.bf16.gmra.mxu0 %v6345
  %v6510 = vpop.f32.mrf.mxu0
  %v6511 = vadd.f32 0.0, %v6510
  %v6512 = vpop.f32.mrf.mxu0
  %v6513 = vadd.f32 0.0, %v6512
  %6514 = vmatmul.bf16.gmra.mxu0 %v6348
  %v6515 = vpop.f32.mrf.mxu0
  %v6516 = vadd.f32 0.0, %v6515
  %v6517 = vpop.f32.mrf.mxu0
  %v6518 = vadd.f32 0.0, %v6517
  %6519 = vmatmul.bf16.gmra.mxu0 %v6351
  %v6520 = vpop.f32.mrf.mxu0
  %v6521 = vadd.f32 0.0, %v6520
  %v6522 = vpop.f32.mrf.mxu0
  %v6523 = vadd.f32 0.0, %v6522
  %6524 = vdwg.mxu0
  %v6525 = vadd.f32 %v5967, %v6366
  %v6526 = vadd.f32 %v5968, %v6368
  %v6527 = vadd.f32 %v5969, %v6371
  %v6528 = vadd.f32 %v5970, %v6373
  %v6529 = vadd.f32 %v5971, %v6376
  %v6530 = vadd.f32 %v5972, %v6378
  %v6531 = vadd.f32 %v5973, %v6381
  %v6532 = vadd.f32 %v5974, %v6383
  %v6533 = vadd.f32 %v5975, %v6386
  %v6534 = vadd.f32 %v5976, %v6388
  %v6535 = vadd.f32 %v5977, %v6391
  %v6536 = vadd.f32 %v5978, %v6393
  %v6537 = vadd.f32 %v5979, %v6396
  %v6538 = vadd.f32 %v5980, %v6398
  %v6539 = vadd.f32 %v5981, %v6401
  %v6540 = vadd.f32 %v5982, %v6403
  %v6541 = vadd.f32 %v5983, %v6406
  %v6542 = vadd.f32 %v5984, %v6408
  %v6543 = vadd.f32 %v5985, %v6411
  %v6544 = vadd.f32 %v5986, %v6413
  %v6545 = vadd.f32 %v5987, %v6416
  %v6546 = vadd.f32 %v5988, %v6418
  %v6547 = vadd.f32 %v5989, %v6421
  %v6548 = vadd.f32 %v5990, %v6423
  %v6549 = vadd.f32 %v5991, %v6426
  %v6550 = vadd.f32 %v5992, %v6428
  %v6551 = vadd.f32 %v5993, %v6431
  %v6552 = vadd.f32 %v5994, %v6433
  %v6553 = vadd.f32 %v5995, %v6436
  %v6554 = vadd.f32 %v5996, %v6438
  %v6555 = vadd.f32 %v5997, %v6441
  %v6556 = vadd.f32 %v5998, %v6443
  %v6557 = vadd.f32 %v5999, %v6446
  %v6558 = vadd.f32 %v6000, %v6448
  %v6559 = vadd.f32 %v6001, %v6451
  %v6560 = vadd.f32 %v6002, %v6453
  %v6561 = vadd.f32 %v6003, %v6456
  %v6562 = vadd.f32 %v6004, %v6458
  %v6563 = vadd.f32 %v6005, %v6461
  %v6564 = vadd.f32 %v6006, %v6463
  %v6565 = vadd.f32 %v6007, %v6466
  %v6566 = vadd.f32 %v6008, %v6468
  %v6567 = vadd.f32 %v6009, %v6471
  %v6568 = vadd.f32 %v6010, %v6473
  %v6569 = vadd.f32 %v6011, %v6476
  %v6570 = vadd.f32 %v6012, %v6478
  %v6571 = vadd.f32 %v6013, %v6481
  %v6572 = vadd.f32 %v6014, %v6483
  %v6573 = vadd.f32 %v6015, %v6486
  %v6574 = vadd.f32 %v6016, %v6488
  %v6575 = vadd.f32 %v6017, %v6491
  %v6576 = vadd.f32 %v6018, %v6493
  %v6577 = vadd.f32 %v6019, %v6496
  %v6578 = vadd.f32 %v6020, %v6498
  %v6579 = vadd.f32 %v6021, %v6501
  %v6580 = vadd.f32 %v6022, %v6503
  %v6581 = vadd.f32 %v6023, %v6506
  %v6582 = vadd.f32 %v6024, %v6508
  %v6583 = vadd.f32 %v6025, %v6511
  %v6584 = vadd.f32 %v6026, %v6513
  %v6585 = vadd.f32 %v6027, %v6516
  %v6586 = vadd.f32 %v6028, %v6518
  %v6587 = vadd.f32 %v6029, %v6521
  %v6588 = vadd.f32 %v6030, %v6523
  %v6589 = vmul.f32 %v6525, %v23
  %v6590 = vmul.f32 %v6526, %v23
  %v6591 = vmul.f32 %v6527, %v23
  %v6592 = vmul.f32 %v6528, %v23
  %v6593 = vmul.f32 %v6529, %v23
  %v6594 = vmul.f32 %v6530, %v23
  %v6595 = vmul.f32 %v6531, %v23
  %v6596 = vmul.f32 %v6532, %v23
  %v6597 = vmul.f32 %v6533, %v23
  %v6598 = vmul.f32 %v6534, %v23
  %v6599 = vmul.f32 %v6535, %v23
  %v6600 = vmul.f32 %v6536, %v23
  %v6601 = vmul.f32 %v6537, %v23
  %v6602 = vmul.f32 %v6538, %v23
  %v6603 = vmul.f32 %v6539, %v23
  %v6604 = vmul.f32 %v6540, %v23
  %v6605 = vmul.f32 %v6541, %v23
  %v6606 = vmul.f32 %v6542, %v23
  %v6607 = vmul.f32 %v6543, %v23
  %v6608 = vmul.f32 %v6544, %v23
  %v6609 = vmul.f32 %v6545, %v23
  %v6610 = vmul.f32 %v6546, %v23
  %v6611 = vmul.f32 %v6547, %v23
  %v6612 = vmul.f32 %v6548, %v23
  %v6613 = vmul.f32 %v6549, %v23
  %v6614 = vmul.f32 %v6550, %v23
  %v6615 = vmul.f32 %v6551, %v23
  %v6616 = vmul.f32 %v6552, %v23
  %v6617 = vmul.f32 %v6553, %v23
  %v6618 = vmul.f32 %v6554, %v23
  %v6619 = vmul.f32 %v6555, %v23
  %v6620 = vmul.f32 %v6556, %v23
  %v6621 = vmul.f32 %v6557, %v23
  %v6622 = vmul.f32 %v6558, %v23
  %v6623 = vmul.f32 %v6559, %v23
  %v6624 = vmul.f32 %v6560, %v23
  %v6625 = vmul.f32 %v6561, %v23
  %v6626 = vmul.f32 %v6562, %v23
  %v6627 = vmul.f32 %v6563, %v23
  %v6628 = vmul.f32 %v6564, %v23
  %v6629 = vmul.f32 %v6565, %v23
  %v6630 = vmul.f32 %v6566, %v23
  %v6631 = vmul.f32 %v6567, %v23
  %v6632 = vmul.f32 %v6568, %v23
  %v6633 = vmul.f32 %v6569, %v23
  %v6634 = vmul.f32 %v6570, %v23
  %v6635 = vmul.f32 %v6571, %v23
  %v6636 = vmul.f32 %v6572, %v23
  %v6637 = vmul.f32 %v6573, %v23
  %v6638 = vmul.f32 %v6574, %v23
  %v6639 = vmul.f32 %v6575, %v23
  %v6640 = vmul.f32 %v6576, %v23
  %v6641 = vmul.f32 %v6577, %v23
  %v6642 = vmul.f32 %v6578, %v23
  %v6643 = vmul.f32 %v6579, %v23
  %v6644 = vmul.f32 %v6580, %v23
  %v6645 = vmul.f32 %v6581, %v23
  %v6646 = vmul.f32 %v6582, %v23
  %v6647 = vmul.f32 %v6583, %v23
  %v6648 = vmul.f32 %v6584, %v23
  %v6649 = vmul.f32 %v6585, %v23
  %v6650 = vmul.f32 %v6586, %v23
  %v6651 = vmul.f32 %v6587, %v23
  %v6652 = vmul.f32 %v6588, %v23
  %v6653 = vadd.f32 %v6589, %v27
  %v6654 = vadd.f32 %v6590, %v27
  %v6655 = vadd.f32 %v6591, %v27
  %v6656 = vadd.f32 %v6592, %v27
  %v6657 = vadd.f32 %v6593, %v27
  %v6658 = vadd.f32 %v6594, %v27
  %v6659 = vadd.f32 %v6595, %v27
  %v6660 = vadd.f32 %v6596, %v27
  %v6661 = vadd.f32 %v6597, %v27
  %v6662 = vadd.f32 %v6598, %v27
  %v6663 = vadd.f32 %v6599, %v27
  %v6664 = vadd.f32 %v6600, %v27
  %v6665 = vadd.f32 %v6601, %v27
  %v6666 = vadd.f32 %v6602, %v27
  %v6667 = vadd.f32 %v6603, %v27
  %v6668 = vadd.f32 %v6604, %v27
  %v6669 = vadd.f32 %v6605, %v27
  %v6670 = vadd.f32 %v6606, %v27
  %v6671 = vadd.f32 %v6607, %v27
  %v6672 = vadd.f32 %v6608, %v27
  %v6673 = vadd.f32 %v6609, %v27
  %v6674 = vadd.f32 %v6610, %v27
  %v6675 = vadd.f32 %v6611, %v27
  %v6676 = vadd.f32 %v6612, %v27
  %v6677 = vadd.f32 %v6613, %v27
  %v6678 = vadd.f32 %v6614, %v27
  %v6679 = vadd.f32 %v6615, %v27
  %v6680 = vadd.f32 %v6616, %v27
  %v6681 = vadd.f32 %v6617, %v27
  %v6682 = vadd.f32 %v6618, %v27
  %v6683 = vadd.f32 %v6619, %v27
  %v6684 = vadd.f32 %v6620, %v27
  %v6685 = vadd.f32 %v6621, %v27
  %v6686 = vadd.f32 %v6622, %v27
  %v6687 = vadd.f32 %v6623, %v27
  %v6688 = vadd.f32 %v6624, %v27
  %v6689 = vadd.f32 %v6625, %v27
  %v6690 = vadd.f32 %v6626, %v27
  %v6691 = vadd.f32 %v6627, %v27
  %v6692 = vadd.f32 %v6628, %v27
  %v6693 = vadd.f32 %v6629, %v27
  %v6694 = vadd.f32 %v6630, %v27
  %v6695 = vadd.f32 %v6631, %v27
  %v6696 = vadd.f32 %v6632, %v27
  %v6697 = vadd.f32 %v6633, %v27
  %v6698 = vadd.f32 %v6634, %v27
  %v6699 = vadd.f32 %v6635, %v27
  %v6700 = vadd.f32 %v6636, %v27
  %v6701 = vadd.f32 %v6637, %v27
  %v6702 = vadd.f32 %v6638, %v27
  %v6703 = vadd.f32 %v6639, %v27
  %v6704 = vadd.f32 %v6640, %v27
  %v6705 = vadd.f32 %v6641, %v27
  %v6706 = vadd.f32 %v6642, %v27
  %v6707 = vadd.f32 %v6643, %v27
  %v6708 = vadd.f32 %v6644, %v27
  %v6709 = vadd.f32 %v6645, %v27
  %v6710 = vadd.f32 %v6646, %v27
  %v6711 = vadd.f32 %v6647, %v27
  %v6712 = vadd.f32 %v6648, %v27
  %v6713 = vadd.f32 %v6649, %v27
  %v6714 = vadd.f32 %v6650, %v27
  %v6715 = vadd.f32 %v6651, %v27
  %v6716 = vadd.f32 %v6652, %v27
  %v6717 = vmax.f32 %v6653, 0.0
  %v6718 = vmax.f32 %v6654, 0.0
  %v6719 = vmax.f32 %v6655, 0.0
  %v6720 = vmax.f32 %v6656, 0.0
  %v6721 = vmax.f32 %v6657, 0.0
  %v6722 = vmax.f32 %v6658, 0.0
  %v6723 = vmax.f32 %v6659, 0.0
  %v6724 = vmax.f32 %v6660, 0.0
  %v6725 = vmax.f32 %v6661, 0.0
  %v6726 = vmax.f32 %v6662, 0.0
  %v6727 = vmax.f32 %v6663, 0.0
  %v6728 = vmax.f32 %v6664, 0.0
  %v6729 = vmax.f32 %v6665, 0.0
  %v6730 = vmax.f32 %v6666, 0.0
  %v6731 = vmax.f32 %v6667, 0.0
  %v6732 = vmax.f32 %v6668, 0.0
  %v6733 = vmax.f32 %v6669, 0.0
  %v6734 = vmax.f32 %v6670, 0.0
  %v6735 = vmax.f32 %v6671, 0.0
  %v6736 = vmax.f32 %v6672, 0.0
  %v6737 = vmax.f32 %v6673, 0.0
  %v6738 = vmax.f32 %v6674, 0.0
  %v6739 = vmax.f32 %v6675, 0.0
  %v6740 = vmax.f32 %v6676, 0.0
  %v6741 = vmax.f32 %v6677, 0.0
  %v6742 = vmax.f32 %v6678, 0.0
  %v6743 = vmax.f32 %v6679, 0.0
  %v6744 = vmax.f32 %v6680, 0.0
  %v6745 = vmax.f32 %v6681, 0.0
  %v6746 = vmax.f32 %v6682, 0.0
  %v6747 = vmax.f32 %v6683, 0.0
  %v6748 = vmax.f32 %v6684, 0.0
  %v6749 = vmax.f32 %v6685, 0.0
  %v6750 = vmax.f32 %v6686, 0.0
  %v6751 = vmax.f32 %v6687, 0.0
  %v6752 = vmax.f32 %v6688, 0.0
  %v6753 = vmax.f32 %v6689, 0.0
  %v6754 = vmax.f32 %v6690, 0.0
  %v6755 = vmax.f32 %v6691, 0.0
  %v6756 = vmax.f32 %v6692, 0.0
  %v6757 = vmax.f32 %v6693, 0.0
  %v6758 = vmax.f32 %v6694, 0.0
  %v6759 = vmax.f32 %v6695, 0.0
  %v6760 = vmax.f32 %v6696, 0.0
  %v6761 = vmax.f32 %v6697, 0.0
  %v6762 = vmax.f32 %v6698, 0.0
  %v6763 = vmax.f32 %v6699, 0.0
  %v6764 = vmax.f32 %v6700, 0.0
  %v6765 = vmax.f32 %v6701, 0.0
  %v6766 = vmax.f32 %v6702, 0.0
  %v6767 = vmax.f32 %v6703, 0.0
  %v6768 = vmax.f32 %v6704, 0.0
  %v6769 = vmax.f32 %v6705, 0.0
  %v6770 = vmax.f32 %v6706, 0.0
  %v6771 = vmax.f32 %v6707, 0.0
  %v6772 = vmax.f32 %v6708, 0.0
  %v6773 = vmax.f32 %v6709, 0.0
  %v6774 = vmax.f32 %v6710, 0.0
  %v6775 = vmax.f32 %v6711, 0.0
  %v6776 = vmax.f32 %v6712, 0.0
  %v6777 = vmax.f32 %v6713, 0.0
  %v6778 = vmax.f32 %v6714, 0.0
  %v6779 = vmax.f32 %v6715, 0.0
  %v6780 = vmax.f32 %v6716, 0.0
  %6781 = vst.msk [vmem:[#allocation2 + $0x18] sm:$0xff] %vm2145, %v6717
  %6782 = vst.msk [vmem:[#allocation2 + $0x20] sm:$0xff] %vm2145, %v6718
  %6783 = vst.msk [vmem:[#allocation2 + $0x28] sm:$0xff] %vm2145, %v6719
  %6784 = vst.msk [vmem:[#allocation2 + $0x30] sm:$0xff] %vm2145, %v6720
  %6785 = vst.msk [vmem:[#allocation2 + $0x38] sm:$0xff] %vm2145, %v6721
  %6786 = vst.msk [vmem:[#allocation2 + $0x40] sm:$0xff] %vm2145, %v6722
  %6787 = vst.msk [vmem:[#allocation2 + $0x48] sm:$0xff] %vm2145, %v6723
  %6788 = vst.msk [vmem:[#allocation2 + $0x50] sm:$0xff] %vm2145, %v6724
  %6789 = vst.msk [vmem:[#allocation2 + $0x58] sm:$0xff] %vm2145, %v6725
  %6790 = vst.msk [vmem:[#allocation2 + $0x60] sm:$0xff] %vm2145, %v6726
  %6791 = vst.msk [vmem:[#allocation2 + $0x68] sm:$0xff] %vm2145, %v6727
  %6792 = vst.msk [vmem:[#allocation2 + $0x70] sm:$0xff] %vm2145, %v6728
  %6793 = vst.msk [vmem:[#allocation2 + $0x78] sm:$0xff] %vm2145, %v6729
  %6794 = vst.msk [vmem:[#allocation2 + $0x80] sm:$0xff] %vm2145, %v6730
  %6795 = vst.msk [vmem:[#allocation2 + $0x88] sm:$0xff] %vm2145, %v6731
  %6796 = vst.msk [vmem:[#allocation2 + $0x90] sm:$0xff] %vm2145, %v6732
  %6797 = vst.msk [vmem:[#allocation2 + $0x98] sm:$0xff] %vm2145, %v6733
  %6798 = vst.msk [vmem:[#allocation2 + $0xa0] sm:$0xff] %vm2145, %v6734
  %6799 = vst.msk [vmem:[#allocation2 + $0xa8] sm:$0xff] %vm2145, %v6735
  %6800 = vst.msk [vmem:[#allocation2 + $0xb0] sm:$0xff] %vm2145, %v6736
  %6801 = vst.msk [vmem:[#allocation2 + $0xb8] sm:$0xff] %vm2145, %v6737
  %6802 = vst.msk [vmem:[#allocation2 + $0xc0] sm:$0xff] %vm2145, %v6738
  %6803 = vst.msk [vmem:[#allocation2 + $0xc8] sm:$0xff] %vm2145, %v6739
  %6804 = vst.msk [vmem:[#allocation2 + $0xd0] sm:$0xff] %vm2145, %v6740
  %6805 = vst.msk [vmem:[#allocation2 + $0xd8] sm:$0xff] %vm2145, %v6741
  %6806 = vst.msk [vmem:[#allocation2 + $0xe0] sm:$0xff] %vm2145, %v6742
  %6807 = vst.msk [vmem:[#allocation2 + $0xe8] sm:$0xff] %vm2145, %v6743
  %6808 = vst.msk [vmem:[#allocation2 + $0xf0] sm:$0xff] %vm2145, %v6744
  %6809 = vst.msk [vmem:[#allocation2 + $0xf8] sm:$0xff] %vm2145, %v6745
  %6810 = vst.msk [vmem:[#allocation2 + $0x100] sm:$0xff] %vm2145, %v6746
  %6811 = vst.msk [vmem:[#allocation2 + $0x108] sm:$0xff] %vm2145, %v6747
  %6812 = vst.msk [vmem:[#allocation2 + $0x110] sm:$0xff] %vm2145, %v6748
  %6813 = vst.msk [vmem:[#allocation2 + $0x118] sm:$0xff] %vm2145, %v6749
  %6814 = vst.msk [vmem:[#allocation2 + $0x120] sm:$0xff] %vm2145, %v6750
  %6815 = vst.msk [vmem:[#allocation2 + $0x128] sm:$0xff] %vm2145, %v6751
  %6816 = vst.msk [vmem:[#allocation2 + $0x130] sm:$0xff] %vm2145, %v6752
  %6817 = vst.msk [vmem:[#allocation2 + $0x138] sm:$0xff] %vm2145, %v6753
  %6818 = vst.msk [vmem:[#allocation2 + $0x140] sm:$0xff] %vm2145, %v6754
  %6819 = vst.msk [vmem:[#allocation2 + $0x148] sm:$0xff] %vm2145, %v6755
  %6820 = vst.msk [vmem:[#allocation2 + $0x150] sm:$0xff] %vm2145, %v6756
  %6821 = vst.msk [vmem:[#allocation2 + $0x158] sm:$0xff] %vm2145, %v6757
  %6822 = vst.msk [vmem:[#allocation2 + $0x160] sm:$0xff] %vm2145, %v6758
  %6823 = vst.msk [vmem:[#allocation2 + $0x168] sm:$0xff] %vm2145, %v6759
  %6824 = vst.msk [vmem:[#allocation2 + $0x170] sm:$0xff] %vm2145, %v6760
  %6825 = vst.msk [vmem:[#allocation2 + $0x178] sm:$0xff] %vm2145, %v6761
  %6826 = vst.msk [vmem:[#allocation2 + $0x180] sm:$0xff] %vm2145, %v6762
  %6827 = vst.msk [vmem:[#allocation2 + $0x188] sm:$0xff] %vm2145, %v6763
  %6828 = vst.msk [vmem:[#allocation2 + $0x190] sm:$0xff] %vm2145, %v6764
  %6829 = vst.msk [vmem:[#allocation2 + $0x198] sm:$0xff] %vm2145, %v6765
  %6830 = vst.msk [vmem:[#allocation2 + $0x1a0] sm:$0xff] %vm2145, %v6766
  %6831 = vst.msk [vmem:[#allocation2 + $0x1a8] sm:$0xff] %vm2145, %v6767
  %6832 = vst.msk [vmem:[#allocation2 + $0x1b0] sm:$0xff] %vm2145, %v6768
  %6833 = vst.msk [vmem:[#allocation2 + $0x1b8] sm:$0xff] %vm2145, %v6769
  %6834 = vst.msk [vmem:[#allocation2 + $0x1c0] sm:$0xff] %vm2145, %v6770
  %6835 = vst.msk [vmem:[#allocation2 + $0x1c8] sm:$0xff] %vm2145, %v6771
  %6836 = vst.msk [vmem:[#allocation2 + $0x1d0] sm:$0xff] %vm2145, %v6772
  %6837 = vst.msk [vmem:[#allocation2 + $0x1d8] sm:$0xff] %vm2145, %v6773
  %6838 = vst.msk [vmem:[#allocation2 + $0x1e0] sm:$0xff] %vm2145, %v6774
  %6839 = vst.msk [vmem:[#allocation2 + $0x1e8] sm:$0xff] %vm2145, %v6775
  %6840 = vst.msk [vmem:[#allocation2 + $0x1f0] sm:$0xff] %vm2145, %v6776
  %6841 = vst.msk [vmem:[#allocation2 + $0x1f8] sm:$0xff] %vm2145, %v6777
  %6842 = vst.msk [vmem:[#allocation2 + $0x200] sm:$0xff] %vm2145, %v6778
  %6843 = vst.msk [vmem:[#allocation2 + $0x208] sm:$0xff] %vm2145, %v6779
  %6844 = vst.msk [vmem:[#allocation2 + $0x210] sm:$0xff] %vm2145, %v6780
  %v6845 = vld [vmem:[#allocation2 + $0x7] sm:$0xff]
  %v6846 = vld [vmem:[#allocation2 + $0xf] sm:$0xff]
  %v6847 = vld [vmem:[#allocation2 + $0x17] sm:$0xff]
  %v6848 = vld [vmem:[#allocation2 + $0x1f] sm:$0xff]
  %v6849 = vld [vmem:[#allocation2 + $0x27] sm:$0xff]
  %v6850 = vld [vmem:[#allocation2 + $0x2f] sm:$0xff]
  %v6851 = vld [vmem:[#allocation2 + $0x37] sm:$0xff]
  %v6852 = vld [vmem:[#allocation2 + $0x3f] sm:$0xff]
  %v6853 = vld [vmem:[#allocation2 + $0x47] sm:$0xff]
  %v6854 = vld [vmem:[#allocation2 + $0x4f] sm:$0xff]
  %v6855 = vld [vmem:[#allocation2 + $0x57] sm:$0xff]
  %v6856 = vld [vmem:[#allocation2 + $0x5f] sm:$0xff]
  %v6857 = vld [vmem:[#allocation2 + $0x67] sm:$0xff]
  %v6858 = vld [vmem:[#allocation2 + $0x6f] sm:$0xff]
  %v6859 = vld [vmem:[#allocation2 + $0x77] sm:$0xff]
  %v6860 = vld [vmem:[#allocation2 + $0x7f] sm:$0xff]
  %v6861 = vld [vmem:[#allocation2 + $0x87] sm:$0xff]
  %v6862 = vld [vmem:[#allocation2 + $0x8f] sm:$0xff]
  %v6863 = vld [vmem:[#allocation2 + $0x97] sm:$0xff]
  %v6864 = vld [vmem:[#allocation2 + $0x9f] sm:$0xff]
  %v6865 = vld [vmem:[#allocation2 + $0xa7] sm:$0xff]
  %v6866 = vld [vmem:[#allocation2 + $0xaf] sm:$0xff]
  %v6867 = vld [vmem:[#allocation2 + $0xb7] sm:$0xff]
  %v6868 = vld [vmem:[#allocation2 + $0xbf] sm:$0xff]
  %v6869 = vld [vmem:[#allocation2 + $0xc7] sm:$0xff]
  %v6870 = vld [vmem:[#allocation2 + $0xcf] sm:$0xff]
  %v6871 = vld [vmem:[#allocation2 + $0xd7] sm:$0xff]
  %v6872 = vld [vmem:[#allocation2 + $0xdf] sm:$0xff]
  %v6873 = vld [vmem:[#allocation2 + $0xe7] sm:$0xff]
  %v6874 = vld [vmem:[#allocation2 + $0xef] sm:$0xff]
  %v6875 = vld [vmem:[#allocation2 + $0xf7] sm:$0xff]
  %v6876 = vld [vmem:[#allocation2 + $0xff] sm:$0xff]
  %v6877 = vld [vmem:[#allocation2 + $0x107] sm:$0xff]
  %v6878 = vld [vmem:[#allocation2 + $0x10f] sm:$0xff]
  %v6879 = vld [vmem:[#allocation2 + $0x117] sm:$0xff]
  %v6880 = vld [vmem:[#allocation2 + $0x11f] sm:$0xff]
  %v6881 = vld [vmem:[#allocation2 + $0x127] sm:$0xff]
  %v6882 = vld [vmem:[#allocation2 + $0x12f] sm:$0xff]
  %v6883 = vld [vmem:[#allocation2 + $0x137] sm:$0xff]
  %v6884 = vld [vmem:[#allocation2 + $0x13f] sm:$0xff]
  %v6885 = vld [vmem:[#allocation2 + $0x147] sm:$0xff]
  %v6886 = vld [vmem:[#allocation2 + $0x14f] sm:$0xff]
  %v6887 = vld [vmem:[#allocation2 + $0x157] sm:$0xff]
  %v6888 = vld [vmem:[#allocation2 + $0x15f] sm:$0xff]
  %v6889 = vld [vmem:[#allocation2 + $0x167] sm:$0xff]
  %v6890 = vld [vmem:[#allocation2 + $0x16f] sm:$0xff]
  %v6891 = vld [vmem:[#allocation2 + $0x177] sm:$0xff]
  %v6892 = vld [vmem:[#allocation2 + $0x17f] sm:$0xff]
  %v6893 = vld [vmem:[#allocation2 + $0x187] sm:$0xff]
  %v6894 = vld [vmem:[#allocation2 + $0x18f] sm:$0xff]
  %v6895 = vld [vmem:[#allocation2 + $0x197] sm:$0xff]
  %v6896 = vld [vmem:[#allocation2 + $0x19f] sm:$0xff]
  %v6897 = vld [vmem:[#allocation2 + $0x1a7] sm:$0xff]
  %v6898 = vld [vmem:[#allocation2 + $0x1af] sm:$0xff]
  %v6899 = vld [vmem:[#allocation2 + $0x1b7] sm:$0xff]
  %v6900 = vld [vmem:[#allocation2 + $0x1bf] sm:$0xff]
  %v6901 = vld [vmem:[#allocation2 + $0x1c7] sm:$0xff]
  %v6902 = vld [vmem:[#allocation2 + $0x1cf] sm:$0xff]
  %v6903 = vld [vmem:[#allocation2 + $0x1d7] sm:$0xff]
  %v6904 = vld [vmem:[#allocation2 + $0x1df] sm:$0xff]
  %v6905 = vld [vmem:[#allocation2 + $0x1e7] sm:$0xff]
  %v6906 = vld [vmem:[#allocation2 + $0x1ef] sm:$0xff]
  %v6907 = vld [vmem:[#allocation2 + $0x1f7] sm:$0xff]
  %v6908 = vld [vmem:[#allocation2 + $0x1ff] sm:$0xff]
  %v6909 = vsel %vm1758, %v6845, 0.0
  %v6910 = vsel %vm1759, %v6846, 0.0
  %v6911 = vsel %vm1760, %v6847, 0.0
  %v6912 = vsel %vm1761, %v6848, 0.0
  %v6913 = vsel %vm1762, %v6849, 0.0
  %v6914 = vsel %vm1763, %v6850, 0.0
  %v6915 = vsel %vm1764, %v6851, 0.0
  %v6916 = vsel %vm1765, %v6852, 0.0
  %v6917 = vsel %vm1766, %v6853, 0.0
  %v6918 = vsel %vm1767, %v6854, 0.0
  %v6919 = vsel %vm1768, %v6855, 0.0
  %v6920 = vsel %vm1769, %v6856, 0.0
  %v6921 = vsel %vm1770, %v6857, 0.0
  %v6922 = vsel %vm1771, %v6858, 0.0
  %v6923 = vsel %vm1772, %v6859, 0.0
  %v6924 = vsel %vm1773, %v6860, 0.0
  %v6925 = vsel %vm1774, %v6861, 0.0
  %v6926 = vsel %vm1775, %v6862, 0.0
  %v6927 = vsel %vm1776, %v6863, 0.0
  %v6928 = vsel %vm1777, %v6864, 0.0
  %v6929 = vsel %vm1778, %v6865, 0.0
  %v6930 = vsel %vm1779, %v6866, 0.0
  %v6931 = vsel %vm1780, %v6867, 0.0
  %v6932 = vsel %vm1781, %v6868, 0.0
  %v6933 = vsel %vm1782, %v6869, 0.0
  %v6934 = vsel %vm1783, %v6870, 0.0
  %v6935 = vsel %vm1784, %v6871, 0.0
  %v6936 = vsel %vm1785, %v6872, 0.0
  %v6937 = vsel %vm1786, %v6873, 0.0
  %v6938 = vsel %vm1787, %v6874, 0.0
  %v6939 = vsel %vm1788, %v6875, 0.0
  %v6940 = vsel %vm1789, %v6876, 0.0
  %v6941 = vsel %vm1790, %v6877, 0.0
  %v6942 = vsel %vm1791, %v6878, 0.0
  %v6943 = vsel %vm1792, %v6879, 0.0
  %v6944 = vsel %vm1793, %v6880, 0.0
  %v6945 = vsel %vm1794, %v6881, 0.0
  %v6946 = vsel %vm1795, %v6882, 0.0
  %v6947 = vsel %vm1796, %v6883, 0.0
  %v6948 = vsel %vm1797, %v6884, 0.0
  %v6949 = vsel %vm1798, %v6885, 0.0
  %v6950 = vsel %vm1799, %v6886, 0.0
  %v6951 = vsel %vm1800, %v6887, 0.0
  %v6952 = vsel %vm1801, %v6888, 0.0
  %v6953 = vsel %vm1802, %v6889, 0.0
  %v6954 = vsel %vm1803, %v6890, 0.0
  %v6955 = vsel %vm1804, %v6891, 0.0
  %v6956 = vsel %vm1805, %v6892, 0.0
  %v6957 = vsel %vm1806, %v6893, 0.0
  %v6958 = vsel %vm1807, %v6894, 0.0
  %v6959 = vsel %vm1808, %v6895, 0.0
  %v6960 = vsel %vm1809, %v6896, 0.0
  %v6961 = vsel %vm1810, %v6897, 0.0
  %v6962 = vsel %vm1811, %v6898, 0.0
  %v6963 = vsel %vm1812, %v6899, 0.0
  %v6964 = vsel %vm1813, %v6900, 0.0
  %v6965 = vsel %vm1814, %v6901, 0.0
  %v6966 = vsel %vm1815, %v6902, 0.0
  %v6967 = vsel %vm1816, %v6903, 0.0
  %v6968 = vsel %vm1817, %v6904, 0.0
  %v6969 = vsel %vm1818, %v6905, 0.0
  %v6970 = vsel %vm1819, %v6906, 0.0
  %v6971 = vsel %vm1820, %v6907, 0.0
  %v6972 = vsel %vm1821, %v6908, 0.0
  %v6973 = vpack.c.bf16 %v6910, %v6909
  %v6974 = vpack.c.bf16 %v6912, %v6911
  %v6975 = vpack.c.bf16 %v6914, %v6913
  %v6976 = vpack.c.bf16 %v6916, %v6915
  %v6977 = vpack.c.bf16 %v6918, %v6917
  %v6978 = vpack.c.bf16 %v6920, %v6919
  %v6979 = vpack.c.bf16 %v6922, %v6921
  %v6980 = vpack.c.bf16 %v6924, %v6923
  %v6981 = vpack.c.bf16 %v6926, %v6925
  %v6982 = vpack.c.bf16 %v6928, %v6927
  %v6983 = vpack.c.bf16 %v6930, %v6929
  %v6984 = vpack.c.bf16 %v6932, %v6931
  %v6985 = vpack.c.bf16 %v6934, %v6933
  %v6986 = vpack.c.bf16 %v6936, %v6935
  %v6987 = vpack.c.bf16 %v6938, %v6937
  %v6988 = vpack.c.bf16 %v6940, %v6939
  %v6989 = vpack.c.bf16 %v6942, %v6941
  %v6990 = vpack.c.bf16 %v6944, %v6943
  %v6991 = vpack.c.bf16 %v6946, %v6945
  %v6992 = vpack.c.bf16 %v6948, %v6947
  %v6993 = vpack.c.bf16 %v6950, %v6949
  %v6994 = vpack.c.bf16 %v6952, %v6951
  %v6995 = vpack.c.bf16 %v6954, %v6953
  %v6996 = vpack.c.bf16 %v6956, %v6955
  %v6997 = vpack.c.bf16 %v6958, %v6957
  %v6998 = vpack.c.bf16 %v6960, %v6959
  %v6999 = vpack.c.bf16 %v6962, %v6961
  %v7000 = vpack.c.bf16 %v6964, %v6963
  %v7001 = vpack.c.bf16 %v6966, %v6965
  %v7002 = vpack.c.bf16 %v6968, %v6967
  %v7003 = vpack.c.bf16 %v6970, %v6969
  %v7004 = vpack.c.bf16 %v6972, %v6971
  %v7005 = vld [vmem:[%s2] sm:$0x3]
  %v7006 = vld [vmem:[#allocation2 + $0x8] sm:$0xff]
  %v7007 = vld [vmem:[#allocation2 + $0x10] sm:$0xff]
  %v7008 = vld [vmem:[#allocation2 + $0x18] sm:$0xff]
  %v7009 = vld [vmem:[#allocation2 + $0x20] sm:$0xff]
  %v7010 = vld [vmem:[#allocation2 + $0x28] sm:$0xff]
  %v7011 = vld [vmem:[#allocation2 + $0x30] sm:$0xff]
  %v7012 = vld [vmem:[#allocation2 + $0x38] sm:$0xff]
  %v7013 = vld [vmem:[#allocation2 + $0x40] sm:$0xff]
  %v7014 = vld [vmem:[#allocation2 + $0x48] sm:$0xff]
  %v7015 = vld [vmem:[#allocation2 + $0x50] sm:$0xff]
  %v7016 = vld [vmem:[#allocation2 + $0x58] sm:$0xff]
  %v7017 = vld [vmem:[#allocation2 + $0x60] sm:$0xff]
  %v7018 = vld [vmem:[#allocation2 + $0x68] sm:$0xff]
  %v7019 = vld [vmem:[#allocation2 + $0x70] sm:$0xff]
  %v7020 = vld [vmem:[#allocation2 + $0x78] sm:$0xff]
  %v7021 = vld [vmem:[#allocation2 + $0x80] sm:$0xff]
  %v7022 = vld [vmem:[#allocation2 + $0x88] sm:$0xff]
  %v7023 = vld [vmem:[#allocation2 + $0x90] sm:$0xff]
  %v7024 = vld [vmem:[#allocation2 + $0x98] sm:$0xff]
  %v7025 = vld [vmem:[#allocation2 + $0xa0] sm:$0xff]
  %v7026 = vld [vmem:[#allocation2 + $0xa8] sm:$0xff]
  %v7027 = vld [vmem:[#allocation2 + $0xb0] sm:$0xff]
  %v7028 = vld [vmem:[#allocation2 + $0xb8] sm:$0xff]
  %v7029 = vld [vmem:[#allocation2 + $0xc0] sm:$0xff]
  %v7030 = vld [vmem:[#allocation2 + $0xc8] sm:$0xff]
  %v7031 = vld [vmem:[#allocation2 + $0xd0] sm:$0xff]
  %v7032 = vld [vmem:[#allocation2 + $0xd8] sm:$0xff]
  %v7033 = vld [vmem:[#allocation2 + $0xe0] sm:$0xff]
  %v7034 = vld [vmem:[#allocation2 + $0xe8] sm:$0xff]
  %v7035 = vld [vmem:[#allocation2 + $0xf0] sm:$0xff]
  %v7036 = vld [vmem:[#allocation2 + $0xf8] sm:$0xff]
  %v7037 = vld [vmem:[#allocation2 + $0x100] sm:$0xff]
  %v7038 = vld [vmem:[#allocation2 + $0x108] sm:$0xff]
  %v7039 = vld [vmem:[#allocation2 + $0x110] sm:$0xff]
  %v7040 = vld [vmem:[#allocation2 + $0x118] sm:$0xff]
  %v7041 = vld [vmem:[#allocation2 + $0x120] sm:$0xff]
  %v7042 = vld [vmem:[#allocation2 + $0x128] sm:$0xff]
  %v7043 = vld [vmem:[#allocation2 + $0x130] sm:$0xff]
  %v7044 = vld [vmem:[#allocation2 + $0x138] sm:$0xff]
  %v7045 = vld [vmem:[#allocation2 + $0x140] sm:$0xff]
  %v7046 = vld [vmem:[#allocation2 + $0x148] sm:$0xff]
  %v7047 = vld [vmem:[#allocation2 + $0x150] sm:$0xff]
  %v7048 = vld [vmem:[#allocation2 + $0x158] sm:$0xff]
  %v7049 = vld [vmem:[#allocation2 + $0x160] sm:$0xff]
  %v7050 = vld [vmem:[#allocation2 + $0x168] sm:$0xff]
  %v7051 = vld [vmem:[#allocation2 + $0x170] sm:$0xff]
  %v7052 = vld [vmem:[#allocation2 + $0x178] sm:$0xff]
  %v7053 = vld [vmem:[#allocation2 + $0x180] sm:$0xff]
  %v7054 = vld [vmem:[#allocation2 + $0x188] sm:$0xff]
  %v7055 = vld [vmem:[#allocation2 + $0x190] sm:$0xff]
  %v7056 = vld [vmem:[#allocation2 + $0x198] sm:$0xff]
  %v7057 = vld [vmem:[#allocation2 + $0x1a0] sm:$0xff]
  %v7058 = vld [vmem:[#allocation2 + $0x1a8] sm:$0xff]
  %v7059 = vld [vmem:[#allocation2 + $0x1b0] sm:$0xff]
  %v7060 = vld [vmem:[#allocation2 + $0x1b8] sm:$0xff]
  %v7061 = vld [vmem:[#allocation2 + $0x1c0] sm:$0xff]
  %v7062 = vld [vmem:[#allocation2 + $0x1c8] sm:$0xff]
  %v7063 = vld [vmem:[#allocation2 + $0x1d0] sm:$0xff]
  %v7064 = vld [vmem:[#allocation2 + $0x1d8] sm:$0xff]
  %v7065 = vld [vmem:[#allocation2 + $0x1e0] sm:$0xff]
  %v7066 = vld [vmem:[#allocation2 + $0x1e8] sm:$0xff]
  %v7067 = vld [vmem:[#allocation2 + $0x1f0] sm:$0xff]
  %v7068 = vld [vmem:[#allocation2 + $0x1f8] sm:$0xff]
  %v7069 = vld [vmem:[#allocation2 + $0x200] sm:$0xff]
  %v7070 = vsel %vm1983, %v7006, 0.0
  %v7071 = vsel %vm1984, %v7007, 0.0
  %v7072 = vsel %vm1985, %v7008, 0.0
  %v7073 = vsel %vm1986, %v7009, 0.0
  %v7074 = vsel %vm1987, %v7010, 0.0
  %v7075 = vsel %vm1988, %v7011, 0.0
  %v7076 = vsel %vm1989, %v7012, 0.0
  %v7077 = vsel %vm1990, %v7013, 0.0
  %v7078 = vsel %vm1991, %v7014, 0.0
  %v7079 = vsel %vm1992, %v7015, 0.0
  %v7080 = vsel %vm1993, %v7016, 0.0
  %v7081 = vsel %vm1994, %v7017, 0.0
  %v7082 = vsel %vm1995, %v7018, 0.0
  %v7083 = vsel %vm1996, %v7019, 0.0
  %v7084 = vsel %vm1997, %v7020, 0.0
  %v7085 = vsel %vm1998, %v7021, 0.0
  %v7086 = vsel %vm1999, %v7022, 0.0
  %v7087 = vsel %vm2000, %v7023, 0.0
  %v7088 = vsel %vm2001, %v7024, 0.0
  %v7089 = vsel %vm2002, %v7025, 0.0
  %v7090 = vsel %vm2003, %v7026, 0.0
  %v7091 = vsel %vm2004, %v7027, 0.0
  %v7092 = vsel %vm2005, %v7028, 0.0
  %v7093 = vsel %vm2006, %v7029, 0.0
  %v7094 = vsel %vm2007, %v7030, 0.0
  %v7095 = vsel %vm2008, %v7031, 0.0
  %v7096 = vsel %vm2009, %v7032, 0.0
  %v7097 = vsel %vm2010, %v7033, 0.0
  %v7098 = vsel %vm2011, %v7034, 0.0
  %v7099 = vsel %vm2012, %v7035, 0.0
  %v7100 = vsel %vm2013, %v7036, 0.0
  %v7101 = vsel %vm2014, %v7037, 0.0
  %v7102 = vsel %vm2015, %v7038, 0.0
  %v7103 = vsel %vm2016, %v7039, 0.0
  %v7104 = vsel %vm2017, %v7040, 0.0
  %v7105 = vsel %vm2018, %v7041, 0.0
  %v7106 = vsel %vm2019, %v7042, 0.0
  %v7107 = vsel %vm2020, %v7043, 0.0
  %v7108 = vsel %vm2021, %v7044, 0.0
  %v7109 = vsel %vm2022, %v7045, 0.0
  %v7110 = vsel %vm2023, %v7046, 0.0
  %v7111 = vsel %vm2024, %v7047, 0.0
  %v7112 = vsel %vm2025, %v7048, 0.0
  %v7113 = vsel %vm2026, %v7049, 0.0
  %v7114 = vsel %vm2027, %v7050, 0.0
  %v7115 = vsel %vm2028, %v7051, 0.0
  %v7116 = vsel %vm2029, %v7052, 0.0
  %v7117 = vsel %vm2030, %v7053, 0.0
  %v7118 = vsel %vm2031, %v7054, 0.0
  %v7119 = vsel %vm2032, %v7055, 0.0
  %v7120 = vsel %vm2033, %v7056, 0.0
  %v7121 = vsel %vm2034, %v7057, 0.0
  %v7122 = vsel %vm2035, %v7058, 0.0
  %v7123 = vsel %vm2036, %v7059, 0.0
  %v7124 = vsel %vm2037, %v7060, 0.0
  %v7125 = vsel %vm2038, %v7061, 0.0
  %v7126 = vsel %vm2039, %v7062, 0.0
  %v7127 = vsel %vm2040, %v7063, 0.0
  %v7128 = vsel %vm2041, %v7064, 0.0
  %v7129 = vsel %vm2042, %v7065, 0.0
  %v7130 = vsel %vm2043, %v7066, 0.0
  %v7131 = vsel %vm2044, %v7067, 0.0
  %v7132 = vsel %vm2045, %v7068, 0.0
  %v7133 = vsel %vm2046, %v7069, 0.0
  %v7134 = vpack.c.bf16 %v7071, %v7070
  %v7135 = vpack.c.bf16 %v7073, %v7072
  %v7136 = vpack.c.bf16 %v7075, %v7074
  %v7137 = vpack.c.bf16 %v7077, %v7076
  %v7138 = vpack.c.bf16 %v7079, %v7078
  %v7139 = vpack.c.bf16 %v7081, %v7080
  %v7140 = vpack.c.bf16 %v7083, %v7082
  %v7141 = vpack.c.bf16 %v7085, %v7084
  %v7142 = vpack.c.bf16 %v7087, %v7086
  %v7143 = vpack.c.bf16 %v7089, %v7088
  %v7144 = vpack.c.bf16 %v7091, %v7090
  %v7145 = vpack.c.bf16 %v7093, %v7092
  %v7146 = vpack.c.bf16 %v7095, %v7094
  %v7147 = vpack.c.bf16 %v7097, %v7096
  %v7148 = vpack.c.bf16 %v7099, %v7098
  %v7149 = vpack.c.bf16 %v7101, %v7100
  %v7150 = vpack.c.bf16 %v7103, %v7102
  %v7151 = vpack.c.bf16 %v7105, %v7104
  %v7152 = vpack.c.bf16 %v7107, %v7106
  %v7153 = vpack.c.bf16 %v7109, %v7108
  %v7154 = vpack.c.bf16 %v7111, %v7110
  %v7155 = vpack.c.bf16 %v7113, %v7112
  %v7156 = vpack.c.bf16 %v7115, %v7114
  %v7157 = vpack.c.bf16 %v7117, %v7116
  %v7158 = vpack.c.bf16 %v7119, %v7118
  %v7159 = vpack.c.bf16 %v7121, %v7120
  %v7160 = vpack.c.bf16 %v7123, %v7122
  %v7161 = vpack.c.bf16 %v7125, %v7124
  %v7162 = vpack.c.bf16 %v7127, %v7126
  %v7163 = vpack.c.bf16 %v7129, %v7128
  %v7164 = vpack.c.bf16 %v7131, %v7130
  %v7165 = vpack.c.bf16 %v7133, %v7132
  %s7166 = scalar_lea.vmem %s2, 2
  %v7167 = vld [vmem:[%s7166] sm:$0x3]
  %v7169 = vsel %vm2145, %v7134, 0
  %v7172 = vsel %vm2145, %v7135, 0
  %v7175 = vsel %vm2145, %v7136, 0
  %v7178 = vsel %vm2145, %v7137, 0
  %v7181 = vsel %vm2145, %v7138, 0
  %v7184 = vsel %vm2145, %v7139, 0
  %v7187 = vsel %vm2145, %v7140, 0
  %v7190 = vsel %vm2145, %v7141, 0
  %v7193 = vsel %vm2145, %v7142, 0
  %v7196 = vsel %vm2145, %v7143, 0
  %v7199 = vsel %vm2145, %v7144, 0
  %v7202 = vsel %vm2145, %v7145, 0
  %v7205 = vsel %vm2145, %v7146, 0
  %v7208 = vsel %vm2145, %v7147, 0
  %v7211 = vsel %vm2145, %v7148, 0
  %v7214 = vsel %vm2145, %v7149, 0
  %v7217 = vsel %vm2145, %v7150, 0
  %v7220 = vsel %vm2145, %v7151, 0
  %v7223 = vsel %vm2145, %v7152, 0
  %v7226 = vsel %vm2145, %v7153, 0
  %v7229 = vsel %vm2145, %v7154, 0
  %v7232 = vsel %vm2145, %v7155, 0
  %v7235 = vsel %vm2145, %v7156, 0
  %v7238 = vsel %vm2145, %v7157, 0
  %v7241 = vsel %vm2145, %v7158, 0
  %v7244 = vsel %vm2145, %v7159, 0
  %v7247 = vsel %vm2145, %v7160, 0
  %v7250 = vsel %vm2145, %v7161, 0
  %v7253 = vsel %vm2145, %v7162, 0
  %v7256 = vsel %vm2145, %v7163, 0
  %v7259 = vsel %vm2145, %v7164, 0
  %v7262 = vsel %vm2145, %v7165, 0
  %v7265 = vsel %vm2242, %v7167, 0
  %7267 = vmatpush.bf16.msra.mxu0 0
  %7268 = vmatpush.bf16.msra.mxu0 0
  %7269 = vmatpush.bf16.msra.mxu0 0
  %7270 = vmatpush.bf16.msra.mxu0 0
  %7271 = vmatpush.bf16.msra.mxu0 0
  %7272 = vmatpush.bf16.msra.mxu0 0
  %7273 = vmatpush.bf16.msra.mxu0 0
  %7274 = vmatpush.bf16.msra.mxu0 %v7265
  %7275 = vmatmul.bf16.gmra.mxu0 %v7169
  %v7276 = vpop.f32.mrf.mxu0
  %v7277 = vadd.f32 0.0, %v7276
  %v7278 = vpop.f32.mrf.mxu0
  %v7279 = vadd.f32 0.0, %v7278
  %7280 = vmatmul.bf16.gmra.mxu0 %v7172
  %v7281 = vpop.f32.mrf.mxu0
  %v7282 = vadd.f32 0.0, %v7281
  %v7283 = vpop.f32.mrf.mxu0
  %v7284 = vadd.f32 0.0, %v7283
  %7285 = vmatmul.bf16.gmra.mxu0 %v7175
  %v7286 = vpop.f32.mrf.mxu0
  %v7287 = vadd.f32 0.0, %v7286
  %v7288 = vpop.f32.mrf.mxu0
  %v7289 = vadd.f32 0.0, %v7288
  %7290 = vmatmul.bf16.gmra.mxu0 %v7178
  %v7291 = vpop.f32.mrf.mxu0
  %v7292 = vadd.f32 0.0, %v7291
  %v7293 = vpop.f32.mrf.mxu0
  %v7294 = vadd.f32 0.0, %v7293
  %7295 = vmatmul.bf16.gmra.mxu0 %v7181
  %v7296 = vpop.f32.mrf.mxu0
  %v7297 = vadd.f32 0.0, %v7296
  %v7298 = vpop.f32.mrf.mxu0
  %v7299 = vadd.f32 0.0, %v7298
  %7300 = vmatmul.bf16.gmra.mxu0 %v7184
  %v7301 = vpop.f32.mrf.mxu0
  %v7302 = vadd.f32 0.0, %v7301
  %v7303 = vpop.f32.mrf.mxu0
  %v7304 = vadd.f32 0.0, %v7303
  %7305 = vmatmul.bf16.gmra.mxu0 %v7187
  %v7306 = vpop.f32.mrf.mxu0
  %v7307 = vadd.f32 0.0, %v7306
  %v7308 = vpop.f32.mrf.mxu0
  %v7309 = vadd.f32 0.0, %v7308
  %7310 = vmatmul.bf16.gmra.mxu0 %v7190
  %v7311 = vpop.f32.mrf.mxu0
  %v7312 = vadd.f32 0.0, %v7311
  %v7313 = vpop.f32.mrf.mxu0
  %v7314 = vadd.f32 0.0, %v7313
  %7315 = vmatmul.bf16.gmra.mxu0 %v7193
  %v7316 = vpop.f32.mrf.mxu0
  %v7317 = vadd.f32 0.0, %v7316
  %v7318 = vpop.f32.mrf.mxu0
  %v7319 = vadd.f32 0.0, %v7318
  %7320 = vmatmul.bf16.gmra.mxu0 %v7196
  %v7321 = vpop.f32.mrf.mxu0
  %v7322 = vadd.f32 0.0, %v7321
  %v7323 = vpop.f32.mrf.mxu0
  %v7324 = vadd.f32 0.0, %v7323
  %7325 = vmatmul.bf16.gmra.mxu0 %v7199
  %v7326 = vpop.f32.mrf.mxu0
  %v7327 = vadd.f32 0.0, %v7326
  %v7328 = vpop.f32.mrf.mxu0
  %v7329 = vadd.f32 0.0, %v7328
  %7330 = vmatmul.bf16.gmra.mxu0 %v7202
  %v7331 = vpop.f32.mrf.mxu0
  %v7332 = vadd.f32 0.0, %v7331
  %v7333 = vpop.f32.mrf.mxu0
  %v7334 = vadd.f32 0.0, %v7333
  %7335 = vmatmul.bf16.gmra.mxu0 %v7205
  %v7336 = vpop.f32.mrf.mxu0
  %v7337 = vadd.f32 0.0, %v7336
  %v7338 = vpop.f32.mrf.mxu0
  %v7339 = vadd.f32 0.0, %v7338
  %7340 = vmatmul.bf16.gmra.mxu0 %v7208
  %v7341 = vpop.f32.mrf.mxu0
  %v7342 = vadd.f32 0.0, %v7341
  %v7343 = vpop.f32.mrf.mxu0
  %v7344 = vadd.f32 0.0, %v7343
  %7345 = vmatmul.bf16.gmra.mxu0 %v7211
  %v7346 = vpop.f32.mrf.mxu0
  %v7347 = vadd.f32 0.0, %v7346
  %v7348 = vpop.f32.mrf.mxu0
  %v7349 = vadd.f32 0.0, %v7348
  %7350 = vmatmul.bf16.gmra.mxu0 %v7214
  %v7351 = vpop.f32.mrf.mxu0
  %v7352 = vadd.f32 0.0, %v7351
  %v7353 = vpop.f32.mrf.mxu0
  %v7354 = vadd.f32 0.0, %v7353
  %7355 = vmatmul.bf16.gmra.mxu0 %v7217
  %v7356 = vpop.f32.mrf.mxu0
  %v7357 = vadd.f32 0.0, %v7356
  %v7358 = vpop.f32.mrf.mxu0
  %v7359 = vadd.f32 0.0, %v7358
  %7360 = vmatmul.bf16.gmra.mxu0 %v7220
  %v7361 = vpop.f32.mrf.mxu0
  %v7362 = vadd.f32 0.0, %v7361
  %v7363 = vpop.f32.mrf.mxu0
  %v7364 = vadd.f32 0.0, %v7363
  %7365 = vmatmul.bf16.gmra.mxu0 %v7223
  %v7366 = vpop.f32.mrf.mxu0
  %v7367 = vadd.f32 0.0, %v7366
  %v7368 = vpop.f32.mrf.mxu0
  %v7369 = vadd.f32 0.0, %v7368
  %7370 = vmatmul.bf16.gmra.mxu0 %v7226
  %v7371 = vpop.f32.mrf.mxu0
  %v7372 = vadd.f32 0.0, %v7371
  %v7373 = vpop.f32.mrf.mxu0
  %v7374 = vadd.f32 0.0, %v7373
  %7375 = vmatmul.bf16.gmra.mxu0 %v7229
  %v7376 = vpop.f32.mrf.mxu0
  %v7377 = vadd.f32 0.0, %v7376
  %v7378 = vpop.f32.mrf.mxu0
  %v7379 = vadd.f32 0.0, %v7378
  %7380 = vmatmul.bf16.gmra.mxu0 %v7232
  %v7381 = vpop.f32.mrf.mxu0
  %v7382 = vadd.f32 0.0, %v7381
  %v7383 = vpop.f32.mrf.mxu0
  %v7384 = vadd.f32 0.0, %v7383
  %7385 = vmatmul.bf16.gmra.mxu0 %v7235
  %v7386 = vpop.f32.mrf.mxu0
  %v7387 = vadd.f32 0.0, %v7386
  %v7388 = vpop.f32.mrf.mxu0
  %v7389 = vadd.f32 0.0, %v7388
  %7390 = vmatmul.bf16.gmra.mxu0 %v7238
  %v7391 = vpop.f32.mrf.mxu0
  %v7392 = vadd.f32 0.0, %v7391
  %v7393 = vpop.f32.mrf.mxu0
  %v7394 = vadd.f32 0.0, %v7393
  %7395 = vmatmul.bf16.gmra.mxu0 %v7241
  %v7396 = vpop.f32.mrf.mxu0
  %v7397 = vadd.f32 0.0, %v7396
  %v7398 = vpop.f32.mrf.mxu0
  %v7399 = vadd.f32 0.0, %v7398
  %7400 = vmatmul.bf16.gmra.mxu0 %v7244
  %v7401 = vpop.f32.mrf.mxu0
  %v7402 = vadd.f32 0.0, %v7401
  %v7403 = vpop.f32.mrf.mxu0
  %v7404 = vadd.f32 0.0, %v7403
  %7405 = vmatmul.bf16.gmra.mxu0 %v7247
  %v7406 = vpop.f32.mrf.mxu0
  %v7407 = vadd.f32 0.0, %v7406
  %v7408 = vpop.f32.mrf.mxu0
  %v7409 = vadd.f32 0.0, %v7408
  %7410 = vmatmul.bf16.gmra.mxu0 %v7250
  %v7411 = vpop.f32.mrf.mxu0
  %v7412 = vadd.f32 0.0, %v7411
  %v7413 = vpop.f32.mrf.mxu0
  %v7414 = vadd.f32 0.0, %v7413
  %7415 = vmatmul.bf16.gmra.mxu0 %v7253
  %v7416 = vpop.f32.mrf.mxu0
  %v7417 = vadd.f32 0.0, %v7416
  %v7418 = vpop.f32.mrf.mxu0
  %v7419 = vadd.f32 0.0, %v7418
  %7420 = vmatmul.bf16.gmra.mxu0 %v7256
  %v7421 = vpop.f32.mrf.mxu0
  %v7422 = vadd.f32 0.0, %v7421
  %v7423 = vpop.f32.mrf.mxu0
  %v7424 = vadd.f32 0.0, %v7423
  %7425 = vmatmul.bf16.gmra.mxu0 %v7259
  %v7426 = vpop.f32.mrf.mxu0
  %v7427 = vadd.f32 0.0, %v7426
  %v7428 = vpop.f32.mrf.mxu0
  %v7429 = vadd.f32 0.0, %v7428
  %7430 = vmatmul.bf16.gmra.mxu0 %v7262
  %v7431 = vpop.f32.mrf.mxu0
  %v7432 = vadd.f32 0.0, %v7431
  %v7433 = vpop.f32.mrf.mxu0
  %v7434 = vadd.f32 0.0, %v7433
  %7435 = vdwg.mxu0
  %v7437 = vsel %vm2145, %v6973, 0
  %v7440 = vsel %vm2145, %v6974, 0
  %v7443 = vsel %vm2145, %v6975, 0
  %v7446 = vsel %vm2145, %v6976, 0
  %v7449 = vsel %vm2145, %v6977, 0
  %v7452 = vsel %vm2145, %v6978, 0
  %v7455 = vsel %vm2145, %v6979, 0
  %v7458 = vsel %vm2145, %v6980, 0
  %v7461 = vsel %vm2145, %v6981, 0
  %v7464 = vsel %vm2145, %v6982, 0
  %v7467 = vsel %vm2145, %v6983, 0
  %v7470 = vsel %vm2145, %v6984, 0
  %v7473 = vsel %vm2145, %v6985, 0
  %v7476 = vsel %vm2145, %v6986, 0
  %v7479 = vsel %vm2145, %v6987, 0
  %v7482 = vsel %vm2145, %v6988, 0
  %v7485 = vsel %vm2145, %v6989, 0
  %v7488 = vsel %vm2145, %v6990, 0
  %v7491 = vsel %vm2145, %v6991, 0
  %v7494 = vsel %vm2145, %v6992, 0
  %v7497 = vsel %vm2145, %v6993, 0
  %v7500 = vsel %vm2145, %v6994, 0
  %v7503 = vsel %vm2145, %v6995, 0
  %v7506 = vsel %vm2145, %v6996, 0
  %v7509 = vsel %vm2145, %v6997, 0
  %v7512 = vsel %vm2145, %v6998, 0
  %v7515 = vsel %vm2145, %v6999, 0
  %v7518 = vsel %vm2145, %v7000, 0
  %v7521 = vsel %vm2145, %v7001, 0
  %v7524 = vsel %vm2145, %v7002, 0
  %v7527 = vsel %vm2145, %v7003, 0
  %v7530 = vsel %vm2145, %v7004, 0
  %v7533 = vsel %vm2242, %v7005, 0
  %7535 = vmatpush.bf16.msra.mxu0 0
  %7536 = vmatpush.bf16.msra.mxu0 0
  %7537 = vmatpush.bf16.msra.mxu0 0
  %7538 = vmatpush.bf16.msra.mxu0 0
  %7539 = vmatpush.bf16.msra.mxu0 0
  %7540 = vmatpush.bf16.msra.mxu0 0
  %7541 = vmatpush.bf16.msra.mxu0 0
  %7542 = vmatpush.bf16.msra.mxu0 %v7533
  %7543 = vmatmul.bf16.gmra.mxu0 %v7437
  %v7544 = vpop.f32.mrf.mxu0
  %v7545 = vadd.f32 %v7277, %v7544
  %v7546 = vpop.f32.mrf.mxu0
  %v7547 = vadd.f32 %v7279, %v7546
  %7548 = vmatmul.bf16.gmra.mxu0 %v7440
  %v7549 = vpop.f32.mrf.mxu0
  %v7550 = vadd.f32 %v7282, %v7549
  %v7551 = vpop.f32.mrf.mxu0
  %v7552 = vadd.f32 %v7284, %v7551
  %7553 = vmatmul.bf16.gmra.mxu0 %v7443
  %v7554 = vpop.f32.mrf.mxu0
  %v7555 = vadd.f32 %v7287, %v7554
  %v7556 = vpop.f32.mrf.mxu0
  %v7557 = vadd.f32 %v7289, %v7556
  %7558 = vmatmul.bf16.gmra.mxu0 %v7446
  %v7559 = vpop.f32.mrf.mxu0
  %v7560 = vadd.f32 %v7292, %v7559
  %v7561 = vpop.f32.mrf.mxu0
  %v7562 = vadd.f32 %v7294, %v7561
  %7563 = vmatmul.bf16.gmra.mxu0 %v7449
  %v7564 = vpop.f32.mrf.mxu0
  %v7565 = vadd.f32 %v7297, %v7564
  %v7566 = vpop.f32.mrf.mxu0
  %v7567 = vadd.f32 %v7299, %v7566
  %7568 = vmatmul.bf16.gmra.mxu0 %v7452
  %v7569 = vpop.f32.mrf.mxu0
  %v7570 = vadd.f32 %v7302, %v7569
  %v7571 = vpop.f32.mrf.mxu0
  %v7572 = vadd.f32 %v7304, %v7571
  %7573 = vmatmul.bf16.gmra.mxu0 %v7455
  %v7574 = vpop.f32.mrf.mxu0
  %v7575 = vadd.f32 %v7307, %v7574
  %v7576 = vpop.f32.mrf.mxu0
  %v7577 = vadd.f32 %v7309, %v7576
  %7578 = vmatmul.bf16.gmra.mxu0 %v7458
  %v7579 = vpop.f32.mrf.mxu0
  %v7580 = vadd.f32 %v7312, %v7579
  %v7581 = vpop.f32.mrf.mxu0
  %v7582 = vadd.f32 %v7314, %v7581
  %7583 = vmatmul.bf16.gmra.mxu0 %v7461
  %v7584 = vpop.f32.mrf.mxu0
  %v7585 = vadd.f32 %v7317, %v7584
  %v7586 = vpop.f32.mrf.mxu0
  %v7587 = vadd.f32 %v7319, %v7586
  %7588 = vmatmul.bf16.gmra.mxu0 %v7464
  %v7589 = vpop.f32.mrf.mxu0
  %v7590 = vadd.f32 %v7322, %v7589
  %v7591 = vpop.f32.mrf.mxu0
  %v7592 = vadd.f32 %v7324, %v7591
  %7593 = vmatmul.bf16.gmra.mxu0 %v7467
  %v7594 = vpop.f32.mrf.mxu0
  %v7595 = vadd.f32 %v7327, %v7594
  %v7596 = vpop.f32.mrf.mxu0
  %v7597 = vadd.f32 %v7329, %v7596
  %7598 = vmatmul.bf16.gmra.mxu0 %v7470
  %v7599 = vpop.f32.mrf.mxu0
  %v7600 = vadd.f32 %v7332, %v7599
  %v7601 = vpop.f32.mrf.mxu0
  %v7602 = vadd.f32 %v7334, %v7601
  %7603 = vmatmul.bf16.gmra.mxu0 %v7473
  %v7604 = vpop.f32.mrf.mxu0
  %v7605 = vadd.f32 %v7337, %v7604
  %v7606 = vpop.f32.mrf.mxu0
  %v7607 = vadd.f32 %v7339, %v7606
  %7608 = vmatmul.bf16.gmra.mxu0 %v7476
  %v7609 = vpop.f32.mrf.mxu0
  %v7610 = vadd.f32 %v7342, %v7609
  %v7611 = vpop.f32.mrf.mxu0
  %v7612 = vadd.f32 %v7344, %v7611
  %7613 = vmatmul.bf16.gmra.mxu0 %v7479
  %v7614 = vpop.f32.mrf.mxu0
  %v7615 = vadd.f32 %v7347, %v7614
  %v7616 = vpop.f32.mrf.mxu0
  %v7617 = vadd.f32 %v7349, %v7616
  %7618 = vmatmul.bf16.gmra.mxu0 %v7482
  %v7619 = vpop.f32.mrf.mxu0
  %v7620 = vadd.f32 %v7352, %v7619
  %v7621 = vpop.f32.mrf.mxu0
  %v7622 = vadd.f32 %v7354, %v7621
  %7623 = vmatmul.bf16.gmra.mxu0 %v7485
  %v7624 = vpop.f32.mrf.mxu0
  %v7625 = vadd.f32 %v7357, %v7624
  %v7626 = vpop.f32.mrf.mxu0
  %v7627 = vadd.f32 %v7359, %v7626
  %7628 = vmatmul.bf16.gmra.mxu0 %v7488
  %v7629 = vpop.f32.mrf.mxu0
  %v7630 = vadd.f32 %v7362, %v7629
  %v7631 = vpop.f32.mrf.mxu0
  %v7632 = vadd.f32 %v7364, %v7631
  %7633 = vmatmul.bf16.gmra.mxu0 %v7491
  %v7634 = vpop.f32.mrf.mxu0
  %v7635 = vadd.f32 %v7367, %v7634
  %v7636 = vpop.f32.mrf.mxu0
  %v7637 = vadd.f32 %v7369, %v7636
  %7638 = vmatmul.bf16.gmra.mxu0 %v7494
  %v7639 = vpop.f32.mrf.mxu0
  %v7640 = vadd.f32 %v7372, %v7639
  %v7641 = vpop.f32.mrf.mxu0
  %v7642 = vadd.f32 %v7374, %v7641
  %7643 = vmatmul.bf16.gmra.mxu0 %v7497
  %v7644 = vpop.f32.mrf.mxu0
  %v7645 = vadd.f32 %v7377, %v7644
  %v7646 = vpop.f32.mrf.mxu0
  %v7647 = vadd.f32 %v7379, %v7646
  %7648 = vmatmul.bf16.gmra.mxu0 %v7500
  %v7649 = vpop.f32.mrf.mxu0
  %v7650 = vadd.f32 %v7382, %v7649
  %v7651 = vpop.f32.mrf.mxu0
  %v7652 = vadd.f32 %v7384, %v7651
  %7653 = vmatmul.bf16.gmra.mxu0 %v7503
  %v7654 = vpop.f32.mrf.mxu0
  %v7655 = vadd.f32 %v7387, %v7654
  %v7656 = vpop.f32.mrf.mxu0
  %v7657 = vadd.f32 %v7389, %v7656
  %7658 = vmatmul.bf16.gmra.mxu0 %v7506
  %v7659 = vpop.f32.mrf.mxu0
  %v7660 = vadd.f32 %v7392, %v7659
  %v7661 = vpop.f32.mrf.mxu0
  %v7662 = vadd.f32 %v7394, %v7661
  %7663 = vmatmul.bf16.gmra.mxu0 %v7509
  %v7664 = vpop.f32.mrf.mxu0
  %v7665 = vadd.f32 %v7397, %v7664
  %v7666 = vpop.f32.mrf.mxu0
  %v7667 = vadd.f32 %v7399, %v7666
  %7668 = vmatmul.bf16.gmra.mxu0 %v7512
  %v7669 = vpop.f32.mrf.mxu0
  %v7670 = vadd.f32 %v7402, %v7669
  %v7671 = vpop.f32.mrf.mxu0
  %v7672 = vadd.f32 %v7404, %v7671
  %7673 = vmatmul.bf16.gmra.mxu0 %v7515
  %v7674 = vpop.f32.mrf.mxu0
  %v7675 = vadd.f32 %v7407, %v7674
  %v7676 = vpop.f32.mrf.mxu0
  %v7677 = vadd.f32 %v7409, %v7676
  %7678 = vmatmul.bf16.gmra.mxu0 %v7518
  %v7679 = vpop.f32.mrf.mxu0
  %v7680 = vadd.f32 %v7412, %v7679
  %v7681 = vpop.f32.mrf.mxu0
  %v7682 = vadd.f32 %v7414, %v7681
  %7683 = vmatmul.bf16.gmra.mxu0 %v7521
  %v7684 = vpop.f32.mrf.mxu0
  %v7685 = vadd.f32 %v7417, %v7684
  %v7686 = vpop.f32.mrf.mxu0
  %v7687 = vadd.f32 %v7419, %v7686
  %7688 = vmatmul.bf16.gmra.mxu0 %v7524
  %v7689 = vpop.f32.mrf.mxu0
  %v7690 = vadd.f32 %v7422, %v7689
  %v7691 = vpop.f32.mrf.mxu0
  %v7692 = vadd.f32 %v7424, %v7691
  %7693 = vmatmul.bf16.gmra.mxu0 %v7527
  %v7694 = vpop.f32.mrf.mxu0
  %v7695 = vadd.f32 %v7427, %v7694
  %v7696 = vpop.f32.mrf.mxu0
  %v7697 = vadd.f32 %v7429, %v7696
  %7698 = vmatmul.bf16.gmra.mxu0 %v7530
  %v7699 = vpop.f32.mrf.mxu0
  %v7700 = vadd.f32 %v7432, %v7699
  %v7701 = vpop.f32.mrf.mxu0
  %v7702 = vadd.f32 %v7434, %v7701
  %7703 = vdwg.mxu0
  %v7704 = vld [vmem:[#allocation2 + $0x9] sm:$0xff]
  %v7705 = vld [vmem:[#allocation2 + $0x11] sm:$0xff]
  %v7706 = vld [vmem:[#allocation2 + $0x19] sm:$0xff]
  %v7707 = vld [vmem:[#allocation2 + $0x21] sm:$0xff]
  %v7708 = vld [vmem:[#allocation2 + $0x29] sm:$0xff]
  %v7709 = vld [vmem:[#allocation2 + $0x31] sm:$0xff]
  %v7710 = vld [vmem:[#allocation2 + $0x39] sm:$0xff]
  %v7711 = vld [vmem:[#allocation2 + $0x41] sm:$0xff]
  %v7712 = vld [vmem:[#allocation2 + $0x49] sm:$0xff]
  %v7713 = vld [vmem:[#allocation2 + $0x51] sm:$0xff]
  %v7714 = vld [vmem:[#allocation2 + $0x59] sm:$0xff]
  %v7715 = vld [vmem:[#allocation2 + $0x61] sm:$0xff]
  %v7716 = vld [vmem:[#allocation2 + $0x69] sm:$0xff]
  %v7717 = vld [vmem:[#allocation2 + $0x71] sm:$0xff]
  %v7718 = vld [vmem:[#allocation2 + $0x79] sm:$0xff]
  %v7719 = vld [vmem:[#allocation2 + $0x81] sm:$0xff]
  %v7720 = vld [vmem:[#allocation2 + $0x89] sm:$0xff]
  %v7721 = vld [vmem:[#allocation2 + $0x91] sm:$0xff]
  %v7722 = vld [vmem:[#allocation2 + $0x99] sm:$0xff]
  %v7723 = vld [vmem:[#allocation2 + $0xa1] sm:$0xff]
  %v7724 = vld [vmem:[#allocation2 + $0xa9] sm:$0xff]
  %v7725 = vld [vmem:[#allocation2 + $0xb1] sm:$0xff]
  %v7726 = vld [vmem:[#allocation2 + $0xb9] sm:$0xff]
  %v7727 = vld [vmem:[#allocation2 + $0xc1] sm:$0xff]
  %v7728 = vld [vmem:[#allocation2 + $0xc9] sm:$0xff]
  %v7729 = vld [vmem:[#allocation2 + $0xd1] sm:$0xff]
  %v7730 = vld [vmem:[#allocation2 + $0xd9] sm:$0xff]
  %v7731 = vld [vmem:[#allocation2 + $0xe1] sm:$0xff]
  %v7732 = vld [vmem:[#allocation2 + $0xe9] sm:$0xff]
  %v7733 = vld [vmem:[#allocation2 + $0xf1] sm:$0xff]
  %v7734 = vld [vmem:[#allocation2 + $0xf9] sm:$0xff]
  %v7735 = vld [vmem:[#allocation2 + $0x101] sm:$0xff]
  %v7736 = vld [vmem:[#allocation2 + $0x109] sm:$0xff]
  %v7737 = vld [vmem:[#allocation2 + $0x111] sm:$0xff]
  %v7738 = vld [vmem:[#allocation2 + $0x119] sm:$0xff]
  %v7739 = vld [vmem:[#allocation2 + $0x121] sm:$0xff]
  %v7740 = vld [vmem:[#allocation2 + $0x129] sm:$0xff]
  %v7741 = vld [vmem:[#allocation2 + $0x131] sm:$0xff]
  %v7742 = vld [vmem:[#allocation2 + $0x139] sm:$0xff]
  %v7743 = vld [vmem:[#allocation2 + $0x141] sm:$0xff]
  %v7744 = vld [vmem:[#allocation2 + $0x149] sm:$0xff]
  %v7745 = vld [vmem:[#allocation2 + $0x151] sm:$0xff]
  %v7746 = vld [vmem:[#allocation2 + $0x159] sm:$0xff]
  %v7747 = vld [vmem:[#allocation2 + $0x161] sm:$0xff]
  %v7748 = vld [vmem:[#allocation2 + $0x169] sm:$0xff]
  %v7749 = vld [vmem:[#allocation2 + $0x171] sm:$0xff]
  %v7750 = vld [vmem:[#allocation2 + $0x179] sm:$0xff]
  %v7751 = vld [vmem:[#allocation2 + $0x181] sm:$0xff]
  %v7752 = vld [vmem:[#allocation2 + $0x189] sm:$0xff]
  %v7753 = vld [vmem:[#allocation2 + $0x191] sm:$0xff]
  %v7754 = vld [vmem:[#allocation2 + $0x199] sm:$0xff]
  %v7755 = vld [vmem:[#allocation2 + $0x1a1] sm:$0xff]
  %v7756 = vld [vmem:[#allocation2 + $0x1a9] sm:$0xff]
  %v7757 = vld [vmem:[#allocation2 + $0x1b1] sm:$0xff]
  %v7758 = vld [vmem:[#allocation2 + $0x1b9] sm:$0xff]
  %v7759 = vld [vmem:[#allocation2 + $0x1c1] sm:$0xff]
  %v7760 = vld [vmem:[#allocation2 + $0x1c9] sm:$0xff]
  %v7761 = vld [vmem:[#allocation2 + $0x1d1] sm:$0xff]
  %v7762 = vld [vmem:[#allocation2 + $0x1d9] sm:$0xff]
  %v7763 = vld [vmem:[#allocation2 + $0x1e1] sm:$0xff]
  %v7764 = vld [vmem:[#allocation2 + $0x1e9] sm:$0xff]
  %v7765 = vld [vmem:[#allocation2 + $0x1f1] sm:$0xff]
  %v7766 = vld [vmem:[#allocation2 + $0x1f9] sm:$0xff]
  %v7767 = vld [vmem:[#allocation2 + $0x201] sm:$0xff]
  %v7768 = vsel %vm2747, %v7704, 0.0
  %v7769 = vsel %vm2748, %v7705, 0.0
  %v7770 = vsel %vm2749, %v7706, 0.0
  %v7771 = vsel %vm2750, %v7707, 0.0
  %v7772 = vsel %vm2751, %v7708, 0.0
  %v7773 = vsel %vm2752, %v7709, 0.0
  %v7774 = vsel %vm2753, %v7710, 0.0
  %v7775 = vsel %vm2754, %v7711, 0.0
  %v7776 = vsel %vm2755, %v7712, 0.0
  %v7777 = vsel %vm2756, %v7713, 0.0
  %v7778 = vsel %vm2757, %v7714, 0.0
  %v7779 = vsel %vm2758, %v7715, 0.0
  %v7780 = vsel %vm2759, %v7716, 0.0
  %v7781 = vsel %vm2760, %v7717, 0.0
  %v7782 = vsel %vm2761, %v7718, 0.0
  %v7783 = vsel %vm2762, %v7719, 0.0
  %v7784 = vsel %vm2763, %v7720, 0.0
  %v7785 = vsel %vm2764, %v7721, 0.0
  %v7786 = vsel %vm2765, %v7722, 0.0
  %v7787 = vsel %vm2766, %v7723, 0.0
  %v7788 = vsel %vm2767, %v7724, 0.0
  %v7789 = vsel %vm2768, %v7725, 0.0
  %v7790 = vsel %vm2769, %v7726, 0.0
  %v7791 = vsel %vm2770, %v7727, 0.0
  %v7792 = vsel %vm2771, %v7728, 0.0
  %v7793 = vsel %vm2772, %v7729, 0.0
  %v7794 = vsel %vm2773, %v7730, 0.0
  %v7795 = vsel %vm2774, %v7731, 0.0
  %v7796 = vsel %vm2775, %v7732, 0.0
  %v7797 = vsel %vm2776, %v7733, 0.0
  %v7798 = vsel %vm2777, %v7734, 0.0
  %v7799 = vsel %vm2778, %v7735, 0.0
  %v7800 = vsel %vm2779, %v7736, 0.0
  %v7801 = vsel %vm2780, %v7737, 0.0
  %v7802 = vsel %vm2781, %v7738, 0.0
  %v7803 = vsel %vm2782, %v7739, 0.0
  %v7804 = vsel %vm2783, %v7740, 0.0
  %v7805 = vsel %vm2784, %v7741, 0.0
  %v7806 = vsel %vm2785, %v7742, 0.0
  %v7807 = vsel %vm2786, %v7743, 0.0
  %v7808 = vsel %vm2787, %v7744, 0.0
  %v7809 = vsel %vm2788, %v7745, 0.0
  %v7810 = vsel %vm2789, %v7746, 0.0
  %v7811 = vsel %vm2790, %v7747, 0.0
  %v7812 = vsel %vm2791, %v7748, 0.0
  %v7813 = vsel %vm2792, %v7749, 0.0
  %v7814 = vsel %vm2793, %v7750, 0.0
  %v7815 = vsel %vm2794, %v7751, 0.0
  %v7816 = vsel %vm2795, %v7752, 0.0
  %v7817 = vsel %vm2796, %v7753, 0.0
  %v7818 = vsel %vm2797, %v7754, 0.0
  %v7819 = vsel %vm2798, %v7755, 0.0
  %v7820 = vsel %vm2799, %v7756, 0.0
  %v7821 = vsel %vm2800, %v7757, 0.0
  %v7822 = vsel %vm2801, %v7758, 0.0
  %v7823 = vsel %vm2802, %v7759, 0.0
  %v7824 = vsel %vm2803, %v7760, 0.0
  %v7825 = vsel %vm2804, %v7761, 0.0
  %v7826 = vsel %vm2805, %v7762, 0.0
  %v7827 = vsel %vm2806, %v7763, 0.0
  %v7828 = vsel %vm2807, %v7764, 0.0
  %v7829 = vsel %vm2808, %v7765, 0.0
  %v7830 = vsel %vm2809, %v7766, 0.0
  %v7831 = vsel %vm2810, %v7767, 0.0
  %v7832 = vpack.c.bf16 %v7769, %v7768
  %v7833 = vpack.c.bf16 %v7771, %v7770
  %v7834 = vpack.c.bf16 %v7773, %v7772
  %v7835 = vpack.c.bf16 %v7775, %v7774
  %v7836 = vpack.c.bf16 %v7777, %v7776
  %v7837 = vpack.c.bf16 %v7779, %v7778
  %v7838 = vpack.c.bf16 %v7781, %v7780
  %v7839 = vpack.c.bf16 %v7783, %v7782
  %v7840 = vpack.c.bf16 %v7785, %v7784
  %v7841 = vpack.c.bf16 %v7787, %v7786
  %v7842 = vpack.c.bf16 %v7789, %v7788
  %v7843 = vpack.c.bf16 %v7791, %v7790
  %v7844 = vpack.c.bf16 %v7793, %v7792
  %v7845 = vpack.c.bf16 %v7795, %v7794
  %v7846 = vpack.c.bf16 %v7797, %v7796
  %v7847 = vpack.c.bf16 %v7799, %v7798
  %v7848 = vpack.c.bf16 %v7801, %v7800
  %v7849 = vpack.c.bf16 %v7803, %v7802
  %v7850 = vpack.c.bf16 %v7805, %v7804
  %v7851 = vpack.c.bf16 %v7807, %v7806
  %v7852 = vpack.c.bf16 %v7809, %v7808
  %v7853 = vpack.c.bf16 %v7811, %v7810
  %v7854 = vpack.c.bf16 %v7813, %v7812
  %v7855 = vpack.c.bf16 %v7815, %v7814
  %v7856 = vpack.c.bf16 %v7817, %v7816
  %v7857 = vpack.c.bf16 %v7819, %v7818
  %v7858 = vpack.c.bf16 %v7821, %v7820
  %v7859 = vpack.c.bf16 %v7823, %v7822
  %v7860 = vpack.c.bf16 %v7825, %v7824
  %v7861 = vpack.c.bf16 %v7827, %v7826
  %v7862 = vpack.c.bf16 %v7829, %v7828
  %v7863 = vpack.c.bf16 %v7831, %v7830
  %s7864 = scalar_lea.vmem %s2, 4
  %v7865 = vld [vmem:[%s7864] sm:$0x3]
  %v7867 = vsel %vm2145, %v7832, 0
  %v7870 = vsel %vm2145, %v7833, 0
  %v7873 = vsel %vm2145, %v7834, 0
  %v7876 = vsel %vm2145, %v7835, 0
  %v7879 = vsel %vm2145, %v7836, 0
  %v7882 = vsel %vm2145, %v7837, 0
  %v7885 = vsel %vm2145, %v7838, 0
  %v7888 = vsel %vm2145, %v7839, 0
  %v7891 = vsel %vm2145, %v7840, 0
  %v7894 = vsel %vm2145, %v7841, 0
  %v7897 = vsel %vm2145, %v7842, 0
  %v7900 = vsel %vm2145, %v7843, 0
  %v7903 = vsel %vm2145, %v7844, 0
  %v7906 = vsel %vm2145, %v7845, 0
  %v7909 = vsel %vm2145, %v7846, 0
  %v7912 = vsel %vm2145, %v7847, 0
  %v7915 = vsel %vm2145, %v7848, 0
  %v7918 = vsel %vm2145, %v7849, 0
  %v7921 = vsel %vm2145, %v7850, 0
  %v7924 = vsel %vm2145, %v7851, 0
  %v7927 = vsel %vm2145, %v7852, 0
  %v7930 = vsel %vm2145, %v7853, 0
  %v7933 = vsel %vm2145, %v7854, 0
  %v7936 = vsel %vm2145, %v7855, 0
  %v7939 = vsel %vm2145, %v7856, 0
  %v7942 = vsel %vm2145, %v7857, 0
  %v7945 = vsel %vm2145, %v7858, 0
  %v7948 = vsel %vm2145, %v7859, 0
  %v7951 = vsel %vm2145, %v7860, 0
  %v7954 = vsel %vm2145, %v7861, 0
  %v7957 = vsel %vm2145, %v7862, 0
  %v7960 = vsel %vm2145, %v7863, 0
  %v7963 = vsel %vm2242, %v7865, 0
  %7965 = vmatpush.bf16.msra.mxu0 0
  %7966 = vmatpush.bf16.msra.mxu0 0
  %7967 = vmatpush.bf16.msra.mxu0 0
  %7968 = vmatpush.bf16.msra.mxu0 0
  %7969 = vmatpush.bf16.msra.mxu0 0
  %7970 = vmatpush.bf16.msra.mxu0 0
  %7971 = vmatpush.bf16.msra.mxu0 0
  %7972 = vmatpush.bf16.msra.mxu0 %v7963
  %7973 = vmatmul.bf16.gmra.mxu0 %v7867
  %v7974 = vpop.f32.mrf.mxu0
  %v7975 = vadd.f32 0.0, %v7974
  %v7976 = vpop.f32.mrf.mxu0
  %v7977 = vadd.f32 0.0, %v7976
  %7978 = vmatmul.bf16.gmra.mxu0 %v7870
  %v7979 = vpop.f32.mrf.mxu0
  %v7980 = vadd.f32 0.0, %v7979
  %v7981 = vpop.f32.mrf.mxu0
  %v7982 = vadd.f32 0.0, %v7981
  %7983 = vmatmul.bf16.gmra.mxu0 %v7873
  %v7984 = vpop.f32.mrf.mxu0
  %v7985 = vadd.f32 0.0, %v7984
  %v7986 = vpop.f32.mrf.mxu0
  %v7987 = vadd.f32 0.0, %v7986
  %7988 = vmatmul.bf16.gmra.mxu0 %v7876
  %v7989 = vpop.f32.mrf.mxu0
  %v7990 = vadd.f32 0.0, %v7989
  %v7991 = vpop.f32.mrf.mxu0
  %v7992 = vadd.f32 0.0, %v7991
  %7993 = vmatmul.bf16.gmra.mxu0 %v7879
  %v7994 = vpop.f32.mrf.mxu0
  %v7995 = vadd.f32 0.0, %v7994
  %v7996 = vpop.f32.mrf.mxu0
  %v7997 = vadd.f32 0.0, %v7996
  %7998 = vmatmul.bf16.gmra.mxu0 %v7882
  %v7999 = vpop.f32.mrf.mxu0
  %v8000 = vadd.f32 0.0, %v7999
  %v8001 = vpop.f32.mrf.mxu0
  %v8002 = vadd.f32 0.0, %v8001
  %8003 = vmatmul.bf16.gmra.mxu0 %v7885
  %v8004 = vpop.f32.mrf.mxu0
  %v8005 = vadd.f32 0.0, %v8004
  %v8006 = vpop.f32.mrf.mxu0
  %v8007 = vadd.f32 0.0, %v8006
  %8008 = vmatmul.bf16.gmra.mxu0 %v7888
  %v8009 = vpop.f32.mrf.mxu0
  %v8010 = vadd.f32 0.0, %v8009
  %v8011 = vpop.f32.mrf.mxu0
  %v8012 = vadd.f32 0.0, %v8011
  %8013 = vmatmul.bf16.gmra.mxu0 %v7891
  %v8014 = vpop.f32.mrf.mxu0
  %v8015 = vadd.f32 0.0, %v8014
  %v8016 = vpop.f32.mrf.mxu0
  %v8017 = vadd.f32 0.0, %v8016
  %8018 = vmatmul.bf16.gmra.mxu0 %v7894
  %v8019 = vpop.f32.mrf.mxu0
  %v8020 = vadd.f32 0.0, %v8019
  %v8021 = vpop.f32.mrf.mxu0
  %v8022 = vadd.f32 0.0, %v8021
  %8023 = vmatmul.bf16.gmra.mxu0 %v7897
  %v8024 = vpop.f32.mrf.mxu0
  %v8025 = vadd.f32 0.0, %v8024
  %v8026 = vpop.f32.mrf.mxu0
  %v8027 = vadd.f32 0.0, %v8026
  %8028 = vmatmul.bf16.gmra.mxu0 %v7900
  %v8029 = vpop.f32.mrf.mxu0
  %v8030 = vadd.f32 0.0, %v8029
  %v8031 = vpop.f32.mrf.mxu0
  %v8032 = vadd.f32 0.0, %v8031
  %8033 = vmatmul.bf16.gmra.mxu0 %v7903
  %v8034 = vpop.f32.mrf.mxu0
  %v8035 = vadd.f32 0.0, %v8034
  %v8036 = vpop.f32.mrf.mxu0
  %v8037 = vadd.f32 0.0, %v8036
  %8038 = vmatmul.bf16.gmra.mxu0 %v7906
  %v8039 = vpop.f32.mrf.mxu0
  %v8040 = vadd.f32 0.0, %v8039
  %v8041 = vpop.f32.mrf.mxu0
  %v8042 = vadd.f32 0.0, %v8041
  %8043 = vmatmul.bf16.gmra.mxu0 %v7909
  %v8044 = vpop.f32.mrf.mxu0
  %v8045 = vadd.f32 0.0, %v8044
  %v8046 = vpop.f32.mrf.mxu0
  %v8047 = vadd.f32 0.0, %v8046
  %8048 = vmatmul.bf16.gmra.mxu0 %v7912
  %v8049 = vpop.f32.mrf.mxu0
  %v8050 = vadd.f32 0.0, %v8049
  %v8051 = vpop.f32.mrf.mxu0
  %v8052 = vadd.f32 0.0, %v8051
  %8053 = vmatmul.bf16.gmra.mxu0 %v7915
  %v8054 = vpop.f32.mrf.mxu0
  %v8055 = vadd.f32 0.0, %v8054
  %v8056 = vpop.f32.mrf.mxu0
  %v8057 = vadd.f32 0.0, %v8056
  %8058 = vmatmul.bf16.gmra.mxu0 %v7918
  %v8059 = vpop.f32.mrf.mxu0
  %v8060 = vadd.f32 0.0, %v8059
  %v8061 = vpop.f32.mrf.mxu0
  %v8062 = vadd.f32 0.0, %v8061
  %8063 = vmatmul.bf16.gmra.mxu0 %v7921
  %v8064 = vpop.f32.mrf.mxu0
  %v8065 = vadd.f32 0.0, %v8064
  %v8066 = vpop.f32.mrf.mxu0
  %v8067 = vadd.f32 0.0, %v8066
  %8068 = vmatmul.bf16.gmra.mxu0 %v7924
  %v8069 = vpop.f32.mrf.mxu0
  %v8070 = vadd.f32 0.0, %v8069
  %v8071 = vpop.f32.mrf.mxu0
  %v8072 = vadd.f32 0.0, %v8071
  %8073 = vmatmul.bf16.gmra.mxu0 %v7927
  %v8074 = vpop.f32.mrf.mxu0
  %v8075 = vadd.f32 0.0, %v8074
  %v8076 = vpop.f32.mrf.mxu0
  %v8077 = vadd.f32 0.0, %v8076
  %8078 = vmatmul.bf16.gmra.mxu0 %v7930
  %v8079 = vpop.f32.mrf.mxu0
  %v8080 = vadd.f32 0.0, %v8079
  %v8081 = vpop.f32.mrf.mxu0
  %v8082 = vadd.f32 0.0, %v8081
  %8083 = vmatmul.bf16.gmra.mxu0 %v7933
  %v8084 = vpop.f32.mrf.mxu0
  %v8085 = vadd.f32 0.0, %v8084
  %v8086 = vpop.f32.mrf.mxu0
  %v8087 = vadd.f32 0.0, %v8086
  %8088 = vmatmul.bf16.gmra.mxu0 %v7936
  %v8089 = vpop.f32.mrf.mxu0
  %v8090 = vadd.f32 0.0, %v8089
  %v8091 = vpop.f32.mrf.mxu0
  %v8092 = vadd.f32 0.0, %v8091
  %8093 = vmatmul.bf16.gmra.mxu0 %v7939
  %v8094 = vpop.f32.mrf.mxu0
  %v8095 = vadd.f32 0.0, %v8094
  %v8096 = vpop.f32.mrf.mxu0
  %v8097 = vadd.f32 0.0, %v8096
  %8098 = vmatmul.bf16.gmra.mxu0 %v7942
  %v8099 = vpop.f32.mrf.mxu0
  %v8100 = vadd.f32 0.0, %v8099
  %v8101 = vpop.f32.mrf.mxu0
  %v8102 = vadd.f32 0.0, %v8101
  %8103 = vmatmul.bf16.gmra.mxu0 %v7945
  %v8104 = vpop.f32.mrf.mxu0
  %v8105 = vadd.f32 0.0, %v8104
  %v8106 = vpop.f32.mrf.mxu0
  %v8107 = vadd.f32 0.0, %v8106
  %8108 = vmatmul.bf16.gmra.mxu0 %v7948
  %v8109 = vpop.f32.mrf.mxu0
  %v8110 = vadd.f32 0.0, %v8109
  %v8111 = vpop.f32.mrf.mxu0
  %v8112 = vadd.f32 0.0, %v8111
  %8113 = vmatmul.bf16.gmra.mxu0 %v7951
  %v8114 = vpop.f32.mrf.mxu0
  %v8115 = vadd.f32 0.0, %v8114
  %v8116 = vpop.f32.mrf.mxu0
  %v8117 = vadd.f32 0.0, %v8116
  %8118 = vmatmul.bf16.gmra.mxu0 %v7954
  %v8119 = vpop.f32.mrf.mxu0
  %v8120 = vadd.f32 0.0, %v8119
  %v8121 = vpop.f32.mrf.mxu0
  %v8122 = vadd.f32 0.0, %v8121
  %8123 = vmatmul.bf16.gmra.mxu0 %v7957
  %v8124 = vpop.f32.mrf.mxu0
  %v8125 = vadd.f32 0.0, %v8124
  %v8126 = vpop.f32.mrf.mxu0
  %v8127 = vadd.f32 0.0, %v8126
  %8128 = vmatmul.bf16.gmra.mxu0 %v7960
  %v8129 = vpop.f32.mrf.mxu0
  %v8130 = vadd.f32 0.0, %v8129
  %v8131 = vpop.f32.mrf.mxu0
  %v8132 = vadd.f32 0.0, %v8131
  %8133 = vdwg.mxu0
  %v8134 = vadd.f32 %v7545, %v7975
  %v8135 = vadd.f32 %v7547, %v7977
  %v8136 = vadd.f32 %v7550, %v7980
  %v8137 = vadd.f32 %v7552, %v7982
  %v8138 = vadd.f32 %v7555, %v7985
  %v8139 = vadd.f32 %v7557, %v7987
  %v8140 = vadd.f32 %v7560, %v7990
  %v8141 = vadd.f32 %v7562, %v7992
  %v8142 = vadd.f32 %v7565, %v7995
  %v8143 = vadd.f32 %v7567, %v7997
  %v8144 = vadd.f32 %v7570, %v8000
  %v8145 = vadd.f32 %v7572, %v8002
  %v8146 = vadd.f32 %v7575, %v8005
  %v8147 = vadd.f32 %v7577, %v8007
  %v8148 = vadd.f32 %v7580, %v8010
  %v8149 = vadd.f32 %v7582, %v8012
  %v8150 = vadd.f32 %v7585, %v8015
  %v8151 = vadd.f32 %v7587, %v8017
  %v8152 = vadd.f32 %v7590, %v8020
  %v8153 = vadd.f32 %v7592, %v8022
  %v8154 = vadd.f32 %v7595, %v8025
  %v8155 = vadd.f32 %v7597, %v8027
  %v8156 = vadd.f32 %v7600, %v8030
  %v8157 = vadd.f32 %v7602, %v8032
  %v8158 = vadd.f32 %v7605, %v8035
  %v8159 = vadd.f32 %v7607, %v8037
  %v8160 = vadd.f32 %v7610, %v8040
  %v8161 = vadd.f32 %v7612, %v8042
  %v8162 = vadd.f32 %v7615, %v8045
  %v8163 = vadd.f32 %v7617, %v8047
  %v8164 = vadd.f32 %v7620, %v8050
  %v8165 = vadd.f32 %v7622, %v8052
  %v8166 = vadd.f32 %v7625, %v8055
  %v8167 = vadd.f32 %v7627, %v8057
  %v8168 = vadd.f32 %v7630, %v8060
  %v8169 = vadd.f32 %v7632, %v8062
  %v8170 = vadd.f32 %v7635, %v8065
  %v8171 = vadd.f32 %v7637, %v8067
  %v8172 = vadd.f32 %v7640, %v8070
  %v8173 = vadd.f32 %v7642, %v8072
  %v8174 = vadd.f32 %v7645, %v8075
  %v8175 = vadd.f32 %v7647, %v8077
  %v8176 = vadd.f32 %v7650, %v8080
  %v8177 = vadd.f32 %v7652, %v8082
  %v8178 = vadd.f32 %v7655, %v8085
  %v8179 = vadd.f32 %v7657, %v8087
  %v8180 = vadd.f32 %v7660, %v8090
  %v8181 = vadd.f32 %v7662, %v8092
  %v8182 = vadd.f32 %v7665, %v8095
  %v8183 = vadd.f32 %v7667, %v8097
  %v8184 = vadd.f32 %v7670, %v8100
  %v8185 = vadd.f32 %v7672, %v8102
  %v8186 = vadd.f32 %v7675, %v8105
  %v8187 = vadd.f32 %v7677, %v8107
  %v8188 = vadd.f32 %v7680, %v8110
  %v8189 = vadd.f32 %v7682, %v8112
  %v8190 = vadd.f32 %v7685, %v8115
  %v8191 = vadd.f32 %v7687, %v8117
  %v8192 = vadd.f32 %v7690, %v8120
  %v8193 = vadd.f32 %v7692, %v8122
  %v8194 = vadd.f32 %v7695, %v8125
  %v8195 = vadd.f32 %v7697, %v8127
  %v8196 = vadd.f32 %v7700, %v8130
  %v8197 = vadd.f32 %v7702, %v8132
  %v8198 = vld [vmem:[#allocation2 + $0x17] sm:$0xff]
  %v8199 = vld [vmem:[#allocation2 + $0x1f] sm:$0xff]
  %v8200 = vld [vmem:[#allocation2 + $0x27] sm:$0xff]
  %v8201 = vld [vmem:[#allocation2 + $0x2f] sm:$0xff]
  %v8202 = vld [vmem:[#allocation2 + $0x37] sm:$0xff]
  %v8203 = vld [vmem:[#allocation2 + $0x3f] sm:$0xff]
  %v8204 = vld [vmem:[#allocation2 + $0x47] sm:$0xff]
  %v8205 = vld [vmem:[#allocation2 + $0x4f] sm:$0xff]
  %v8206 = vld [vmem:[#allocation2 + $0x57] sm:$0xff]
  %v8207 = vld [vmem:[#allocation2 + $0x5f] sm:$0xff]
  %v8208 = vld [vmem:[#allocation2 + $0x67] sm:$0xff]
  %v8209 = vld [vmem:[#allocation2 + $0x6f] sm:$0xff]
  %v8210 = vld [vmem:[#allocation2 + $0x77] sm:$0xff]
  %v8211 = vld [vmem:[#allocation2 + $0x7f] sm:$0xff]
  %v8212 = vld [vmem:[#allocation2 + $0x87] sm:$0xff]
  %v8213 = vld [vmem:[#allocation2 + $0x8f] sm:$0xff]
  %v8214 = vld [vmem:[#allocation2 + $0x97] sm:$0xff]
  %v8215 = vld [vmem:[#allocation2 + $0x9f] sm:$0xff]
  %v8216 = vld [vmem:[#allocation2 + $0xa7] sm:$0xff]
  %v8217 = vld [vmem:[#allocation2 + $0xaf] sm:$0xff]
  %v8218 = vld [vmem:[#allocation2 + $0xb7] sm:$0xff]
  %v8219 = vld [vmem:[#allocation2 + $0xbf] sm:$0xff]
  %v8220 = vld [vmem:[#allocation2 + $0xc7] sm:$0xff]
  %v8221 = vld [vmem:[#allocation2 + $0xcf] sm:$0xff]
  %v8222 = vld [vmem:[#allocation2 + $0xd7] sm:$0xff]
  %v8223 = vld [vmem:[#allocation2 + $0xdf] sm:$0xff]
  %v8224 = vld [vmem:[#allocation2 + $0xe7] sm:$0xff]
  %v8225 = vld [vmem:[#allocation2 + $0xef] sm:$0xff]
  %v8226 = vld [vmem:[#allocation2 + $0xf7] sm:$0xff]
  %v8227 = vld [vmem:[#allocation2 + $0xff] sm:$0xff]
  %v8228 = vld [vmem:[#allocation2 + $0x107] sm:$0xff]
  %v8229 = vld [vmem:[#allocation2 + $0x10f] sm:$0xff]
  %v8230 = vld [vmem:[#allocation2 + $0x117] sm:$0xff]
  %v8231 = vld [vmem:[#allocation2 + $0x11f] sm:$0xff]
  %v8232 = vld [vmem:[#allocation2 + $0x127] sm:$0xff]
  %v8233 = vld [vmem:[#allocation2 + $0x12f] sm:$0xff]
  %v8234 = vld [vmem:[#allocation2 + $0x137] sm:$0xff]
  %v8235 = vld [vmem:[#allocation2 + $0x13f] sm:$0xff]
  %v8236 = vld [vmem:[#allocation2 + $0x147] sm:$0xff]
  %v8237 = vld [vmem:[#allocation2 + $0x14f] sm:$0xff]
  %v8238 = vld [vmem:[#allocation2 + $0x157] sm:$0xff]
  %v8239 = vld [vmem:[#allocation2 + $0x15f] sm:$0xff]
  %v8240 = vld [vmem:[#allocation2 + $0x167] sm:$0xff]
  %v8241 = vld [vmem:[#allocation2 + $0x16f] sm:$0xff]
  %v8242 = vld [vmem:[#allocation2 + $0x177] sm:$0xff]
  %v8243 = vld [vmem:[#allocation2 + $0x17f] sm:$0xff]
  %v8244 = vld [vmem:[#allocation2 + $0x187] sm:$0xff]
  %v8245 = vld [vmem:[#allocation2 + $0x18f] sm:$0xff]
  %v8246 = vld [vmem:[#allocation2 + $0x197] sm:$0xff]
  %v8247 = vld [vmem:[#allocation2 + $0x19f] sm:$0xff]
  %v8248 = vld [vmem:[#allocation2 + $0x1a7] sm:$0xff]
  %v8249 = vld [vmem:[#allocation2 + $0x1af] sm:$0xff]
  %v8250 = vld [vmem:[#allocation2 + $0x1b7] sm:$0xff]
  %v8251 = vld [vmem:[#allocation2 + $0x1bf] sm:$0xff]
  %v8252 = vld [vmem:[#allocation2 + $0x1c7] sm:$0xff]
  %v8253 = vld [vmem:[#allocation2 + $0x1cf] sm:$0xff]
  %v8254 = vld [vmem:[#allocation2 + $0x1d7] sm:$0xff]
  %v8255 = vld [vmem:[#allocation2 + $0x1df] sm:$0xff]
  %v8256 = vld [vmem:[#allocation2 + $0x1e7] sm:$0xff]
  %v8257 = vld [vmem:[#allocation2 + $0x1ef] sm:$0xff]
  %v8258 = vld [vmem:[#allocation2 + $0x1f7] sm:$0xff]
  %v8259 = vld [vmem:[#allocation2 + $0x1ff] sm:$0xff]
  %v8260 = vld [vmem:[#allocation2 + $0x207] sm:$0xff]
  %v8261 = vld [vmem:[#allocation2 + $0x20f] sm:$0xff]
  %v8262 = vsel %vm3305, %v8198, 0.0
  %v8263 = vsel %vm3306, %v8199, 0.0
  %v8264 = vsel %vm3307, %v8200, 0.0
  %v8265 = vsel %vm3308, %v8201, 0.0
  %v8266 = vsel %vm3309, %v8202, 0.0
  %v8267 = vsel %vm3310, %v8203, 0.0
  %v8268 = vsel %vm3311, %v8204, 0.0
  %v8269 = vsel %vm3312, %v8205, 0.0
  %v8270 = vsel %vm3313, %v8206, 0.0
  %v8271 = vsel %vm3314, %v8207, 0.0
  %v8272 = vsel %vm3315, %v8208, 0.0
  %v8273 = vsel %vm3316, %v8209, 0.0
  %v8274 = vsel %vm3317, %v8210, 0.0
  %v8275 = vsel %vm3318, %v8211, 0.0
  %v8276 = vsel %vm3319, %v8212, 0.0
  %v8277 = vsel %vm3320, %v8213, 0.0
  %v8278 = vsel %vm3321, %v8214, 0.0
  %v8279 = vsel %vm3322, %v8215, 0.0
  %v8280 = vsel %vm3323, %v8216, 0.0
  %v8281 = vsel %vm3324, %v8217, 0.0
  %v8282 = vsel %vm3325, %v8218, 0.0
  %v8283 = vsel %vm3326, %v8219, 0.0
  %v8284 = vsel %vm3327, %v8220, 0.0
  %v8285 = vsel %vm3328, %v8221, 0.0
  %v8286 = vsel %vm3329, %v8222, 0.0
  %v8287 = vsel %vm3330, %v8223, 0.0
  %v8288 = vsel %vm3331, %v8224, 0.0
  %v8289 = vsel %vm3332, %v8225, 0.0
  %v8290 = vsel %vm3333, %v8226, 0.0
  %v8291 = vsel %vm3334, %v8227, 0.0
  %v8292 = vsel %vm3335, %v8228, 0.0
  %v8293 = vsel %vm3336, %v8229, 0.0
  %v8294 = vsel %vm3337, %v8230, 0.0
  %v8295 = vsel %vm3338, %v8231, 0.0
  %v8296 = vsel %vm3339, %v8232, 0.0
  %v8297 = vsel %vm3340, %v8233, 0.0
  %v8298 = vsel %vm3341, %v8234, 0.0
  %v8299 = vsel %vm3342, %v8235, 0.0
  %v8300 = vsel %vm3343, %v8236, 0.0
  %v8301 = vsel %vm3344, %v8237, 0.0
  %v8302 = vsel %vm3345, %v8238, 0.0
  %v8303 = vsel %vm3346, %v8239, 0.0
  %v8304 = vsel %vm3347, %v8240, 0.0
  %v8305 = vsel %vm3348, %v8241, 0.0
  %v8306 = vsel %vm3349, %v8242, 0.0
  %v8307 = vsel %vm3350, %v8243, 0.0
  %v8308 = vsel %vm3351, %v8244, 0.0
  %v8309 = vsel %vm3352, %v8245, 0.0
  %v8310 = vsel %vm3353, %v8246, 0.0
  %v8311 = vsel %vm3354, %v8247, 0.0
  %v8312 = vsel %vm3355, %v8248, 0.0
  %v8313 = vsel %vm3356, %v8249, 0.0
  %v8314 = vsel %vm3357, %v8250, 0.0
  %v8315 = vsel %vm3358, %v8251, 0.0
  %v8316 = vsel %vm3359, %v8252, 0.0
  %v8317 = vsel %vm3360, %v8253, 0.0
  %v8318 = vsel %vm3361, %v8254, 0.0
  %v8319 = vsel %vm3362, %v8255, 0.0
  %v8320 = vsel %vm3363, %v8256, 0.0
  %v8321 = vsel %vm3364, %v8257, 0.0
  %v8322 = vsel %vm3365, %v8258, 0.0
  %v8323 = vsel %vm3366, %v8259, 0.0
  %v8324 = vsel %vm3367, %v8260, 0.0
  %v8325 = vsel %vm3368, %v8261, 0.0
  %v8326 = vpack.c.bf16 %v8263, %v8262
  %v8327 = vpack.c.bf16 %v8265, %v8264
  %v8328 = vpack.c.bf16 %v8267, %v8266
  %v8329 = vpack.c.bf16 %v8269, %v8268
  %v8330 = vpack.c.bf16 %v8271, %v8270
  %v8331 = vpack.c.bf16 %v8273, %v8272
  %v8332 = vpack.c.bf16 %v8275, %v8274
  %v8333 = vpack.c.bf16 %v8277, %v8276
  %v8334 = vpack.c.bf16 %v8279, %v8278
  %v8335 = vpack.c.bf16 %v8281, %v8280
  %v8336 = vpack.c.bf16 %v8283, %v8282
  %v8337 = vpack.c.bf16 %v8285, %v8284
  %v8338 = vpack.c.bf16 %v8287, %v8286
  %v8339 = vpack.c.bf16 %v8289, %v8288
  %v8340 = vpack.c.bf16 %v8291, %v8290
  %v8341 = vpack.c.bf16 %v8293, %v8292
  %v8342 = vpack.c.bf16 %v8295, %v8294
  %v8343 = vpack.c.bf16 %v8297, %v8296
  %v8344 = vpack.c.bf16 %v8299, %v8298
  %v8345 = vpack.c.bf16 %v8301, %v8300
  %v8346 = vpack.c.bf16 %v8303, %v8302
  %v8347 = vpack.c.bf16 %v8305, %v8304
  %v8348 = vpack.c.bf16 %v8307, %v8306
  %v8349 = vpack.c.bf16 %v8309, %v8308
  %v8350 = vpack.c.bf16 %v8311, %v8310
  %v8351 = vpack.c.bf16 %v8313, %v8312
  %v8352 = vpack.c.bf16 %v8315, %v8314
  %v8353 = vpack.c.bf16 %v8317, %v8316
  %v8354 = vpack.c.bf16 %v8319, %v8318
  %v8355 = vpack.c.bf16 %v8321, %v8320
  %v8356 = vpack.c.bf16 %v8323, %v8322
  %v8357 = vpack.c.bf16 %v8325, %v8324
  %s8358 = scalar_lea.vmem %s2, 6
  %v8359 = vld [vmem:[%s8358] sm:$0x3]
  %v8361 = vsel %vm2145, %v8326, 0
  %v8364 = vsel %vm2145, %v8327, 0
  %v8367 = vsel %vm2145, %v8328, 0
  %v8370 = vsel %vm2145, %v8329, 0
  %v8373 = vsel %vm2145, %v8330, 0
  %v8376 = vsel %vm2145, %v8331, 0
  %v8379 = vsel %vm2145, %v8332, 0
  %v8382 = vsel %vm2145, %v8333, 0
  %v8385 = vsel %vm2145, %v8334, 0
  %v8388 = vsel %vm2145, %v8335, 0
  %v8391 = vsel %vm2145, %v8336, 0
  %v8394 = vsel %vm2145, %v8337, 0
  %v8397 = vsel %vm2145, %v8338, 0
  %v8400 = vsel %vm2145, %v8339, 0
  %v8403 = vsel %vm2145, %v8340, 0
  %v8406 = vsel %vm2145, %v8341, 0
  %v8409 = vsel %vm2145, %v8342, 0
  %v8412 = vsel %vm2145, %v8343, 0
  %v8415 = vsel %vm2145, %v8344, 0
  %v8418 = vsel %vm2145, %v8345, 0
  %v8421 = vsel %vm2145, %v8346, 0
  %v8424 = vsel %vm2145, %v8347, 0
  %v8427 = vsel %vm2145, %v8348, 0
  %v8430 = vsel %vm2145, %v8349, 0
  %v8433 = vsel %vm2145, %v8350, 0
  %v8436 = vsel %vm2145, %v8351, 0
  %v8439 = vsel %vm2145, %v8352, 0
  %v8442 = vsel %vm2145, %v8353, 0
  %v8445 = vsel %vm2145, %v8354, 0
  %v8448 = vsel %vm2145, %v8355, 0
  %v8451 = vsel %vm2145, %v8356, 0
  %v8454 = vsel %vm2145, %v8357, 0
  %v8457 = vsel %vm2242, %v8359, 0
  %8459 = vmatpush.bf16.msra.mxu0 0
  %8460 = vmatpush.bf16.msra.mxu0 0
  %8461 = vmatpush.bf16.msra.mxu0 0
  %8462 = vmatpush.bf16.msra.mxu0 0
  %8463 = vmatpush.bf16.msra.mxu0 0
  %8464 = vmatpush.bf16.msra.mxu0 0
  %8465 = vmatpush.bf16.msra.mxu0 0
  %8466 = vmatpush.bf16.msra.mxu0 %v8457
  %8467 = vmatmul.bf16.gmra.mxu0 %v8361
  %v8468 = vpop.f32.mrf.mxu0
  %v8469 = vadd.f32 0.0, %v8468
  %v8470 = vpop.f32.mrf.mxu0
  %v8471 = vadd.f32 0.0, %v8470
  %8472 = vmatmul.bf16.gmra.mxu0 %v8364
  %v8473 = vpop.f32.mrf.mxu0
  %v8474 = vadd.f32 0.0, %v8473
  %v8475 = vpop.f32.mrf.mxu0
  %v8476 = vadd.f32 0.0, %v8475
  %8477 = vmatmul.bf16.gmra.mxu0 %v8367
  %v8478 = vpop.f32.mrf.mxu0
  %v8479 = vadd.f32 0.0, %v8478
  %v8480 = vpop.f32.mrf.mxu0
  %v8481 = vadd.f32 0.0, %v8480
  %8482 = vmatmul.bf16.gmra.mxu0 %v8370
  %v8483 = vpop.f32.mrf.mxu0
  %v8484 = vadd.f32 0.0, %v8483
  %v8485 = vpop.f32.mrf.mxu0
  %v8486 = vadd.f32 0.0, %v8485
  %8487 = vmatmul.bf16.gmra.mxu0 %v8373
  %v8488 = vpop.f32.mrf.mxu0
  %v8489 = vadd.f32 0.0, %v8488
  %v8490 = vpop.f32.mrf.mxu0
  %v8491 = vadd.f32 0.0, %v8490
  %8492 = vmatmul.bf16.gmra.mxu0 %v8376
  %v8493 = vpop.f32.mrf.mxu0
  %v8494 = vadd.f32 0.0, %v8493
  %v8495 = vpop.f32.mrf.mxu0
  %v8496 = vadd.f32 0.0, %v8495
  %8497 = vmatmul.bf16.gmra.mxu0 %v8379
  %v8498 = vpop.f32.mrf.mxu0
  %v8499 = vadd.f32 0.0, %v8498
  %v8500 = vpop.f32.mrf.mxu0
  %v8501 = vadd.f32 0.0, %v8500
  %8502 = vmatmul.bf16.gmra.mxu0 %v8382
  %v8503 = vpop.f32.mrf.mxu0
  %v8504 = vadd.f32 0.0, %v8503
  %v8505 = vpop.f32.mrf.mxu0
  %v8506 = vadd.f32 0.0, %v8505
  %8507 = vmatmul.bf16.gmra.mxu0 %v8385
  %v8508 = vpop.f32.mrf.mxu0
  %v8509 = vadd.f32 0.0, %v8508
  %v8510 = vpop.f32.mrf.mxu0
  %v8511 = vadd.f32 0.0, %v8510
  %8512 = vmatmul.bf16.gmra.mxu0 %v8388
  %v8513 = vpop.f32.mrf.mxu0
  %v8514 = vadd.f32 0.0, %v8513
  %v8515 = vpop.f32.mrf.mxu0
  %v8516 = vadd.f32 0.0, %v8515
  %8517 = vmatmul.bf16.gmra.mxu0 %v8391
  %v8518 = vpop.f32.mrf.mxu0
  %v8519 = vadd.f32 0.0, %v8518
  %v8520 = vpop.f32.mrf.mxu0
  %v8521 = vadd.f32 0.0, %v8520
  %8522 = vmatmul.bf16.gmra.mxu0 %v8394
  %v8523 = vpop.f32.mrf.mxu0
  %v8524 = vadd.f32 0.0, %v8523
  %v8525 = vpop.f32.mrf.mxu0
  %v8526 = vadd.f32 0.0, %v8525
  %8527 = vmatmul.bf16.gmra.mxu0 %v8397
  %v8528 = vpop.f32.mrf.mxu0
  %v8529 = vadd.f32 0.0, %v8528
  %v8530 = vpop.f32.mrf.mxu0
  %v8531 = vadd.f32 0.0, %v8530
  %8532 = vmatmul.bf16.gmra.mxu0 %v8400
  %v8533 = vpop.f32.mrf.mxu0
  %v8534 = vadd.f32 0.0, %v8533
  %v8535 = vpop.f32.mrf.mxu0
  %v8536 = vadd.f32 0.0, %v8535
  %8537 = vmatmul.bf16.gmra.mxu0 %v8403
  %v8538 = vpop.f32.mrf.mxu0
  %v8539 = vadd.f32 0.0, %v8538
  %v8540 = vpop.f32.mrf.mxu0
  %v8541 = vadd.f32 0.0, %v8540
  %8542 = vmatmul.bf16.gmra.mxu0 %v8406
  %v8543 = vpop.f32.mrf.mxu0
  %v8544 = vadd.f32 0.0, %v8543
  %v8545 = vpop.f32.mrf.mxu0
  %v8546 = vadd.f32 0.0, %v8545
  %8547 = vmatmul.bf16.gmra.mxu0 %v8409
  %v8548 = vpop.f32.mrf.mxu0
  %v8549 = vadd.f32 0.0, %v8548
  %v8550 = vpop.f32.mrf.mxu0
  %v8551 = vadd.f32 0.0, %v8550
  %8552 = vmatmul.bf16.gmra.mxu0 %v8412
  %v8553 = vpop.f32.mrf.mxu0
  %v8554 = vadd.f32 0.0, %v8553
  %v8555 = vpop.f32.mrf.mxu0
  %v8556 = vadd.f32 0.0, %v8555
  %8557 = vmatmul.bf16.gmra.mxu0 %v8415
  %v8558 = vpop.f32.mrf.mxu0
  %v8559 = vadd.f32 0.0, %v8558
  %v8560 = vpop.f32.mrf.mxu0
  %v8561 = vadd.f32 0.0, %v8560
  %8562 = vmatmul.bf16.gmra.mxu0 %v8418
  %v8563 = vpop.f32.mrf.mxu0
  %v8564 = vadd.f32 0.0, %v8563
  %v8565 = vpop.f32.mrf.mxu0
  %v8566 = vadd.f32 0.0, %v8565
  %8567 = vmatmul.bf16.gmra.mxu0 %v8421
  %v8568 = vpop.f32.mrf.mxu0
  %v8569 = vadd.f32 0.0, %v8568
  %v8570 = vpop.f32.mrf.mxu0
  %v8571 = vadd.f32 0.0, %v8570
  %8572 = vmatmul.bf16.gmra.mxu0 %v8424
  %v8573 = vpop.f32.mrf.mxu0
  %v8574 = vadd.f32 0.0, %v8573
  %v8575 = vpop.f32.mrf.mxu0
  %v8576 = vadd.f32 0.0, %v8575
  %8577 = vmatmul.bf16.gmra.mxu0 %v8427
  %v8578 = vpop.f32.mrf.mxu0
  %v8579 = vadd.f32 0.0, %v8578
  %v8580 = vpop.f32.mrf.mxu0
  %v8581 = vadd.f32 0.0, %v8580
  %8582 = vmatmul.bf16.gmra.mxu0 %v8430
  %v8583 = vpop.f32.mrf.mxu0
  %v8584 = vadd.f32 0.0, %v8583
  %v8585 = vpop.f32.mrf.mxu0
  %v8586 = vadd.f32 0.0, %v8585
  %8587 = vmatmul.bf16.gmra.mxu0 %v8433
  %v8588 = vpop.f32.mrf.mxu0
  %v8589 = vadd.f32 0.0, %v8588
  %v8590 = vpop.f32.mrf.mxu0
  %v8591 = vadd.f32 0.0, %v8590
  %8592 = vmatmul.bf16.gmra.mxu0 %v8436
  %v8593 = vpop.f32.mrf.mxu0
  %v8594 = vadd.f32 0.0, %v8593
  %v8595 = vpop.f32.mrf.mxu0
  %v8596 = vadd.f32 0.0, %v8595
  %8597 = vmatmul.bf16.gmra.mxu0 %v8439
  %v8598 = vpop.f32.mrf.mxu0
  %v8599 = vadd.f32 0.0, %v8598
  %v8600 = vpop.f32.mrf.mxu0
  %v8601 = vadd.f32 0.0, %v8600
  %8602 = vmatmul.bf16.gmra.mxu0 %v8442
  %v8603 = vpop.f32.mrf.mxu0
  %v8604 = vadd.f32 0.0, %v8603
  %v8605 = vpop.f32.mrf.mxu0
  %v8606 = vadd.f32 0.0, %v8605
  %8607 = vmatmul.bf16.gmra.mxu0 %v8445
  %v8608 = vpop.f32.mrf.mxu0
  %v8609 = vadd.f32 0.0, %v8608
  %v8610 = vpop.f32.mrf.mxu0
  %v8611 = vadd.f32 0.0, %v8610
  %8612 = vmatmul.bf16.gmra.mxu0 %v8448
  %v8613 = vpop.f32.mrf.mxu0
  %v8614 = vadd.f32 0.0, %v8613
  %v8615 = vpop.f32.mrf.mxu0
  %v8616 = vadd.f32 0.0, %v8615
  %8617 = vmatmul.bf16.gmra.mxu0 %v8451
  %v8618 = vpop.f32.mrf.mxu0
  %v8619 = vadd.f32 0.0, %v8618
  %v8620 = vpop.f32.mrf.mxu0
  %v8621 = vadd.f32 0.0, %v8620
  %8622 = vmatmul.bf16.gmra.mxu0 %v8454
  %v8623 = vpop.f32.mrf.mxu0
  %v8624 = vadd.f32 0.0, %v8623
  %v8625 = vpop.f32.mrf.mxu0
  %v8626 = vadd.f32 0.0, %v8625
  %8627 = vdwg.mxu0
  %v8628 = vadd.f32 %v8134, %v8469
  %v8629 = vadd.f32 %v8135, %v8471
  %v8630 = vadd.f32 %v8136, %v8474
  %v8631 = vadd.f32 %v8137, %v8476
  %v8632 = vadd.f32 %v8138, %v8479
  %v8633 = vadd.f32 %v8139, %v8481
  %v8634 = vadd.f32 %v8140, %v8484
  %v8635 = vadd.f32 %v8141, %v8486
  %v8636 = vadd.f32 %v8142, %v8489
  %v8637 = vadd.f32 %v8143, %v8491
  %v8638 = vadd.f32 %v8144, %v8494
  %v8639 = vadd.f32 %v8145, %v8496
  %v8640 = vadd.f32 %v8146, %v8499
  %v8641 = vadd.f32 %v8147, %v8501
  %v8642 = vadd.f32 %v8148, %v8504
  %v8643 = vadd.f32 %v8149, %v8506
  %v8644 = vadd.f32 %v8150, %v8509
  %v8645 = vadd.f32 %v8151, %v8511
  %v8646 = vadd.f32 %v8152, %v8514
  %v8647 = vadd.f32 %v8153, %v8516
  %v8648 = vadd.f32 %v8154, %v8519
  %v8649 = vadd.f32 %v8155, %v8521
  %v8650 = vadd.f32 %v8156, %v8524
  %v8651 = vadd.f32 %v8157, %v8526
  %v8652 = vadd.f32 %v8158, %v8529
  %v8653 = vadd.f32 %v8159, %v8531
  %v8654 = vadd.f32 %v8160, %v8534
  %v8655 = vadd.f32 %v8161, %v8536
  %v8656 = vadd.f32 %v8162, %v8539
  %v8657 = vadd.f32 %v8163, %v8541
  %v8658 = vadd.f32 %v8164, %v8544
  %v8659 = vadd.f32 %v8165, %v8546
  %v8660 = vadd.f32 %v8166, %v8549
  %v8661 = vadd.f32 %v8167, %v8551
  %v8662 = vadd.f32 %v8168, %v8554
  %v8663 = vadd.f32 %v8169, %v8556
  %v8664 = vadd.f32 %v8170, %v8559
  %v8665 = vadd.f32 %v8171, %v8561
  %v8666 = vadd.f32 %v8172, %v8564
  %v8667 = vadd.f32 %v8173, %v8566
  %v8668 = vadd.f32 %v8174, %v8569
  %v8669 = vadd.f32 %v8175, %v8571
  %v8670 = vadd.f32 %v8176, %v8574
  %v8671 = vadd.f32 %v8177, %v8576
  %v8672 = vadd.f32 %v8178, %v8579
  %v8673 = vadd.f32 %v8179, %v8581
  %v8674 = vadd.f32 %v8180, %v8584
  %v8675 = vadd.f32 %v8181, %v8586
  %v8676 = vadd.f32 %v8182, %v8589
  %v8677 = vadd.f32 %v8183, %v8591
  %v8678 = vadd.f32 %v8184, %v8594
  %v8679 = vadd.f32 %v8185, %v8596
  %v8680 = vadd.f32 %v8186, %v8599
  %v8681 = vadd.f32 %v8187, %v8601
  %v8682 = vadd.f32 %v8188, %v8604
  %v8683 = vadd.f32 %v8189, %v8606
  %v8684 = vadd.f32 %v8190, %v8609
  %v8685 = vadd.f32 %v8191, %v8611
  %v8686 = vadd.f32 %v8192, %v8614
  %v8687 = vadd.f32 %v8193, %v8616
  %v8688 = vadd.f32 %v8194, %v8619
  %v8689 = vadd.f32 %v8195, %v8621
  %v8690 = vadd.f32 %v8196, %v8624
  %v8691 = vadd.f32 %v8197, %v8626
  %v8692 = vld [vmem:[#allocation2 + $0x18] sm:$0xff]
  %v8693 = vld [vmem:[#allocation2 + $0x20] sm:$0xff]
  %v8694 = vld [vmem:[#allocation2 + $0x28] sm:$0xff]
  %v8695 = vld [vmem:[#allocation2 + $0x30] sm:$0xff]
  %v8696 = vld [vmem:[#allocation2 + $0x38] sm:$0xff]
  %v8697 = vld [vmem:[#allocation2 + $0x40] sm:$0xff]
  %v8698 = vld [vmem:[#allocation2 + $0x48] sm:$0xff]
  %v8699 = vld [vmem:[#allocation2 + $0x50] sm:$0xff]
  %v8700 = vld [vmem:[#allocation2 + $0x58] sm:$0xff]
  %v8701 = vld [vmem:[#allocation2 + $0x60] sm:$0xff]
  %v8702 = vld [vmem:[#allocation2 + $0x68] sm:$0xff]
  %v8703 = vld [vmem:[#allocation2 + $0x70] sm:$0xff]
  %v8704 = vld [vmem:[#allocation2 + $0x78] sm:$0xff]
  %v8705 = vld [vmem:[#allocation2 + $0x80] sm:$0xff]
  %v8706 = vld [vmem:[#allocation2 + $0x88] sm:$0xff]
  %v8707 = vld [vmem:[#allocation2 + $0x90] sm:$0xff]
  %v8708 = vld [vmem:[#allocation2 + $0x98] sm:$0xff]
  %v8709 = vld [vmem:[#allocation2 + $0xa0] sm:$0xff]
  %v8710 = vld [vmem:[#allocation2 + $0xa8] sm:$0xff]
  %v8711 = vld [vmem:[#allocation2 + $0xb0] sm:$0xff]
  %v8712 = vld [vmem:[#allocation2 + $0xb8] sm:$0xff]
  %v8713 = vld [vmem:[#allocation2 + $0xc0] sm:$0xff]
  %v8714 = vld [vmem:[#allocation2 + $0xc8] sm:$0xff]
  %v8715 = vld [vmem:[#allocation2 + $0xd0] sm:$0xff]
  %v8716 = vld [vmem:[#allocation2 + $0xd8] sm:$0xff]
  %v8717 = vld [vmem:[#allocation2 + $0xe0] sm:$0xff]
  %v8718 = vld [vmem:[#allocation2 + $0xe8] sm:$0xff]
  %v8719 = vld [vmem:[#allocation2 + $0xf0] sm:$0xff]
  %v8720 = vld [vmem:[#allocation2 + $0xf8] sm:$0xff]
  %v8721 = vld [vmem:[#allocation2 + $0x100] sm:$0xff]
  %v8722 = vld [vmem:[#allocation2 + $0x108] sm:$0xff]
  %v8723 = vld [vmem:[#allocation2 + $0x110] sm:$0xff]
  %v8724 = vld [vmem:[#allocation2 + $0x118] sm:$0xff]
  %v8725 = vld [vmem:[#allocation2 + $0x120] sm:$0xff]
  %v8726 = vld [vmem:[#allocation2 + $0x128] sm:$0xff]
  %v8727 = vld [vmem:[#allocation2 + $0x130] sm:$0xff]
  %v8728 = vld [vmem:[#allocation2 + $0x138] sm:$0xff]
  %v8729 = vld [vmem:[#allocation2 + $0x140] sm:$0xff]
  %v8730 = vld [vmem:[#allocation2 + $0x148] sm:$0xff]
  %v8731 = vld [vmem:[#allocation2 + $0x150] sm:$0xff]
  %v8732 = vld [vmem:[#allocation2 + $0x158] sm:$0xff]
  %v8733 = vld [vmem:[#allocation2 + $0x160] sm:$0xff]
  %v8734 = vld [vmem:[#allocation2 + $0x168] sm:$0xff]
  %v8735 = vld [vmem:[#allocation2 + $0x170] sm:$0xff]
  %v8736 = vld [vmem:[#allocation2 + $0x178] sm:$0xff]
  %v8737 = vld [vmem:[#allocation2 + $0x180] sm:$0xff]
  %v8738 = vld [vmem:[#allocation2 + $0x188] sm:$0xff]
  %v8739 = vld [vmem:[#allocation2 + $0x190] sm:$0xff]
  %v8740 = vld [vmem:[#allocation2 + $0x198] sm:$0xff]
  %v8741 = vld [vmem:[#allocation2 + $0x1a0] sm:$0xff]
  %v8742 = vld [vmem:[#allocation2 + $0x1a8] sm:$0xff]
  %v8743 = vld [vmem:[#allocation2 + $0x1b0] sm:$0xff]
  %v8744 = vld [vmem:[#allocation2 + $0x1b8] sm:$0xff]
  %v8745 = vld [vmem:[#allocation2 + $0x1c0] sm:$0xff]
  %v8746 = vld [vmem:[#allocation2 + $0x1c8] sm:$0xff]
  %v8747 = vld [vmem:[#allocation2 + $0x1d0] sm:$0xff]
  %v8748 = vld [vmem:[#allocation2 + $0x1d8] sm:$0xff]
  %v8749 = vld [vmem:[#allocation2 + $0x1e0] sm:$0xff]
  %v8750 = vld [vmem:[#allocation2 + $0x1e8] sm:$0xff]
  %v8751 = vld [vmem:[#allocation2 + $0x1f0] sm:$0xff]
  %v8752 = vld [vmem:[#allocation2 + $0x1f8] sm:$0xff]
  %v8753 = vld [vmem:[#allocation2 + $0x200] sm:$0xff]
  %v8754 = vld [vmem:[#allocation2 + $0x208] sm:$0xff]
  %v8755 = vld [vmem:[#allocation2 + $0x210] sm:$0xff]
  %v8756 = vsel %vm3863, %v8692, 0.0
  %v8757 = vsel %vm3864, %v8693, 0.0
  %v8758 = vsel %vm3865, %v8694, 0.0
  %v8759 = vsel %vm3866, %v8695, 0.0
  %v8760 = vsel %vm3867, %v8696, 0.0
  %v8761 = vsel %vm3868, %v8697, 0.0
  %v8762 = vsel %vm3869, %v8698, 0.0
  %v8763 = vsel %vm3870, %v8699, 0.0
  %v8764 = vsel %vm3871, %v8700, 0.0
  %v8765 = vsel %vm3872, %v8701, 0.0
  %v8766 = vsel %vm3873, %v8702, 0.0
  %v8767 = vsel %vm3874, %v8703, 0.0
  %v8768 = vsel %vm3875, %v8704, 0.0
  %v8769 = vsel %vm3876, %v8705, 0.0
  %v8770 = vsel %vm3877, %v8706, 0.0
  %v8771 = vsel %vm3878, %v8707, 0.0
  %v8772 = vsel %vm3879, %v8708, 0.0
  %v8773 = vsel %vm3880, %v8709, 0.0
  %v8774 = vsel %vm3881, %v8710, 0.0
  %v8775 = vsel %vm3882, %v8711, 0.0
  %v8776 = vsel %vm3883, %v8712, 0.0
  %v8777 = vsel %vm3884, %v8713, 0.0
  %v8778 = vsel %vm3885, %v8714, 0.0
  %v8779 = vsel %vm3886, %v8715, 0.0
  %v8780 = vsel %vm3887, %v8716, 0.0
  %v8781 = vsel %vm3888, %v8717, 0.0
  %v8782 = vsel %vm3889, %v8718, 0.0
  %v8783 = vsel %vm3890, %v8719, 0.0
  %v8784 = vsel %vm3891, %v8720, 0.0
  %v8785 = vsel %vm3892, %v8721, 0.0
  %v8786 = vsel %vm3893, %v8722, 0.0
  %v8787 = vsel %vm3894, %v8723, 0.0
  %v8788 = vsel %vm3895, %v8724, 0.0
  %v8789 = vsel %vm3896, %v8725, 0.0
  %v8790 = vsel %vm3897, %v8726, 0.0
  %v8791 = vsel %vm3898, %v8727, 0.0
  %v8792 = vsel %vm3899, %v8728, 0.0
  %v8793 = vsel %vm3900, %v8729, 0.0
  %v8794 = vsel %vm3901, %v8730, 0.0
  %v8795 = vsel %vm3902, %v8731, 0.0
  %v8796 = vsel %vm3903, %v8732, 0.0
  %v8797 = vsel %vm3904, %v8733, 0.0
  %v8798 = vsel %vm3905, %v8734, 0.0
  %v8799 = vsel %vm3906, %v8735, 0.0
  %v8800 = vsel %vm3907, %v8736, 0.0
  %v8801 = vsel %vm3908, %v8737, 0.0
  %v8802 = vsel %vm3909, %v8738, 0.0
  %v8803 = vsel %vm3910, %v8739, 0.0
  %v8804 = vsel %vm3911, %v8740, 0.0
  %v8805 = vsel %vm3912, %v8741, 0.0
  %v8806 = vsel %vm3913, %v8742, 0.0
  %v8807 = vsel %vm3914, %v8743, 0.0
  %v8808 = vsel %vm3915, %v8744, 0.0
  %v8809 = vsel %vm3916, %v8745, 0.0
  %v8810 = vsel %vm3917, %v8746, 0.0
  %v8811 = vsel %vm3918, %v8747, 0.0
  %v8812 = vsel %vm3919, %v8748, 0.0
  %v8813 = vsel %vm3920, %v8749, 0.0
  %v8814 = vsel %vm3921, %v8750, 0.0
  %v8815 = vsel %vm3922, %v8751, 0.0
  %v8816 = vsel %vm3923, %v8752, 0.0
  %v8817 = vsel %vm3924, %v8753, 0.0
  %v8818 = vsel %vm3925, %v8754, 0.0
  %v8819 = vsel %vm3926, %v8755, 0.0
  %v8820 = vpack.c.bf16 %v8757, %v8756
  %v8821 = vpack.c.bf16 %v8759, %v8758
  %v8822 = vpack.c.bf16 %v8761, %v8760
  %v8823 = vpack.c.bf16 %v8763, %v8762
  %v8824 = vpack.c.bf16 %v8765, %v8764
  %v8825 = vpack.c.bf16 %v8767, %v8766
  %v8826 = vpack.c.bf16 %v8769, %v8768
  %v8827 = vpack.c.bf16 %v8771, %v8770
  %v8828 = vpack.c.bf16 %v8773, %v8772
  %v8829 = vpack.c.bf16 %v8775, %v8774
  %v8830 = vpack.c.bf16 %v8777, %v8776
  %v8831 = vpack.c.bf16 %v8779, %v8778
  %v8832 = vpack.c.bf16 %v8781, %v8780
  %v8833 = vpack.c.bf16 %v8783, %v8782
  %v8834 = vpack.c.bf16 %v8785, %v8784
  %v8835 = vpack.c.bf16 %v8787, %v8786
  %v8836 = vpack.c.bf16 %v8789, %v8788
  %v8837 = vpack.c.bf16 %v8791, %v8790
  %v8838 = vpack.c.bf16 %v8793, %v8792
  %v8839 = vpack.c.bf16 %v8795, %v8794
  %v8840 = vpack.c.bf16 %v8797, %v8796
  %v8841 = vpack.c.bf16 %v8799, %v8798
  %v8842 = vpack.c.bf16 %v8801, %v8800
  %v8843 = vpack.c.bf16 %v8803, %v8802
  %v8844 = vpack.c.bf16 %v8805, %v8804
  %v8845 = vpack.c.bf16 %v8807, %v8806
  %v8846 = vpack.c.bf16 %v8809, %v8808
  %v8847 = vpack.c.bf16 %v8811, %v8810
  %v8848 = vpack.c.bf16 %v8813, %v8812
  %v8849 = vpack.c.bf16 %v8815, %v8814
  %v8850 = vpack.c.bf16 %v8817, %v8816
  %v8851 = vpack.c.bf16 %v8819, %v8818
  %s8852 = scalar_lea.vmem %s2, 8
  %v8853 = vld [vmem:[%s8852] sm:$0x3]
  %v8855 = vsel %vm2145, %v8820, 0
  %v8858 = vsel %vm2145, %v8821, 0
  %v8861 = vsel %vm2145, %v8822, 0
  %v8864 = vsel %vm2145, %v8823, 0
  %v8867 = vsel %vm2145, %v8824, 0
  %v8870 = vsel %vm2145, %v8825, 0
  %v8873 = vsel %vm2145, %v8826, 0
  %v8876 = vsel %vm2145, %v8827, 0
  %v8879 = vsel %vm2145, %v8828, 0
  %v8882 = vsel %vm2145, %v8829, 0
  %v8885 = vsel %vm2145, %v8830, 0
  %v8888 = vsel %vm2145, %v8831, 0
  %v8891 = vsel %vm2145, %v8832, 0
  %v8894 = vsel %vm2145, %v8833, 0
  %v8897 = vsel %vm2145, %v8834, 0
  %v8900 = vsel %vm2145, %v8835, 0
  %v8903 = vsel %vm2145, %v8836, 0
  %v8906 = vsel %vm2145, %v8837, 0
  %v8909 = vsel %vm2145, %v8838, 0
  %v8912 = vsel %vm2145, %v8839, 0
  %v8915 = vsel %vm2145, %v8840, 0
  %v8918 = vsel %vm2145, %v8841, 0
  %v8921 = vsel %vm2145, %v8842, 0
  %v8924 = vsel %vm2145, %v8843, 0
  %v8927 = vsel %vm2145, %v8844, 0
  %v8930 = vsel %vm2145, %v8845, 0
  %v8933 = vsel %vm2145, %v8846, 0
  %v8936 = vsel %vm2145, %v8847, 0
  %v8939 = vsel %vm2145, %v8848, 0
  %v8942 = vsel %vm2145, %v8849, 0
  %v8945 = vsel %vm2145, %v8850, 0
  %v8948 = vsel %vm2145, %v8851, 0
  %v8951 = vsel %vm2242, %v8853, 0
  %8953 = vmatpush.bf16.msra.mxu0 0
  %8954 = vmatpush.bf16.msra.mxu0 0
  %8955 = vmatpush.bf16.msra.mxu0 0
  %8956 = vmatpush.bf16.msra.mxu0 0
  %8957 = vmatpush.bf16.msra.mxu0 0
  %8958 = vmatpush.bf16.msra.mxu0 0
  %8959 = vmatpush.bf16.msra.mxu0 0
  %8960 = vmatpush.bf16.msra.mxu0 %v8951
  %8961 = vmatmul.bf16.gmra.mxu0 %v8855
  %v8962 = vpop.f32.mrf.mxu0
  %v8963 = vadd.f32 0.0, %v8962
  %v8964 = vpop.f32.mrf.mxu0
  %v8965 = vadd.f32 0.0, %v8964
  %8966 = vmatmul.bf16.gmra.mxu0 %v8858
  %v8967 = vpop.f32.mrf.mxu0
  %v8968 = vadd.f32 0.0, %v8967
  %v8969 = vpop.f32.mrf.mxu0
  %v8970 = vadd.f32 0.0, %v8969
  %8971 = vmatmul.bf16.gmra.mxu0 %v8861
  %v8972 = vpop.f32.mrf.mxu0
  %v8973 = vadd.f32 0.0, %v8972
  %v8974 = vpop.f32.mrf.mxu0
  %v8975 = vadd.f32 0.0, %v8974
  %8976 = vmatmul.bf16.gmra.mxu0 %v8864
  %v8977 = vpop.f32.mrf.mxu0
  %v8978 = vadd.f32 0.0, %v8977
  %v8979 = vpop.f32.mrf.mxu0
  %v8980 = vadd.f32 0.0, %v8979
  %8981 = vmatmul.bf16.gmra.mxu0 %v8867
  %v8982 = vpop.f32.mrf.mxu0
  %v8983 = vadd.f32 0.0, %v8982
  %v8984 = vpop.f32.mrf.mxu0
  %v8985 = vadd.f32 0.0, %v8984
  %8986 = vmatmul.bf16.gmra.mxu0 %v8870
  %v8987 = vpop.f32.mrf.mxu0
  %v8988 = vadd.f32 0.0, %v8987
  %v8989 = vpop.f32.mrf.mxu0
  %v8990 = vadd.f32 0.0, %v8989
  %8991 = vmatmul.bf16.gmra.mxu0 %v8873
  %v8992 = vpop.f32.mrf.mxu0
  %v8993 = vadd.f32 0.0, %v8992
  %v8994 = vpop.f32.mrf.mxu0
  %v8995 = vadd.f32 0.0, %v8994
  %8996 = vmatmul.bf16.gmra.mxu0 %v8876
  %v8997 = vpop.f32.mrf.mxu0
  %v8998 = vadd.f32 0.0, %v8997
  %v8999 = vpop.f32.mrf.mxu0
  %v9000 = vadd.f32 0.0, %v8999
  %9001 = vmatmul.bf16.gmra.mxu0 %v8879
  %v9002 = vpop.f32.mrf.mxu0
  %v9003 = vadd.f32 0.0, %v9002
  %v9004 = vpop.f32.mrf.mxu0
  %v9005 = vadd.f32 0.0, %v9004
  %9006 = vmatmul.bf16.gmra.mxu0 %v8882
  %v9007 = vpop.f32.mrf.mxu0
  %v9008 = vadd.f32 0.0, %v9007
  %v9009 = vpop.f32.mrf.mxu0
  %v9010 = vadd.f32 0.0, %v9009
  %9011 = vmatmul.bf16.gmra.mxu0 %v8885
  %v9012 = vpop.f32.mrf.mxu0
  %v9013 = vadd.f32 0.0, %v9012
  %v9014 = vpop.f32.mrf.mxu0
  %v9015 = vadd.f32 0.0, %v9014
  %9016 = vmatmul.bf16.gmra.mxu0 %v8888
  %v9017 = vpop.f32.mrf.mxu0
  %v9018 = vadd.f32 0.0, %v9017
  %v9019 = vpop.f32.mrf.mxu0
  %v9020 = vadd.f32 0.0, %v9019
  %9021 = vmatmul.bf16.gmra.mxu0 %v8891
  %v9022 = vpop.f32.mrf.mxu0
  %v9023 = vadd.f32 0.0, %v9022
  %v9024 = vpop.f32.mrf.mxu0
  %v9025 = vadd.f32 0.0, %v9024
  %9026 = vmatmul.bf16.gmra.mxu0 %v8894
  %v9027 = vpop.f32.mrf.mxu0
  %v9028 = vadd.f32 0.0, %v9027
  %v9029 = vpop.f32.mrf.mxu0
  %v9030 = vadd.f32 0.0, %v9029
  %9031 = vmatmul.bf16.gmra.mxu0 %v8897
  %v9032 = vpop.f32.mrf.mxu0
  %v9033 = vadd.f32 0.0, %v9032
  %v9034 = vpop.f32.mrf.mxu0
  %v9035 = vadd.f32 0.0, %v9034
  %9036 = vmatmul.bf16.gmra.mxu0 %v8900
  %v9037 = vpop.f32.mrf.mxu0
  %v9038 = vadd.f32 0.0, %v9037
  %v9039 = vpop.f32.mrf.mxu0
  %v9040 = vadd.f32 0.0, %v9039
  %9041 = vmatmul.bf16.gmra.mxu0 %v8903
  %v9042 = vpop.f32.mrf.mxu0
  %v9043 = vadd.f32 0.0, %v9042
  %v9044 = vpop.f32.mrf.mxu0
  %v9045 = vadd.f32 0.0, %v9044
  %9046 = vmatmul.bf16.gmra.mxu0 %v8906
  %v9047 = vpop.f32.mrf.mxu0
  %v9048 = vadd.f32 0.0, %v9047
  %v9049 = vpop.f32.mrf.mxu0
  %v9050 = vadd.f32 0.0, %v9049
  %9051 = vmatmul.bf16.gmra.mxu0 %v8909
  %v9052 = vpop.f32.mrf.mxu0
  %v9053 = vadd.f32 0.0, %v9052
  %v9054 = vpop.f32.mrf.mxu0
  %v9055 = vadd.f32 0.0, %v9054
  %9056 = vmatmul.bf16.gmra.mxu0 %v8912
  %v9057 = vpop.f32.mrf.mxu0
  %v9058 = vadd.f32 0.0, %v9057
  %v9059 = vpop.f32.mrf.mxu0
  %v9060 = vadd.f32 0.0, %v9059
  %9061 = vmatmul.bf16.gmra.mxu0 %v8915
  %v9062 = vpop.f32.mrf.mxu0
  %v9063 = vadd.f32 0.0, %v9062
  %v9064 = vpop.f32.mrf.mxu0
  %v9065 = vadd.f32 0.0, %v9064
  %9066 = vmatmul.bf16.gmra.mxu0 %v8918
  %v9067 = vpop.f32.mrf.mxu0
  %v9068 = vadd.f32 0.0, %v9067
  %v9069 = vpop.f32.mrf.mxu0
  %v9070 = vadd.f32 0.0, %v9069
  %9071 = vmatmul.bf16.gmra.mxu0 %v8921
  %v9072 = vpop.f32.mrf.mxu0
  %v9073 = vadd.f32 0.0, %v9072
  %v9074 = vpop.f32.mrf.mxu0
  %v9075 = vadd.f32 0.0, %v9074
  %9076 = vmatmul.bf16.gmra.mxu0 %v8924
  %v9077 = vpop.f32.mrf.mxu0
  %v9078 = vadd.f32 0.0, %v9077
  %v9079 = vpop.f32.mrf.mxu0
  %v9080 = vadd.f32 0.0, %v9079
  %9081 = vmatmul.bf16.gmra.mxu0 %v8927
  %v9082 = vpop.f32.mrf.mxu0
  %v9083 = vadd.f32 0.0, %v9082
  %v9084 = vpop.f32.mrf.mxu0
  %v9085 = vadd.f32 0.0, %v9084
  %9086 = vmatmul.bf16.gmra.mxu0 %v8930
  %v9087 = vpop.f32.mrf.mxu0
  %v9088 = vadd.f32 0.0, %v9087
  %v9089 = vpop.f32.mrf.mxu0
  %v9090 = vadd.f32 0.0, %v9089
  %9091 = vmatmul.bf16.gmra.mxu0 %v8933
  %v9092 = vpop.f32.mrf.mxu0
  %v9093 = vadd.f32 0.0, %v9092
  %v9094 = vpop.f32.mrf.mxu0
  %v9095 = vadd.f32 0.0, %v9094
  %9096 = vmatmul.bf16.gmra.mxu0 %v8936
  %v9097 = vpop.f32.mrf.mxu0
  %v9098 = vadd.f32 0.0, %v9097
  %v9099 = vpop.f32.mrf.mxu0
  %v9100 = vadd.f32 0.0, %v9099
  %9101 = vmatmul.bf16.gmra.mxu0 %v8939
  %v9102 = vpop.f32.mrf.mxu0
  %v9103 = vadd.f32 0.0, %v9102
  %v9104 = vpop.f32.mrf.mxu0
  %v9105 = vadd.f32 0.0, %v9104
  %9106 = vmatmul.bf16.gmra.mxu0 %v8942
  %v9107 = vpop.f32.mrf.mxu0
  %v9108 = vadd.f32 0.0, %v9107
  %v9109 = vpop.f32.mrf.mxu0
  %v9110 = vadd.f32 0.0, %v9109
  %9111 = vmatmul.bf16.gmra.mxu0 %v8945
  %v9112 = vpop.f32.mrf.mxu0
  %v9113 = vadd.f32 0.0, %v9112
  %v9114 = vpop.f32.mrf.mxu0
  %v9115 = vadd.f32 0.0, %v9114
  %9116 = vmatmul.bf16.gmra.mxu0 %v8948
  %v9117 = vpop.f32.mrf.mxu0
  %v9118 = vadd.f32 0.0, %v9117
  %v9119 = vpop.f32.mrf.mxu0
  %v9120 = vadd.f32 0.0, %v9119
  %9121 = vdwg.mxu0
  %v9122 = vadd.f32 %v8628, %v8963
  %v9123 = vadd.f32 %v8629, %v8965
  %v9124 = vadd.f32 %v8630, %v8968
  %v9125 = vadd.f32 %v8631, %v8970
  %v9126 = vadd.f32 %v8632, %v8973
  %v9127 = vadd.f32 %v8633, %v8975
  %v9128 = vadd.f32 %v8634, %v8978
  %v9129 = vadd.f32 %v8635, %v8980
  %v9130 = vadd.f32 %v8636, %v8983
  %v9131 = vadd.f32 %v8637, %v8985
  %v9132 = vadd.f32 %v8638, %v8988
  %v9133 = vadd.f32 %v8639, %v8990
  %v9134 = vadd.f32 %v8640, %v8993
  %v9135 = vadd.f32 %v8641, %v8995
  %v9136 = vadd.f32 %v8642, %v8998
  %v9137 = vadd.f32 %v8643, %v9000
  %v9138 = vadd.f32 %v8644, %v9003
  %v9139 = vadd.f32 %v8645, %v9005
  %v9140 = vadd.f32 %v8646, %v9008
  %v9141 = vadd.f32 %v8647, %v9010
  %v9142 = vadd.f32 %v8648, %v9013
  %v9143 = vadd.f32 %v8649, %v9015
  %v9144 = vadd.f32 %v8650, %v9018
  %v9145 = vadd.f32 %v8651, %v9020
  %v9146 = vadd.f32 %v8652, %v9023
  %v9147 = vadd.f32 %v8653, %v9025
  %v9148 = vadd.f32 %v8654, %v9028
  %v9149 = vadd.f32 %v8655, %v9030
  %v9150 = vadd.f32 %v8656, %v9033
  %v9151 = vadd.f32 %v8657, %v9035
  %v9152 = vadd.f32 %v8658, %v9038
  %v9153 = vadd.f32 %v8659, %v9040
  %v9154 = vadd.f32 %v8660, %v9043
  %v9155 = vadd.f32 %v8661, %v9045
  %v9156 = vadd.f32 %v8662, %v9048
  %v9157 = vadd.f32 %v8663, %v9050
  %v9158 = vadd.f32 %v8664, %v9053
  %v9159 = vadd.f32 %v8665, %v9055
  %v9160 = vadd.f32 %v8666, %v9058
  %v9161 = vadd.f32 %v8667, %v9060
  %v9162 = vadd.f32 %v8668, %v9063
  %v9163 = vadd.f32 %v8669, %v9065
  %v9164 = vadd.f32 %v8670, %v9068
  %v9165 = vadd.f32 %v8671, %v9070
  %v9166 = vadd.f32 %v8672, %v9073
  %v9167 = vadd.f32 %v8673, %v9075
  %v9168 = vadd.f32 %v8674, %v9078
  %v9169 = vadd.f32 %v8675, %v9080
  %v9170 = vadd.f32 %v8676, %v9083
  %v9171 = vadd.f32 %v8677, %v9085
  %v9172 = vadd.f32 %v8678, %v9088
  %v9173 = vadd.f32 %v8679, %v9090
  %v9174 = vadd.f32 %v8680, %v9093
  %v9175 = vadd.f32 %v8681, %v9095
  %v9176 = vadd.f32 %v8682, %v9098
  %v9177 = vadd.f32 %v8683, %v9100
  %v9178 = vadd.f32 %v8684, %v9103
  %v9179 = vadd.f32 %v8685, %v9105
  %v9180 = vadd.f32 %v8686, %v9108
  %v9181 = vadd.f32 %v8687, %v9110
  %v9182 = vadd.f32 %v8688, %v9113
  %v9183 = vadd.f32 %v8689, %v9115
  %v9184 = vadd.f32 %v8690, %v9118
  %v9185 = vadd.f32 %v8691, %v9120
  %v9186 = vld [vmem:[#allocation2 + $0x19] sm:$0xff]
  %v9187 = vld [vmem:[#allocation2 + $0x21] sm:$0xff]
  %v9188 = vld [vmem:[#allocation2 + $0x29] sm:$0xff]
  %v9189 = vld [vmem:[#allocation2 + $0x31] sm:$0xff]
  %v9190 = vld [vmem:[#allocation2 + $0x39] sm:$0xff]
  %v9191 = vld [vmem:[#allocation2 + $0x41] sm:$0xff]
  %v9192 = vld [vmem:[#allocation2 + $0x49] sm:$0xff]
  %v9193 = vld [vmem:[#allocation2 + $0x51] sm:$0xff]
  %v9194 = vld [vmem:[#allocation2 + $0x59] sm:$0xff]
  %v9195 = vld [vmem:[#allocation2 + $0x61] sm:$0xff]
  %v9196 = vld [vmem:[#allocation2 + $0x69] sm:$0xff]
  %v9197 = vld [vmem:[#allocation2 + $0x71] sm:$0xff]
  %v9198 = vld [vmem:[#allocation2 + $0x79] sm:$0xff]
  %v9199 = vld [vmem:[#allocation2 + $0x81] sm:$0xff]
  %v9200 = vld [vmem:[#allocation2 + $0x89] sm:$0xff]
  %v9201 = vld [vmem:[#allocation2 + $0x91] sm:$0xff]
  %v9202 = vld [vmem:[#allocation2 + $0x99] sm:$0xff]
  %v9203 = vld [vmem:[#allocation2 + $0xa1] sm:$0xff]
  %v9204 = vld [vmem:[#allocation2 + $0xa9] sm:$0xff]
  %v9205 = vld [vmem:[#allocation2 + $0xb1] sm:$0xff]
  %v9206 = vld [vmem:[#allocation2 + $0xb9] sm:$0xff]
  %v9207 = vld [vmem:[#allocation2 + $0xc1] sm:$0xff]
  %v9208 = vld [vmem:[#allocation2 + $0xc9] sm:$0xff]
  %v9209 = vld [vmem:[#allocation2 + $0xd1] sm:$0xff]
  %v9210 = vld [vmem:[#allocation2 + $0xd9] sm:$0xff]
  %v9211 = vld [vmem:[#allocation2 + $0xe1] sm:$0xff]
  %v9212 = vld [vmem:[#allocation2 + $0xe9] sm:$0xff]
  %v9213 = vld [vmem:[#allocation2 + $0xf1] sm:$0xff]
  %v9214 = vld [vmem:[#allocation2 + $0xf9] sm:$0xff]
  %v9215 = vld [vmem:[#allocation2 + $0x101] sm:$0xff]
  %v9216 = vld [vmem:[#allocation2 + $0x109] sm:$0xff]
  %v9217 = vld [vmem:[#allocation2 + $0x111] sm:$0xff]
  %v9218 = vld [vmem:[#allocation2 + $0x119] sm:$0xff]
  %v9219 = vld [vmem:[#allocation2 + $0x121] sm:$0xff]
  %v9220 = vld [vmem:[#allocation2 + $0x129] sm:$0xff]
  %v9221 = vld [vmem:[#allocation2 + $0x131] sm:$0xff]
  %v9222 = vld [vmem:[#allocation2 + $0x139] sm:$0xff]
  %v9223 = vld [vmem:[#allocation2 + $0x141] sm:$0xff]
  %v9224 = vld [vmem:[#allocation2 + $0x149] sm:$0xff]
  %v9225 = vld [vmem:[#allocation2 + $0x151] sm:$0xff]
  %v9226 = vld [vmem:[#allocation2 + $0x159] sm:$0xff]
  %v9227 = vld [vmem:[#allocation2 + $0x161] sm:$0xff]
  %v9228 = vld [vmem:[#allocation2 + $0x169] sm:$0xff]
  %v9229 = vld [vmem:[#allocation2 + $0x171] sm:$0xff]
  %v9230 = vld [vmem:[#allocation2 + $0x179] sm:$0xff]
  %v9231 = vld [vmem:[#allocation2 + $0x181] sm:$0xff]
  %v9232 = vld [vmem:[#allocation2 + $0x189] sm:$0xff]
  %v9233 = vld [vmem:[#allocation2 + $0x191] sm:$0xff]
  %v9234 = vld [vmem:[#allocation2 + $0x199] sm:$0xff]
  %v9235 = vld [vmem:[#allocation2 + $0x1a1] sm:$0xff]
  %v9236 = vld [vmem:[#allocation2 + $0x1a9] sm:$0xff]
  %v9237 = vld [vmem:[#allocation2 + $0x1b1] sm:$0xff]
  %v9238 = vld [vmem:[#allocation2 + $0x1b9] sm:$0xff]
  %v9239 = vld [vmem:[#allocation2 + $0x1c1] sm:$0xff]
  %v9240 = vld [vmem:[#allocation2 + $0x1c9] sm:$0xff]
  %v9241 = vld [vmem:[#allocation2 + $0x1d1] sm:$0xff]
  %v9242 = vld [vmem:[#allocation2 + $0x1d9] sm:$0xff]
  %v9243 = vld [vmem:[#allocation2 + $0x1e1] sm:$0xff]
  %v9244 = vld [vmem:[#allocation2 + $0x1e9] sm:$0xff]
  %v9245 = vld [vmem:[#allocation2 + $0x1f1] sm:$0xff]
  %v9246 = vld [vmem:[#allocation2 + $0x1f9] sm:$0xff]
  %v9247 = vld [vmem:[#allocation2 + $0x201] sm:$0xff]
  %v9248 = vld [vmem:[#allocation2 + $0x209] sm:$0xff]
  %v9249 = vld [vmem:[#allocation2 + $0x211] sm:$0xff]
  %v9250 = vsel %vm4421, %v9186, 0.0
  %v9251 = vsel %vm4422, %v9187, 0.0
  %v9252 = vsel %vm4423, %v9188, 0.0
  %v9253 = vsel %vm4424, %v9189, 0.0
  %v9254 = vsel %vm4425, %v9190, 0.0
  %v9255 = vsel %vm4426, %v9191, 0.0
  %v9256 = vsel %vm4427, %v9192, 0.0
  %v9257 = vsel %vm4428, %v9193, 0.0
  %v9258 = vsel %vm4429, %v9194, 0.0
  %v9259 = vsel %vm4430, %v9195, 0.0
  %v9260 = vsel %vm4431, %v9196, 0.0
  %v9261 = vsel %vm4432, %v9197, 0.0
  %v9262 = vsel %vm4433, %v9198, 0.0
  %v9263 = vsel %vm4434, %v9199, 0.0
  %v9264 = vsel %vm4435, %v9200, 0.0
  %v9265 = vsel %vm4436, %v9201, 0.0
  %v9266 = vsel %vm4437, %v9202, 0.0
  %v9267 = vsel %vm4438, %v9203, 0.0
  %v9268 = vsel %vm4439, %v9204, 0.0
  %v9269 = vsel %vm4440, %v9205, 0.0
  %v9270 = vsel %vm4441, %v9206, 0.0
  %v9271 = vsel %vm4442, %v9207, 0.0
  %v9272 = vsel %vm4443, %v9208, 0.0
  %v9273 = vsel %vm4444, %v9209, 0.0
  %v9274 = vsel %vm4445, %v9210, 0.0
  %v9275 = vsel %vm4446, %v9211, 0.0
  %v9276 = vsel %vm4447, %v9212, 0.0
  %v9277 = vsel %vm4448, %v9213, 0.0
  %v9278 = vsel %vm4449, %v9214, 0.0
  %v9279 = vsel %vm4450, %v9215, 0.0
  %v9280 = vsel %vm4451, %v9216, 0.0
  %v9281 = vsel %vm4452, %v9217, 0.0
  %v9282 = vsel %vm4453, %v9218, 0.0
  %v9283 = vsel %vm4454, %v9219, 0.0
  %v9284 = vsel %vm4455, %v9220, 0.0
  %v9285 = vsel %vm4456, %v9221, 0.0
  %v9286 = vsel %vm4457, %v9222, 0.0
  %v9287 = vsel %vm4458, %v9223, 0.0
  %v9288 = vsel %vm4459, %v9224, 0.0
  %v9289 = vsel %vm4460, %v9225, 0.0
  %v9290 = vsel %vm4461, %v9226, 0.0
  %v9291 = vsel %vm4462, %v9227, 0.0
  %v9292 = vsel %vm4463, %v9228, 0.0
  %v9293 = vsel %vm4464, %v9229, 0.0
  %v9294 = vsel %vm4465, %v9230, 0.0
  %v9295 = vsel %vm4466, %v9231, 0.0
  %v9296 = vsel %vm4467, %v9232, 0.0
  %v9297 = vsel %vm4468, %v9233, 0.0
  %v9298 = vsel %vm4469, %v9234, 0.0
  %v9299 = vsel %vm4470, %v9235, 0.0
  %v9300 = vsel %vm4471, %v9236, 0.0
  %v9301 = vsel %vm4472, %v9237, 0.0
  %v9302 = vsel %vm4473, %v9238, 0.0
  %v9303 = vsel %vm4474, %v9239, 0.0
  %v9304 = vsel %vm4475, %v9240, 0.0
  %v9305 = vsel %vm4476, %v9241, 0.0
  %v9306 = vsel %vm4477, %v9242, 0.0
  %v9307 = vsel %vm4478, %v9243, 0.0
  %v9308 = vsel %vm4479, %v9244, 0.0
  %v9309 = vsel %vm4480, %v9245, 0.0
  %v9310 = vsel %vm4481, %v9246, 0.0
  %v9311 = vsel %vm4482, %v9247, 0.0
  %v9312 = vsel %vm4483, %v9248, 0.0
  %v9313 = vsel %vm4484, %v9249, 0.0
  %v9314 = vpack.c.bf16 %v9251, %v9250
  %v9315 = vpack.c.bf16 %v9253, %v9252
  %v9316 = vpack.c.bf16 %v9255, %v9254
  %v9317 = vpack.c.bf16 %v9257, %v9256
  %v9318 = vpack.c.bf16 %v9259, %v9258
  %v9319 = vpack.c.bf16 %v9261, %v9260
  %v9320 = vpack.c.bf16 %v9263, %v9262
  %v9321 = vpack.c.bf16 %v9265, %v9264
  %v9322 = vpack.c.bf16 %v9267, %v9266
  %v9323 = vpack.c.bf16 %v9269, %v9268
  %v9324 = vpack.c.bf16 %v9271, %v9270
  %v9325 = vpack.c.bf16 %v9273, %v9272
  %v9326 = vpack.c.bf16 %v9275, %v9274
  %v9327 = vpack.c.bf16 %v9277, %v9276
  %v9328 = vpack.c.bf16 %v9279, %v9278
  %v9329 = vpack.c.bf16 %v9281, %v9280
  %v9330 = vpack.c.bf16 %v9283, %v9282
  %v9331 = vpack.c.bf16 %v9285, %v9284
  %v9332 = vpack.c.bf16 %v9287, %v9286
  %v9333 = vpack.c.bf16 %v9289, %v9288
  %v9334 = vpack.c.bf16 %v9291, %v9290
  %v9335 = vpack.c.bf16 %v9293, %v9292
  %v9336 = vpack.c.bf16 %v9295, %v9294
  %v9337 = vpack.c.bf16 %v9297, %v9296
  %v9338 = vpack.c.bf16 %v9299, %v9298
  %v9339 = vpack.c.bf16 %v9301, %v9300
  %v9340 = vpack.c.bf16 %v9303, %v9302
  %v9341 = vpack.c.bf16 %v9305, %v9304
  %v9342 = vpack.c.bf16 %v9307, %v9306
  %v9343 = vpack.c.bf16 %v9309, %v9308
  %v9344 = vpack.c.bf16 %v9311, %v9310
  %v9345 = vpack.c.bf16 %v9313, %v9312
  %s9346 = scalar_lea.vmem %s2, 10
  %v9347 = vld [vmem:[%s9346] sm:$0x3]
  %v9349 = vsel %vm2145, %v9314, 0
  %v9352 = vsel %vm2145, %v9315, 0
  %v9355 = vsel %vm2145, %v9316, 0
  %v9358 = vsel %vm2145, %v9317, 0
  %v9361 = vsel %vm2145, %v9318, 0
  %v9364 = vsel %vm2145, %v9319, 0
  %v9367 = vsel %vm2145, %v9320, 0
  %v9370 = vsel %vm2145, %v9321, 0
  %v9373 = vsel %vm2145, %v9322, 0
  %v9376 = vsel %vm2145, %v9323, 0
  %v9379 = vsel %vm2145, %v9324, 0
  %v9382 = vsel %vm2145, %v9325, 0
  %v9385 = vsel %vm2145, %v9326, 0
  %v9388 = vsel %vm2145, %v9327, 0
  %v9391 = vsel %vm2145, %v9328, 0
  %v9394 = vsel %vm2145, %v9329, 0
  %v9397 = vsel %vm2145, %v9330, 0
  %v9400 = vsel %vm2145, %v9331, 0
  %v9403 = vsel %vm2145, %v9332, 0
  %v9406 = vsel %vm2145, %v9333, 0
  %v9409 = vsel %vm2145, %v9334, 0
  %v9412 = vsel %vm2145, %v9335, 0
  %v9415 = vsel %vm2145, %v9336, 0
  %v9418 = vsel %vm2145, %v9337, 0
  %v9421 = vsel %vm2145, %v9338, 0
  %v9424 = vsel %vm2145, %v9339, 0
  %v9427 = vsel %vm2145, %v9340, 0
  %v9430 = vsel %vm2145, %v9341, 0
  %v9433 = vsel %vm2145, %v9342, 0
  %v9436 = vsel %vm2145, %v9343, 0
  %v9439 = vsel %vm2145, %v9344, 0
  %v9442 = vsel %vm2145, %v9345, 0
  %v9445 = vsel %vm2242, %v9347, 0
  %9447 = vmatpush.bf16.msra.mxu0 0
  %9448 = vmatpush.bf16.msra.mxu0 0
  %9449 = vmatpush.bf16.msra.mxu0 0
  %9450 = vmatpush.bf16.msra.mxu0 0
  %9451 = vmatpush.bf16.msra.mxu0 0
  %9452 = vmatpush.bf16.msra.mxu0 0
  %9453 = vmatpush.bf16.msra.mxu0 0
  %9454 = vmatpush.bf16.msra.mxu0 %v9445
  %9455 = vmatmul.bf16.gmra.mxu0 %v9349
  %v9456 = vpop.f32.mrf.mxu0
  %v9457 = vadd.f32 0.0, %v9456
  %v9458 = vpop.f32.mrf.mxu0
  %v9459 = vadd.f32 0.0, %v9458
  %9460 = vmatmul.bf16.gmra.mxu0 %v9352
  %v9461 = vpop.f32.mrf.mxu0
  %v9462 = vadd.f32 0.0, %v9461
  %v9463 = vpop.f32.mrf.mxu0
  %v9464 = vadd.f32 0.0, %v9463
  %9465 = vmatmul.bf16.gmra.mxu0 %v9355
  %v9466 = vpop.f32.mrf.mxu0
  %v9467 = vadd.f32 0.0, %v9466
  %v9468 = vpop.f32.mrf.mxu0
  %v9469 = vadd.f32 0.0, %v9468
  %9470 = vmatmul.bf16.gmra.mxu0 %v9358
  %v9471 = vpop.f32.mrf.mxu0
  %v9472 = vadd.f32 0.0, %v9471
  %v9473 = vpop.f32.mrf.mxu0
  %v9474 = vadd.f32 0.0, %v9473
  %9475 = vmatmul.bf16.gmra.mxu0 %v9361
  %v9476 = vpop.f32.mrf.mxu0
  %v9477 = vadd.f32 0.0, %v9476
  %v9478 = vpop.f32.mrf.mxu0
  %v9479 = vadd.f32 0.0, %v9478
  %9480 = vmatmul.bf16.gmra.mxu0 %v9364
  %v9481 = vpop.f32.mrf.mxu0
  %v9482 = vadd.f32 0.0, %v9481
  %v9483 = vpop.f32.mrf.mxu0
  %v9484 = vadd.f32 0.0, %v9483
  %9485 = vmatmul.bf16.gmra.mxu0 %v9367
  %v9486 = vpop.f32.mrf.mxu0
  %v9487 = vadd.f32 0.0, %v9486
  %v9488 = vpop.f32.mrf.mxu0
  %v9489 = vadd.f32 0.0, %v9488
  %9490 = vmatmul.bf16.gmra.mxu0 %v9370
  %v9491 = vpop.f32.mrf.mxu0
  %v9492 = vadd.f32 0.0, %v9491
  %v9493 = vpop.f32.mrf.mxu0
  %v9494 = vadd.f32 0.0, %v9493
  %9495 = vmatmul.bf16.gmra.mxu0 %v9373
  %v9496 = vpop.f32.mrf.mxu0
  %v9497 = vadd.f32 0.0, %v9496
  %v9498 = vpop.f32.mrf.mxu0
  %v9499 = vadd.f32 0.0, %v9498
  %9500 = vmatmul.bf16.gmra.mxu0 %v9376
  %v9501 = vpop.f32.mrf.mxu0
  %v9502 = vadd.f32 0.0, %v9501
  %v9503 = vpop.f32.mrf.mxu0
  %v9504 = vadd.f32 0.0, %v9503
  %9505 = vmatmul.bf16.gmra.mxu0 %v9379
  %v9506 = vpop.f32.mrf.mxu0
  %v9507 = vadd.f32 0.0, %v9506
  %v9508 = vpop.f32.mrf.mxu0
  %v9509 = vadd.f32 0.0, %v9508
  %9510 = vmatmul.bf16.gmra.mxu0 %v9382
  %v9511 = vpop.f32.mrf.mxu0
  %v9512 = vadd.f32 0.0, %v9511
  %v9513 = vpop.f32.mrf.mxu0
  %v9514 = vadd.f32 0.0, %v9513
  %9515 = vmatmul.bf16.gmra.mxu0 %v9385
  %v9516 = vpop.f32.mrf.mxu0
  %v9517 = vadd.f32 0.0, %v9516
  %v9518 = vpop.f32.mrf.mxu0
  %v9519 = vadd.f32 0.0, %v9518
  %9520 = vmatmul.bf16.gmra.mxu0 %v9388
  %v9521 = vpop.f32.mrf.mxu0
  %v9522 = vadd.f32 0.0, %v9521
  %v9523 = vpop.f32.mrf.mxu0
  %v9524 = vadd.f32 0.0, %v9523
  %9525 = vmatmul.bf16.gmra.mxu0 %v9391
  %v9526 = vpop.f32.mrf.mxu0
  %v9527 = vadd.f32 0.0, %v9526
  %v9528 = vpop.f32.mrf.mxu0
  %v9529 = vadd.f32 0.0, %v9528
  %9530 = vmatmul.bf16.gmra.mxu0 %v9394
  %v9531 = vpop.f32.mrf.mxu0
  %v9532 = vadd.f32 0.0, %v9531
  %v9533 = vpop.f32.mrf.mxu0
  %v9534 = vadd.f32 0.0, %v9533
  %9535 = vmatmul.bf16.gmra.mxu0 %v9397
  %v9536 = vpop.f32.mrf.mxu0
  %v9537 = vadd.f32 0.0, %v9536
  %v9538 = vpop.f32.mrf.mxu0
  %v9539 = vadd.f32 0.0, %v9538
  %9540 = vmatmul.bf16.gmra.mxu0 %v9400
  %v9541 = vpop.f32.mrf.mxu0
  %v9542 = vadd.f32 0.0, %v9541
  %v9543 = vpop.f32.mrf.mxu0
  %v9544 = vadd.f32 0.0, %v9543
  %9545 = vmatmul.bf16.gmra.mxu0 %v9403
  %v9546 = vpop.f32.mrf.mxu0
  %v9547 = vadd.f32 0.0, %v9546
  %v9548 = vpop.f32.mrf.mxu0
  %v9549 = vadd.f32 0.0, %v9548
  %9550 = vmatmul.bf16.gmra.mxu0 %v9406
  %v9551 = vpop.f32.mrf.mxu0
  %v9552 = vadd.f32 0.0, %v9551
  %v9553 = vpop.f32.mrf.mxu0
  %v9554 = vadd.f32 0.0, %v9553
  %9555 = vmatmul.bf16.gmra.mxu0 %v9409
  %v9556 = vpop.f32.mrf.mxu0
  %v9557 = vadd.f32 0.0, %v9556
  %v9558 = vpop.f32.mrf.mxu0
  %v9559 = vadd.f32 0.0, %v9558
  %9560 = vmatmul.bf16.gmra.mxu0 %v9412
  %v9561 = vpop.f32.mrf.mxu0
  %v9562 = vadd.f32 0.0, %v9561
  %v9563 = vpop.f32.mrf.mxu0
  %v9564 = vadd.f32 0.0, %v9563
  %9565 = vmatmul.bf16.gmra.mxu0 %v9415
  %v9566 = vpop.f32.mrf.mxu0
  %v9567 = vadd.f32 0.0, %v9566
  %v9568 = vpop.f32.mrf.mxu0
  %v9569 = vadd.f32 0.0, %v9568
  %9570 = vmatmul.bf16.gmra.mxu0 %v9418
  %v9571 = vpop.f32.mrf.mxu0
  %v9572 = vadd.f32 0.0, %v9571
  %v9573 = vpop.f32.mrf.mxu0
  %v9574 = vadd.f32 0.0, %v9573
  %9575 = vmatmul.bf16.gmra.mxu0 %v9421
  %v9576 = vpop.f32.mrf.mxu0
  %v9577 = vadd.f32 0.0, %v9576
  %v9578 = vpop.f32.mrf.mxu0
  %v9579 = vadd.f32 0.0, %v9578
  %9580 = vmatmul.bf16.gmra.mxu0 %v9424
  %v9581 = vpop.f32.mrf.mxu0
  %v9582 = vadd.f32 0.0, %v9581
  %v9583 = vpop.f32.mrf.mxu0
  %v9584 = vadd.f32 0.0, %v9583
  %9585 = vmatmul.bf16.gmra.mxu0 %v9427
  %v9586 = vpop.f32.mrf.mxu0
  %v9587 = vadd.f32 0.0, %v9586
  %v9588 = vpop.f32.mrf.mxu0
  %v9589 = vadd.f32 0.0, %v9588
  %9590 = vmatmul.bf16.gmra.mxu0 %v9430
  %v9591 = vpop.f32.mrf.mxu0
  %v9592 = vadd.f32 0.0, %v9591
  %v9593 = vpop.f32.mrf.mxu0
  %v9594 = vadd.f32 0.0, %v9593
  %9595 = vmatmul.bf16.gmra.mxu0 %v9433
  %v9596 = vpop.f32.mrf.mxu0
  %v9597 = vadd.f32 0.0, %v9596
  %v9598 = vpop.f32.mrf.mxu0
  %v9599 = vadd.f32 0.0, %v9598
  %9600 = vmatmul.bf16.gmra.mxu0 %v9436
  %v9601 = vpop.f32.mrf.mxu0
  %v9602 = vadd.f32 0.0, %v9601
  %v9603 = vpop.f32.mrf.mxu0
  %v9604 = vadd.f32 0.0, %v9603
  %9605 = vmatmul.bf16.gmra.mxu0 %v9439
  %v9606 = vpop.f32.mrf.mxu0
  %v9607 = vadd.f32 0.0, %v9606
  %v9608 = vpop.f32.mrf.mxu0
  %v9609 = vadd.f32 0.0, %v9608
  %9610 = vmatmul.bf16.gmra.mxu0 %v9442
  %v9611 = vpop.f32.mrf.mxu0
  %v9612 = vadd.f32 0.0, %v9611
  %v9613 = vpop.f32.mrf.mxu0
  %v9614 = vadd.f32 0.0, %v9613
  %9615 = vdwg.mxu0
  %v9616 = vadd.f32 %v9122, %v9457
  %v9617 = vadd.f32 %v9123, %v9459
  %v9618 = vadd.f32 %v9124, %v9462
  %v9619 = vadd.f32 %v9125, %v9464
  %v9620 = vadd.f32 %v9126, %v9467
  %v9621 = vadd.f32 %v9127, %v9469
  %v9622 = vadd.f32 %v9128, %v9472
  %v9623 = vadd.f32 %v9129, %v9474
  %v9624 = vadd.f32 %v9130, %v9477
  %v9625 = vadd.f32 %v9131, %v9479
  %v9626 = vadd.f32 %v9132, %v9482
  %v9627 = vadd.f32 %v9133, %v9484
  %v9628 = vadd.f32 %v9134, %v9487
  %v9629 = vadd.f32 %v9135, %v9489
  %v9630 = vadd.f32 %v9136, %v9492
  %v9631 = vadd.f32 %v9137, %v9494
  %v9632 = vadd.f32 %v9138, %v9497
  %v9633 = vadd.f32 %v9139, %v9499
  %v9634 = vadd.f32 %v9140, %v9502
  %v9635 = vadd.f32 %v9141, %v9504
  %v9636 = vadd.f32 %v9142, %v9507
  %v9637 = vadd.f32 %v9143, %v9509
  %v9638 = vadd.f32 %v9144, %v9512
  %v9639 = vadd.f32 %v9145, %v9514
  %v9640 = vadd.f32 %v9146, %v9517
  %v9641 = vadd.f32 %v9147, %v9519
  %v9642 = vadd.f32 %v9148, %v9522
  %v9643 = vadd.f32 %v9149, %v9524
  %v9644 = vadd.f32 %v9150, %v9527
  %v9645 = vadd.f32 %v9151, %v9529
  %v9646 = vadd.f32 %v9152, %v9532
  %v9647 = vadd.f32 %v9153, %v9534
  %v9648 = vadd.f32 %v9154, %v9537
  %v9649 = vadd.f32 %v9155, %v9539
  %v9650 = vadd.f32 %v9156, %v9542
  %v9651 = vadd.f32 %v9157, %v9544
  %v9652 = vadd.f32 %v9158, %v9547
  %v9653 = vadd.f32 %v9159, %v9549
  %v9654 = vadd.f32 %v9160, %v9552
  %v9655 = vadd.f32 %v9161, %v9554
  %v9656 = vadd.f32 %v9162, %v9557
  %v9657 = vadd.f32 %v9163, %v9559
  %v9658 = vadd.f32 %v9164, %v9562
  %v9659 = vadd.f32 %v9165, %v9564
  %v9660 = vadd.f32 %v9166, %v9567
  %v9661 = vadd.f32 %v9167, %v9569
  %v9662 = vadd.f32 %v9168, %v9572
  %v9663 = vadd.f32 %v9169, %v9574
  %v9664 = vadd.f32 %v9170, %v9577
  %v9665 = vadd.f32 %v9171, %v9579
  %v9666 = vadd.f32 %v9172, %v9582
  %v9667 = vadd.f32 %v9173, %v9584
  %v9668 = vadd.f32 %v9174, %v9587
  %v9669 = vadd.f32 %v9175, %v9589
  %v9670 = vadd.f32 %v9176, %v9592
  %v9671 = vadd.f32 %v9177, %v9594
  %v9672 = vadd.f32 %v9178, %v9597
  %v9673 = vadd.f32 %v9179, %v9599
  %v9674 = vadd.f32 %v9180, %v9602
  %v9675 = vadd.f32 %v9181, %v9604
  %v9676 = vadd.f32 %v9182, %v9607
  %v9677 = vadd.f32 %v9183, %v9609
  %v9678 = vadd.f32 %v9184, %v9612
  %v9679 = vadd.f32 %v9185, %v9614
  %v9680 = vld [vmem:[#allocation2 + $0x27] sm:$0xff]
  %v9681 = vld [vmem:[#allocation2 + $0x2f] sm:$0xff]
  %v9682 = vld [vmem:[#allocation2 + $0x37] sm:$0xff]
  %v9683 = vld [vmem:[#allocation2 + $0x3f] sm:$0xff]
  %v9684 = vld [vmem:[#allocation2 + $0x47] sm:$0xff]
  %v9685 = vld [vmem:[#allocation2 + $0x4f] sm:$0xff]
  %v9686 = vld [vmem:[#allocation2 + $0x57] sm:$0xff]
  %v9687 = vld [vmem:[#allocation2 + $0x5f] sm:$0xff]
  %v9688 = vld [vmem:[#allocation2 + $0x67] sm:$0xff]
  %v9689 = vld [vmem:[#allocation2 + $0x6f] sm:$0xff]
  %v9690 = vld [vmem:[#allocation2 + $0x77] sm:$0xff]
  %v9691 = vld [vmem:[#allocation2 + $0x7f] sm:$0xff]
  %v9692 = vld [vmem:[#allocation2 + $0x87] sm:$0xff]
  %v9693 = vld [vmem:[#allocation2 + $0x8f] sm:$0xff]
  %v9694 = vld [vmem:[#allocation2 + $0x97] sm:$0xff]
  %v9695 = vld [vmem:[#allocation2 + $0x9f] sm:$0xff]
  %v9696 = vld [vmem:[#allocation2 + $0xa7] sm:$0xff]
  %v9697 = vld [vmem:[#allocation2 + $0xaf] sm:$0xff]
  %v9698 = vld [vmem:[#allocation2 + $0xb7] sm:$0xff]
  %v9699 = vld [vmem:[#allocation2 + $0xbf] sm:$0xff]
  %v9700 = vld [vmem:[#allocation2 + $0xc7] sm:$0xff]
  %v9701 = vld [vmem:[#allocation2 + $0xcf] sm:$0xff]
  %v9702 = vld [vmem:[#allocation2 + $0xd7] sm:$0xff]
  %v9703 = vld [vmem:[#allocation2 + $0xdf] sm:$0xff]
  %v9704 = vld [vmem:[#allocation2 + $0xe7] sm:$0xff]
  %v9705 = vld [vmem:[#allocation2 + $0xef] sm:$0xff]
  %v9706 = vld [vmem:[#allocation2 + $0xf7] sm:$0xff]
  %v9707 = vld [vmem:[#allocation2 + $0xff] sm:$0xff]
  %v9708 = vld [vmem:[#allocation2 + $0x107] sm:$0xff]
  %v9709 = vld [vmem:[#allocation2 + $0x10f] sm:$0xff]
  %v9710 = vld [vmem:[#allocation2 + $0x117] sm:$0xff]
  %v9711 = vld [vmem:[#allocation2 + $0x11f] sm:$0xff]
  %v9712 = vld [vmem:[#allocation2 + $0x127] sm:$0xff]
  %v9713 = vld [vmem:[#allocation2 + $0x12f] sm:$0xff]
  %v9714 = vld [vmem:[#allocation2 + $0x137] sm:$0xff]
  %v9715 = vld [vmem:[#allocation2 + $0x13f] sm:$0xff]
  %v9716 = vld [vmem:[#allocation2 + $0x147] sm:$0xff]
  %v9717 = vld [vmem:[#allocation2 + $0x14f] sm:$0xff]
  %v9718 = vld [vmem:[#allocation2 + $0x157] sm:$0xff]
  %v9719 = vld [vmem:[#allocation2 + $0x15f] sm:$0xff]
  %v9720 = vld [vmem:[#allocation2 + $0x167] sm:$0xff]
  %v9721 = vld [vmem:[#allocation2 + $0x16f] sm:$0xff]
  %v9722 = vld [vmem:[#allocation2 + $0x177] sm:$0xff]
  %v9723 = vld [vmem:[#allocation2 + $0x17f] sm:$0xff]
  %v9724 = vld [vmem:[#allocation2 + $0x187] sm:$0xff]
  %v9725 = vld [vmem:[#allocation2 + $0x18f] sm:$0xff]
  %v9726 = vld [vmem:[#allocation2 + $0x197] sm:$0xff]
  %v9727 = vld [vmem:[#allocation2 + $0x19f] sm:$0xff]
  %v9728 = vld [vmem:[#allocation2 + $0x1a7] sm:$0xff]
  %v9729 = vld [vmem:[#allocation2 + $0x1af] sm:$0xff]
  %v9730 = vld [vmem:[#allocation2 + $0x1b7] sm:$0xff]
  %v9731 = vld [vmem:[#allocation2 + $0x1bf] sm:$0xff]
  %v9732 = vld [vmem:[#allocation2 + $0x1c7] sm:$0xff]
  %v9733 = vld [vmem:[#allocation2 + $0x1cf] sm:$0xff]
  %v9734 = vld [vmem:[#allocation2 + $0x1d7] sm:$0xff]
  %v9735 = vld [vmem:[#allocation2 + $0x1df] sm:$0xff]
  %v9736 = vld [vmem:[#allocation2 + $0x1e7] sm:$0xff]
  %v9737 = vld [vmem:[#allocation2 + $0x1ef] sm:$0xff]
  %v9738 = vld [vmem:[#allocation2 + $0x1f7] sm:$0xff]
  %v9739 = vld [vmem:[#allocation2 + $0x1ff] sm:$0xff]
  %v9740 = vld [vmem:[#allocation2 + $0x207] sm:$0xff]
  %v9741 = vld [vmem:[#allocation2 + $0x20f] sm:$0xff]
  %v9742 = vld [vmem:[#allocation2 + $0x217] sm:$0xff]
  %v9743 = vld [vmem:[#allocation2 + $0x21f] sm:$0xff]
  %v9744 = vsel %vm4979, %v9680, 0.0
  %v9745 = vsel %vm4980, %v9681, 0.0
  %v9746 = vsel %vm4981, %v9682, 0.0
  %v9747 = vsel %vm4982, %v9683, 0.0
  %v9748 = vsel %vm4983, %v9684, 0.0
  %v9749 = vsel %vm4984, %v9685, 0.0
  %v9750 = vsel %vm4985, %v9686, 0.0
  %v9751 = vsel %vm4986, %v9687, 0.0
  %v9752 = vsel %vm4987, %v9688, 0.0
  %v9753 = vsel %vm4988, %v9689, 0.0
  %v9754 = vsel %vm4989, %v9690, 0.0
  %v9755 = vsel %vm4990, %v9691, 0.0
  %v9756 = vsel %vm4991, %v9692, 0.0
  %v9757 = vsel %vm4992, %v9693, 0.0
  %v9758 = vsel %vm4993, %v9694, 0.0
  %v9759 = vsel %vm4994, %v9695, 0.0
  %v9760 = vsel %vm4995, %v9696, 0.0
  %v9761 = vsel %vm4996, %v9697, 0.0
  %v9762 = vsel %vm4997, %v9698, 0.0
  %v9763 = vsel %vm4998, %v9699, 0.0
  %v9764 = vsel %vm4999, %v9700, 0.0
  %v9765 = vsel %vm5000, %v9701, 0.0
  %v9766 = vsel %vm5001, %v9702, 0.0
  %v9767 = vsel %vm5002, %v9703, 0.0
  %v9768 = vsel %vm5003, %v9704, 0.0
  %v9769 = vsel %vm5004, %v9705, 0.0
  %v9770 = vsel %vm5005, %v9706, 0.0
  %v9771 = vsel %vm5006, %v9707, 0.0
  %v9772 = vsel %vm5007, %v9708, 0.0
  %v9773 = vsel %vm5008, %v9709, 0.0
  %v9774 = vsel %vm5009, %v9710, 0.0
  %v9775 = vsel %vm5010, %v9711, 0.0
  %v9776 = vsel %vm5011, %v9712, 0.0
  %v9777 = vsel %vm5012, %v9713, 0.0
  %v9778 = vsel %vm5013, %v9714, 0.0
  %v9779 = vsel %vm5014, %v9715, 0.0
  %v9780 = vsel %vm5015, %v9716, 0.0
  %v9781 = vsel %vm5016, %v9717, 0.0
  %v9782 = vsel %vm5017, %v9718, 0.0
  %v9783 = vsel %vm5018, %v9719, 0.0
  %v9784 = vsel %vm5019, %v9720, 0.0
  %v9785 = vsel %vm5020, %v9721, 0.0
  %v9786 = vsel %vm5021, %v9722, 0.0
  %v9787 = vsel %vm5022, %v9723, 0.0
  %v9788 = vsel %vm5023, %v9724, 0.0
  %v9789 = vsel %vm5024, %v9725, 0.0
  %v9790 = vsel %vm5025, %v9726, 0.0
  %v9791 = vsel %vm5026, %v9727, 0.0
  %v9792 = vsel %vm5027, %v9728, 0.0
  %v9793 = vsel %vm5028, %v9729, 0.0
  %v9794 = vsel %vm5029, %v9730, 0.0
  %v9795 = vsel %vm5030, %v9731, 0.0
  %v9796 = vsel %vm5031, %v9732, 0.0
  %v9797 = vsel %vm5032, %v9733, 0.0
  %v9798 = vsel %vm5033, %v9734, 0.0
  %v9799 = vsel %vm5034, %v9735, 0.0
  %v9800 = vsel %vm5035, %v9736, 0.0
  %v9801 = vsel %vm5036, %v9737, 0.0
  %v9802 = vsel %vm5037, %v9738, 0.0
  %v9803 = vsel %vm5038, %v9739, 0.0
  %v9804 = vsel %vm5039, %v9740, 0.0
  %v9805 = vsel %vm5040, %v9741, 0.0
  %v9806 = vsel %vm5041, %v9742, 0.0
  %v9807 = vsel %vm5042, %v9743, 0.0
  %v9808 = vpack.c.bf16 %v9745, %v9744
  %v9809 = vpack.c.bf16 %v9747, %v9746
  %v9810 = vpack.c.bf16 %v9749, %v9748
  %v9811 = vpack.c.bf16 %v9751, %v9750
  %v9812 = vpack.c.bf16 %v9753, %v9752
  %v9813 = vpack.c.bf16 %v9755, %v9754
  %v9814 = vpack.c.bf16 %v9757, %v9756
  %v9815 = vpack.c.bf16 %v9759, %v9758
  %v9816 = vpack.c.bf16 %v9761, %v9760
  %v9817 = vpack.c.bf16 %v9763, %v9762
  %v9818 = vpack.c.bf16 %v9765, %v9764
  %v9819 = vpack.c.bf16 %v9767, %v9766
  %v9820 = vpack.c.bf16 %v9769, %v9768
  %v9821 = vpack.c.bf16 %v9771, %v9770
  %v9822 = vpack.c.bf16 %v9773, %v9772
  %v9823 = vpack.c.bf16 %v9775, %v9774
  %v9824 = vpack.c.bf16 %v9777, %v9776
  %v9825 = vpack.c.bf16 %v9779, %v9778
  %v9826 = vpack.c.bf16 %v9781, %v9780
  %v9827 = vpack.c.bf16 %v9783, %v9782
  %v9828 = vpack.c.bf16 %v9785, %v9784
  %v9829 = vpack.c.bf16 %v9787, %v9786
  %v9830 = vpack.c.bf16 %v9789, %v9788
  %v9831 = vpack.c.bf16 %v9791, %v9790
  %v9832 = vpack.c.bf16 %v9793, %v9792
  %v9833 = vpack.c.bf16 %v9795, %v9794
  %v9834 = vpack.c.bf16 %v9797, %v9796
  %v9835 = vpack.c.bf16 %v9799, %v9798
  %v9836 = vpack.c.bf16 %v9801, %v9800
  %v9837 = vpack.c.bf16 %v9803, %v9802
  %v9838 = vpack.c.bf16 %v9805, %v9804
  %v9839 = vpack.c.bf16 %v9807, %v9806
  %s9840 = scalar_lea.vmem %s2, 12
  %v9841 = vld [vmem:[%s9840] sm:$0x3]
  %v9843 = vsel %vm2145, %v9808, 0
  %v9846 = vsel %vm2145, %v9809, 0
  %v9849 = vsel %vm2145, %v9810, 0
  %v9852 = vsel %vm2145, %v9811, 0
  %v9855 = vsel %vm2145, %v9812, 0
  %v9858 = vsel %vm2145, %v9813, 0
  %v9861 = vsel %vm2145, %v9814, 0
  %v9864 = vsel %vm2145, %v9815, 0
  %v9867 = vsel %vm2145, %v9816, 0
  %v9870 = vsel %vm2145, %v9817, 0
  %v9873 = vsel %vm2145, %v9818, 0
  %v9876 = vsel %vm2145, %v9819, 0
  %v9879 = vsel %vm2145, %v9820, 0
  %v9882 = vsel %vm2145, %v9821, 0
  %v9885 = vsel %vm2145, %v9822, 0
  %v9888 = vsel %vm2145, %v9823, 0
  %v9891 = vsel %vm2145, %v9824, 0
  %v9894 = vsel %vm2145, %v9825, 0
  %v9897 = vsel %vm2145, %v9826, 0
  %v9900 = vsel %vm2145, %v9827, 0
  %v9903 = vsel %vm2145, %v9828, 0
  %v9906 = vsel %vm2145, %v9829, 0
  %v9909 = vsel %vm2145, %v9830, 0
  %v9912 = vsel %vm2145, %v9831, 0
  %v9915 = vsel %vm2145, %v9832, 0
  %v9918 = vsel %vm2145, %v9833, 0
  %v9921 = vsel %vm2145, %v9834, 0
  %v9924 = vsel %vm2145, %v9835, 0
  %v9927 = vsel %vm2145, %v9836, 0
  %v9930 = vsel %vm2145, %v9837, 0
  %v9933 = vsel %vm2145, %v9838, 0
  %v9936 = vsel %vm2145, %v9839, 0
  %v9939 = vsel %vm2242, %v9841, 0
  %9941 = vmatpush.bf16.msra.mxu0 0
  %9942 = vmatpush.bf16.msra.mxu0 0
  %9943 = vmatpush.bf16.msra.mxu0 0
  %9944 = vmatpush.bf16.msra.mxu0 0
  %9945 = vmatpush.bf16.msra.mxu0 0
  %9946 = vmatpush.bf16.msra.mxu0 0
  %9947 = vmatpush.bf16.msra.mxu0 0
  %9948 = vmatpush.bf16.msra.mxu0 %v9939
  %9949 = vmatmul.bf16.gmra.mxu0 %v9843
  %v9950 = vpop.f32.mrf.mxu0
  %v9951 = vadd.f32 0.0, %v9950
  %v9952 = vpop.f32.mrf.mxu0
  %v9953 = vadd.f32 0.0, %v9952
  %9954 = vmatmul.bf16.gmra.mxu0 %v9846
  %v9955 = vpop.f32.mrf.mxu0
  %v9956 = vadd.f32 0.0, %v9955
  %v9957 = vpop.f32.mrf.mxu0
  %v9958 = vadd.f32 0.0, %v9957
  %9959 = vmatmul.bf16.gmra.mxu0 %v9849
  %v9960 = vpop.f32.mrf.mxu0
  %v9961 = vadd.f32 0.0, %v9960
  %v9962 = vpop.f32.mrf.mxu0
  %v9963 = vadd.f32 0.0, %v9962
  %9964 = vmatmul.bf16.gmra.mxu0 %v9852
  %v9965 = vpop.f32.mrf.mxu0
  %v9966 = vadd.f32 0.0, %v9965
  %v9967 = vpop.f32.mrf.mxu0
  %v9968 = vadd.f32 0.0, %v9967
  %9969 = vmatmul.bf16.gmra.mxu0 %v9855
  %v9970 = vpop.f32.mrf.mxu0
  %v9971 = vadd.f32 0.0, %v9970
  %v9972 = vpop.f32.mrf.mxu0
  %v9973 = vadd.f32 0.0, %v9972
  %9974 = vmatmul.bf16.gmra.mxu0 %v9858
  %v9975 = vpop.f32.mrf.mxu0
  %v9976 = vadd.f32 0.0, %v9975
  %v9977 = vpop.f32.mrf.mxu0
  %v9978 = vadd.f32 0.0, %v9977
  %9979 = vmatmul.bf16.gmra.mxu0 %v9861
  %v9980 = vpop.f32.mrf.mxu0
  %v9981 = vadd.f32 0.0, %v9980
  %v9982 = vpop.f32.mrf.mxu0
  %v9983 = vadd.f32 0.0, %v9982
  %9984 = vmatmul.bf16.gmra.mxu0 %v9864
  %v9985 = vpop.f32.mrf.mxu0
  %v9986 = vadd.f32 0.0, %v9985
  %v9987 = vpop.f32.mrf.mxu0
  %v9988 = vadd.f32 0.0, %v9987
  %9989 = vmatmul.bf16.gmra.mxu0 %v9867
  %v9990 = vpop.f32.mrf.mxu0
  %v9991 = vadd.f32 0.0, %v9990
  %v9992 = vpop.f32.mrf.mxu0
  %v9993 = vadd.f32 0.0, %v9992
  %9994 = vmatmul.bf16.gmra.mxu0 %v9870
  %v9995 = vpop.f32.mrf.mxu0
  %v9996 = vadd.f32 0.0, %v9995
  %v9997 = vpop.f32.mrf.mxu0
  %v9998 = vadd.f32 0.0, %v9997
  %9999 = vmatmul.bf16.gmra.mxu0 %v9873
  %v10000 = vpop.f32.mrf.mxu0
  %v10001 = vadd.f32 0.0, %v10000
  %v10002 = vpop.f32.mrf.mxu0
  %v10003 = vadd.f32 0.0, %v10002
  %10004 = vmatmul.bf16.gmra.mxu0 %v9876
  %v10005 = vpop.f32.mrf.mxu0
  %v10006 = vadd.f32 0.0, %v10005
  %v10007 = vpop.f32.mrf.mxu0
  %v10008 = vadd.f32 0.0, %v10007
  %10009 = vmatmul.bf16.gmra.mxu0 %v9879
  %v10010 = vpop.f32.mrf.mxu0
  %v10011 = vadd.f32 0.0, %v10010
  %v10012 = vpop.f32.mrf.mxu0
  %v10013 = vadd.f32 0.0, %v10012
  %10014 = vmatmul.bf16.gmra.mxu0 %v9882
  %v10015 = vpop.f32.mrf.mxu0
  %v10016 = vadd.f32 0.0, %v10015
  %v10017 = vpop.f32.mrf.mxu0
  %v10018 = vadd.f32 0.0, %v10017
  %10019 = vmatmul.bf16.gmra.mxu0 %v9885
  %v10020 = vpop.f32.mrf.mxu0
  %v10021 = vadd.f32 0.0, %v10020
  %v10022 = vpop.f32.mrf.mxu0
  %v10023 = vadd.f32 0.0, %v10022
  %10024 = vmatmul.bf16.gmra.mxu0 %v9888
  %v10025 = vpop.f32.mrf.mxu0
  %v10026 = vadd.f32 0.0, %v10025
  %v10027 = vpop.f32.mrf.mxu0
  %v10028 = vadd.f32 0.0, %v10027
  %10029 = vmatmul.bf16.gmra.mxu0 %v9891
  %v10030 = vpop.f32.mrf.mxu0
  %v10031 = vadd.f32 0.0, %v10030
  %v10032 = vpop.f32.mrf.mxu0
  %v10033 = vadd.f32 0.0, %v10032
  %10034 = vmatmul.bf16.gmra.mxu0 %v9894
  %v10035 = vpop.f32.mrf.mxu0
  %v10036 = vadd.f32 0.0, %v10035
  %v10037 = vpop.f32.mrf.mxu0
  %v10038 = vadd.f32 0.0, %v10037
  %10039 = vmatmul.bf16.gmra.mxu0 %v9897
  %v10040 = vpop.f32.mrf.mxu0
  %v10041 = vadd.f32 0.0, %v10040
  %v10042 = vpop.f32.mrf.mxu0
  %v10043 = vadd.f32 0.0, %v10042
  %10044 = vmatmul.bf16.gmra.mxu0 %v9900
  %v10045 = vpop.f32.mrf.mxu0
  %v10046 = vadd.f32 0.0, %v10045
  %v10047 = vpop.f32.mrf.mxu0
  %v10048 = vadd.f32 0.0, %v10047
  %10049 = vmatmul.bf16.gmra.mxu0 %v9903
  %v10050 = vpop.f32.mrf.mxu0
  %v10051 = vadd.f32 0.0, %v10050
  %v10052 = vpop.f32.mrf.mxu0
  %v10053 = vadd.f32 0.0, %v10052
  %10054 = vmatmul.bf16.gmra.mxu0 %v9906
  %v10055 = vpop.f32.mrf.mxu0
  %v10056 = vadd.f32 0.0, %v10055
  %v10057 = vpop.f32.mrf.mxu0
  %v10058 = vadd.f32 0.0, %v10057
  %10059 = vmatmul.bf16.gmra.mxu0 %v9909
  %v10060 = vpop.f32.mrf.mxu0
  %v10061 = vadd.f32 0.0, %v10060
  %v10062 = vpop.f32.mrf.mxu0
  %v10063 = vadd.f32 0.0, %v10062
  %10064 = vmatmul.bf16.gmra.mxu0 %v9912
  %v10065 = vpop.f32.mrf.mxu0
  %v10066 = vadd.f32 0.0, %v10065
  %v10067 = vpop.f32.mrf.mxu0
  %v10068 = vadd.f32 0.0, %v10067
  %10069 = vmatmul.bf16.gmra.mxu0 %v9915
  %v10070 = vpop.f32.mrf.mxu0
  %v10071 = vadd.f32 0.0, %v10070
  %v10072 = vpop.f32.mrf.mxu0
  %v10073 = vadd.f32 0.0, %v10072
  %10074 = vmatmul.bf16.gmra.mxu0 %v9918
  %v10075 = vpop.f32.mrf.mxu0
  %v10076 = vadd.f32 0.0, %v10075
  %v10077 = vpop.f32.mrf.mxu0
  %v10078 = vadd.f32 0.0, %v10077
  %10079 = vmatmul.bf16.gmra.mxu0 %v9921
  %v10080 = vpop.f32.mrf.mxu0
  %v10081 = vadd.f32 0.0, %v10080
  %v10082 = vpop.f32.mrf.mxu0
  %v10083 = vadd.f32 0.0, %v10082
  %10084 = vmatmul.bf16.gmra.mxu0 %v9924
  %v10085 = vpop.f32.mrf.mxu0
  %v10086 = vadd.f32 0.0, %v10085
  %v10087 = vpop.f32.mrf.mxu0
  %v10088 = vadd.f32 0.0, %v10087
  %10089 = vmatmul.bf16.gmra.mxu0 %v9927
  %v10090 = vpop.f32.mrf.mxu0
  %v10091 = vadd.f32 0.0, %v10090
  %v10092 = vpop.f32.mrf.mxu0
  %v10093 = vadd.f32 0.0, %v10092
  %10094 = vmatmul.bf16.gmra.mxu0 %v9930
  %v10095 = vpop.f32.mrf.mxu0
  %v10096 = vadd.f32 0.0, %v10095
  %v10097 = vpop.f32.mrf.mxu0
  %v10098 = vadd.f32 0.0, %v10097
  %10099 = vmatmul.bf16.gmra.mxu0 %v9933
  %v10100 = vpop.f32.mrf.mxu0
  %v10101 = vadd.f32 0.0, %v10100
  %v10102 = vpop.f32.mrf.mxu0
  %v10103 = vadd.f32 0.0, %v10102
  %10104 = vmatmul.bf16.gmra.mxu0 %v9936
  %v10105 = vpop.f32.mrf.mxu0
  %v10106 = vadd.f32 0.0, %v10105
  %v10107 = vpop.f32.mrf.mxu0
  %v10108 = vadd.f32 0.0, %v10107
  %10109 = vdwg.mxu0
  %v10110 = vadd.f32 %v9616, %v9951
  %v10111 = vadd.f32 %v9617, %v9953
  %v10112 = vadd.f32 %v9618, %v9956
  %v10113 = vadd.f32 %v9619, %v9958
  %v10114 = vadd.f32 %v9620, %v9961
  %v10115 = vadd.f32 %v9621, %v9963
  %v10116 = vadd.f32 %v9622, %v9966
  %v10117 = vadd.f32 %v9623, %v9968
  %v10118 = vadd.f32 %v9624, %v9971
  %v10119 = vadd.f32 %v9625, %v9973
  %v10120 = vadd.f32 %v9626, %v9976
  %v10121 = vadd.f32 %v9627, %v9978
  %v10122 = vadd.f32 %v9628, %v9981
  %v10123 = vadd.f32 %v9629, %v9983
  %v10124 = vadd.f32 %v9630, %v9986
  %v10125 = vadd.f32 %v9631, %v9988
  %v10126 = vadd.f32 %v9632, %v9991
  %v10127 = vadd.f32 %v9633, %v9993
  %v10128 = vadd.f32 %v9634, %v9996
  %v10129 = vadd.f32 %v9635, %v9998
  %v10130 = vadd.f32 %v9636, %v10001
  %v10131 = vadd.f32 %v9637, %v10003
  %v10132 = vadd.f32 %v9638, %v10006
  %v10133 = vadd.f32 %v9639, %v10008
  %v10134 = vadd.f32 %v9640, %v10011
  %v10135 = vadd.f32 %v9641, %v10013
  %v10136 = vadd.f32 %v9642, %v10016
  %v10137 = vadd.f32 %v9643, %v10018
  %v10138 = vadd.f32 %v9644, %v10021
  %v10139 = vadd.f32 %v9645, %v10023
  %v10140 = vadd.f32 %v9646, %v10026
  %v10141 = vadd.f32 %v9647, %v10028
  %v10142 = vadd.f32 %v9648, %v10031
  %v10143 = vadd.f32 %v9649, %v10033
  %v10144 = vadd.f32 %v9650, %v10036
  %v10145 = vadd.f32 %v9651, %v10038
  %v10146 = vadd.f32 %v9652, %v10041
  %v10147 = vadd.f32 %v9653, %v10043
  %v10148 = vadd.f32 %v9654, %v10046
  %v10149 = vadd.f32 %v9655, %v10048
  %v10150 = vadd.f32 %v9656, %v10051
  %v10151 = vadd.f32 %v9657, %v10053
  %v10152 = vadd.f32 %v9658, %v10056
  %v10153 = vadd.f32 %v9659, %v10058
  %v10154 = vadd.f32 %v9660, %v10061
  %v10155 = vadd.f32 %v9661, %v10063
  %v10156 = vadd.f32 %v9662, %v10066
  %v10157 = vadd.f32 %v9663, %v10068
  %v10158 = vadd.f32 %v9664, %v10071
  %v10159 = vadd.f32 %v9665, %v10073
  %v10160 = vadd.f32 %v9666, %v10076
  %v10161 = vadd.f32 %v9667, %v10078
  %v10162 = vadd.f32 %v9668, %v10081
  %v10163 = vadd.f32 %v9669, %v10083
  %v10164 = vadd.f32 %v9670, %v10086
  %v10165 = vadd.f32 %v9671, %v10088
  %v10166 = vadd.f32 %v9672, %v10091
  %v10167 = vadd.f32 %v9673, %v10093
  %v10168 = vadd.f32 %v9674, %v10096
  %v10169 = vadd.f32 %v9675, %v10098
  %v10170 = vadd.f32 %v9676, %v10101
  %v10171 = vadd.f32 %v9677, %v10103
  %v10172 = vadd.f32 %v9678, %v10106
  %v10173 = vadd.f32 %v9679, %v10108
  %v10174 = vld [vmem:[#allocation2 + $0x28] sm:$0xff]
  %v10175 = vld [vmem:[#allocation2 + $0x30] sm:$0xff]
  %v10176 = vld [vmem:[#allocation2 + $0x38] sm:$0xff]
  %v10177 = vld [vmem:[#allocation2 + $0x40] sm:$0xff]
  %v10178 = vld [vmem:[#allocation2 + $0x48] sm:$0xff]
  %v10179 = vld [vmem:[#allocation2 + $0x50] sm:$0xff]
  %v10180 = vld [vmem:[#allocation2 + $0x58] sm:$0xff]
  %v10181 = vld [vmem:[#allocation2 + $0x60] sm:$0xff]
  %v10182 = vld [vmem:[#allocation2 + $0x68] sm:$0xff]
  %v10183 = vld [vmem:[#allocation2 + $0x70] sm:$0xff]
  %v10184 = vld [vmem:[#allocation2 + $0x78] sm:$0xff]
  %v10185 = vld [vmem:[#allocation2 + $0x80] sm:$0xff]
  %v10186 = vld [vmem:[#allocation2 + $0x88] sm:$0xff]
  %v10187 = vld [vmem:[#allocation2 + $0x90] sm:$0xff]
  %v10188 = vld [vmem:[#allocation2 + $0x98] sm:$0xff]
  %v10189 = vld [vmem:[#allocation2 + $0xa0] sm:$0xff]
  %v10190 = vld [vmem:[#allocation2 + $0xa8] sm:$0xff]
  %v10191 = vld [vmem:[#allocation2 + $0xb0] sm:$0xff]
  %v10192 = vld [vmem:[#allocation2 + $0xb8] sm:$0xff]
  %v10193 = vld [vmem:[#allocation2 + $0xc0] sm:$0xff]
  %v10194 = vld [vmem:[#allocation2 + $0xc8] sm:$0xff]
  %v10195 = vld [vmem:[#allocation2 + $0xd0] sm:$0xff]
  %v10196 = vld [vmem:[#allocation2 + $0xd8] sm:$0xff]
  %v10197 = vld [vmem:[#allocation2 + $0xe0] sm:$0xff]
  %v10198 = vld [vmem:[#allocation2 + $0xe8] sm:$0xff]
  %v10199 = vld [vmem:[#allocation2 + $0xf0] sm:$0xff]
  %v10200 = vld [vmem:[#allocation2 + $0xf8] sm:$0xff]
  %v10201 = vld [vmem:[#allocation2 + $0x100] sm:$0xff]
  %v10202 = vld [vmem:[#allocation2 + $0x108] sm:$0xff]
  %v10203 = vld [vmem:[#allocation2 + $0x110] sm:$0xff]
  %v10204 = vld [vmem:[#allocation2 + $0x118] sm:$0xff]
  %v10205 = vld [vmem:[#allocation2 + $0x120] sm:$0xff]
  %v10206 = vld [vmem:[#allocation2 + $0x128] sm:$0xff]
  %v10207 = vld [vmem:[#allocation2 + $0x130] sm:$0xff]
  %v10208 = vld [vmem:[#allocation2 + $0x138] sm:$0xff]
  %v10209 = vld [vmem:[#allocation2 + $0x140] sm:$0xff]
  %v10210 = vld [vmem:[#allocation2 + $0x148] sm:$0xff]
  %v10211 = vld [vmem:[#allocation2 + $0x150] sm:$0xff]
  %v10212 = vld [vmem:[#allocation2 + $0x158] sm:$0xff]
  %v10213 = vld [vmem:[#allocation2 + $0x160] sm:$0xff]
  %v10214 = vld [vmem:[#allocation2 + $0x168] sm:$0xff]
  %v10215 = vld [vmem:[#allocation2 + $0x170] sm:$0xff]
  %v10216 = vld [vmem:[#allocation2 + $0x178] sm:$0xff]
  %v10217 = vld [vmem:[#allocation2 + $0x180] sm:$0xff]
  %v10218 = vld [vmem:[#allocation2 + $0x188] sm:$0xff]
  %v10219 = vld [vmem:[#allocation2 + $0x190] sm:$0xff]
  %v10220 = vld [vmem:[#allocation2 + $0x198] sm:$0xff]
  %v10221 = vld [vmem:[#allocation2 + $0x1a0] sm:$0xff]
  %v10222 = vld [vmem:[#allocation2 + $0x1a8] sm:$0xff]
  %v10223 = vld [vmem:[#allocation2 + $0x1b0] sm:$0xff]
  %v10224 = vld [vmem:[#allocation2 + $0x1b8] sm:$0xff]
  %v10225 = vld [vmem:[#allocation2 + $0x1c0] sm:$0xff]
  %v10226 = vld [vmem:[#allocation2 + $0x1c8] sm:$0xff]
  %v10227 = vld [vmem:[#allocation2 + $0x1d0] sm:$0xff]
  %v10228 = vld [vmem:[#allocation2 + $0x1d8] sm:$0xff]
  %v10229 = vld [vmem:[#allocation2 + $0x1e0] sm:$0xff]
  %v10230 = vld [vmem:[#allocation2 + $0x1e8] sm:$0xff]
  %v10231 = vld [vmem:[#allocation2 + $0x1f0] sm:$0xff]
  %v10232 = vld [vmem:[#allocation2 + $0x1f8] sm:$0xff]
  %v10233 = vld [vmem:[#allocation2 + $0x200] sm:$0xff]
  %v10234 = vld [vmem:[#allocation2 + $0x208] sm:$0xff]
  %v10235 = vld [vmem:[#allocation2 + $0x210] sm:$0xff]
  %v10236 = vld [vmem:[#allocation2 + $0x218] sm:$0xff]
  %v10237 = vld [vmem:[#allocation2 + $0x220] sm:$0xff]
  %v10238 = vsel %vm5537, %v10174, 0.0
  %v10239 = vsel %vm5538, %v10175, 0.0
  %v10240 = vsel %vm5539, %v10176, 0.0
  %v10241 = vsel %vm5540, %v10177, 0.0
  %v10242 = vsel %vm5541, %v10178, 0.0
  %v10243 = vsel %vm5542, %v10179, 0.0
  %v10244 = vsel %vm5543, %v10180, 0.0
  %v10245 = vsel %vm5544, %v10181, 0.0
  %v10246 = vsel %vm5545, %v10182, 0.0
  %v10247 = vsel %vm5546, %v10183, 0.0
  %v10248 = vsel %vm5547, %v10184, 0.0
  %v10249 = vsel %vm5548, %v10185, 0.0
  %v10250 = vsel %vm5549, %v10186, 0.0
  %v10251 = vsel %vm5550, %v10187, 0.0
  %v10252 = vsel %vm5551, %v10188, 0.0
  %v10253 = vsel %vm5552, %v10189, 0.0
  %v10254 = vsel %vm5553, %v10190, 0.0
  %v10255 = vsel %vm5554, %v10191, 0.0
  %v10256 = vsel %vm5555, %v10192, 0.0
  %v10257 = vsel %vm5556, %v10193, 0.0
  %v10258 = vsel %vm5557, %v10194, 0.0
  %v10259 = vsel %vm5558, %v10195, 0.0
  %v10260 = vsel %vm5559, %v10196, 0.0
  %v10261 = vsel %vm5560, %v10197, 0.0
  %v10262 = vsel %vm5561, %v10198, 0.0
  %v10263 = vsel %vm5562, %v10199, 0.0
  %v10264 = vsel %vm5563, %v10200, 0.0
  %v10265 = vsel %vm5564, %v10201, 0.0
  %v10266 = vsel %vm5565, %v10202, 0.0
  %v10267 = vsel %vm5566, %v10203, 0.0
  %v10268 = vsel %vm5567, %v10204, 0.0
  %v10269 = vsel %vm5568, %v10205, 0.0
  %v10270 = vsel %vm5569, %v10206, 0.0
  %v10271 = vsel %vm5570, %v10207, 0.0
  %v10272 = vsel %vm5571, %v10208, 0.0
  %v10273 = vsel %vm5572, %v10209, 0.0
  %v10274 = vsel %vm5573, %v10210, 0.0
  %v10275 = vsel %vm5574, %v10211, 0.0
  %v10276 = vsel %vm5575, %v10212, 0.0
  %v10277 = vsel %vm5576, %v10213, 0.0
  %v10278 = vsel %vm5577, %v10214, 0.0
  %v10279 = vsel %vm5578, %v10215, 0.0
  %v10280 = vsel %vm5579, %v10216, 0.0
  %v10281 = vsel %vm5580, %v10217, 0.0
  %v10282 = vsel %vm5581, %v10218, 0.0
  %v10283 = vsel %vm5582, %v10219, 0.0
  %v10284 = vsel %vm5583, %v10220, 0.0
  %v10285 = vsel %vm5584, %v10221, 0.0
  %v10286 = vsel %vm5585, %v10222, 0.0
  %v10287 = vsel %vm5586, %v10223, 0.0
  %v10288 = vsel %vm5587, %v10224, 0.0
  %v10289 = vsel %vm5588, %v10225, 0.0
  %v10290 = vsel %vm5589, %v10226, 0.0
  %v10291 = vsel %vm5590, %v10227, 0.0
  %v10292 = vsel %vm5591, %v10228, 0.0
  %v10293 = vsel %vm5592, %v10229, 0.0
  %v10294 = vsel %vm5593, %v10230, 0.0
  %v10295 = vsel %vm5594, %v10231, 0.0
  %v10296 = vsel %vm5595, %v10232, 0.0
  %v10297 = vsel %vm5596, %v10233, 0.0
  %v10298 = vsel %vm5597, %v10234, 0.0
  %v10299 = vsel %vm5598, %v10235, 0.0
  %v10300 = vsel %vm5599, %v10236, 0.0
  %v10301 = vsel %vm5600, %v10237, 0.0
  %v10302 = vpack.c.bf16 %v10239, %v10238
  %v10303 = vpack.c.bf16 %v10241, %v10240
  %v10304 = vpack.c.bf16 %v10243, %v10242
  %v10305 = vpack.c.bf16 %v10245, %v10244
  %v10306 = vpack.c.bf16 %v10247, %v10246
  %v10307 = vpack.c.bf16 %v10249, %v10248
  %v10308 = vpack.c.bf16 %v10251, %v10250
  %v10309 = vpack.c.bf16 %v10253, %v10252
  %v10310 = vpack.c.bf16 %v10255, %v10254
  %v10311 = vpack.c.bf16 %v10257, %v10256
  %v10312 = vpack.c.bf16 %v10259, %v10258
  %v10313 = vpack.c.bf16 %v10261, %v10260
  %v10314 = vpack.c.bf16 %v10263, %v10262
  %v10315 = vpack.c.bf16 %v10265, %v10264
  %v10316 = vpack.c.bf16 %v10267, %v10266
  %v10317 = vpack.c.bf16 %v10269, %v10268
  %v10318 = vpack.c.bf16 %v10271, %v10270
  %v10319 = vpack.c.bf16 %v10273, %v10272
  %v10320 = vpack.c.bf16 %v10275, %v10274
  %v10321 = vpack.c.bf16 %v10277, %v10276
  %v10322 = vpack.c.bf16 %v10279, %v10278
  %v10323 = vpack.c.bf16 %v10281, %v10280
  %v10324 = vpack.c.bf16 %v10283, %v10282
  %v10325 = vpack.c.bf16 %v10285, %v10284
  %v10326 = vpack.c.bf16 %v10287, %v10286
  %v10327 = vpack.c.bf16 %v10289, %v10288
  %v10328 = vpack.c.bf16 %v10291, %v10290
  %v10329 = vpack.c.bf16 %v10293, %v10292
  %v10330 = vpack.c.bf16 %v10295, %v10294
  %v10331 = vpack.c.bf16 %v10297, %v10296
  %v10332 = vpack.c.bf16 %v10299, %v10298
  %v10333 = vpack.c.bf16 %v10301, %v10300
  %s10334 = scalar_lea.vmem %s2, 14
  %v10335 = vld [vmem:[%s10334] sm:$0x3]
  %v10337 = vsel %vm2145, %v10302, 0
  %v10340 = vsel %vm2145, %v10303, 0
  %v10343 = vsel %vm2145, %v10304, 0
  %v10346 = vsel %vm2145, %v10305, 0
  %v10349 = vsel %vm2145, %v10306, 0
  %v10352 = vsel %vm2145, %v10307, 0
  %v10355 = vsel %vm2145, %v10308, 0
  %v10358 = vsel %vm2145, %v10309, 0
  %v10361 = vsel %vm2145, %v10310, 0
  %v10364 = vsel %vm2145, %v10311, 0
  %v10367 = vsel %vm2145, %v10312, 0
  %v10370 = vsel %vm2145, %v10313, 0
  %v10373 = vsel %vm2145, %v10314, 0
  %v10376 = vsel %vm2145, %v10315, 0
  %v10379 = vsel %vm2145, %v10316, 0
  %v10382 = vsel %vm2145, %v10317, 0
  %v10385 = vsel %vm2145, %v10318, 0
  %v10388 = vsel %vm2145, %v10319, 0
  %v10391 = vsel %vm2145, %v10320, 0
  %v10394 = vsel %vm2145, %v10321, 0
  %v10397 = vsel %vm2145, %v10322, 0
  %v10400 = vsel %vm2145, %v10323, 0
  %v10403 = vsel %vm2145, %v10324, 0
  %v10406 = vsel %vm2145, %v10325, 0
  %v10409 = vsel %vm2145, %v10326, 0
  %v10412 = vsel %vm2145, %v10327, 0
  %v10415 = vsel %vm2145, %v10328, 0
  %v10418 = vsel %vm2145, %v10329, 0
  %v10421 = vsel %vm2145, %v10330, 0
  %v10424 = vsel %vm2145, %v10331, 0
  %v10427 = vsel %vm2145, %v10332, 0
  %v10430 = vsel %vm2145, %v10333, 0
  %v10433 = vsel %vm2242, %v10335, 0
  %10435 = vmatpush.bf16.msra.mxu0 0
  %10436 = vmatpush.bf16.msra.mxu0 0
  %10437 = vmatpush.bf16.msra.mxu0 0
  %10438 = vmatpush.bf16.msra.mxu0 0
  %10439 = vmatpush.bf16.msra.mxu0 0
  %10440 = vmatpush.bf16.msra.mxu0 0
  %10441 = vmatpush.bf16.msra.mxu0 0
  %10442 = vmatpush.bf16.msra.mxu0 %v10433
  %10443 = vmatmul.bf16.gmra.mxu0 %v10337
  %v10444 = vpop.f32.mrf.mxu0
  %v10445 = vadd.f32 0.0, %v10444
  %v10446 = vpop.f32.mrf.mxu0
  %v10447 = vadd.f32 0.0, %v10446
  %10448 = vmatmul.bf16.gmra.mxu0 %v10340
  %v10449 = vpop.f32.mrf.mxu0
  %v10450 = vadd.f32 0.0, %v10449
  %v10451 = vpop.f32.mrf.mxu0
  %v10452 = vadd.f32 0.0, %v10451
  %10453 = vmatmul.bf16.gmra.mxu0 %v10343
  %v10454 = vpop.f32.mrf.mxu0
  %v10455 = vadd.f32 0.0, %v10454
  %v10456 = vpop.f32.mrf.mxu0
  %v10457 = vadd.f32 0.0, %v10456
  %10458 = vmatmul.bf16.gmra.mxu0 %v10346
  %v10459 = vpop.f32.mrf.mxu0
  %v10460 = vadd.f32 0.0, %v10459
  %v10461 = vpop.f32.mrf.mxu0
  %v10462 = vadd.f32 0.0, %v10461
  %10463 = vmatmul.bf16.gmra.mxu0 %v10349
  %v10464 = vpop.f32.mrf.mxu0
  %v10465 = vadd.f32 0.0, %v10464
  %v10466 = vpop.f32.mrf.mxu0
  %v10467 = vadd.f32 0.0, %v10466
  %10468 = vmatmul.bf16.gmra.mxu0 %v10352
  %v10469 = vpop.f32.mrf.mxu0
  %v10470 = vadd.f32 0.0, %v10469
  %v10471 = vpop.f32.mrf.mxu0
  %v10472 = vadd.f32 0.0, %v10471
  %10473 = vmatmul.bf16.gmra.mxu0 %v10355
  %v10474 = vpop.f32.mrf.mxu0
  %v10475 = vadd.f32 0.0, %v10474
  %v10476 = vpop.f32.mrf.mxu0
  %v10477 = vadd.f32 0.0, %v10476
  %10478 = vmatmul.bf16.gmra.mxu0 %v10358
  %v10479 = vpop.f32.mrf.mxu0
  %v10480 = vadd.f32 0.0, %v10479
  %v10481 = vpop.f32.mrf.mxu0
  %v10482 = vadd.f32 0.0, %v10481
  %10483 = vmatmul.bf16.gmra.mxu0 %v10361
  %v10484 = vpop.f32.mrf.mxu0
  %v10485 = vadd.f32 0.0, %v10484
  %v10486 = vpop.f32.mrf.mxu0
  %v10487 = vadd.f32 0.0, %v10486
  %10488 = vmatmul.bf16.gmra.mxu0 %v10364
  %v10489 = vpop.f32.mrf.mxu0
  %v10490 = vadd.f32 0.0, %v10489
  %v10491 = vpop.f32.mrf.mxu0
  %v10492 = vadd.f32 0.0, %v10491
  %10493 = vmatmul.bf16.gmra.mxu0 %v10367
  %v10494 = vpop.f32.mrf.mxu0
  %v10495 = vadd.f32 0.0, %v10494
  %v10496 = vpop.f32.mrf.mxu0
  %v10497 = vadd.f32 0.0, %v10496
  %10498 = vmatmul.bf16.gmra.mxu0 %v10370
  %v10499 = vpop.f32.mrf.mxu0
  %v10500 = vadd.f32 0.0, %v10499
  %v10501 = vpop.f32.mrf.mxu0
  %v10502 = vadd.f32 0.0, %v10501
  %10503 = vmatmul.bf16.gmra.mxu0 %v10373
  %v10504 = vpop.f32.mrf.mxu0
  %v10505 = vadd.f32 0.0, %v10504
  %v10506 = vpop.f32.mrf.mxu0
  %v10507 = vadd.f32 0.0, %v10506
  %10508 = vmatmul.bf16.gmra.mxu0 %v10376
  %v10509 = vpop.f32.mrf.mxu0
  %v10510 = vadd.f32 0.0, %v10509
  %v10511 = vpop.f32.mrf.mxu0
  %v10512 = vadd.f32 0.0, %v10511
  %10513 = vmatmul.bf16.gmra.mxu0 %v10379
  %v10514 = vpop.f32.mrf.mxu0
  %v10515 = vadd.f32 0.0, %v10514
  %v10516 = vpop.f32.mrf.mxu0
  %v10517 = vadd.f32 0.0, %v10516
  %10518 = vmatmul.bf16.gmra.mxu0 %v10382
  %v10519 = vpop.f32.mrf.mxu0
  %v10520 = vadd.f32 0.0, %v10519
  %v10521 = vpop.f32.mrf.mxu0
  %v10522 = vadd.f32 0.0, %v10521
  %10523 = vmatmul.bf16.gmra.mxu0 %v10385
  %v10524 = vpop.f32.mrf.mxu0
  %v10525 = vadd.f32 0.0, %v10524
  %v10526 = vpop.f32.mrf.mxu0
  %v10527 = vadd.f32 0.0, %v10526
  %10528 = vmatmul.bf16.gmra.mxu0 %v10388
  %v10529 = vpop.f32.mrf.mxu0
  %v10530 = vadd.f32 0.0, %v10529
  %v10531 = vpop.f32.mrf.mxu0
  %v10532 = vadd.f32 0.0, %v10531
  %10533 = vmatmul.bf16.gmra.mxu0 %v10391
  %v10534 = vpop.f32.mrf.mxu0
  %v10535 = vadd.f32 0.0, %v10534
  %v10536 = vpop.f32.mrf.mxu0
  %v10537 = vadd.f32 0.0, %v10536
  %10538 = vmatmul.bf16.gmra.mxu0 %v10394
  %v10539 = vpop.f32.mrf.mxu0
  %v10540 = vadd.f32 0.0, %v10539
  %v10541 = vpop.f32.mrf.mxu0
  %v10542 = vadd.f32 0.0, %v10541
  %10543 = vmatmul.bf16.gmra.mxu0 %v10397
  %v10544 = vpop.f32.mrf.mxu0
  %v10545 = vadd.f32 0.0, %v10544
  %v10546 = vpop.f32.mrf.mxu0
  %v10547 = vadd.f32 0.0, %v10546
  %10548 = vmatmul.bf16.gmra.mxu0 %v10400
  %v10549 = vpop.f32.mrf.mxu0
  %v10550 = vadd.f32 0.0, %v10549
  %v10551 = vpop.f32.mrf.mxu0
  %v10552 = vadd.f32 0.0, %v10551
  %10553 = vmatmul.bf16.gmra.mxu0 %v10403
  %v10554 = vpop.f32.mrf.mxu0
  %v10555 = vadd.f32 0.0, %v10554
  %v10556 = vpop.f32.mrf.mxu0
  %v10557 = vadd.f32 0.0, %v10556
  %10558 = vmatmul.bf16.gmra.mxu0 %v10406
  %v10559 = vpop.f32.mrf.mxu0
  %v10560 = vadd.f32 0.0, %v10559
  %v10561 = vpop.f32.mrf.mxu0
  %v10562 = vadd.f32 0.0, %v10561
  %10563 = vmatmul.bf16.gmra.mxu0 %v10409
  %v10564 = vpop.f32.mrf.mxu0
  %v10565 = vadd.f32 0.0, %v10564
  %v10566 = vpop.f32.mrf.mxu0
  %v10567 = vadd.f32 0.0, %v10566
  %10568 = vmatmul.bf16.gmra.mxu0 %v10412
  %v10569 = vpop.f32.mrf.mxu0
  %v10570 = vadd.f32 0.0, %v10569
  %v10571 = vpop.f32.mrf.mxu0
  %v10572 = vadd.f32 0.0, %v10571
  %10573 = vmatmul.bf16.gmra.mxu0 %v10415
  %v10574 = vpop.f32.mrf.mxu0
  %v10575 = vadd.f32 0.0, %v10574
  %v10576 = vpop.f32.mrf.mxu0
  %v10577 = vadd.f32 0.0, %v10576
  %10578 = vmatmul.bf16.gmra.mxu0 %v10418
  %v10579 = vpop.f32.mrf.mxu0
  %v10580 = vadd.f32 0.0, %v10579
  %v10581 = vpop.f32.mrf.mxu0
  %v10582 = vadd.f32 0.0, %v10581
  %10583 = vmatmul.bf16.gmra.mxu0 %v10421
  %v10584 = vpop.f32.mrf.mxu0
  %v10585 = vadd.f32 0.0, %v10584
  %v10586 = vpop.f32.mrf.mxu0
  %v10587 = vadd.f32 0.0, %v10586
  %10588 = vmatmul.bf16.gmra.mxu0 %v10424
  %v10589 = vpop.f32.mrf.mxu0
  %v10590 = vadd.f32 0.0, %v10589
  %v10591 = vpop.f32.mrf.mxu0
  %v10592 = vadd.f32 0.0, %v10591
  %10593 = vmatmul.bf16.gmra.mxu0 %v10427
  %v10594 = vpop.f32.mrf.mxu0
  %v10595 = vadd.f32 0.0, %v10594
  %v10596 = vpop.f32.mrf.mxu0
  %v10597 = vadd.f32 0.0, %v10596
  %10598 = vmatmul.bf16.gmra.mxu0 %v10430
  %v10599 = vpop.f32.mrf.mxu0
  %v10600 = vadd.f32 0.0, %v10599
  %v10601 = vpop.f32.mrf.mxu0
  %v10602 = vadd.f32 0.0, %v10601
  %10603 = vdwg.mxu0
  %v10604 = vadd.f32 %v10110, %v10445
  %v10605 = vadd.f32 %v10111, %v10447
  %v10606 = vadd.f32 %v10112, %v10450
  %v10607 = vadd.f32 %v10113, %v10452
  %v10608 = vadd.f32 %v10114, %v10455
  %v10609 = vadd.f32 %v10115, %v10457
  %v10610 = vadd.f32 %v10116, %v10460
  %v10611 = vadd.f32 %v10117, %v10462
  %v10612 = vadd.f32 %v10118, %v10465
  %v10613 = vadd.f32 %v10119, %v10467
  %v10614 = vadd.f32 %v10120, %v10470
  %v10615 = vadd.f32 %v10121, %v10472
  %v10616 = vadd.f32 %v10122, %v10475
  %v10617 = vadd.f32 %v10123, %v10477
  %v10618 = vadd.f32 %v10124, %v10480
  %v10619 = vadd.f32 %v10125, %v10482
  %v10620 = vadd.f32 %v10126, %v10485
  %v10621 = vadd.f32 %v10127, %v10487
  %v10622 = vadd.f32 %v10128, %v10490
  %v10623 = vadd.f32 %v10129, %v10492
  %v10624 = vadd.f32 %v10130, %v10495
  %v10625 = vadd.f32 %v10131, %v10497
  %v10626 = vadd.f32 %v10132, %v10500
  %v10627 = vadd.f32 %v10133, %v10502
  %v10628 = vadd.f32 %v10134, %v10505
  %v10629 = vadd.f32 %v10135, %v10507
  %v10630 = vadd.f32 %v10136, %v10510
  %v10631 = vadd.f32 %v10137, %v10512
  %v10632 = vadd.f32 %v10138, %v10515
  %v10633 = vadd.f32 %v10139, %v10517
  %v10634 = vadd.f32 %v10140, %v10520
  %v10635 = vadd.f32 %v10141, %v10522
  %v10636 = vadd.f32 %v10142, %v10525
  %v10637 = vadd.f32 %v10143, %v10527
  %v10638 = vadd.f32 %v10144, %v10530
  %v10639 = vadd.f32 %v10145, %v10532
  %v10640 = vadd.f32 %v10146, %v10535
  %v10641 = vadd.f32 %v10147, %v10537
  %v10642 = vadd.f32 %v10148, %v10540
  %v10643 = vadd.f32 %v10149, %v10542
  %v10644 = vadd.f32 %v10150, %v10545
  %v10645 = vadd.f32 %v10151, %v10547
  %v10646 = vadd.f32 %v10152, %v10550
  %v10647 = vadd.f32 %v10153, %v10552
  %v10648 = vadd.f32 %v10154, %v10555
  %v10649 = vadd.f32 %v10155, %v10557
  %v10650 = vadd.f32 %v10156, %v10560
  %v10651 = vadd.f32 %v10157, %v10562
  %v10652 = vadd.f32 %v10158, %v10565
  %v10653 = vadd.f32 %v10159, %v10567
  %v10654 = vadd.f32 %v10160, %v10570
  %v10655 = vadd.f32 %v10161, %v10572
  %v10656 = vadd.f32 %v10162, %v10575
  %v10657 = vadd.f32 %v10163, %v10577
  %v10658 = vadd.f32 %v10164, %v10580
  %v10659 = vadd.f32 %v10165, %v10582
  %v10660 = vadd.f32 %v10166, %v10585
  %v10661 = vadd.f32 %v10167, %v10587
  %v10662 = vadd.f32 %v10168, %v10590
  %v10663 = vadd.f32 %v10169, %v10592
  %v10664 = vadd.f32 %v10170, %v10595
  %v10665 = vadd.f32 %v10171, %v10597
  %v10666 = vadd.f32 %v10172, %v10600
  %v10667 = vadd.f32 %v10173, %v10602
  %v10668 = vld [vmem:[#allocation2 + $0x29] sm:$0xff]
  %v10669 = vld [vmem:[#allocation2 + $0x31] sm:$0xff]
  %v10670 = vld [vmem:[#allocation2 + $0x39] sm:$0xff]
  %v10671 = vld [vmem:[#allocation2 + $0x41] sm:$0xff]
  %v10672 = vld [vmem:[#allocation2 + $0x49] sm:$0xff]
  %v10673 = vld [vmem:[#allocation2 + $0x51] sm:$0xff]
  %v10674 = vld [vmem:[#allocation2 + $0x59] sm:$0xff]
  %v10675 = vld [vmem:[#allocation2 + $0x61] sm:$0xff]
  %v10676 = vld [vmem:[#allocation2 + $0x69] sm:$0xff]
  %v10677 = vld [vmem:[#allocation2 + $0x71] sm:$0xff]
  %v10678 = vld [vmem:[#allocation2 + $0x79] sm:$0xff]
  %v10679 = vld [vmem:[#allocation2 + $0x81] sm:$0xff]
  %v10680 = vld [vmem:[#allocation2 + $0x89] sm:$0xff]
  %v10681 = vld [vmem:[#allocation2 + $0x91] sm:$0xff]
  %v10682 = vld [vmem:[#allocation2 + $0x99] sm:$0xff]
  %v10683 = vld [vmem:[#allocation2 + $0xa1] sm:$0xff]
  %v10684 = vld [vmem:[#allocation2 + $0xa9] sm:$0xff]
  %v10685 = vld [vmem:[#allocation2 + $0xb1] sm:$0xff]
  %v10686 = vld [vmem:[#allocation2 + $0xb9] sm:$0xff]
  %v10687 = vld [vmem:[#allocation2 + $0xc1] sm:$0xff]
  %v10688 = vld [vmem:[#allocation2 + $0xc9] sm:$0xff]
  %v10689 = vld [vmem:[#allocation2 + $0xd1] sm:$0xff]
  %v10690 = vld [vmem:[#allocation2 + $0xd9] sm:$0xff]
  %v10691 = vld [vmem:[#allocation2 + $0xe1] sm:$0xff]
  %v10692 = vld [vmem:[#allocation2 + $0xe9] sm:$0xff]
  %v10693 = vld [vmem:[#allocation2 + $0xf1] sm:$0xff]
  %v10694 = vld [vmem:[#allocation2 + $0xf9] sm:$0xff]
  %v10695 = vld [vmem:[#allocation2 + $0x101] sm:$0xff]
  %v10696 = vld [vmem:[#allocation2 + $0x109] sm:$0xff]
  %v10697 = vld [vmem:[#allocation2 + $0x111] sm:$0xff]
  %v10698 = vld [vmem:[#allocation2 + $0x119] sm:$0xff]
  %v10699 = vld [vmem:[#allocation2 + $0x121] sm:$0xff]
  %v10700 = vld [vmem:[#allocation2 + $0x129] sm:$0xff]
  %v10701 = vld [vmem:[#allocation2 + $0x131] sm:$0xff]
  %v10702 = vld [vmem:[#allocation2 + $0x139] sm:$0xff]
  %v10703 = vld [vmem:[#allocation2 + $0x141] sm:$0xff]
  %v10704 = vld [vmem:[#allocation2 + $0x149] sm:$0xff]
  %v10705 = vld [vmem:[#allocation2 + $0x151] sm:$0xff]
  %v10706 = vld [vmem:[#allocation2 + $0x159] sm:$0xff]
  %v10707 = vld [vmem:[#allocation2 + $0x161] sm:$0xff]
  %v10708 = vld [vmem:[#allocation2 + $0x169] sm:$0xff]
  %v10709 = vld [vmem:[#allocation2 + $0x171] sm:$0xff]
  %v10710 = vld [vmem:[#allocation2 + $0x179] sm:$0xff]
  %v10711 = vld [vmem:[#allocation2 + $0x181] sm:$0xff]
  %v10712 = vld [vmem:[#allocation2 + $0x189] sm:$0xff]
  %v10713 = vld [vmem:[#allocation2 + $0x191] sm:$0xff]
  %v10714 = vld [vmem:[#allocation2 + $0x199] sm:$0xff]
  %v10715 = vld [vmem:[#allocation2 + $0x1a1] sm:$0xff]
  %v10716 = vld [vmem:[#allocation2 + $0x1a9] sm:$0xff]
  %v10717 = vld [vmem:[#allocation2 + $0x1b1] sm:$0xff]
  %v10718 = vld [vmem:[#allocation2 + $0x1b9] sm:$0xff]
  %v10719 = vld [vmem:[#allocation2 + $0x1c1] sm:$0xff]
  %v10720 = vld [vmem:[#allocation2 + $0x1c9] sm:$0xff]
  %v10721 = vld [vmem:[#allocation2 + $0x1d1] sm:$0xff]
  %v10722 = vld [vmem:[#allocation2 + $0x1d9] sm:$0xff]
  %v10723 = vld [vmem:[#allocation2 + $0x1e1] sm:$0xff]
  %v10724 = vld [vmem:[#allocation2 + $0x1e9] sm:$0xff]
  %v10725 = vld [vmem:[#allocation2 + $0x1f1] sm:$0xff]
  %v10726 = vld [vmem:[#allocation2 + $0x1f9] sm:$0xff]
  %v10727 = vld [vmem:[#allocation2 + $0x201] sm:$0xff]
  %v10728 = vld [vmem:[#allocation2 + $0x209] sm:$0xff]
  %v10729 = vld [vmem:[#allocation2 + $0x211] sm:$0xff]
  %v10730 = vld [vmem:[#allocation2 + $0x219] sm:$0xff]
  %v10731 = vld [vmem:[#allocation2 + $0x221] sm:$0xff]
  %v10732 = vsel %vm6095, %v10668, 0.0
  %v10733 = vsel %vm6096, %v10669, 0.0
  %v10734 = vsel %vm6097, %v10670, 0.0
  %v10735 = vsel %vm6098, %v10671, 0.0
  %v10736 = vsel %vm6099, %v10672, 0.0
  %v10737 = vsel %vm6100, %v10673, 0.0
  %v10738 = vsel %vm6101, %v10674, 0.0
  %v10739 = vsel %vm6102, %v10675, 0.0
  %v10740 = vsel %vm6103, %v10676, 0.0
  %v10741 = vsel %vm6104, %v10677, 0.0
  %v10742 = vsel %vm6105, %v10678, 0.0
  %v10743 = vsel %vm6106, %v10679, 0.0
  %v10744 = vsel %vm6107, %v10680, 0.0
  %v10745 = vsel %vm6108, %v10681, 0.0
  %v10746 = vsel %vm6109, %v10682, 0.0
  %v10747 = vsel %vm6110, %v10683, 0.0
  %v10748 = vsel %vm6111, %v10684, 0.0
  %v10749 = vsel %vm6112, %v10685, 0.0
  %v10750 = vsel %vm6113, %v10686, 0.0
  %v10751 = vsel %vm6114, %v10687, 0.0
  %v10752 = vsel %vm6115, %v10688, 0.0
  %v10753 = vsel %vm6116, %v10689, 0.0
  %v10754 = vsel %vm6117, %v10690, 0.0
  %v10755 = vsel %vm6118, %v10691, 0.0
  %v10756 = vsel %vm6119, %v10692, 0.0
  %v10757 = vsel %vm6120, %v10693, 0.0
  %v10758 = vsel %vm6121, %v10694, 0.0
  %v10759 = vsel %vm6122, %v10695, 0.0
  %v10760 = vsel %vm6123, %v10696, 0.0
  %v10761 = vsel %vm6124, %v10697, 0.0
  %v10762 = vsel %vm6125, %v10698, 0.0
  %v10763 = vsel %vm6126, %v10699, 0.0
  %v10764 = vsel %vm6127, %v10700, 0.0
  %v10765 = vsel %vm6128, %v10701, 0.0
  %v10766 = vsel %vm6129, %v10702, 0.0
  %v10767 = vsel %vm6130, %v10703, 0.0
  %v10768 = vsel %vm6131, %v10704, 0.0
  %v10769 = vsel %vm6132, %v10705, 0.0
  %v10770 = vsel %vm6133, %v10706, 0.0
  %v10771 = vsel %vm6134, %v10707, 0.0
  %v10772 = vsel %vm6135, %v10708, 0.0
  %v10773 = vsel %vm6136, %v10709, 0.0
  %v10774 = vsel %vm6137, %v10710, 0.0
  %v10775 = vsel %vm6138, %v10711, 0.0
  %v10776 = vsel %vm6139, %v10712, 0.0
  %v10777 = vsel %vm6140, %v10713, 0.0
  %v10778 = vsel %vm6141, %v10714, 0.0
  %v10779 = vsel %vm6142, %v10715, 0.0
  %v10780 = vsel %vm6143, %v10716, 0.0
  %v10781 = vsel %vm6144, %v10717, 0.0
  %v10782 = vsel %vm6145, %v10718, 0.0
  %v10783 = vsel %vm6146, %v10719, 0.0
  %v10784 = vsel %vm6147, %v10720, 0.0
  %v10785 = vsel %vm6148, %v10721, 0.0
  %v10786 = vsel %vm6149, %v10722, 0.0
  %v10787 = vsel %vm6150, %v10723, 0.0
  %v10788 = vsel %vm6151, %v10724, 0.0
  %v10789 = vsel %vm6152, %v10725, 0.0
  %v10790 = vsel %vm6153, %v10726, 0.0
  %v10791 = vsel %vm6154, %v10727, 0.0
  %v10792 = vsel %vm6155, %v10728, 0.0
  %v10793 = vsel %vm6156, %v10729, 0.0
  %v10794 = vsel %vm6157, %v10730, 0.0
  %v10795 = vsel %vm6158, %v10731, 0.0
  %v10796 = vpack.c.bf16 %v10733, %v10732
  %v10797 = vpack.c.bf16 %v10735, %v10734
  %v10798 = vpack.c.bf16 %v10737, %v10736
  %v10799 = vpack.c.bf16 %v10739, %v10738
  %v10800 = vpack.c.bf16 %v10741, %v10740
  %v10801 = vpack.c.bf16 %v10743, %v10742
  %v10802 = vpack.c.bf16 %v10745, %v10744
  %v10803 = vpack.c.bf16 %v10747, %v10746
  %v10804 = vpack.c.bf16 %v10749, %v10748
  %v10805 = vpack.c.bf16 %v10751, %v10750
  %v10806 = vpack.c.bf16 %v10753, %v10752
  %v10807 = vpack.c.bf16 %v10755, %v10754
  %v10808 = vpack.c.bf16 %v10757, %v10756
  %v10809 = vpack.c.bf16 %v10759, %v10758
  %v10810 = vpack.c.bf16 %v10761, %v10760
  %v10811 = vpack.c.bf16 %v10763, %v10762
  %v10812 = vpack.c.bf16 %v10765, %v10764
  %v10813 = vpack.c.bf16 %v10767, %v10766
  %v10814 = vpack.c.bf16 %v10769, %v10768
  %v10815 = vpack.c.bf16 %v10771, %v10770
  %v10816 = vpack.c.bf16 %v10773, %v10772
  %v10817 = vpack.c.bf16 %v10775, %v10774
  %v10818 = vpack.c.bf16 %v10777, %v10776
  %v10819 = vpack.c.bf16 %v10779, %v10778
  %v10820 = vpack.c.bf16 %v10781, %v10780
  %v10821 = vpack.c.bf16 %v10783, %v10782
  %v10822 = vpack.c.bf16 %v10785, %v10784
  %v10823 = vpack.c.bf16 %v10787, %v10786
  %v10824 = vpack.c.bf16 %v10789, %v10788
  %v10825 = vpack.c.bf16 %v10791, %v10790
  %v10826 = vpack.c.bf16 %v10793, %v10792
  %v10827 = vpack.c.bf16 %v10795, %v10794
  %s10828 = scalar_lea.vmem %s2, 16
  %v10829 = vld [vmem:[%s10828] sm:$0x3]
  %v10831 = vsel %vm2145, %v10796, 0
  %v10834 = vsel %vm2145, %v10797, 0
  %v10837 = vsel %vm2145, %v10798, 0
  %v10840 = vsel %vm2145, %v10799, 0
  %v10843 = vsel %vm2145, %v10800, 0
  %v10846 = vsel %vm2145, %v10801, 0
  %v10849 = vsel %vm2145, %v10802, 0
  %v10852 = vsel %vm2145, %v10803, 0
  %v10855 = vsel %vm2145, %v10804, 0
  %v10858 = vsel %vm2145, %v10805, 0
  %v10861 = vsel %vm2145, %v10806, 0
  %v10864 = vsel %vm2145, %v10807, 0
  %v10867 = vsel %vm2145, %v10808, 0
  %v10870 = vsel %vm2145, %v10809, 0
  %v10873 = vsel %vm2145, %v10810, 0
  %v10876 = vsel %vm2145, %v10811, 0
  %v10879 = vsel %vm2145, %v10812, 0
  %v10882 = vsel %vm2145, %v10813, 0
  %v10885 = vsel %vm2145, %v10814, 0
  %v10888 = vsel %vm2145, %v10815, 0
  %v10891 = vsel %vm2145, %v10816, 0
  %v10894 = vsel %vm2145, %v10817, 0
  %v10897 = vsel %vm2145, %v10818, 0
  %v10900 = vsel %vm2145, %v10819, 0
  %v10903 = vsel %vm2145, %v10820, 0
  %v10906 = vsel %vm2145, %v10821, 0
  %v10909 = vsel %vm2145, %v10822, 0
  %v10912 = vsel %vm2145, %v10823, 0
  %v10915 = vsel %vm2145, %v10824, 0
  %v10918 = vsel %vm2145, %v10825, 0
  %v10921 = vsel %vm2145, %v10826, 0
  %v10924 = vsel %vm2145, %v10827, 0
  %v10927 = vsel %vm2242, %v10829, 0
  %10929 = vmatpush.bf16.msra.mxu0 0
  %10930 = vmatpush.bf16.msra.mxu0 0
  %10931 = vmatpush.bf16.msra.mxu0 0
  %10932 = vmatpush.bf16.msra.mxu0 0
  %10933 = vmatpush.bf16.msra.mxu0 0
  %10934 = vmatpush.bf16.msra.mxu0 0
  %10935 = vmatpush.bf16.msra.mxu0 0
  %10936 = vmatpush.bf16.msra.mxu0 %v10927
  %10937 = vmatmul.bf16.gmra.mxu0 %v10831
  %v10938 = vpop.f32.mrf.mxu0
  %v10939 = vadd.f32 0.0, %v10938
  %v10940 = vpop.f32.mrf.mxu0
  %v10941 = vadd.f32 0.0, %v10940
  %10942 = vmatmul.bf16.gmra.mxu0 %v10834
  %v10943 = vpop.f32.mrf.mxu0
  %v10944 = vadd.f32 0.0, %v10943
  %v10945 = vpop.f32.mrf.mxu0
  %v10946 = vadd.f32 0.0, %v10945
  %10947 = vmatmul.bf16.gmra.mxu0 %v10837
  %v10948 = vpop.f32.mrf.mxu0
  %v10949 = vadd.f32 0.0, %v10948
  %v10950 = vpop.f32.mrf.mxu0
  %v10951 = vadd.f32 0.0, %v10950
  %10952 = vmatmul.bf16.gmra.mxu0 %v10840
  %v10953 = vpop.f32.mrf.mxu0
  %v10954 = vadd.f32 0.0, %v10953
  %v10955 = vpop.f32.mrf.mxu0
  %v10956 = vadd.f32 0.0, %v10955
  %10957 = vmatmul.bf16.gmra.mxu0 %v10843
  %v10958 = vpop.f32.mrf.mxu0
  %v10959 = vadd.f32 0.0, %v10958
  %v10960 = vpop.f32.mrf.mxu0
  %v10961 = vadd.f32 0.0, %v10960
  %10962 = vmatmul.bf16.gmra.mxu0 %v10846
  %v10963 = vpop.f32.mrf.mxu0
  %v10964 = vadd.f32 0.0, %v10963
  %v10965 = vpop.f32.mrf.mxu0
  %v10966 = vadd.f32 0.0, %v10965
  %10967 = vmatmul.bf16.gmra.mxu0 %v10849
  %v10968 = vpop.f32.mrf.mxu0
  %v10969 = vadd.f32 0.0, %v10968
  %v10970 = vpop.f32.mrf.mxu0
  %v10971 = vadd.f32 0.0, %v10970
  %10972 = vmatmul.bf16.gmra.mxu0 %v10852
  %v10973 = vpop.f32.mrf.mxu0
  %v10974 = vadd.f32 0.0, %v10973
  %v10975 = vpop.f32.mrf.mxu0
  %v10976 = vadd.f32 0.0, %v10975
  %10977 = vmatmul.bf16.gmra.mxu0 %v10855
  %v10978 = vpop.f32.mrf.mxu0
  %v10979 = vadd.f32 0.0, %v10978
  %v10980 = vpop.f32.mrf.mxu0
  %v10981 = vadd.f32 0.0, %v10980
  %10982 = vmatmul.bf16.gmra.mxu0 %v10858
  %v10983 = vpop.f32.mrf.mxu0
  %v10984 = vadd.f32 0.0, %v10983
  %v10985 = vpop.f32.mrf.mxu0
  %v10986 = vadd.f32 0.0, %v10985
  %10987 = vmatmul.bf16.gmra.mxu0 %v10861
  %v10988 = vpop.f32.mrf.mxu0
  %v10989 = vadd.f32 0.0, %v10988
  %v10990 = vpop.f32.mrf.mxu0
  %v10991 = vadd.f32 0.0, %v10990
  %10992 = vmatmul.bf16.gmra.mxu0 %v10864
  %v10993 = vpop.f32.mrf.mxu0
  %v10994 = vadd.f32 0.0, %v10993
  %v10995 = vpop.f32.mrf.mxu0
  %v10996 = vadd.f32 0.0, %v10995
  %10997 = vmatmul.bf16.gmra.mxu0 %v10867
  %v10998 = vpop.f32.mrf.mxu0
  %v10999 = vadd.f32 0.0, %v10998
  %v11000 = vpop.f32.mrf.mxu0
  %v11001 = vadd.f32 0.0, %v11000
  %11002 = vmatmul.bf16.gmra.mxu0 %v10870
  %v11003 = vpop.f32.mrf.mxu0
  %v11004 = vadd.f32 0.0, %v11003
  %v11005 = vpop.f32.mrf.mxu0
  %v11006 = vadd.f32 0.0, %v11005
  %11007 = vmatmul.bf16.gmra.mxu0 %v10873
  %v11008 = vpop.f32.mrf.mxu0
  %v11009 = vadd.f32 0.0, %v11008
  %v11010 = vpop.f32.mrf.mxu0
  %v11011 = vadd.f32 0.0, %v11010
  %11012 = vmatmul.bf16.gmra.mxu0 %v10876
  %v11013 = vpop.f32.mrf.mxu0
  %v11014 = vadd.f32 0.0, %v11013
  %v11015 = vpop.f32.mrf.mxu0
  %v11016 = vadd.f32 0.0, %v11015
  %11017 = vmatmul.bf16.gmra.mxu0 %v10879
  %v11018 = vpop.f32.mrf.mxu0
  %v11019 = vadd.f32 0.0, %v11018
  %v11020 = vpop.f32.mrf.mxu0
  %v11021 = vadd.f32 0.0, %v11020
  %11022 = vmatmul.bf16.gmra.mxu0 %v10882
  %v11023 = vpop.f32.mrf.mxu0
  %v11024 = vadd.f32 0.0, %v11023
  %v11025 = vpop.f32.mrf.mxu0
  %v11026 = vadd.f32 0.0, %v11025
  %11027 = vmatmul.bf16.gmra.mxu0 %v10885
  %v11028 = vpop.f32.mrf.mxu0
  %v11029 = vadd.f32 0.0, %v11028
  %v11030 = vpop.f32.mrf.mxu0
  %v11031 = vadd.f32 0.0, %v11030
  %11032 = vmatmul.bf16.gmra.mxu0 %v10888
  %v11033 = vpop.f32.mrf.mxu0
  %v11034 = vadd.f32 0.0, %v11033
  %v11035 = vpop.f32.mrf.mxu0
  %v11036 = vadd.f32 0.0, %v11035
  %11037 = vmatmul.bf16.gmra.mxu0 %v10891
  %v11038 = vpop.f32.mrf.mxu0
  %v11039 = vadd.f32 0.0, %v11038
  %v11040 = vpop.f32.mrf.mxu0
  %v11041 = vadd.f32 0.0, %v11040
  %11042 = vmatmul.bf16.gmra.mxu0 %v10894
  %v11043 = vpop.f32.mrf.mxu0
  %v11044 = vadd.f32 0.0, %v11043
  %v11045 = vpop.f32.mrf.mxu0
  %v11046 = vadd.f32 0.0, %v11045
  %11047 = vmatmul.bf16.gmra.mxu0 %v10897
  %v11048 = vpop.f32.mrf.mxu0
  %v11049 = vadd.f32 0.0, %v11048
  %v11050 = vpop.f32.mrf.mxu0
  %v11051 = vadd.f32 0.0, %v11050
  %11052 = vmatmul.bf16.gmra.mxu0 %v10900
  %v11053 = vpop.f32.mrf.mxu0
  %v11054 = vadd.f32 0.0, %v11053
  %v11055 = vpop.f32.mrf.mxu0
  %v11056 = vadd.f32 0.0, %v11055
  %11057 = vmatmul.bf16.gmra.mxu0 %v10903
  %v11058 = vpop.f32.mrf.mxu0
  %v11059 = vadd.f32 0.0, %v11058
  %v11060 = vpop.f32.mrf.mxu0
  %v11061 = vadd.f32 0.0, %v11060
  %11062 = vmatmul.bf16.gmra.mxu0 %v10906
  %v11063 = vpop.f32.mrf.mxu0
  %v11064 = vadd.f32 0.0, %v11063
  %v11065 = vpop.f32.mrf.mxu0
  %v11066 = vadd.f32 0.0, %v11065
  %11067 = vmatmul.bf16.gmra.mxu0 %v10909
  %v11068 = vpop.f32.mrf.mxu0
  %v11069 = vadd.f32 0.0, %v11068
  %v11070 = vpop.f32.mrf.mxu0
  %v11071 = vadd.f32 0.0, %v11070
  %11072 = vmatmul.bf16.gmra.mxu0 %v10912
  %v11073 = vpop.f32.mrf.mxu0
  %v11074 = vadd.f32 0.0, %v11073
  %v11075 = vpop.f32.mrf.mxu0
  %v11076 = vadd.f32 0.0, %v11075
  %11077 = vmatmul.bf16.gmra.mxu0 %v10915
  %v11078 = vpop.f32.mrf.mxu0
  %v11079 = vadd.f32 0.0, %v11078
  %v11080 = vpop.f32.mrf.mxu0
  %v11081 = vadd.f32 0.0, %v11080
  %11082 = vmatmul.bf16.gmra.mxu0 %v10918
  %v11083 = vpop.f32.mrf.mxu0
  %v11084 = vadd.f32 0.0, %v11083
  %v11085 = vpop.f32.mrf.mxu0
  %v11086 = vadd.f32 0.0, %v11085
  %11087 = vmatmul.bf16.gmra.mxu0 %v10921
  %v11088 = vpop.f32.mrf.mxu0
  %v11089 = vadd.f32 0.0, %v11088
  %v11090 = vpop.f32.mrf.mxu0
  %v11091 = vadd.f32 0.0, %v11090
  %11092 = vmatmul.bf16.gmra.mxu0 %v10924
  %v11093 = vpop.f32.mrf.mxu0
  %v11094 = vadd.f32 0.0, %v11093
  %v11095 = vpop.f32.mrf.mxu0
  %v11096 = vadd.f32 0.0, %v11095
  %11097 = vdwg.mxu0
  %v11098 = vadd.f32 %v10604, %v10939
  %v11099 = vadd.f32 %v10605, %v10941
  %v11100 = vadd.f32 %v10606, %v10944
  %v11101 = vadd.f32 %v10607, %v10946
  %v11102 = vadd.f32 %v10608, %v10949
  %v11103 = vadd.f32 %v10609, %v10951
  %v11104 = vadd.f32 %v10610, %v10954
  %v11105 = vadd.f32 %v10611, %v10956
  %v11106 = vadd.f32 %v10612, %v10959
  %v11107 = vadd.f32 %v10613, %v10961
  %v11108 = vadd.f32 %v10614, %v10964
  %v11109 = vadd.f32 %v10615, %v10966
  %v11110 = vadd.f32 %v10616, %v10969
  %v11111 = vadd.f32 %v10617, %v10971
  %v11112 = vadd.f32 %v10618, %v10974
  %v11113 = vadd.f32 %v10619, %v10976
  %v11114 = vadd.f32 %v10620, %v10979
  %v11115 = vadd.f32 %v10621, %v10981
  %v11116 = vadd.f32 %v10622, %v10984
  %v11117 = vadd.f32 %v10623, %v10986
  %v11118 = vadd.f32 %v10624, %v10989
  %v11119 = vadd.f32 %v10625, %v10991
  %v11120 = vadd.f32 %v10626, %v10994
  %v11121 = vadd.f32 %v10627, %v10996
  %v11122 = vadd.f32 %v10628, %v10999
  %v11123 = vadd.f32 %v10629, %v11001
  %v11124 = vadd.f32 %v10630, %v11004
  %v11125 = vadd.f32 %v10631, %v11006
  %v11126 = vadd.f32 %v10632, %v11009
  %v11127 = vadd.f32 %v10633, %v11011
  %v11128 = vadd.f32 %v10634, %v11014
  %v11129 = vadd.f32 %v10635, %v11016
  %v11130 = vadd.f32 %v10636, %v11019
  %v11131 = vadd.f32 %v10637, %v11021
  %v11132 = vadd.f32 %v10638, %v11024
  %v11133 = vadd.f32 %v10639, %v11026
  %v11134 = vadd.f32 %v10640, %v11029
  %v11135 = vadd.f32 %v10641, %v11031
  %v11136 = vadd.f32 %v10642, %v11034
  %v11137 = vadd.f32 %v10643, %v11036
  %v11138 = vadd.f32 %v10644, %v11039
  %v11139 = vadd.f32 %v10645, %v11041
  %v11140 = vadd.f32 %v10646, %v11044
  %v11141 = vadd.f32 %v10647, %v11046
  %v11142 = vadd.f32 %v10648, %v11049
  %v11143 = vadd.f32 %v10649, %v11051
  %v11144 = vadd.f32 %v10650, %v11054
  %v11145 = vadd.f32 %v10651, %v11056
  %v11146 = vadd.f32 %v10652, %v11059
  %v11147 = vadd.f32 %v10653, %v11061
  %v11148 = vadd.f32 %v10654, %v11064
  %v11149 = vadd.f32 %v10655, %v11066
  %v11150 = vadd.f32 %v10656, %v11069
  %v11151 = vadd.f32 %v10657, %v11071
  %v11152 = vadd.f32 %v10658, %v11074
  %v11153 = vadd.f32 %v10659, %v11076
  %v11154 = vadd.f32 %v10660, %v11079
  %v11155 = vadd.f32 %v10661, %v11081
  %v11156 = vadd.f32 %v10662, %v11084
  %v11157 = vadd.f32 %v10663, %v11086
  %v11158 = vadd.f32 %v10664, %v11089
  %v11159 = vadd.f32 %v10665, %v11091
  %v11160 = vadd.f32 %v10666, %v11094
  %v11161 = vadd.f32 %v10667, %v11096
  %v11162 = vmul.f32 %v11098, %v23
  %v11163 = vmul.f32 %v11099, %v23
  %v11164 = vmul.f32 %v11100, %v23
  %v11165 = vmul.f32 %v11101, %v23
  %v11166 = vmul.f32 %v11102, %v23
  %v11167 = vmul.f32 %v11103, %v23
  %v11168 = vmul.f32 %v11104, %v23
  %v11169 = vmul.f32 %v11105, %v23
  %v11170 = vmul.f32 %v11106, %v23
  %v11171 = vmul.f32 %v11107, %v23
  %v11172 = vmul.f32 %v11108, %v23
  %v11173 = vmul.f32 %v11109, %v23
  %v11174 = vmul.f32 %v11110, %v23
  %v11175 = vmul.f32 %v11111, %v23
  %v11176 = vmul.f32 %v11112, %v23
  %v11177 = vmul.f32 %v11113, %v23
  %v11178 = vmul.f32 %v11114, %v23
  %v11179 = vmul.f32 %v11115, %v23
  %v11180 = vmul.f32 %v11116, %v23
  %v11181 = vmul.f32 %v11117, %v23
  %v11182 = vmul.f32 %v11118, %v23
  %v11183 = vmul.f32 %v11119, %v23
  %v11184 = vmul.f32 %v11120, %v23
  %v11185 = vmul.f32 %v11121, %v23
  %v11186 = vmul.f32 %v11122, %v23
  %v11187 = vmul.f32 %v11123, %v23
  %v11188 = vmul.f32 %v11124, %v23
  %v11189 = vmul.f32 %v11125, %v23
  %v11190 = vmul.f32 %v11126, %v23
  %v11191 = vmul.f32 %v11127, %v23
  %v11192 = vmul.f32 %v11128, %v23
  %v11193 = vmul.f32 %v11129, %v23
  %v11194 = vmul.f32 %v11130, %v23
  %v11195 = vmul.f32 %v11131, %v23
  %v11196 = vmul.f32 %v11132, %v23
  %v11197 = vmul.f32 %v11133, %v23
  %v11198 = vmul.f32 %v11134, %v23
  %v11199 = vmul.f32 %v11135, %v23
  %v11200 = vmul.f32 %v11136, %v23
  %v11201 = vmul.f32 %v11137, %v23
  %v11202 = vmul.f32 %v11138, %v23
  %v11203 = vmul.f32 %v11139, %v23
  %v11204 = vmul.f32 %v11140, %v23
  %v11205 = vmul.f32 %v11141, %v23
  %v11206 = vmul.f32 %v11142, %v23
  %v11207 = vmul.f32 %v11143, %v23
  %v11208 = vmul.f32 %v11144, %v23
  %v11209 = vmul.f32 %v11145, %v23
  %v11210 = vmul.f32 %v11146, %v23
  %v11211 = vmul.f32 %v11147, %v23
  %v11212 = vmul.f32 %v11148, %v23
  %v11213 = vmul.f32 %v11149, %v23
  %v11214 = vmul.f32 %v11150, %v23
  %v11215 = vmul.f32 %v11151, %v23
  %v11216 = vmul.f32 %v11152, %v23
  %v11217 = vmul.f32 %v11153, %v23
  %v11218 = vmul.f32 %v11154, %v23
  %v11219 = vmul.f32 %v11155, %v23
  %v11220 = vmul.f32 %v11156, %v23
  %v11221 = vmul.f32 %v11157, %v23
  %v11222 = vmul.f32 %v11158, %v23
  %v11223 = vmul.f32 %v11159, %v23
  %v11224 = vmul.f32 %v11160, %v23
  %v11225 = vmul.f32 %v11161, %v23
  %v11226 = vadd.f32 %v11162, %v27
  %v11227 = vadd.f32 %v11163, %v27
  %v11228 = vadd.f32 %v11164, %v27
  %v11229 = vadd.f32 %v11165, %v27
  %v11230 = vadd.f32 %v11166, %v27
  %v11231 = vadd.f32 %v11167, %v27
  %v11232 = vadd.f32 %v11168, %v27
  %v11233 = vadd.f32 %v11169, %v27
  %v11234 = vadd.f32 %v11170, %v27
  %v11235 = vadd.f32 %v11171, %v27
  %v11236 = vadd.f32 %v11172, %v27
  %v11237 = vadd.f32 %v11173, %v27
  %v11238 = vadd.f32 %v11174, %v27
  %v11239 = vadd.f32 %v11175, %v27
  %v11240 = vadd.f32 %v11176, %v27
  %v11241 = vadd.f32 %v11177, %v27
  %v11242 = vadd.f32 %v11178, %v27
  %v11243 = vadd.f32 %v11179, %v27
  %v11244 = vadd.f32 %v11180, %v27
  %v11245 = vadd.f32 %v11181, %v27
  %v11246 = vadd.f32 %v11182, %v27
  %v11247 = vadd.f32 %v11183, %v27
  %v11248 = vadd.f32 %v11184, %v27
  %v11249 = vadd.f32 %v11185, %v27
  %v11250 = vadd.f32 %v11186, %v27
  %v11251 = vadd.f32 %v11187, %v27
  %v11252 = vadd.f32 %v11188, %v27
  %v11253 = vadd.f32 %v11189, %v27
  %v11254 = vadd.f32 %v11190, %v27
  %v11255 = vadd.f32 %v11191, %v27
  %v11256 = vadd.f32 %v11192, %v27
  %v11257 = vadd.f32 %v11193, %v27
  %v11258 = vadd.f32 %v11194, %v27
  %v11259 = vadd.f32 %v11195, %v27
  %v11260 = vadd.f32 %v11196, %v27
  %v11261 = vadd.f32 %v11197, %v27
  %v11262 = vadd.f32 %v11198, %v27
  %v11263 = vadd.f32 %v11199, %v27
  %v11264 = vadd.f32 %v11200, %v27
  %v11265 = vadd.f32 %v11201, %v27
  %v11266 = vadd.f32 %v11202, %v27
  %v11267 = vadd.f32 %v11203, %v27
  %v11268 = vadd.f32 %v11204, %v27
  %v11269 = vadd.f32 %v11205, %v27
  %v11270 = vadd.f32 %v11206, %v27
  %v11271 = vadd.f32 %v11207, %v27
  %v11272 = vadd.f32 %v11208, %v27
  %v11273 = vadd.f32 %v11209, %v27
  %v11274 = vadd.f32 %v11210, %v27
  %v11275 = vadd.f32 %v11211, %v27
  %v11276 = vadd.f32 %v11212, %v27
  %v11277 = vadd.f32 %v11213, %v27
  %v11278 = vadd.f32 %v11214, %v27
  %v11279 = vadd.f32 %v11215, %v27
  %v11280 = vadd.f32 %v11216, %v27
  %v11281 = vadd.f32 %v11217, %v27
  %v11282 = vadd.f32 %v11218, %v27
  %v11283 = vadd.f32 %v11219, %v27
  %v11284 = vadd.f32 %v11220, %v27
  %v11285 = vadd.f32 %v11221, %v27
  %v11286 = vadd.f32 %v11222, %v27
  %v11287 = vadd.f32 %v11223, %v27
  %v11288 = vadd.f32 %v11224, %v27
  %v11289 = vadd.f32 %v11225, %v27
  %v11290 = vld [vmem:[%s0 + $0x18] sm:$0xff]
  %v11291 = vld [vmem:[%s0 + $0x20] sm:$0xff]
  %v11292 = vld [vmem:[%s0 + $0x28] sm:$0xff]
  %v11293 = vld [vmem:[%s0 + $0x30] sm:$0xff]
  %v11294 = vld [vmem:[%s0 + $0x38] sm:$0xff]
  %v11295 = vld [vmem:[%s0 + $0x40] sm:$0xff]
  %v11296 = vld [vmem:[%s0 + $0x48] sm:$0xff]
  %v11297 = vld [vmem:[%s0 + $0x50] sm:$0xff]
  %v11298 = vld [vmem:[%s0 + $0x58] sm:$0xff]
  %v11299 = vld [vmem:[%s0 + $0x60] sm:$0xff]
  %v11300 = vld [vmem:[%s0 + $0x68] sm:$0xff]
  %v11301 = vld [vmem:[%s0 + $0x70] sm:$0xff]
  %v11302 = vld [vmem:[%s0 + $0x78] sm:$0xff]
  %v11303 = vld [vmem:[%s0 + $0x80] sm:$0xff]
  %v11304 = vld [vmem:[%s0 + $0x88] sm:$0xff]
  %v11305 = vld [vmem:[%s0 + $0x90] sm:$0xff]
  %v11306 = vld [vmem:[%s0 + $0x98] sm:$0xff]
  %v11307 = vld [vmem:[%s0 + $0xa0] sm:$0xff]
  %v11308 = vld [vmem:[%s0 + $0xa8] sm:$0xff]
  %v11309 = vld [vmem:[%s0 + $0xb0] sm:$0xff]
  %v11310 = vld [vmem:[%s0 + $0xb8] sm:$0xff]
  %v11311 = vld [vmem:[%s0 + $0xc0] sm:$0xff]
  %v11312 = vld [vmem:[%s0 + $0xc8] sm:$0xff]
  %v11313 = vld [vmem:[%s0 + $0xd0] sm:$0xff]
  %v11314 = vld [vmem:[%s0 + $0xd8] sm:$0xff]
  %v11315 = vld [vmem:[%s0 + $0xe0] sm:$0xff]
  %v11316 = vld [vmem:[%s0 + $0xe8] sm:$0xff]
  %v11317 = vld [vmem:[%s0 + $0xf0] sm:$0xff]
  %v11318 = vld [vmem:[%s0 + $0xf8] sm:$0xff]
  %v11319 = vld [vmem:[%s0 + $0x100] sm:$0xff]
  %v11320 = vld [vmem:[%s0 + $0x108] sm:$0xff]
  %v11321 = vld [vmem:[%s0 + $0x110] sm:$0xff]
  %v11322 = vld [vmem:[%s0 + $0x118] sm:$0xff]
  %v11323 = vld [vmem:[%s0 + $0x120] sm:$0xff]
  %v11324 = vld [vmem:[%s0 + $0x128] sm:$0xff]
  %v11325 = vld [vmem:[%s0 + $0x130] sm:$0xff]
  %v11326 = vld [vmem:[%s0 + $0x138] sm:$0xff]
  %v11327 = vld [vmem:[%s0 + $0x140] sm:$0xff]
  %v11328 = vld [vmem:[%s0 + $0x148] sm:$0xff]
  %v11329 = vld [vmem:[%s0 + $0x150] sm:$0xff]
  %v11330 = vld [vmem:[%s0 + $0x158] sm:$0xff]
  %v11331 = vld [vmem:[%s0 + $0x160] sm:$0xff]
  %v11332 = vld [vmem:[%s0 + $0x168] sm:$0xff]
  %v11333 = vld [vmem:[%s0 + $0x170] sm:$0xff]
  %v11334 = vld [vmem:[%s0 + $0x178] sm:$0xff]
  %v11335 = vld [vmem:[%s0 + $0x180] sm:$0xff]
  %v11336 = vld [vmem:[%s0 + $0x188] sm:$0xff]
  %v11337 = vld [vmem:[%s0 + $0x190] sm:$0xff]
  %v11338 = vld [vmem:[%s0 + $0x198] sm:$0xff]
  %v11339 = vld [vmem:[%s0 + $0x1a0] sm:$0xff]
  %v11340 = vld [vmem:[%s0 + $0x1a8] sm:$0xff]
  %v11341 = vld [vmem:[%s0 + $0x1b0] sm:$0xff]
  %v11342 = vld [vmem:[%s0 + $0x1b8] sm:$0xff]
  %v11343 = vld [vmem:[%s0 + $0x1c0] sm:$0xff]
  %v11344 = vld [vmem:[%s0 + $0x1c8] sm:$0xff]
  %v11345 = vld [vmem:[%s0 + $0x1d0] sm:$0xff]
  %v11346 = vld [vmem:[%s0 + $0x1d8] sm:$0xff]
  %v11347 = vld [vmem:[%s0 + $0x1e0] sm:$0xff]
  %v11348 = vld [vmem:[%s0 + $0x1e8] sm:$0xff]
  %v11349 = vld [vmem:[%s0 + $0x1f0] sm:$0xff]
  %v11350 = vld [vmem:[%s0 + $0x1f8] sm:$0xff]
  %v11351 = vld [vmem:[%s0 + $0x200] sm:$0xff]
  %v11352 = vld [vmem:[%s0 + $0x208] sm:$0xff]
  %v11353 = vld [vmem:[%s0 + $0x210] sm:$0xff]
  %v11354 = vadd.f32 %v11226, %v11290
  %v11355 = vadd.f32 %v11227, %v11291
  %v11356 = vadd.f32 %v11228, %v11292
  %v11357 = vadd.f32 %v11229, %v11293
  %v11358 = vadd.f32 %v11230, %v11294
  %v11359 = vadd.f32 %v11231, %v11295
  %v11360 = vadd.f32 %v11232, %v11296
  %v11361 = vadd.f32 %v11233, %v11297
  %v11362 = vadd.f32 %v11234, %v11298
  %v11363 = vadd.f32 %v11235, %v11299
  %v11364 = vadd.f32 %v11236, %v11300
  %v11365 = vadd.f32 %v11237, %v11301
  %v11366 = vadd.f32 %v11238, %v11302
  %v11367 = vadd.f32 %v11239, %v11303
  %v11368 = vadd.f32 %v11240, %v11304
  %v11369 = vadd.f32 %v11241, %v11305
  %v11370 = vadd.f32 %v11242, %v11306
  %v11371 = vadd.f32 %v11243, %v11307
  %v11372 = vadd.f32 %v11244, %v11308
  %v11373 = vadd.f32 %v11245, %v11309
  %v11374 = vadd.f32 %v11246, %v11310
  %v11375 = vadd.f32 %v11247, %v11311
  %v11376 = vadd.f32 %v11248, %v11312
  %v11377 = vadd.f32 %v11249, %v11313
  %v11378 = vadd.f32 %v11250, %v11314
  %v11379 = vadd.f32 %v11251, %v11315
  %v11380 = vadd.f32 %v11252, %v11316
  %v11381 = vadd.f32 %v11253, %v11317
  %v11382 = vadd.f32 %v11254, %v11318
  %v11383 = vadd.f32 %v11255, %v11319
  %v11384 = vadd.f32 %v11256, %v11320
  %v11385 = vadd.f32 %v11257, %v11321
  %v11386 = vadd.f32 %v11258, %v11322
  %v11387 = vadd.f32 %v11259, %v11323
  %v11388 = vadd.f32 %v11260, %v11324
  %v11389 = vadd.f32 %v11261, %v11325
  %v11390 = vadd.f32 %v11262, %v11326
  %v11391 = vadd.f32 %v11263, %v11327
  %v11392 = vadd.f32 %v11264, %v11328
  %v11393 = vadd.f32 %v11265, %v11329
  %v11394 = vadd.f32 %v11266, %v11330
  %v11395 = vadd.f32 %v11267, %v11331
  %v11396 = vadd.f32 %v11268, %v11332
  %v11397 = vadd.f32 %v11269, %v11333
  %v11398 = vadd.f32 %v11270, %v11334
  %v11399 = vadd.f32 %v11271, %v11335
  %v11400 = vadd.f32 %v11272, %v11336
  %v11401 = vadd.f32 %v11273, %v11337
  %v11402 = vadd.f32 %v11274, %v11338
  %v11403 = vadd.f32 %v11275, %v11339
  %v11404 = vadd.f32 %v11276, %v11340
  %v11405 = vadd.f32 %v11277, %v11341
  %v11406 = vadd.f32 %v11278, %v11342
  %v11407 = vadd.f32 %v11279, %v11343
  %v11408 = vadd.f32 %v11280, %v11344
  %v11409 = vadd.f32 %v11281, %v11345
  %v11410 = vadd.f32 %v11282, %v11346
  %v11411 = vadd.f32 %v11283, %v11347
  %v11412 = vadd.f32 %v11284, %v11348
  %v11413 = vadd.f32 %v11285, %v11349
  %v11414 = vadd.f32 %v11286, %v11350
  %v11415 = vadd.f32 %v11287, %v11351
  %v11416 = vadd.f32 %v11288, %v11352
  %v11417 = vadd.f32 %v11289, %v11353
  %v11418 = vmax.f32 %v11354, 0.0
  %v11419 = vmax.f32 %v11355, 0.0
  %v11420 = vmax.f32 %v11356, 0.0
  %v11421 = vmax.f32 %v11357, 0.0
  %v11422 = vmax.f32 %v11358, 0.0
  %v11423 = vmax.f32 %v11359, 0.0
  %v11424 = vmax.f32 %v11360, 0.0
  %v11425 = vmax.f32 %v11361, 0.0
  %v11426 = vmax.f32 %v11362, 0.0
  %v11427 = vmax.f32 %v11363, 0.0
  %v11428 = vmax.f32 %v11364, 0.0
  %v11429 = vmax.f32 %v11365, 0.0
  %v11430 = vmax.f32 %v11366, 0.0
  %v11431 = vmax.f32 %v11367, 0.0
  %v11432 = vmax.f32 %v11368, 0.0
  %v11433 = vmax.f32 %v11369, 0.0
  %v11434 = vmax.f32 %v11370, 0.0
  %v11435 = vmax.f32 %v11371, 0.0
  %v11436 = vmax.f32 %v11372, 0.0
  %v11437 = vmax.f32 %v11373, 0.0
  %v11438 = vmax.f32 %v11374, 0.0
  %v11439 = vmax.f32 %v11375, 0.0
  %v11440 = vmax.f32 %v11376, 0.0
  %v11441 = vmax.f32 %v11377, 0.0
  %v11442 = vmax.f32 %v11378, 0.0
  %v11443 = vmax.f32 %v11379, 0.0
  %v11444 = vmax.f32 %v11380, 0.0
  %v11445 = vmax.f32 %v11381, 0.0
  %v11446 = vmax.f32 %v11382, 0.0
  %v11447 = vmax.f32 %v11383, 0.0
  %v11448 = vmax.f32 %v11384, 0.0
  %v11449 = vmax.f32 %v11385, 0.0
  %v11450 = vmax.f32 %v11386, 0.0
  %v11451 = vmax.f32 %v11387, 0.0
  %v11452 = vmax.f32 %v11388, 0.0
  %v11453 = vmax.f32 %v11389, 0.0
  %v11454 = vmax.f32 %v11390, 0.0
  %v11455 = vmax.f32 %v11391, 0.0
  %v11456 = vmax.f32 %v11392, 0.0
  %v11457 = vmax.f32 %v11393, 0.0
  %v11458 = vmax.f32 %v11394, 0.0
  %v11459 = vmax.f32 %v11395, 0.0
  %v11460 = vmax.f32 %v11396, 0.0
  %v11461 = vmax.f32 %v11397, 0.0
  %v11462 = vmax.f32 %v11398, 0.0
  %v11463 = vmax.f32 %v11399, 0.0
  %v11464 = vmax.f32 %v11400, 0.0
  %v11465 = vmax.f32 %v11401, 0.0
  %v11466 = vmax.f32 %v11402, 0.0
  %v11467 = vmax.f32 %v11403, 0.0
  %v11468 = vmax.f32 %v11404, 0.0
  %v11469 = vmax.f32 %v11405, 0.0
  %v11470 = vmax.f32 %v11406, 0.0
  %v11471 = vmax.f32 %v11407, 0.0
  %v11472 = vmax.f32 %v11408, 0.0
  %v11473 = vmax.f32 %v11409, 0.0
  %v11474 = vmax.f32 %v11410, 0.0
  %v11475 = vmax.f32 %v11411, 0.0
  %v11476 = vmax.f32 %v11412, 0.0
  %v11477 = vmax.f32 %v11413, 0.0
  %v11478 = vmax.f32 %v11414, 0.0
  %v11479 = vmax.f32 %v11415, 0.0
  %v11480 = vmax.f32 %v11416, 0.0
  %v11481 = vmax.f32 %v11417, 0.0
  %11482 = vst.msk [vmem:[%s5] sm:$0xff] %vm2145, %v11418
  %11483 = vst.msk [vmem:[%s5 + $0x8] sm:$0xff] %vm2145, %v11419
  %11484 = vst.msk [vmem:[%s5 + $0x10] sm:$0xff] %vm2145, %v11420
  %11485 = vst.msk [vmem:[%s5 + $0x18] sm:$0xff] %vm2145, %v11421
  %11486 = vst.msk [vmem:[%s5 + $0x20] sm:$0xff] %vm2145, %v11422
  %11487 = vst.msk [vmem:[%s5 + $0x28] sm:$0xff] %vm2145, %v11423
  %11488 = vst.msk [vmem:[%s5 + $0x30] sm:$0xff] %vm2145, %v11424
  %11489 = vst.msk [vmem:[%s5 + $0x38] sm:$0xff] %vm2145, %v11425
  %11490 = vst.msk [vmem:[%s5 + $0x40] sm:$0xff] %vm2145, %v11426
  %11491 = vst.msk [vmem:[%s5 + $0x48] sm:$0xff] %vm2145, %v11427
  %11492 = vst.msk [vmem:[%s5 + $0x50] sm:$0xff] %vm2145, %v11428
  %11493 = vst.msk [vmem:[%s5 + $0x58] sm:$0xff] %vm2145, %v11429
  %11494 = vst.msk [vmem:[%s5 + $0x60] sm:$0xff] %vm2145, %v11430
  %11495 = vst.msk [vmem:[%s5 + $0x68] sm:$0xff] %vm2145, %v11431
  %11496 = vst.msk [vmem:[%s5 + $0x70] sm:$0xff] %vm2145, %v11432
  %11497 = vst.msk [vmem:[%s5 + $0x78] sm:$0xff] %vm2145, %v11433
  %11498 = vst.msk [vmem:[%s5 + $0x80] sm:$0xff] %vm2145, %v11434
  %11499 = vst.msk [vmem:[%s5 + $0x88] sm:$0xff] %vm2145, %v11435
  %11500 = vst.msk [vmem:[%s5 + $0x90] sm:$0xff] %vm2145, %v11436
  %11501 = vst.msk [vmem:[%s5 + $0x98] sm:$0xff] %vm2145, %v11437
  %11502 = vst.msk [vmem:[%s5 + $0xa0] sm:$0xff] %vm2145, %v11438
  %11503 = vst.msk [vmem:[%s5 + $0xa8] sm:$0xff] %vm2145, %v11439
  %11504 = vst.msk [vmem:[%s5 + $0xb0] sm:$0xff] %vm2145, %v11440
  %11505 = vst.msk [vmem:[%s5 + $0xb8] sm:$0xff] %vm2145, %v11441
  %11506 = vst.msk [vmem:[%s5 + $0xc0] sm:$0xff] %vm2145, %v11442
  %11507 = vst.msk [vmem:[%s5 + $0xc8] sm:$0xff] %vm2145, %v11443
  %11508 = vst.msk [vmem:[%s5 + $0xd0] sm:$0xff] %vm2145, %v11444
  %11509 = vst.msk [vmem:[%s5 + $0xd8] sm:$0xff] %vm2145, %v11445
  %11510 = vst.msk [vmem:[%s5 + $0xe0] sm:$0xff] %vm2145, %v11446
  %11511 = vst.msk [vmem:[%s5 + $0xe8] sm:$0xff] %vm2145, %v11447
  %11512 = vst.msk [vmem:[%s5 + $0xf0] sm:$0xff] %vm2145, %v11448
  %11513 = vst.msk [vmem:[%s5 + $0xf8] sm:$0xff] %vm2145, %v11449
  %11514 = vst.msk [vmem:[%s5 + $0x100] sm:$0xff] %vm2145, %v11450
  %11515 = vst.msk [vmem:[%s5 + $0x108] sm:$0xff] %vm2145, %v11451
  %11516 = vst.msk [vmem:[%s5 + $0x110] sm:$0xff] %vm2145, %v11452
  %11517 = vst.msk [vmem:[%s5 + $0x118] sm:$0xff] %vm2145, %v11453
  %11518 = vst.msk [vmem:[%s5 + $0x120] sm:$0xff] %vm2145, %v11454
  %11519 = vst.msk [vmem:[%s5 + $0x128] sm:$0xff] %vm2145, %v11455
  %11520 = vst.msk [vmem:[%s5 + $0x130] sm:$0xff] %vm2145, %v11456
  %11521 = vst.msk [vmem:[%s5 + $0x138] sm:$0xff] %vm2145, %v11457
  %11522 = vst.msk [vmem:[%s5 + $0x140] sm:$0xff] %vm2145, %v11458
  %11523 = vst.msk [vmem:[%s5 + $0x148] sm:$0xff] %vm2145, %v11459
  %11524 = vst.msk [vmem:[%s5 + $0x150] sm:$0xff] %vm2145, %v11460
  %11525 = vst.msk [vmem:[%s5 + $0x158] sm:$0xff] %vm2145, %v11461
  %11526 = vst.msk [vmem:[%s5 + $0x160] sm:$0xff] %vm2145, %v11462
  %11527 = vst.msk [vmem:[%s5 + $0x168] sm:$0xff] %vm2145, %v11463
  %11528 = vst.msk [vmem:[%s5 + $0x170] sm:$0xff] %vm2145, %v11464
  %11529 = vst.msk [vmem:[%s5 + $0x178] sm:$0xff] %vm2145, %v11465
  %11530 = vst.msk [vmem:[%s5 + $0x180] sm:$0xff] %vm2145, %v11466
  %11531 = vst.msk [vmem:[%s5 + $0x188] sm:$0xff] %vm2145, %v11467
  %11532 = vst.msk [vmem:[%s5 + $0x190] sm:$0xff] %vm2145, %v11468
  %11533 = vst.msk [vmem:[%s5 + $0x198] sm:$0xff] %vm2145, %v11469
  %11534 = vst.msk [vmem:[%s5 + $0x1a0] sm:$0xff] %vm2145, %v11470
  %11535 = vst.msk [vmem:[%s5 + $0x1a8] sm:$0xff] %vm2145, %v11471
  %11536 = vst.msk [vmem:[%s5 + $0x1b0] sm:$0xff] %vm2145, %v11472
  %11537 = vst.msk [vmem:[%s5 + $0x1b8] sm:$0xff] %vm2145, %v11473
  %11538 = vst.msk [vmem:[%s5 + $0x1c0] sm:$0xff] %vm2145, %v11474
  %11539 = vst.msk [vmem:[%s5 + $0x1c8] sm:$0xff] %vm2145, %v11475
  %11540 = vst.msk [vmem:[%s5 + $0x1d0] sm:$0xff] %vm2145, %v11476
  %11541 = vst.msk [vmem:[%s5 + $0x1d8] sm:$0xff] %vm2145, %v11477
  %11542 = vst.msk [vmem:[%s5 + $0x1e0] sm:$0xff] %vm2145, %v11478
  %11543 = vst.msk [vmem:[%s5 + $0x1e8] sm:$0xff] %vm2145, %v11479
  %11544 = vst.msk [vmem:[%s5 + $0x1f0] sm:$0xff] %vm2145, %v11480
  %11545 = vst.msk [vmem:[%s5 + $0x1f8] sm:$0xff] %vm2145, %v11481
  // Predicated region
  $region22: #{tpu_custom_call.1} parent=0 // pred_check
    _
  $region23: #{tpu_custom_call.1} parent=0 // pred_check_branch
    %11547 = sbr.rel (0) target = $region25
  $region24: #{tpu_custom_call.1} parent=0 // pred_region
    _
  $region25: #{tpu_custom_call.1} parent=0 // pred_fallthru
    _
  // Predicated region
  $region26: #{tpu_custom_call.1} parent=0 // pred_check
    _
  $region27: #{tpu_custom_call.1} parent=0 // pred_check_branch
    %11549 = sbr.rel (0) target = $region29
  $region28: #{tpu_custom_call.1} parent=0 // pred_region
    _
  $region29: #{tpu_custom_call.1} parent=0 // pred_fallthru
    _

</llo_original>
